<compile_context>
chip_gen: v5e
topology: v5e:2x2
jax: 0.10.0
libtpu: 0.0.40
codegen_flags: <defaults>
</compile_context>

<pallas_src>
import numpy as np
import jax
import jax.numpy as jnp
from jax import lax
from jax.experimental import pallas as pl
from jax.experimental.pallas import tpu as pltpu

D_MODEL = 256          # d_model (module default)
N_HEAD = 8             # nhead
HEAD_DIM = D_MODEL // N_HEAD
D_FF = 2 * D_MODEL     # dim_feedforward = d_model * 2
N_LAYERS = 3           # num_decoder_layers
LN_EPS = 1e-5          # nn.LayerNorm default
# dropout_rate=0.15 is identity in eval mode (no-op here).


def _layer_norm(v, w, b):
    # one-pass variance: E[x^2] - mu^2 (one cross-lane reduction fewer)
    mu = jnp.mean(v, axis=-1, keepdims=True)
    var = jnp.mean(v * v, axis=-1, keepdims=True) - mu * mu
    return (v - mu) * lax.rsqrt(var + LN_EPS) * w + b


def decoder_kernel(
    x_ref,
    sa_in_wt, sa_in_b, sa_out_wt, sa_out_b,
    ca_row,
    ff1_wt, ff1_b, ff2_wt, ff2_b,
    ln1_w, ln1_b, ln2_w, ln2_b, ln3_w, ln3_b,
    out_ref,
):
    f32, bf16 = jnp.float32, jnp.bfloat16
    TB, S, D = x_ref.shape
    M = TB * S

    tgt = x_ref[...].astype(f32).reshape(M, D)         # (M, D) residual stream, f32

    for l in range(N_LAYERS):                           # static unroll, weights VMEM-resident
        # ---------------- self-attention -----------------------------------
        # Single fused QKV matmul (q scale pre-folded into weights/bias).
        x_b = tgt.astype(bf16)
        qkv = jnp.dot(x_b, sa_in_wt[l], preferred_element_type=f32) + sa_in_b[l]
        q = qkv[:, :D_MODEL].reshape(TB, S, D_MODEL)
        k = qkv[:, D_MODEL:2 * D_MODEL].reshape(TB, S, D_MODEL)
        v = qkv[:, 2 * D_MODEL:].reshape(TB, S, D_MODEL)

        heads = []
        for h in range(N_HEAD):                         # per head, batched over TB
            sl = slice(h * HEAD_DIM, (h + 1) * HEAD_DIM)
            qh = q[:, :, sl].astype(bf16)
            kh = k[:, :, sl].astype(bf16)
            vh = v[:, :, sl].astype(bf16)
            s = jnp.einsum('bqd,bkd->bqk', qh, kh, preferred_element_type=f32)
            m = jnp.max(s, axis=-1, keepdims=True)
            e = jnp.exp(s - m)
            p = e * pl.reciprocal(jnp.sum(e, axis=-1, keepdims=True), approx=True)
            heads.append(jnp.einsum('bqk,bkd->bqd', p.astype(bf16), vh,
                                    preferred_element_type=f32))
        attn = jnp.concatenate(heads, axis=-1).reshape(M, D_MODEL)
        # Single full-width out-projection.
        sa = jnp.dot(attn.astype(bf16), sa_out_wt[l],
                     preferred_element_type=f32) + sa_out_b[l]
        tgt = _layer_norm(tgt + sa, ln1_w[l], ln1_b[l])

        # -------- cross-attn vs. zero memory == constant (1, D) row ---------
        tgt = _layer_norm(tgt + ca_row[l], ln2_w[l], ln2_b[l])

        # ---------------- feed-forward (ReLU) -------------------------------
        x_b = tgt.astype(bf16)
        h1 = jnp.maximum(jnp.dot(x_b, ff1_wt[l],
                                 preferred_element_type=f32) + ff1_b[l], 0.0)
        ff = jnp.dot(h1.astype(bf16), ff2_wt[l],
                     preferred_element_type=f32) + ff2_b[l]
        tgt = _layer_norm(tgt + ff, ln3_w[l], ln3_b[l])

    out_ref[...] = tgt.reshape(TB, S, D).astype(out_ref.dtype)   # lane-dense bf16


def prepare_params(params):
    """One-time host-side weight prep (hoisted out of the per-call path)."""
    (sa_in_wt, sa_in_b, sa_out_wt, sa_out_b,
     ca_in_wt, ca_in_b, ca_out_wt, ca_out_b,
     ff1_wt, ff1_b, ff2_wt, ff2_b,
     ln1_w, ln1_b, ln2_w, ln2_b, ln3_w, ln3_b,
     zpi_wt, zpi_b) = params

    # Fold 1/sqrt(head_dim) into the q slice of the self-attn in-projection.
    scale = 1.0 / float(np.sqrt(HEAD_DIM))
    sa_in_wt = sa_in_wt.at[:, :, :D_MODEL].multiply(scale)
    sa_in_b = sa_in_b.at[:, :, :D_MODEL].multiply(scale)

    # Cross-attention with memory = zeros collapses to a constant per-layer row:
    #   K = V = bias rows -> uniform softmax -> out = b_v @ W_o + b_o.
    b_v = ca_in_b[:, :, 2 * D_MODEL:]                                 # (L, 1, D)
    ca_row = jnp.einsum('lod,lde->loe', b_v, ca_out_wt) + ca_out_b    # (L, 1, D) f32

    bf = lambda a: a.astype(jnp.bfloat16)
    kernel_params = (
        bf(sa_in_wt), sa_in_b, bf(sa_out_wt), sa_out_b,
        ca_row,
        bf(ff1_wt), ff1_b, bf(ff2_wt), ff2_b,
        ln1_w, ln1_b, ln2_w, ln2_b, ln3_w, ln3_b,
    )
    return kernel_params, zpi_wt, zpi_b


def combine_decoder(x_dense, prepped):
    """x_dense: (B, S, D_MODEL) dense-batched node features. Returns (B, S, 1) probs."""
    kernel_params, zpi_wt, zpi_b = prepped
    B, S, D = x_dense.shape
    assert D == D_MODEL

    # Batch-tile so each grid step sees M = TB*S ~ 256 rows (MXU full width on
    # v6e/v7x, >=128 on v5e).  grid >= 2 falls out naturally for large B,
    # letting dimension_semantics=("parallel",) feed both v7x TensorCores.
    TB = max(1, min(B, 256 // max(S, 1)))
    n_blocks = pl.cdiv(B, TB)
    B_pad = n_blocks * TB
    if B_pad != B:
        x_dense = jnp.pad(x_dense, ((0, B_pad - B), (0, 0), (0, 0)))

    def const_spec(arr):
        nd = arr.ndim
        # Block index never changes across the grid -> fetched from HBM once.
        # TODO(synk): on v7x, pipeline_mode=pl.Buffered(1) would halve the
        # weight VMEM; not needed here (~7 MB total vs the 32 MiB limit).
        return pl.BlockSpec(arr.shape, lambda b, _nd=nd: (0,) * _nd)

    in_specs = [pl.BlockSpec((TB, S, D), lambda b: (b, 0, 0))]
    in_specs += [const_spec(a) for a in kernel_params]
    out_specs = pl.BlockSpec((TB, S, D), lambda b: (b, 0, 0))

    grid_spec = pltpu.PrefetchScalarGridSpec(
        num_scalar_prefetch=0,
        grid=(n_blocks,),
        in_specs=in_specs,
        out_specs=out_specs,
    )

    dec = pl.pallas_call(
        decoder_kernel,
        out_shape=jax.ShapeDtypeStruct((B_pad, S, D), jnp.bfloat16),
        grid_spec=grid_spec,
        compiler_params=pltpu.CompilerParams(
            dimension_semantics=("parallel",),
            vmem_limit_bytes=32 * 1024 * 1024,        # legal on v5e/v6e/v7x
        ),
    )(x_dense, *kernel_params)

    dec = dec[:B].astype(jnp.float32)

    # z_pi Linear (degenerate N=1 matmul) + sigmoid in plain XLA: keeps the
    # Pallas output lane-dense and avoids 1-wide masked stores in the kernel.
    logits = jnp.einsum('bsd,de->bse', dec, zpi_wt) + zpi_b[0]
    return jax.nn.sigmoid(logits)


def init_params(key):
    """Deterministic synthetic parameters; weights stored pre-transposed (x @ W)."""
    ks = jax.random.split(key, 20)

    def nrm(k, shape, s=0.05):
        return s * jax.random.normal(k, shape, jnp.float32)

    L, D, DF = N_LAYERS, D_MODEL, D_FF
    return (
        nrm(ks[0], (L, D, 3 * D)),  nrm(ks[1], (L, 1, 3 * D)),   # self-attn in_proj
        nrm(ks[2], (L, D, D)),      nrm(ks[3], (L, 1, D)),       # self-attn out_proj
        nrm(ks[4], (L, D, 3 * D)),  nrm(ks[5], (L, 1, 3 * D)),   # cross-attn in_proj
        nrm(ks[6], (L, D, D)),      nrm(ks[7], (L, 1, D)),       # cross-attn out_proj
        nrm(ks[8], (L, D, DF)),     nrm(ks[9], (L, 1, DF)),      # linear1
        nrm(ks[10], (L, DF, D)),    nrm(ks[11], (L, 1, D)),      # linear2
        1.0 + nrm(ks[12], (L, 1, D)), nrm(ks[13], (L, 1, D)),    # norm1
        1.0 + nrm(ks[14], (L, 1, D)), nrm(ks[15], (L, 1, D)),    # norm2
        1.0 + nrm(ks[16], (L, 1, D)), nrm(ks[17], (L, 1, D)),    # norm3
        nrm(ks[18], (D, 1)),        nrm(ks[19], (1, 1)),         # z_pi
    )


def to_dense_batch(x, batch, B, n_max):
    """torch_geometric.utils.to_dense_batch with fill_value=0 (glue, plain JAX)."""
    n = x.shape[0]
    counts = jnp.bincount(batch, length=B)
    offsets = jnp.concatenate(
        [jnp.zeros((1,), counts.dtype), jnp.cumsum(counts)[:-1]])
    pos = jnp.arange(n) - offsets[batch]
    dense = jnp.zeros((B, n_max, x.shape[1]), x.dtype).at[batch, pos].set(x)
    mask = jnp.zeros((B, n_max), bool).at[batch, pos].set(True)
    return dense, mask


def ref_forward(x_dense, params):
    """Pure-JAX reference of the same math (full cross-attn against zero memory).

    The big weight matrices are rounded through bf16 (same storage the kernel
    uses) so the comparison isolates kernel arithmetic, not quantization."""
    (sa_in_wt, sa_in_b, sa_out_wt, sa_out_b,
     ca_in_wt, ca_in_b, ca_out_wt, ca_out_b,
     ff1_wt, ff1_b, ff2_wt, ff2_b,
     ln1_w, ln1_b, ln2_w, ln2_b, ln3_w, ln3_b,
     zpi_wt, zpi_b) = params
    B, S, D = x_dense.shape
    H, HD = N_HEAD, HEAD_DIM
    scale = 1.0 / np.sqrt(HD)

    q_ = lambda a: a.astype(jnp.bfloat16).astype(jnp.float32)
    sa_in_wt, sa_out_wt = q_(sa_in_wt), q_(sa_out_wt)
    ff1_wt, ff2_wt = q_(ff1_wt), q_(ff2_wt)

    def mha(q_in, kv_in, wt, b, owt, ob):
        q = q_in @ wt[:, :D] + b[0, :D]
        k = kv_in @ wt[:, D:2 * D] + b[0, D:2 * D]
        v = kv_in @ wt[:, 2 * D:] + b[0, 2 * D:]
        split = lambda t: t.reshape(B, S, H, HD).transpose(0, 2, 1, 3)
        qh, kh, vh = split(q) * scale, split(k), split(v)
        s = jnp.einsum('bhqd,bhkd->bhqk', qh, kh)
        p = jax.nn.softmax(s, axis=-1)
        o = jnp.einsum('bhqk,bhkd->bhqd', p, vh)
        o = o.transpose(0, 2, 1, 3).reshape(B, S, D)
        return o @ owt + ob[0]

    def ln(v, w, b):
        mu = jnp.mean(v, axis=-1, keepdims=True)
        var = jnp.mean((v - mu) ** 2, axis=-1, keepdims=True)
        return (v - mu) / jnp.sqrt(var + LN_EPS) * w[0] + b[0]

    tgt = x_dense
    for i in range(N_LAYERS):
        tgt = ln(tgt + mha(tgt, tgt, sa_in_wt[i], sa_in_b[i],
                           sa_out_wt[i], sa_out_b[i]), ln1_w[i], ln1_b[i])
        mem = jnp.zeros_like(tgt)
        tgt = ln(tgt + mha(tgt, mem, ca_in_wt[i], ca_in_b[i],
                           ca_out_wt[i], ca_out_b[i]), ln2_w[i], ln2_b[i])
        h1 = jax.nn.relu(tgt @ ff1_wt[i] + ff1_b[i][0])
        tgt = ln(tgt + h1 @ ff2_wt[i] + ff2_b[i][0], ln3_w[i], ln3_b[i])
    return jax.nn.sigmoid(tgt @ zpi_wt + zpi_b[0])


if __name__ == "__main__":
    key = jax.random.PRNGKey(0)
    kp, kx = jax.random.split(key)
    params = init_params(kp)
    prepped = prepare_params(params)          # one-time weight prep (hoisted)

    # TODO(synk): target_model is an external GNN; its output (per-node
    # embeddings + batch vector) is synthesized here instead.
    counts = [8, 5]                           # 2 graphs -> B=2, N_max=8
    batch_vec = jnp.array(sum([[i] * c for i, c in enumerate(counts)], []),
                          jnp.int32)
    nodes = jax.random.normal(kx, (int(sum(counts)), D_MODEL), jnp.float32)

    B, S = len(counts), max(counts)
    dense, mask = to_dense_batch(nodes, batch_vec, B, S)   # (B,S,D), (B,S)

    pi_dense = combine_decoder(dense, prepped)             # (B, S, 1), sigmoid applied
    pi_dense = jax.block_until_ready(pi_dense)

    # pi[t_mask]: boolean gather (dynamic shape) done on host, matching
    # PyTorch's batch-major row order.  (sigmoid commutes with the gather.)
    mask_np = np.asarray(mask)
    pi_out = np.asarray(pi_dense)[mask_np]                 # (num_nodes, 1)

    ref = np.asarray(ref_forward(dense, params))[mask_np]
    np.testing.assert_allclose(pi_out, ref, atol=2e-2, rtol=0)

    print("KERNEL_OK")
</pallas_src>

<mosaic_0001>
module attributes {stable_mosaic.version = 11 : i64} {
  func.func @decoder_kernel(%arg0: i32, %arg1: memref<2x8x256xf32, #tpu.memory_space<vmem>>, %arg2: memref<3x256x768xbf16, #tpu.memory_space<vmem>>, %arg3: memref<3x1x768xf32, #tpu.memory_space<vmem>>, %arg4: memref<3x256x256xbf16, #tpu.memory_space<vmem>>, %arg5: memref<3x1x256xf32, #tpu.memory_space<vmem>>, %arg6: memref<3x1x256xf32, #tpu.memory_space<vmem>>, %arg7: memref<3x256x512xbf16, #tpu.memory_space<vmem>>, %arg8: memref<3x1x512xf32, #tpu.memory_space<vmem>>, %arg9: memref<3x512x256xbf16, #tpu.memory_space<vmem>>, %arg10: memref<3x1x256xf32, #tpu.memory_space<vmem>>, %arg11: memref<3x1x256xf32, #tpu.memory_space<vmem>>, %arg12: memref<3x1x256xf32, #tpu.memory_space<vmem>>, %arg13: memref<3x1x256xf32, #tpu.memory_space<vmem>>, %arg14: memref<3x1x256xf32, #tpu.memory_space<vmem>>, %arg15: memref<3x1x256xf32, #tpu.memory_space<vmem>>, %arg16: memref<3x1x256xf32, #tpu.memory_space<vmem>>, %arg17: memref<2x8x256xbf16, #tpu.memory_space<vmem>>) attributes {dimension_semantics = [#tpu.dimension_semantics<parallel>], iteration_bounds = array<i64: 1>, scalar_prefetch = 0 : i64, scratch_operands = 0 : i64, tpu.core_type = #tpu.core_type<tc>, window_params = [{transform_indices = @transform_0, window_bounds = array<i64: 2, 8, 256>}, {pipeline_mode = #tpu.pipeline_mode<synchronous>, transform_indices = @transform_1, window_bounds = array<i64: 3, 256, 768>}, {pipeline_mode = #tpu.pipeline_mode<synchronous>, transform_indices = @transform_2, window_bounds = array<i64: 3, 1, 768>}, {pipeline_mode = #tpu.pipeline_mode<synchronous>, transform_indices = @transform_3, window_bounds = array<i64: 3, 256, 256>}, {pipeline_mode = #tpu.pipeline_mode<synchronous>, transform_indices = @transform_4, window_bounds = array<i64: 3, 1, 256>}, {pipeline_mode = #tpu.pipeline_mode<synchronous>, transform_indices = @transform_5, window_bounds = array<i64: 3, 1, 256>}, {pipeline_mode = #tpu.pipeline_mode<synchronous>, transform_indices = @transform_6, window_bounds = array<i64: 3, 256, 512>}, {pipeline_mode = #tpu.pipeline_mode<synchronous>, transform_indices = @transform_7, window_bounds = array<i64: 3, 1, 512>}, {pipeline_mode = #tpu.pipeline_mode<synchronous>, transform_indices = @transform_8, window_bounds = array<i64: 3, 512, 256>}, {pipeline_mode = #tpu.pipeline_mode<synchronous>, transform_indices = @transform_9, window_bounds = array<i64: 3, 1, 256>}, {pipeline_mode = #tpu.pipeline_mode<synchronous>, transform_indices = @transform_10, window_bounds = array<i64: 3, 1, 256>}, {pipeline_mode = #tpu.pipeline_mode<synchronous>, transform_indices = @transform_11, window_bounds = array<i64: 3, 1, 256>}, {pipeline_mode = #tpu.pipeline_mode<synchronous>, transform_indices = @transform_12, window_bounds = array<i64: 3, 1, 256>}, {pipeline_mode = #tpu.pipeline_mode<synchronous>, transform_indices = @transform_13, window_bounds = array<i64: 3, 1, 256>}, {pipeline_mode = #tpu.pipeline_mode<synchronous>, transform_indices = @transform_14, window_bounds = array<i64: 3, 1, 256>}, {pipeline_mode = #tpu.pipeline_mode<synchronous>, transform_indices = @transform_15, window_bounds = array<i64: 3, 1, 256>}, {transform_indices = @transform_16, window_bounds = array<i64: 2, 8, 256>}]} {
    %c0 = arith.constant 0 : index
    %c0_0 = arith.constant 0 : index
    %c0_1 = arith.constant 0 : index
    %0 = vector.load %arg1[%c0, %c0_0, %c0_1] : memref<2x8x256xf32, #tpu.memory_space<vmem>>, vector<2x8x256xf32>
    %1 = vector.shape_cast %0 : vector<2x8x256xf32> to vector<16x256xf32>
    %2 = arith.truncf %1 : vector<16x256xf32> to vector<16x256xbf16>
    %c0_2 = arith.constant 0 : index
    %c0_3 = arith.constant 0 : index
    %c0_4 = arith.constant 0 : index
    %3 = vector.load %arg2[%c0_2, %c0_3, %c0_4] : memref<3x256x768xbf16, #tpu.memory_space<vmem>>, vector<1x256x768xbf16>
    %4 = vector.shape_cast %3 : vector<1x256x768xbf16> to vector<256x768xbf16>
    %cst = arith.constant dense<0.000000e+00> : vector<16x768xf32>
    %5 = tpu.matmul %2, %4, %cst {dimension_numbers = #tpu.dot_dimension_numbers<[1], [0], [0], [1], [0, 0, 1, 1], [], []>} : vector<16x256xbf16>, vector<256x768xbf16>, vector<16x768xf32> -> vector<16x768xf32>
    %c0_5 = arith.constant 0 : index
    %c0_6 = arith.constant 0 : index
    %c0_7 = arith.constant 0 : index
    %6 = vector.load %arg3[%c0_5, %c0_6, %c0_7] : memref<3x1x768xf32, #tpu.memory_space<vmem>>, vector<1x1x768xf32>
    %7 = vector.shape_cast %6 : vector<1x1x768xf32> to vector<1x768xf32>
    %8 = vector.broadcast %7 : vector<1x768xf32> to vector<16x768xf32>
    %9 = arith.addf %5, %8 : vector<16x768xf32>
    %10 = vector.extract_strided_slice %9 {offsets = [0, 0], sizes = [16, 256], strides = [1, 1]} : vector<16x768xf32> to vector<16x256xf32>
    %11 = vector.shape_cast %10 : vector<16x256xf32> to vector<2x8x256xf32>
    %12 = vector.extract_strided_slice %9 {offsets = [0, 256], sizes = [16, 256], strides = [1, 1]} : vector<16x768xf32> to vector<16x256xf32>
    %13 = vector.shape_cast %12 : vector<16x256xf32> to vector<2x8x256xf32>
    %14 = vector.extract_strided_slice %9 {offsets = [0, 512], sizes = [16, 256], strides = [1, 1]} : vector<16x768xf32> to vector<16x256xf32>
    %15 = vector.shape_cast %14 : vector<16x256xf32> to vector<2x8x256xf32>
    %16 = vector.extract_strided_slice %11 {offsets = [0, 0, 0], sizes = [2, 8, 32], strides = [1, 1, 1]} : vector<2x8x256xf32> to vector<2x8x32xf32>
    %17 = arith.truncf %16 : vector<2x8x32xf32> to vector<2x8x32xbf16>
    %18 = vector.extract_strided_slice %13 {offsets = [0, 0, 0], sizes = [2, 8, 32], strides = [1, 1, 1]} : vector<2x8x256xf32> to vector<2x8x32xf32>
    %19 = arith.truncf %18 : vector<2x8x32xf32> to vector<2x8x32xbf16>
    %20 = vector.extract_strided_slice %15 {offsets = [0, 0, 0], sizes = [2, 8, 32], strides = [1, 1, 1]} : vector<2x8x256xf32> to vector<2x8x32xf32>
    %21 = arith.truncf %20 : vector<2x8x32xf32> to vector<2x8x32xbf16>
    "tpu.trace_start"() <{level = 10 : i32, message = "bqd,bkd->bqk"}> : () -> ()
    %cst_8 = arith.constant dense<0.000000e+00> : vector<2x8x8xf32>
    %22 = tpu.matmul %17, %19, %cst_8 {dimension_numbers = #tpu.dot_dimension_numbers<[2], [2], [1], [1], [0, 0, 0, 1, 1, 1], [0], [0]>} : vector<2x8x32xbf16>, vector<2x8x32xbf16>, vector<2x8x8xf32> -> vector<2x8x8xf32>
    "tpu.trace_stop"() : () -> ()
    %cst_9 = arith.constant dense<0xFF800000> : vector<2x8xf32>
    %23 = vector.multi_reduction <maximumf>, %22, %cst_9 [2] : vector<2x8x8xf32> to vector<2x8xf32>
    %24 = vector.shape_cast %23 : vector<2x8xf32> to vector<2x8x1xf32>
    %25 = vector.broadcast %24 : vector<2x8x1xf32> to vector<2x8x8xf32>
    %26 = arith.subf %22, %25 : vector<2x8x8xf32>
    %27 = math.exp %26 : vector<2x8x8xf32>
    %cst_10 = arith.constant dense<0.000000e+00> : vector<2x8xf32>
    %28 = vector.multi_reduction <add>, %27, %cst_10 [2] : vector<2x8x8xf32> to vector<2x8xf32>
    %29 = vector.shape_cast %28 : vector<2x8xf32> to vector<2x8x1xf32>
    %30 = tpu.reciprocal %29 {approx = true} : vector<2x8x1xf32> -> vector<2x8x1xf32>
    %31 = vector.broadcast %30 : vector<2x8x1xf32> to vector<2x8x8xf32>
    %32 = arith.mulf %27, %31 : vector<2x8x8xf32>
    %33 = arith.truncf %32 : vector<2x8x8xf32> to vector<2x8x8xbf16>
    "tpu.trace_start"() <{level = 10 : i32, message = "bqk,bkd->bqd"}> : () -> ()
    %cst_11 = arith.constant dense<0.000000e+00> : vector<2x8x32xf32>
    %34 = tpu.matmul %33, %21, %cst_11 {dimension_numbers = #tpu.dot_dimension_numbers<[2], [1], [1], [2], [0, 0, 0, 1, 1, 2], [0], [0]>} : vector<2x8x8xbf16>, vector<2x8x32xbf16>, vector<2x8x32xf32> -> vector<2x8x32xf32>
    "tpu.trace_stop"() : () -> ()
    %35 = vector.extract_strided_slice %11 {offsets = [0, 0, 32], sizes = [2, 8, 32], strides = [1, 1, 1]} : vector<2x8x256xf32> to vector<2x8x32xf32>
    %36 = arith.truncf %35 : vector<2x8x32xf32> to vector<2x8x32xbf16>
    %37 = vector.extract_strided_slice %13 {offsets = [0, 0, 32], sizes = [2, 8, 32], strides = [1, 1, 1]} : vector<2x8x256xf32> to vector<2x8x32xf32>
    %38 = arith.truncf %37 : vector<2x8x32xf32> to vector<2x8x32xbf16>
    %39 = vector.extract_strided_slice %15 {offsets = [0, 0, 32], sizes = [2, 8, 32], strides = [1, 1, 1]} : vector<2x8x256xf32> to vector<2x8x32xf32>
    %40 = arith.truncf %39 : vector<2x8x32xf32> to vector<2x8x32xbf16>
    "tpu.trace_start"() <{level = 10 : i32, message = "bqd,bkd->bqk"}> : () -> ()
    %cst_12 = arith.constant dense<0.000000e+00> : vector<2x8x8xf32>
    %41 = tpu.matmul %36, %38, %cst_12 {dimension_numbers = #tpu.dot_dimension_numbers<[2], [2], [1], [1], [0, 0, 0, 1, 1, 1], [0], [0]>} : vector<2x8x32xbf16>, vector<2x8x32xbf16>, vector<2x8x8xf32> -> vector<2x8x8xf32>
    "tpu.trace_stop"() : () -> ()
    %cst_13 = arith.constant dense<0xFF800000> : vector<2x8xf32>
    %42 = vector.multi_reduction <maximumf>, %41, %cst_13 [2] : vector<2x8x8xf32> to vector<2x8xf32>
    %43 = vector.shape_cast %42 : vector<2x8xf32> to vector<2x8x1xf32>
    %44 = vector.broadcast %43 : vector<2x8x1xf32> to vector<2x8x8xf32>
    %45 = arith.subf %41, %44 : vector<2x8x8xf32>
    %46 = math.exp %45 : vector<2x8x8xf32>
    %cst_14 = arith.constant dense<0.000000e+00> : vector<2x8xf32>
    %47 = vector.multi_reduction <add>, %46, %cst_14 [2] : vector<2x8x8xf32> to vector<2x8xf32>
    %48 = vector.shape_cast %47 : vector<2x8xf32> to vector<2x8x1xf32>
    %49 = tpu.reciprocal %48 {approx = true} : vector<2x8x1xf32> -> vector<2x8x1xf32>
    %50 = vector.broadcast %49 : vector<2x8x1xf32> to vector<2x8x8xf32>
    %51 = arith.mulf %46, %50 : vector<2x8x8xf32>
    %52 = arith.truncf %51 : vector<2x8x8xf32> to vector<2x8x8xbf16>
    "tpu.trace_start"() <{level = 10 : i32, message = "bqk,bkd->bqd"}> : () -> ()
    %cst_15 = arith.constant dense<0.000000e+00> : vector<2x8x32xf32>
    %53 = tpu.matmul %52, %40, %cst_15 {dimension_numbers = #tpu.dot_dimension_numbers<[2], [1], [1], [2], [0, 0, 0, 1, 1, 2], [0], [0]>} : vector<2x8x8xbf16>, vector<2x8x32xbf16>, vector<2x8x32xf32> -> vector<2x8x32xf32>
    "tpu.trace_stop"() : () -> ()
    %54 = vector.extract_strided_slice %11 {offsets = [0, 0, 64], sizes = [2, 8, 32], strides = [1, 1, 1]} : vector<2x8x256xf32> to vector<2x8x32xf32>
    %55 = arith.truncf %54 : vector<2x8x32xf32> to vector<2x8x32xbf16>
    %56 = vector.extract_strided_slice %13 {offsets = [0, 0, 64], sizes = [2, 8, 32], strides = [1, 1, 1]} : vector<2x8x256xf32> to vector<2x8x32xf32>
    %57 = arith.truncf %56 : vector<2x8x32xf32> to vector<2x8x32xbf16>
    %58 = vector.extract_strided_slice %15 {offsets = [0, 0, 64], sizes = [2, 8, 32], strides = [1, 1, 1]} : vector<2x8x256xf32> to vector<2x8x32xf32>
    %59 = arith.truncf %58 : vector<2x8x32xf32> to vector<2x8x32xbf16>
    "tpu.trace_start"() <{level = 10 : i32, message = "bqd,bkd->bqk"}> : () -> ()
    %cst_16 = arith.constant dense<0.000000e+00> : vector<2x8x8xf32>
    %60 = tpu.matmul %55, %57, %cst_16 {dimension_numbers = #tpu.dot_dimension_numbers<[2], [2], [1], [1], [0, 0, 0, 1, 1, 1], [0], [0]>} : vector<2x8x32xbf16>, vector<2x8x32xbf16>, vector<2x8x8xf32> -> vector<2x8x8xf32>
    "tpu.trace_stop"() : () -> ()
    %cst_17 = arith.constant dense<0xFF800000> : vector<2x8xf32>
    %61 = vector.multi_reduction <maximumf>, %60, %cst_17 [2] : vector<2x8x8xf32> to vector<2x8xf32>
    %62 = vector.shape_cast %61 : vector<2x8xf32> to vector<2x8x1xf32>
    %63 = vector.broadcast %62 : vector<2x8x1xf32> to vector<2x8x8xf32>
    %64 = arith.subf %60, %63 : vector<2x8x8xf32>
    %65 = math.exp %64 : vector<2x8x8xf32>
    %cst_18 = arith.constant dense<0.000000e+00> : vector<2x8xf32>
    %66 = vector.multi_reduction <add>, %65, %cst_18 [2] : vector<2x8x8xf32> to vector<2x8xf32>
    %67 = vector.shape_cast %66 : vector<2x8xf32> to vector<2x8x1xf32>
    %68 = tpu.reciprocal %67 {approx = true} : vector<2x8x1xf32> -> vector<2x8x1xf32>
    %69 = vector.broadcast %68 : vector<2x8x1xf32> to vector<2x8x8xf32>
    %70 = arith.mulf %65, %69 : vector<2x8x8xf32>
    %71 = arith.truncf %70 : vector<2x8x8xf32> to vector<2x8x8xbf16>
    "tpu.trace_start"() <{level = 10 : i32, message = "bqk,bkd->bqd"}> : () -> ()
    %cst_19 = arith.constant dense<0.000000e+00> : vector<2x8x32xf32>
    %72 = tpu.matmul %71, %59, %cst_19 {dimension_numbers = #tpu.dot_dimension_numbers<[2], [1], [1], [2], [0, 0, 0, 1, 1, 2], [0], [0]>} : vector<2x8x8xbf16>, vector<2x8x32xbf16>, vector<2x8x32xf32> -> vector<2x8x32xf32>
    "tpu.trace_stop"() : () -> ()
    %73 = vector.extract_strided_slice %11 {offsets = [0, 0, 96], sizes = [2, 8, 32], strides = [1, 1, 1]} : vector<2x8x256xf32> to vector<2x8x32xf32>
    %74 = arith.truncf %73 : vector<2x8x32xf32> to vector<2x8x32xbf16>
    %75 = vector.extract_strided_slice %13 {offsets = [0, 0, 96], sizes = [2, 8, 32], strides = [1, 1, 1]} : vector<2x8x256xf32> to vector<2x8x32xf32>
    %76 = arith.truncf %75 : vector<2x8x32xf32> to vector<2x8x32xbf16>
    %77 = vector.extract_strided_slice %15 {offsets = [0, 0, 96], sizes = [2, 8, 32], strides = [1, 1, 1]} : vector<2x8x256xf32> to vector<2x8x32xf32>
    %78 = arith.truncf %77 : vector<2x8x32xf32> to vector<2x8x32xbf16>
    "tpu.trace_start"() <{level = 10 : i32, message = "bqd,bkd->bqk"}> : () -> ()
    %cst_20 = arith.constant dense<0.000000e+00> : vector<2x8x8xf32>
    %79 = tpu.matmul %74, %76, %cst_20 {dimension_numbers = #tpu.dot_dimension_numbers<[2], [2], [1], [1], [0, 0, 0, 1, 1, 1], [0], [0]>} : vector<2x8x32xbf16>, vector<2x8x32xbf16>, vector<2x8x8xf32> -> vector<2x8x8xf32>
    "tpu.trace_stop"() : () -> ()
    %cst_21 = arith.constant dense<0xFF800000> : vector<2x8xf32>
    %80 = vector.multi_reduction <maximumf>, %79, %cst_21 [2] : vector<2x8x8xf32> to vector<2x8xf32>
    %81 = vector.shape_cast %80 : vector<2x8xf32> to vector<2x8x1xf32>
    %82 = vector.broadcast %81 : vector<2x8x1xf32> to vector<2x8x8xf32>
    %83 = arith.subf %79, %82 : vector<2x8x8xf32>
    %84 = math.exp %83 : vector<2x8x8xf32>
    %cst_22 = arith.constant dense<0.000000e+00> : vector<2x8xf32>
    %85 = vector.multi_reduction <add>, %84, %cst_22 [2] : vector<2x8x8xf32> to vector<2x8xf32>
    %86 = vector.shape_cast %85 : vector<2x8xf32> to vector<2x8x1xf32>
    %87 = tpu.reciprocal %86 {approx = true} : vector<2x8x1xf32> -> vector<2x8x1xf32>
    %88 = vector.broadcast %87 : vector<2x8x1xf32> to vector<2x8x8xf32>
    %89 = arith.mulf %84, %88 : vector<2x8x8xf32>
    %90 = arith.truncf %89 : vector<2x8x8xf32> to vector<2x8x8xbf16>
    "tpu.trace_start"() <{level = 10 : i32, message = "bqk,bkd->bqd"}> : () -> ()
    %cst_23 = arith.constant dense<0.000000e+00> : vector<2x8x32xf32>
    %91 = tpu.matmul %90, %78, %cst_23 {dimension_numbers = #tpu.dot_dimension_numbers<[2], [1], [1], [2], [0, 0, 0, 1, 1, 2], [0], [0]>} : vector<2x8x8xbf16>, vector<2x8x32xbf16>, vector<2x8x32xf32> -> vector<2x8x32xf32>
    "tpu.trace_stop"() : () -> ()
    %92 = vector.extract_strided_slice %11 {offsets = [0, 0, 128], sizes = [2, 8, 32], strides = [1, 1, 1]} : vector<2x8x256xf32> to vector<2x8x32xf32>
    %93 = arith.truncf %92 : vector<2x8x32xf32> to vector<2x8x32xbf16>
    %94 = vector.extract_strided_slice %13 {offsets = [0, 0, 128], sizes = [2, 8, 32], strides = [1, 1, 1]} : vector<2x8x256xf32> to vector<2x8x32xf32>
    %95 = arith.truncf %94 : vector<2x8x32xf32> to vector<2x8x32xbf16>
    %96 = vector.extract_strided_slice %15 {offsets = [0, 0, 128], sizes = [2, 8, 32], strides = [1, 1, 1]} : vector<2x8x256xf32> to vector<2x8x32xf32>
    %97 = arith.truncf %96 : vector<2x8x32xf32> to vector<2x8x32xbf16>
    "tpu.trace_start"() <{level = 10 : i32, message = "bqd,bkd->bqk"}> : () -> ()
    %cst_24 = arith.constant dense<0.000000e+00> : vector<2x8x8xf32>
    %98 = tpu.matmul %93, %95, %cst_24 {dimension_numbers = #tpu.dot_dimension_numbers<[2], [2], [1], [1], [0, 0, 0, 1, 1, 1], [0], [0]>} : vector<2x8x32xbf16>, vector<2x8x32xbf16>, vector<2x8x8xf32> -> vector<2x8x8xf32>
    "tpu.trace_stop"() : () -> ()
    %cst_25 = arith.constant dense<0xFF800000> : vector<2x8xf32>
    %99 = vector.multi_reduction <maximumf>, %98, %cst_25 [2] : vector<2x8x8xf32> to vector<2x8xf32>
    %100 = vector.shape_cast %99 : vector<2x8xf32> to vector<2x8x1xf32>
    %101 = vector.broadcast %100 : vector<2x8x1xf32> to vector<2x8x8xf32>
    %102 = arith.subf %98, %101 : vector<2x8x8xf32>
    %103 = math.exp %102 : vector<2x8x8xf32>
    %cst_26 = arith.constant dense<0.000000e+00> : vector<2x8xf32>
    %104 = vector.multi_reduction <add>, %103, %cst_26 [2] : vector<2x8x8xf32> to vector<2x8xf32>
    %105 = vector.shape_cast %104 : vector<2x8xf32> to vector<2x8x1xf32>
    %106 = tpu.reciprocal %105 {approx = true} : vector<2x8x1xf32> -> vector<2x8x1xf32>
    %107 = vector.broadcast %106 : vector<2x8x1xf32> to vector<2x8x8xf32>
    %108 = arith.mulf %103, %107 : vector<2x8x8xf32>
    %109 = arith.truncf %108 : vector<2x8x8xf32> to vector<2x8x8xbf16>
    "tpu.trace_start"() <{level = 10 : i32, message = "bqk,bkd->bqd"}> : () -> ()
    %cst_27 = arith.constant dense<0.000000e+00> : vector<2x8x32xf32>
    %110 = tpu.matmul %109, %97, %cst_27 {dimension_numbers = #tpu.dot_dimension_numbers<[2], [1], [1], [2], [0, 0, 0, 1, 1, 2], [0], [0]>} : vector<2x8x8xbf16>, vector<2x8x32xbf16>, vector<2x8x32xf32> -> vector<2x8x32xf32>
    "tpu.trace_stop"() : () -> ()
    %111 = vector.extract_strided_slice %11 {offsets = [0, 0, 160], sizes = [2, 8, 32], strides = [1, 1, 1]} : vector<2x8x256xf32> to vector<2x8x32xf32>
    %112 = arith.truncf %111 : vector<2x8x32xf32> to vector<2x8x32xbf16>
    %113 = vector.extract_strided_slice %13 {offsets = [0, 0, 160], sizes = [2, 8, 32], strides = [1, 1, 1]} : vector<2x8x256xf32> to vector<2x8x32xf32>
    %114 = arith.truncf %113 : vector<2x8x32xf32> to vector<2x8x32xbf16>
    %115 = vector.extract_strided_slice %15 {offsets = [0, 0, 160], sizes = [2, 8, 32], strides = [1, 1, 1]} : vector<2x8x256xf32> to vector<2x8x32xf32>
    %116 = arith.truncf %115 : vector<2x8x32xf32> to vector<2x8x32xbf16>
    "tpu.trace_start"() <{level = 10 : i32, message = "bqd,bkd->bqk"}> : () -> ()
    %cst_28 = arith.constant dense<0.000000e+00> : vector<2x8x8xf32>
    %117 = tpu.matmul %112, %114, %cst_28 {dimension_numbers = #tpu.dot_dimension_numbers<[2], [2], [1], [1], [0, 0, 0, 1, 1, 1], [0], [0]>} : vector<2x8x32xbf16>, vector<2x8x32xbf16>, vector<2x8x8xf32> -> vector<2x8x8xf32>
    "tpu.trace_stop"() : () -> ()
    %cst_29 = arith.constant dense<0xFF800000> : vector<2x8xf32>
    %118 = vector.multi_reduction <maximumf>, %117, %cst_29 [2] : vector<2x8x8xf32> to vector<2x8xf32>
    %119 = vector.shape_cast %118 : vector<2x8xf32> to vector<2x8x1xf32>
    %120 = vector.broadcast %119 : vector<2x8x1xf32> to vector<2x8x8xf32>
    %121 = arith.subf %117, %120 : vector<2x8x8xf32>
    %122 = math.exp %121 : vector<2x8x8xf32>
    %cst_30 = arith.constant dense<0.000000e+00> : vector<2x8xf32>
    %123 = vector.multi_reduction <add>, %122, %cst_30 [2] : vector<2x8x8xf32> to vector<2x8xf32>
    %124 = vector.shape_cast %123 : vector<2x8xf32> to vector<2x8x1xf32>
    %125 = tpu.reciprocal %124 {approx = true} : vector<2x8x1xf32> -> vector<2x8x1xf32>
    %126 = vector.broadcast %125 : vector<2x8x1xf32> to vector<2x8x8xf32>
    %127 = arith.mulf %122, %126 : vector<2x8x8xf32>
    %128 = arith.truncf %127 : vector<2x8x8xf32> to vector<2x8x8xbf16>
    "tpu.trace_start"() <{level = 10 : i32, message = "bqk,bkd->bqd"}> : () -> ()
    %cst_31 = arith.constant dense<0.000000e+00> : vector<2x8x32xf32>
    %129 = tpu.matmul %128, %116, %cst_31 {dimension_numbers = #tpu.dot_dimension_numbers<[2], [1], [1], [2], [0, 0, 0, 1, 1, 2], [0], [0]>} : vector<2x8x8xbf16>, vector<2x8x32xbf16>, vector<2x8x32xf32> -> vector<2x8x32xf32>
    "tpu.trace_stop"() : () -> ()
    %130 = vector.extract_strided_slice %11 {offsets = [0, 0, 192], sizes = [2, 8, 32], strides = [1, 1, 1]} : vector<2x8x256xf32> to vector<2x8x32xf32>
    %131 = arith.truncf %130 : vector<2x8x32xf32> to vector<2x8x32xbf16>
    %132 = vector.extract_strided_slice %13 {offsets = [0, 0, 192], sizes = [2, 8, 32], strides = [1, 1, 1]} : vector<2x8x256xf32> to vector<2x8x32xf32>
    %133 = arith.truncf %132 : vector<2x8x32xf32> to vector<2x8x32xbf16>
    %134 = vector.extract_strided_slice %15 {offsets = [0, 0, 192], sizes = [2, 8, 32], strides = [1, 1, 1]} : vector<2x8x256xf32> to vector<2x8x32xf32>
    %135 = arith.truncf %134 : vector<2x8x32xf32> to vector<2x8x32xbf16>
    "tpu.trace_start"() <{level = 10 : i32, message = "bqd,bkd->bqk"}> : () -> ()
    %cst_32 = arith.constant dense<0.000000e+00> : vector<2x8x8xf32>
    %136 = tpu.matmul %131, %133, %cst_32 {dimension_numbers = #tpu.dot_dimension_numbers<[2], [2], [1], [1], [0, 0, 0, 1, 1, 1], [0], [0]>} : vector<2x8x32xbf16>, vector<2x8x32xbf16>, vector<2x8x8xf32> -> vector<2x8x8xf32>
    "tpu.trace_stop"() : () -> ()
    %cst_33 = arith.constant dense<0xFF800000> : vector<2x8xf32>
    %137 = vector.multi_reduction <maximumf>, %136, %cst_33 [2] : vector<2x8x8xf32> to vector<2x8xf32>
    %138 = vector.shape_cast %137 : vector<2x8xf32> to vector<2x8x1xf32>
    %139 = vector.broadcast %138 : vector<2x8x1xf32> to vector<2x8x8xf32>
    %140 = arith.subf %136, %139 : vector<2x8x8xf32>
    %141 = math.exp %140 : vector<2x8x8xf32>
    %cst_34 = arith.constant dense<0.000000e+00> : vector<2x8xf32>
    %142 = vector.multi_reduction <add>, %141, %cst_34 [2] : vector<2x8x8xf32> to vector<2x8xf32>
    %143 = vector.shape_cast %142 : vector<2x8xf32> to vector<2x8x1xf32>
    %144 = tpu.reciprocal %143 {approx = true} : vector<2x8x1xf32> -> vector<2x8x1xf32>
    %145 = vector.broadcast %144 : vector<2x8x1xf32> to vector<2x8x8xf32>
    %146 = arith.mulf %141, %145 : vector<2x8x8xf32>
    %147 = arith.truncf %146 : vector<2x8x8xf32> to vector<2x8x8xbf16>
    "tpu.trace_start"() <{level = 10 : i32, message = "bqk,bkd->bqd"}> : () -> ()
    %cst_35 = arith.constant dense<0.000000e+00> : vector<2x8x32xf32>
    %148 = tpu.matmul %147, %135, %cst_35 {dimension_numbers = #tpu.dot_dimension_numbers<[2], [1], [1], [2], [0, 0, 0, 1, 1, 2], [0], [0]>} : vector<2x8x8xbf16>, vector<2x8x32xbf16>, vector<2x8x32xf32> -> vector<2x8x32xf32>
    "tpu.trace_stop"() : () -> ()
    %149 = vector.extract_strided_slice %11 {offsets = [0, 0, 224], sizes = [2, 8, 32], strides = [1, 1, 1]} : vector<2x8x256xf32> to vector<2x8x32xf32>
    %150 = arith.truncf %149 : vector<2x8x32xf32> to vector<2x8x32xbf16>
    %151 = vector.extract_strided_slice %13 {offsets = [0, 0, 224], sizes = [2, 8, 32], strides = [1, 1, 1]} : vector<2x8x256xf32> to vector<2x8x32xf32>
    %152 = arith.truncf %151 : vector<2x8x32xf32> to vector<2x8x32xbf16>
    %153 = vector.extract_strided_slice %15 {offsets = [0, 0, 224], sizes = [2, 8, 32], strides = [1, 1, 1]} : vector<2x8x256xf32> to vector<2x8x32xf32>
    %154 = arith.truncf %153 : vector<2x8x32xf32> to vector<2x8x32xbf16>
    "tpu.trace_start"() <{level = 10 : i32, message = "bqd,bkd->bqk"}> : () -> ()
    %cst_36 = arith.constant dense<0.000000e+00> : vector<2x8x8xf32>
    %155 = tpu.matmul %150, %152, %cst_36 {dimension_numbers = #tpu.dot_dimension_numbers<[2], [2], [1], [1], [0, 0, 0, 1, 1, 1], [0], [0]>} : vector<2x8x32xbf16>, vector<2x8x32xbf16>, vector<2x8x8xf32> -> vector<2x8x8xf32>
    "tpu.trace_stop"() : () -> ()
    %cst_37 = arith.constant dense<0xFF800000> : vector<2x8xf32>
    %156 = vector.multi_reduction <maximumf>, %155, %cst_37 [2] : vector<2x8x8xf32> to vector<2x8xf32>
    %157 = vector.shape_cast %156 : vector<2x8xf32> to vector<2x8x1xf32>
    %158 = vector.broadcast %157 : vector<2x8x1xf32> to vector<2x8x8xf32>
    %159 = arith.subf %155, %158 : vector<2x8x8xf32>
    %160 = math.exp %159 : vector<2x8x8xf32>
    %cst_38 = arith.constant dense<0.000000e+00> : vector<2x8xf32>
    %161 = vector.multi_reduction <add>, %160, %cst_38 [2] : vector<2x8x8xf32> to vector<2x8xf32>
    %162 = vector.shape_cast %161 : vector<2x8xf32> to vector<2x8x1xf32>
    %163 = tpu.reciprocal %162 {approx = true} : vector<2x8x1xf32> -> vector<2x8x1xf32>
    %164 = vector.broadcast %163 : vector<2x8x1xf32> to vector<2x8x8xf32>
    %165 = arith.mulf %160, %164 : vector<2x8x8xf32>
    %166 = arith.truncf %165 : vector<2x8x8xf32> to vector<2x8x8xbf16>
    "tpu.trace_start"() <{level = 10 : i32, message = "bqk,bkd->bqd"}> : () -> ()
    %cst_39 = arith.constant dense<0.000000e+00> : vector<2x8x32xf32>
    %167 = tpu.matmul %166, %154, %cst_39 {dimension_numbers = #tpu.dot_dimension_numbers<[2], [1], [1], [2], [0, 0, 0, 1, 1, 2], [0], [0]>} : vector<2x8x8xbf16>, vector<2x8x32xbf16>, vector<2x8x32xf32> -> vector<2x8x32xf32>
    "tpu.trace_stop"() : () -> ()
    %168 = tpu.concatenate %34, %53, %72, %91, %110, %129, %148, %167 in 2 : vector<2x8x32xf32>, vector<2x8x32xf32>, vector<2x8x32xf32>, vector<2x8x32xf32>, vector<2x8x32xf32>, vector<2x8x32xf32>, vector<2x8x32xf32>, vector<2x8x32xf32> -> vector<2x8x256xf32>
    %169 = vector.shape_cast %168 : vector<2x8x256xf32> to vector<16x256xf32>
    %170 = arith.truncf %169 : vector<16x256xf32> to vector<16x256xbf16>
    %c0_40 = arith.constant 0 : index
    %c0_41 = arith.constant 0 : index
    %c0_42 = arith.constant 0 : index
    %171 = vector.load %arg4[%c0_40, %c0_41, %c0_42] : memref<3x256x256xbf16, #tpu.memory_space<vmem>>, vector<1x256x256xbf16>
    %172 = vector.shape_cast %171 : vector<1x256x256xbf16> to vector<256x256xbf16>
    %cst_43 = arith.constant dense<0.000000e+00> : vector<16x256xf32>
    %173 = tpu.matmul %170, %172, %cst_43 {dimension_numbers = #tpu.dot_dimension_numbers<[1], [0], [0], [1], [0, 0, 1, 1], [], []>} : vector<16x256xbf16>, vector<256x256xbf16>, vector<16x256xf32> -> vector<16x256xf32>
    %c0_44 = arith.constant 0 : index
    %c0_45 = arith.constant 0 : index
    %c0_46 = arith.constant 0 : index
    %174 = vector.load %arg5[%c0_44, %c0_45, %c0_46] : memref<3x1x256xf32, #tpu.memory_space<vmem>>, vector<1x1x256xf32>
    %175 = vector.shape_cast %174 : vector<1x1x256xf32> to vector<1x256xf32>
    %176 = vector.broadcast %175 : vector<1x256xf32> to vector<16x256xf32>
    %177 = arith.addf %173, %176 : vector<16x256xf32>
    %178 = arith.addf %1, %177 : vector<16x256xf32>
    %c0_47 = arith.constant 0 : index
    %c0_48 = arith.constant 0 : index
    %c0_49 = arith.constant 0 : index
    %179 = vector.load %arg11[%c0_47, %c0_48, %c0_49] : memref<3x1x256xf32, #tpu.memory_space<vmem>>, vector<1x1x256xf32>
    %180 = vector.shape_cast %179 : vector<1x1x256xf32> to vector<1x256xf32>
    %c0_50 = arith.constant 0 : index
    %c0_51 = arith.constant 0 : index
    %c0_52 = arith.constant 0 : index
    %181 = vector.load %arg12[%c0_50, %c0_51, %c0_52] : memref<3x1x256xf32, #tpu.memory_space<vmem>>, vector<1x1x256xf32>
    %182 = vector.shape_cast %181 : vector<1x1x256xf32> to vector<1x256xf32>
    %cst_53 = arith.constant dense<0.000000e+00> : vector<16xf32>
    %183 = vector.multi_reduction <add>, %178, %cst_53 [1] : vector<16x256xf32> to vector<16xf32>
    %184 = vector.shape_cast %183 : vector<16xf32> to vector<16x1xf32>
    %cst_54 = arith.constant 2.560000e+02 : f32
    %185 = vector.broadcast %cst_54 : f32 to vector<16x1xf32>
    %186 = arith.divf %184, %185 : vector<16x1xf32>
    %187 = arith.mulf %178, %178 : vector<16x256xf32>
    %cst_55 = arith.constant dense<0.000000e+00> : vector<16xf32>
    %188 = vector.multi_reduction <add>, %187, %cst_55 [1] : vector<16x256xf32> to vector<16xf32>
    %189 = vector.shape_cast %188 : vector<16xf32> to vector<16x1xf32>
    %cst_56 = arith.constant 2.560000e+02 : f32
    %190 = vector.broadcast %cst_56 : f32 to vector<16x1xf32>
    %191 = arith.divf %189, %190 : vector<16x1xf32>
    %192 = arith.mulf %186, %186 : vector<16x1xf32>
    %193 = arith.subf %191, %192 : vector<16x1xf32>
    %194 = vector.broadcast %186 : vector<16x1xf32> to vector<16x256xf32>
    %195 = arith.subf %178, %194 : vector<16x256xf32>
    %cst_57 = arith.constant 9.99999974E-6 : f32
    %196 = vector.broadcast %cst_57 : f32 to vector<16x1xf32>
    %197 = arith.addf %193, %196 : vector<16x1xf32>
    %198 = math.rsqrt %197 : vector<16x1xf32>
    %199 = vector.broadcast %198 : vector<16x1xf32> to vector<16x256xf32>
    %200 = arith.mulf %195, %199 : vector<16x256xf32>
    %201 = vector.broadcast %180 : vector<1x256xf32> to vector<16x256xf32>
    %202 = arith.mulf %200, %201 : vector<16x256xf32>
    %203 = vector.broadcast %182 : vector<1x256xf32> to vector<16x256xf32>
    %204 = arith.addf %202, %203 : vector<16x256xf32>
    %c0_58 = arith.constant 0 : index
    %c0_59 = arith.constant 0 : index
    %c0_60 = arith.constant 0 : index
    %205 = vector.load %arg6[%c0_58, %c0_59, %c0_60] : memref<3x1x256xf32, #tpu.memory_space<vmem>>, vector<1x1x256xf32>
    %206 = vector.shape_cast %205 : vector<1x1x256xf32> to vector<1x256xf32>
    %207 = vector.broadcast %206 : vector<1x256xf32> to vector<16x256xf32>
    %208 = arith.addf %204, %207 : vector<16x256xf32>
    %c0_61 = arith.constant 0 : index
    %c0_62 = arith.constant 0 : index
    %c0_63 = arith.constant 0 : index
    %209 = vector.load %arg13[%c0_61, %c0_62, %c0_63] : memref<3x1x256xf32, #tpu.memory_space<vmem>>, vector<1x1x256xf32>
    %210 = vector.shape_cast %209 : vector<1x1x256xf32> to vector<1x256xf32>
    %c0_64 = arith.constant 0 : index
    %c0_65 = arith.constant 0 : index
    %c0_66 = arith.constant 0 : index
    %211 = vector.load %arg14[%c0_64, %c0_65, %c0_66] : memref<3x1x256xf32, #tpu.memory_space<vmem>>, vector<1x1x256xf32>
    %212 = vector.shape_cast %211 : vector<1x1x256xf32> to vector<1x256xf32>
    %cst_67 = arith.constant dense<0.000000e+00> : vector<16xf32>
    %213 = vector.multi_reduction <add>, %208, %cst_67 [1] : vector<16x256xf32> to vector<16xf32>
    %214 = vector.shape_cast %213 : vector<16xf32> to vector<16x1xf32>
    %cst_68 = arith.constant 2.560000e+02 : f32
    %215 = vector.broadcast %cst_68 : f32 to vector<16x1xf32>
    %216 = arith.divf %214, %215 : vector<16x1xf32>
    %217 = arith.mulf %208, %208 : vector<16x256xf32>
    %cst_69 = arith.constant dense<0.000000e+00> : vector<16xf32>
    %218 = vector.multi_reduction <add>, %217, %cst_69 [1] : vector<16x256xf32> to vector<16xf32>
    %219 = vector.shape_cast %218 : vector<16xf32> to vector<16x1xf32>
    %cst_70 = arith.constant 2.560000e+02 : f32
    %220 = vector.broadcast %cst_70 : f32 to vector<16x1xf32>
    %221 = arith.divf %219, %220 : vector<16x1xf32>
    %222 = arith.mulf %216, %216 : vector<16x1xf32>
    %223 = arith.subf %221, %222 : vector<16x1xf32>
    %224 = vector.broadcast %216 : vector<16x1xf32> to vector<16x256xf32>
    %225 = arith.subf %208, %224 : vector<16x256xf32>
    %cst_71 = arith.constant 9.99999974E-6 : f32
    %226 = vector.broadcast %cst_71 : f32 to vector<16x1xf32>
    %227 = arith.addf %223, %226 : vector<16x1xf32>
    %228 = math.rsqrt %227 : vector<16x1xf32>
    %229 = vector.broadcast %228 : vector<16x1xf32> to vector<16x256xf32>
    %230 = arith.mulf %225, %229 : vector<16x256xf32>
    %231 = vector.broadcast %210 : vector<1x256xf32> to vector<16x256xf32>
    %232 = arith.mulf %230, %231 : vector<16x256xf32>
    %233 = vector.broadcast %212 : vector<1x256xf32> to vector<16x256xf32>
    %234 = arith.addf %232, %233 : vector<16x256xf32>
    %235 = arith.truncf %234 : vector<16x256xf32> to vector<16x256xbf16>
    %c0_72 = arith.constant 0 : index
    %c0_73 = arith.constant 0 : index
    %c0_74 = arith.constant 0 : index
    %236 = vector.load %arg7[%c0_72, %c0_73, %c0_74] : memref<3x256x512xbf16, #tpu.memory_space<vmem>>, vector<1x256x512xbf16>
    %237 = vector.shape_cast %236 : vector<1x256x512xbf16> to vector<256x512xbf16>
    %cst_75 = arith.constant dense<0.000000e+00> : vector<16x512xf32>
    %238 = tpu.matmul %235, %237, %cst_75 {dimension_numbers = #tpu.dot_dimension_numbers<[1], [0], [0], [1], [0, 0, 1, 1], [], []>} : vector<16x256xbf16>, vector<256x512xbf16>, vector<16x512xf32> -> vector<16x512xf32>
    %c0_76 = arith.constant 0 : index
    %c0_77 = arith.constant 0 : index
    %c0_78 = arith.constant 0 : index
    %239 = vector.load %arg8[%c0_76, %c0_77, %c0_78] : memref<3x1x512xf32, #tpu.memory_space<vmem>>, vector<1x1x512xf32>
    %240 = vector.shape_cast %239 : vector<1x1x512xf32> to vector<1x512xf32>
    %241 = vector.broadcast %240 : vector<1x512xf32> to vector<16x512xf32>
    %242 = arith.addf %238, %241 : vector<16x512xf32>
    %cst_79 = arith.constant 0.000000e+00 : f32
    %243 = vector.broadcast %cst_79 : f32 to vector<16x512xf32>
    %244 = arith.maximumf %242, %243 : vector<16x512xf32>
    %245 = arith.truncf %244 : vector<16x512xf32> to vector<16x512xbf16>
    %c0_80 = arith.constant 0 : index
    %c0_81 = arith.constant 0 : index
    %c0_82 = arith.constant 0 : index
    %246 = vector.load %arg9[%c0_80, %c0_81, %c0_82] : memref<3x512x256xbf16, #tpu.memory_space<vmem>>, vector<1x512x256xbf16>
    %247 = vector.shape_cast %246 : vector<1x512x256xbf16> to vector<512x256xbf16>
    %cst_83 = arith.constant dense<0.000000e+00> : vector<16x256xf32>
    %248 = tpu.matmul %245, %247, %cst_83 {dimension_numbers = #tpu.dot_dimension_numbers<[1], [0], [0], [1], [0, 0, 1, 1], [], []>} : vector<16x512xbf16>, vector<512x256xbf16>, vector<16x256xf32> -> vector<16x256xf32>
    %c0_84 = arith.constant 0 : index
    %c0_85 = arith.constant 0 : index
    %c0_86 = arith.constant 0 : index
    %249 = vector.load %arg10[%c0_84, %c0_85, %c0_86] : memref<3x1x256xf32, #tpu.memory_space<vmem>>, vector<1x1x256xf32>
    %250 = vector.shape_cast %249 : vector<1x1x256xf32> to vector<1x256xf32>
    %251 = vector.broadcast %250 : vector<1x256xf32> to vector<16x256xf32>
    %252 = arith.addf %248, %251 : vector<16x256xf32>
    %253 = arith.addf %234, %252 : vector<16x256xf32>
    %c0_87 = arith.constant 0 : index
    %c0_88 = arith.constant 0 : index
    %c0_89 = arith.constant 0 : index
    %254 = vector.load %arg15[%c0_87, %c0_88, %c0_89] : memref<3x1x256xf32, #tpu.memory_space<vmem>>, vector<1x1x256xf32>
    %255 = vector.shape_cast %254 : vector<1x1x256xf32> to vector<1x256xf32>
    %c0_90 = arith.constant 0 : index
    %c0_91 = arith.constant 0 : index
    %c0_92 = arith.constant 0 : index
    %256 = vector.load %arg16[%c0_90, %c0_91, %c0_92] : memref<3x1x256xf32, #tpu.memory_space<vmem>>, vector<1x1x256xf32>
    %257 = vector.shape_cast %256 : vector<1x1x256xf32> to vector<1x256xf32>
    %cst_93 = arith.constant dense<0.000000e+00> : vector<16xf32>
    %258 = vector.multi_reduction <add>, %253, %cst_93 [1] : vector<16x256xf32> to vector<16xf32>
    %259 = vector.shape_cast %258 : vector<16xf32> to vector<16x1xf32>
    %cst_94 = arith.constant 2.560000e+02 : f32
    %260 = vector.broadcast %cst_94 : f32 to vector<16x1xf32>
    %261 = arith.divf %259, %260 : vector<16x1xf32>
    %262 = arith.mulf %253, %253 : vector<16x256xf32>
    %cst_95 = arith.constant dense<0.000000e+00> : vector<16xf32>
    %263 = vector.multi_reduction <add>, %262, %cst_95 [1] : vector<16x256xf32> to vector<16xf32>
    %264 = vector.shape_cast %263 : vector<16xf32> to vector<16x1xf32>
    %cst_96 = arith.constant 2.560000e+02 : f32
    %265 = vector.broadcast %cst_96 : f32 to vector<16x1xf32>
    %266 = arith.divf %264, %265 : vector<16x1xf32>
    %267 = arith.mulf %261, %261 : vector<16x1xf32>
    %268 = arith.subf %266, %267 : vector<16x1xf32>
    %269 = vector.broadcast %261 : vector<16x1xf32> to vector<16x256xf32>
    %270 = arith.subf %253, %269 : vector<16x256xf32>
    %cst_97 = arith.constant 9.99999974E-6 : f32
    %271 = vector.broadcast %cst_97 : f32 to vector<16x1xf32>
    %272 = arith.addf %268, %271 : vector<16x1xf32>
    %273 = math.rsqrt %272 : vector<16x1xf32>
    %274 = vector.broadcast %273 : vector<16x1xf32> to vector<16x256xf32>
    %275 = arith.mulf %270, %274 : vector<16x256xf32>
    %276 = vector.broadcast %255 : vector<1x256xf32> to vector<16x256xf32>
    %277 = arith.mulf %275, %276 : vector<16x256xf32>
    %278 = vector.broadcast %257 : vector<1x256xf32> to vector<16x256xf32>
    %279 = arith.addf %277, %278 : vector<16x256xf32>
    %280 = arith.truncf %279 : vector<16x256xf32> to vector<16x256xbf16>
    %c1 = arith.constant 1 : index
    %c0_98 = arith.constant 0 : index
    %c0_99 = arith.constant 0 : index
    %281 = vector.load %arg2[%c1, %c0_98, %c0_99] : memref<3x256x768xbf16, #tpu.memory_space<vmem>>, vector<1x256x768xbf16>
    %282 = vector.shape_cast %281 : vector<1x256x768xbf16> to vector<256x768xbf16>
    %cst_100 = arith.constant dense<0.000000e+00> : vector<16x768xf32>
    %283 = tpu.matmul %280, %282, %cst_100 {dimension_numbers = #tpu.dot_dimension_numbers<[1], [0], [0], [1], [0, 0, 1, 1], [], []>} : vector<16x256xbf16>, vector<256x768xbf16>, vector<16x768xf32> -> vector<16x768xf32>
    %c1_101 = arith.constant 1 : index
    %c0_102 = arith.constant 0 : index
    %c0_103 = arith.constant 0 : index
    %284 = vector.load %arg3[%c1_101, %c0_102, %c0_103] : memref<3x1x768xf32, #tpu.memory_space<vmem>>, vector<1x1x768xf32>
    %285 = vector.shape_cast %284 : vector<1x1x768xf32> to vector<1x768xf32>
    %286 = vector.broadcast %285 : vector<1x768xf32> to vector<16x768xf32>
    %287 = arith.addf %283, %286 : vector<16x768xf32>
    %288 = vector.extract_strided_slice %287 {offsets = [0, 0], sizes = [16, 256], strides = [1, 1]} : vector<16x768xf32> to vector<16x256xf32>
    %289 = vector.shape_cast %288 : vector<16x256xf32> to vector<2x8x256xf32>
    %290 = vector.extract_strided_slice %287 {offsets = [0, 256], sizes = [16, 256], strides = [1, 1]} : vector<16x768xf32> to vector<16x256xf32>
    %291 = vector.shape_cast %290 : vector<16x256xf32> to vector<2x8x256xf32>
    %292 = vector.extract_strided_slice %287 {offsets = [0, 512], sizes = [16, 256], strides = [1, 1]} : vector<16x768xf32> to vector<16x256xf32>
    %293 = vector.shape_cast %292 : vector<16x256xf32> to vector<2x8x256xf32>
    %294 = vector.extract_strided_slice %289 {offsets = [0, 0, 0], sizes = [2, 8, 32], strides = [1, 1, 1]} : vector<2x8x256xf32> to vector<2x8x32xf32>
    %295 = arith.truncf %294 : vector<2x8x32xf32> to vector<2x8x32xbf16>
    %296 = vector.extract_strided_slice %291 {offsets = [0, 0, 0], sizes = [2, 8, 32], strides = [1, 1, 1]} : vector<2x8x256xf32> to vector<2x8x32xf32>
    %297 = arith.truncf %296 : vector<2x8x32xf32> to vector<2x8x32xbf16>
    %298 = vector.extract_strided_slice %293 {offsets = [0, 0, 0], sizes = [2, 8, 32], strides = [1, 1, 1]} : vector<2x8x256xf32> to vector<2x8x32xf32>
    %299 = arith.truncf %298 : vector<2x8x32xf32> to vector<2x8x32xbf16>
    "tpu.trace_start"() <{level = 10 : i32, message = "bqd,bkd->bqk"}> : () -> ()
    %cst_104 = arith.constant dense<0.000000e+00> : vector<2x8x8xf32>
    %300 = tpu.matmul %295, %297, %cst_104 {dimension_numbers = #tpu.dot_dimension_numbers<[2], [2], [1], [1], [0, 0, 0, 1, 1, 1], [0], [0]>} : vector<2x8x32xbf16>, vector<2x8x32xbf16>, vector<2x8x8xf32> -> vector<2x8x8xf32>
    "tpu.trace_stop"() : () -> ()
    %cst_105 = arith.constant dense<0xFF800000> : vector<2x8xf32>
    %301 = vector.multi_reduction <maximumf>, %300, %cst_105 [2] : vector<2x8x8xf32> to vector<2x8xf32>
    %302 = vector.shape_cast %301 : vector<2x8xf32> to vector<2x8x1xf32>
    %303 = vector.broadcast %302 : vector<2x8x1xf32> to vector<2x8x8xf32>
    %304 = arith.subf %300, %303 : vector<2x8x8xf32>
    %305 = math.exp %304 : vector<2x8x8xf32>
    %cst_106 = arith.constant dense<0.000000e+00> : vector<2x8xf32>
    %306 = vector.multi_reduction <add>, %305, %cst_106 [2] : vector<2x8x8xf32> to vector<2x8xf32>
    %307 = vector.shape_cast %306 : vector<2x8xf32> to vector<2x8x1xf32>
    %308 = tpu.reciprocal %307 {approx = true} : vector<2x8x1xf32> -> vector<2x8x1xf32>
    %309 = vector.broadcast %308 : vector<2x8x1xf32> to vector<2x8x8xf32>
    %310 = arith.mulf %305, %309 : vector<2x8x8xf32>
    %311 = arith.truncf %310 : vector<2x8x8xf32> to vector<2x8x8xbf16>
    "tpu.trace_start"() <{level = 10 : i32, message = "bqk,bkd->bqd"}> : () -> ()
    %cst_107 = arith.constant dense<0.000000e+00> : vector<2x8x32xf32>
    %312 = tpu.matmul %311, %299, %cst_107 {dimension_numbers = #tpu.dot_dimension_numbers<[2], [1], [1], [2], [0, 0, 0, 1, 1, 2], [0], [0]>} : vector<2x8x8xbf16>, vector<2x8x32xbf16>, vector<2x8x32xf32> -> vector<2x8x32xf32>
    "tpu.trace_stop"() : () -> ()
    %313 = vector.extract_strided_slice %289 {offsets = [0, 0, 32], sizes = [2, 8, 32], strides = [1, 1, 1]} : vector<2x8x256xf32> to vector<2x8x32xf32>
    %314 = arith.truncf %313 : vector<2x8x32xf32> to vector<2x8x32xbf16>
    %315 = vector.extract_strided_slice %291 {offsets = [0, 0, 32], sizes = [2, 8, 32], strides = [1, 1, 1]} : vector<2x8x256xf32> to vector<2x8x32xf32>
    %316 = arith.truncf %315 : vector<2x8x32xf32> to vector<2x8x32xbf16>
    %317 = vector.extract_strided_slice %293 {offsets = [0, 0, 32], sizes = [2, 8, 32], strides = [1, 1, 1]} : vector<2x8x256xf32> to vector<2x8x32xf32>
    %318 = arith.truncf %317 : vector<2x8x32xf32> to vector<2x8x32xbf16>
    "tpu.trace_start"() <{level = 10 : i32, message = "bqd,bkd->bqk"}> : () -> ()
    %cst_108 = arith.constant dense<0.000000e+00> : vector<2x8x8xf32>
    %319 = tpu.matmul %314, %316, %cst_108 {dimension_numbers = #tpu.dot_dimension_numbers<[2], [2], [1], [1], [0, 0, 0, 1, 1, 1], [0], [0]>} : vector<2x8x32xbf16>, vector<2x8x32xbf16>, vector<2x8x8xf32> -> vector<2x8x8xf32>
    "tpu.trace_stop"() : () -> ()
    %cst_109 = arith.constant dense<0xFF800000> : vector<2x8xf32>
    %320 = vector.multi_reduction <maximumf>, %319, %cst_109 [2] : vector<2x8x8xf32> to vector<2x8xf32>
    %321 = vector.shape_cast %320 : vector<2x8xf32> to vector<2x8x1xf32>
    %322 = vector.broadcast %321 : vector<2x8x1xf32> to vector<2x8x8xf32>
    %323 = arith.subf %319, %322 : vector<2x8x8xf32>
    %324 = math.exp %323 : vector<2x8x8xf32>
    %cst_110 = arith.constant dense<0.000000e+00> : vector<2x8xf32>
    %325 = vector.multi_reduction <add>, %324, %cst_110 [2] : vector<2x8x8xf32> to vector<2x8xf32>
    %326 = vector.shape_cast %325 : vector<2x8xf32> to vector<2x8x1xf32>
    %327 = tpu.reciprocal %326 {approx = true} : vector<2x8x1xf32> -> vector<2x8x1xf32>
    %328 = vector.broadcast %327 : vector<2x8x1xf32> to vector<2x8x8xf32>
    %329 = arith.mulf %324, %328 : vector<2x8x8xf32>
    %330 = arith.truncf %329 : vector<2x8x8xf32> to vector<2x8x8xbf16>
    "tpu.trace_start"() <{level = 10 : i32, message = "bqk,bkd->bqd"}> : () -> ()
    %cst_111 = arith.constant dense<0.000000e+00> : vector<2x8x32xf32>
    %331 = tpu.matmul %330, %318, %cst_111 {dimension_numbers = #tpu.dot_dimension_numbers<[2], [1], [1], [2], [0, 0, 0, 1, 1, 2], [0], [0]>} : vector<2x8x8xbf16>, vector<2x8x32xbf16>, vector<2x8x32xf32> -> vector<2x8x32xf32>
    "tpu.trace_stop"() : () -> ()
    %332 = vector.extract_strided_slice %289 {offsets = [0, 0, 64], sizes = [2, 8, 32], strides = [1, 1, 1]} : vector<2x8x256xf32> to vector<2x8x32xf32>
    %333 = arith.truncf %332 : vector<2x8x32xf32> to vector<2x8x32xbf16>
    %334 = vector.extract_strided_slice %291 {offsets = [0, 0, 64], sizes = [2, 8, 32], strides = [1, 1, 1]} : vector<2x8x256xf32> to vector<2x8x32xf32>
    %335 = arith.truncf %334 : vector<2x8x32xf32> to vector<2x8x32xbf16>
    %336 = vector.extract_strided_slice %293 {offsets = [0, 0, 64], sizes = [2, 8, 32], strides = [1, 1, 1]} : vector<2x8x256xf32> to vector<2x8x32xf32>
    %337 = arith.truncf %336 : vector<2x8x32xf32> to vector<2x8x32xbf16>
    "tpu.trace_start"() <{level = 10 : i32, message = "bqd,bkd->bqk"}> : () -> ()
    %cst_112 = arith.constant dense<0.000000e+00> : vector<2x8x8xf32>
    %338 = tpu.matmul %333, %335, %cst_112 {dimension_numbers = #tpu.dot_dimension_numbers<[2], [2], [1], [1], [0, 0, 0, 1, 1, 1], [0], [0]>} : vector<2x8x32xbf16>, vector<2x8x32xbf16>, vector<2x8x8xf32> -> vector<2x8x8xf32>
    "tpu.trace_stop"() : () -> ()
    %cst_113 = arith.constant dense<0xFF800000> : vector<2x8xf32>
    %339 = vector.multi_reduction <maximumf>, %338, %cst_113 [2] : vector<2x8x8xf32> to vector<2x8xf32>
    %340 = vector.shape_cast %339 : vector<2x8xf32> to vector<2x8x1xf32>
    %341 = vector.broadcast %340 : vector<2x8x1xf32> to vector<2x8x8xf32>
    %342 = arith.subf %338, %341 : vector<2x8x8xf32>
    %343 = math.exp %342 : vector<2x8x8xf32>
    %cst_114 = arith.constant dense<0.000000e+00> : vector<2x8xf32>
    %344 = vector.multi_reduction <add>, %343, %cst_114 [2] : vector<2x8x8xf32> to vector<2x8xf32>
    %345 = vector.shape_cast %344 : vector<2x8xf32> to vector<2x8x1xf32>
    %346 = tpu.reciprocal %345 {approx = true} : vector<2x8x1xf32> -> vector<2x8x1xf32>
    %347 = vector.broadcast %346 : vector<2x8x1xf32> to vector<2x8x8xf32>
    %348 = arith.mulf %343, %347 : vector<2x8x8xf32>
    %349 = arith.truncf %348 : vector<2x8x8xf32> to vector<2x8x8xbf16>
    "tpu.trace_start"() <{level = 10 : i32, message = "bqk,bkd->bqd"}> : () -> ()
    %cst_115 = arith.constant dense<0.000000e+00> : vector<2x8x32xf32>
    %350 = tpu.matmul %349, %337, %cst_115 {dimension_numbers = #tpu.dot_dimension_numbers<[2], [1], [1], [2], [0, 0, 0, 1, 1, 2], [0], [0]>} : vector<2x8x8xbf16>, vector<2x8x32xbf16>, vector<2x8x32xf32> -> vector<2x8x32xf32>
    "tpu.trace_stop"() : () -> ()
    %351 = vector.extract_strided_slice %289 {offsets = [0, 0, 96], sizes = [2, 8, 32], strides = [1, 1, 1]} : vector<2x8x256xf32> to vector<2x8x32xf32>
    %352 = arith.truncf %351 : vector<2x8x32xf32> to vector<2x8x32xbf16>
    %353 = vector.extract_strided_slice %291 {offsets = [0, 0, 96], sizes = [2, 8, 32], strides = [1, 1, 1]} : vector<2x8x256xf32> to vector<2x8x32xf32>
    %354 = arith.truncf %353 : vector<2x8x32xf32> to vector<2x8x32xbf16>
    %355 = vector.extract_strided_slice %293 {offsets = [0, 0, 96], sizes = [2, 8, 32], strides = [1, 1, 1]} : vector<2x8x256xf32> to vector<2x8x32xf32>
    %356 = arith.truncf %355 : vector<2x8x32xf32> to vector<2x8x32xbf16>
    "tpu.trace_start"() <{level = 10 : i32, message = "bqd,bkd->bqk"}> : () -> ()
    %cst_116 = arith.constant dense<0.000000e+00> : vector<2x8x8xf32>
    %357 = tpu.matmul %352, %354, %cst_116 {dimension_numbers = #tpu.dot_dimension_numbers<[2], [2], [1], [1], [0, 0, 0, 1, 1, 1], [0], [0]>} : vector<2x8x32xbf16>, vector<2x8x32xbf16>, vector<2x8x8xf32> -> vector<2x8x8xf32>
    "tpu.trace_stop"() : () -> ()
    %cst_117 = arith.constant dense<0xFF800000> : vector<2x8xf32>
    %358 = vector.multi_reduction <maximumf>, %357, %cst_117 [2] : vector<2x8x8xf32> to vector<2x8xf32>
    %359 = vector.shape_cast %358 : vector<2x8xf32> to vector<2x8x1xf32>
    %360 = vector.broadcast %359 : vector<2x8x1xf32> to vector<2x8x8xf32>
    %361 = arith.subf %357, %360 : vector<2x8x8xf32>
    %362 = math.exp %361 : vector<2x8x8xf32>
    %cst_118 = arith.constant dense<0.000000e+00> : vector<2x8xf32>
    %363 = vector.multi_reduction <add>, %362, %cst_118 [2] : vector<2x8x8xf32> to vector<2x8xf32>
    %364 = vector.shape_cast %363 : vector<2x8xf32> to vector<2x8x1xf32>
    %365 = tpu.reciprocal %364 {approx = true} : vector<2x8x1xf32> -> vector<2x8x1xf32>
    %366 = vector.broadcast %365 : vector<2x8x1xf32> to vector<2x8x8xf32>
    %367 = arith.mulf %362, %366 : vector<2x8x8xf32>
    %368 = arith.truncf %367 : vector<2x8x8xf32> to vector<2x8x8xbf16>
    "tpu.trace_start"() <{level = 10 : i32, message = "bqk,bkd->bqd"}> : () -> ()
    %cst_119 = arith.constant dense<0.000000e+00> : vector<2x8x32xf32>
    %369 = tpu.matmul %368, %356, %cst_119 {dimension_numbers = #tpu.dot_dimension_numbers<[2], [1], [1], [2], [0, 0, 0, 1, 1, 2], [0], [0]>} : vector<2x8x8xbf16>, vector<2x8x32xbf16>, vector<2x8x32xf32> -> vector<2x8x32xf32>
    "tpu.trace_stop"() : () -> ()
    %370 = vector.extract_strided_slice %289 {offsets = [0, 0, 128], sizes = [2, 8, 32], strides = [1, 1, 1]} : vector<2x8x256xf32> to vector<2x8x32xf32>
    %371 = arith.truncf %370 : vector<2x8x32xf32> to vector<2x8x32xbf16>
    %372 = vector.extract_strided_slice %291 {offsets = [0, 0, 128], sizes = [2, 8, 32], strides = [1, 1, 1]} : vector<2x8x256xf32> to vector<2x8x32xf32>
    %373 = arith.truncf %372 : vector<2x8x32xf32> to vector<2x8x32xbf16>
    %374 = vector.extract_strided_slice %293 {offsets = [0, 0, 128], sizes = [2, 8, 32], strides = [1, 1, 1]} : vector<2x8x256xf32> to vector<2x8x32xf32>
    %375 = arith.truncf %374 : vector<2x8x32xf32> to vector<2x8x32xbf16>
    "tpu.trace_start"() <{level = 10 : i32, message = "bqd,bkd->bqk"}> : () -> ()
    %cst_120 = arith.constant dense<0.000000e+00> : vector<2x8x8xf32>
    %376 = tpu.matmul %371, %373, %cst_120 {dimension_numbers = #tpu.dot_dimension_numbers<[2], [2], [1], [1], [0, 0, 0, 1, 1, 1], [0], [0]>} : vector<2x8x32xbf16>, vector<2x8x32xbf16>, vector<2x8x8xf32> -> vector<2x8x8xf32>
    "tpu.trace_stop"() : () -> ()
    %cst_121 = arith.constant dense<0xFF800000> : vector<2x8xf32>
    %377 = vector.multi_reduction <maximumf>, %376, %cst_121 [2] : vector<2x8x8xf32> to vector<2x8xf32>
    %378 = vector.shape_cast %377 : vector<2x8xf32> to vector<2x8x1xf32>
    %379 = vector.broadcast %378 : vector<2x8x1xf32> to vector<2x8x8xf32>
    %380 = arith.subf %376, %379 : vector<2x8x8xf32>
    %381 = math.exp %380 : vector<2x8x8xf32>
    %cst_122 = arith.constant dense<0.000000e+00> : vector<2x8xf32>
    %382 = vector.multi_reduction <add>, %381, %cst_122 [2] : vector<2x8x8xf32> to vector<2x8xf32>
    %383 = vector.shape_cast %382 : vector<2x8xf32> to vector<2x8x1xf32>
    %384 = tpu.reciprocal %383 {approx = true} : vector<2x8x1xf32> -> vector<2x8x1xf32>
    %385 = vector.broadcast %384 : vector<2x8x1xf32> to vector<2x8x8xf32>
    %386 = arith.mulf %381, %385 : vector<2x8x8xf32>
    %387 = arith.truncf %386 : vector<2x8x8xf32> to vector<2x8x8xbf16>
    "tpu.trace_start"() <{level = 10 : i32, message = "bqk,bkd->bqd"}> : () -> ()
    %cst_123 = arith.constant dense<0.000000e+00> : vector<2x8x32xf32>
    %388 = tpu.matmul %387, %375, %cst_123 {dimension_numbers = #tpu.dot_dimension_numbers<[2], [1], [1], [2], [0, 0, 0, 1, 1, 2], [0], [0]>} : vector<2x8x8xbf16>, vector<2x8x32xbf16>, vector<2x8x32xf32> -> vector<2x8x32xf32>
    "tpu.trace_stop"() : () -> ()
    %389 = vector.extract_strided_slice %289 {offsets = [0, 0, 160], sizes = [2, 8, 32], strides = [1, 1, 1]} : vector<2x8x256xf32> to vector<2x8x32xf32>
    %390 = arith.truncf %389 : vector<2x8x32xf32> to vector<2x8x32xbf16>
    %391 = vector.extract_strided_slice %291 {offsets = [0, 0, 160], sizes = [2, 8, 32], strides = [1, 1, 1]} : vector<2x8x256xf32> to vector<2x8x32xf32>
    %392 = arith.truncf %391 : vector<2x8x32xf32> to vector<2x8x32xbf16>
    %393 = vector.extract_strided_slice %293 {offsets = [0, 0, 160], sizes = [2, 8, 32], strides = [1, 1, 1]} : vector<2x8x256xf32> to vector<2x8x32xf32>
    %394 = arith.truncf %393 : vector<2x8x32xf32> to vector<2x8x32xbf16>
    "tpu.trace_start"() <{level = 10 : i32, message = "bqd,bkd->bqk"}> : () -> ()
    %cst_124 = arith.constant dense<0.000000e+00> : vector<2x8x8xf32>
    %395 = tpu.matmul %390, %392, %cst_124 {dimension_numbers = #tpu.dot_dimension_numbers<[2], [2], [1], [1], [0, 0, 0, 1, 1, 1], [0], [0]>} : vector<2x8x32xbf16>, vector<2x8x32xbf16>, vector<2x8x8xf32> -> vector<2x8x8xf32>
    "tpu.trace_stop"() : () -> ()
    %cst_125 = arith.constant dense<0xFF800000> : vector<2x8xf32>
    %396 = vector.multi_reduction <maximumf>, %395, %cst_125 [2] : vector<2x8x8xf32> to vector<2x8xf32>
    %397 = vector.shape_cast %396 : vector<2x8xf32> to vector<2x8x1xf32>
    %398 = vector.broadcast %397 : vector<2x8x1xf32> to vector<2x8x8xf32>
    %399 = arith.subf %395, %398 : vector<2x8x8xf32>
    %400 = math.exp %399 : vector<2x8x8xf32>
    %cst_126 = arith.constant dense<0.000000e+00> : vector<2x8xf32>
    %401 = vector.multi_reduction <add>, %400, %cst_126 [2] : vector<2x8x8xf32> to vector<2x8xf32>
    %402 = vector.shape_cast %401 : vector<2x8xf32> to vector<2x8x1xf32>
    %403 = tpu.reciprocal %402 {approx = true} : vector<2x8x1xf32> -> vector<2x8x1xf32>
    %404 = vector.broadcast %403 : vector<2x8x1xf32> to vector<2x8x8xf32>
    %405 = arith.mulf %400, %404 : vector<2x8x8xf32>
    %406 = arith.truncf %405 : vector<2x8x8xf32> to vector<2x8x8xbf16>
    "tpu.trace_start"() <{level = 10 : i32, message = "bqk,bkd->bqd"}> : () -> ()
    %cst_127 = arith.constant dense<0.000000e+00> : vector<2x8x32xf32>
    %407 = tpu.matmul %406, %394, %cst_127 {dimension_numbers = #tpu.dot_dimension_numbers<[2], [1], [1], [2], [0, 0, 0, 1, 1, 2], [0], [0]>} : vector<2x8x8xbf16>, vector<2x8x32xbf16>, vector<2x8x32xf32> -> vector<2x8x32xf32>
    "tpu.trace_stop"() : () -> ()
    %408 = vector.extract_strided_slice %289 {offsets = [0, 0, 192], sizes = [2, 8, 32], strides = [1, 1, 1]} : vector<2x8x256xf32> to vector<2x8x32xf32>
    %409 = arith.truncf %408 : vector<2x8x32xf32> to vector<2x8x32xbf16>
    %410 = vector.extract_strided_slice %291 {offsets = [0, 0, 192], sizes = [2, 8, 32], strides = [1, 1, 1]} : vector<2x8x256xf32> to vector<2x8x32xf32>
    %411 = arith.truncf %410 : vector<2x8x32xf32> to vector<2x8x32xbf16>
    %412 = vector.extract_strided_slice %293 {offsets = [0, 0, 192], sizes = [2, 8, 32], strides = [1, 1, 1]} : vector<2x8x256xf32> to vector<2x8x32xf32>
    %413 = arith.truncf %412 : vector<2x8x32xf32> to vector<2x8x32xbf16>
    "tpu.trace_start"() <{level = 10 : i32, message = "bqd,bkd->bqk"}> : () -> ()
    %cst_128 = arith.constant dense<0.000000e+00> : vector<2x8x8xf32>
    %414 = tpu.matmul %409, %411, %cst_128 {dimension_numbers = #tpu.dot_dimension_numbers<[2], [2], [1], [1], [0, 0, 0, 1, 1, 1], [0], [0]>} : vector<2x8x32xbf16>, vector<2x8x32xbf16>, vector<2x8x8xf32> -> vector<2x8x8xf32>
    "tpu.trace_stop"() : () -> ()
    %cst_129 = arith.constant dense<0xFF800000> : vector<2x8xf32>
    %415 = vector.multi_reduction <maximumf>, %414, %cst_129 [2] : vector<2x8x8xf32> to vector<2x8xf32>
    %416 = vector.shape_cast %415 : vector<2x8xf32> to vector<2x8x1xf32>
    %417 = vector.broadcast %416 : vector<2x8x1xf32> to vector<2x8x8xf32>
    %418 = arith.subf %414, %417 : vector<2x8x8xf32>
    %419 = math.exp %418 : vector<2x8x8xf32>
    %cst_130 = arith.constant dense<0.000000e+00> : vector<2x8xf32>
    %420 = vector.multi_reduction <add>, %419, %cst_130 [2] : vector<2x8x8xf32> to vector<2x8xf32>
    %421 = vector.shape_cast %420 : vector<2x8xf32> to vector<2x8x1xf32>
    %422 = tpu.reciprocal %421 {approx = true} : vector<2x8x1xf32> -> vector<2x8x1xf32>
    %423 = vector.broadcast %422 : vector<2x8x1xf32> to vector<2x8x8xf32>
    %424 = arith.mulf %419, %423 : vector<2x8x8xf32>
    %425 = arith.truncf %424 : vector<2x8x8xf32> to vector<2x8x8xbf16>
    "tpu.trace_start"() <{level = 10 : i32, message = "bqk,bkd->bqd"}> : () -> ()
    %cst_131 = arith.constant dense<0.000000e+00> : vector<2x8x32xf32>
    %426 = tpu.matmul %425, %413, %cst_131 {dimension_numbers = #tpu.dot_dimension_numbers<[2], [1], [1], [2], [0, 0, 0, 1, 1, 2], [0], [0]>} : vector<2x8x8xbf16>, vector<2x8x32xbf16>, vector<2x8x32xf32> -> vector<2x8x32xf32>
    "tpu.trace_stop"() : () -> ()
    %427 = vector.extract_strided_slice %289 {offsets = [0, 0, 224], sizes = [2, 8, 32], strides = [1, 1, 1]} : vector<2x8x256xf32> to vector<2x8x32xf32>
    %428 = arith.truncf %427 : vector<2x8x32xf32> to vector<2x8x32xbf16>
    %429 = vector.extract_strided_slice %291 {offsets = [0, 0, 224], sizes = [2, 8, 32], strides = [1, 1, 1]} : vector<2x8x256xf32> to vector<2x8x32xf32>
    %430 = arith.truncf %429 : vector<2x8x32xf32> to vector<2x8x32xbf16>
    %431 = vector.extract_strided_slice %293 {offsets = [0, 0, 224], sizes = [2, 8, 32], strides = [1, 1, 1]} : vector<2x8x256xf32> to vector<2x8x32xf32>
    %432 = arith.truncf %431 : vector<2x8x32xf32> to vector<2x8x32xbf16>
    "tpu.trace_start"() <{level = 10 : i32, message = "bqd,bkd->bqk"}> : () -> ()
    %cst_132 = arith.constant dense<0.000000e+00> : vector<2x8x8xf32>
    %433 = tpu.matmul %428, %430, %cst_132 {dimension_numbers = #tpu.dot_dimension_numbers<[2], [2], [1], [1], [0, 0, 0, 1, 1, 1], [0], [0]>} : vector<2x8x32xbf16>, vector<2x8x32xbf16>, vector<2x8x8xf32> -> vector<2x8x8xf32>
    "tpu.trace_stop"() : () -> ()
    %cst_133 = arith.constant dense<0xFF800000> : vector<2x8xf32>
    %434 = vector.multi_reduction <maximumf>, %433, %cst_133 [2] : vector<2x8x8xf32> to vector<2x8xf32>
    %435 = vector.shape_cast %434 : vector<2x8xf32> to vector<2x8x1xf32>
    %436 = vector.broadcast %435 : vector<2x8x1xf32> to vector<2x8x8xf32>
    %437 = arith.subf %433, %436 : vector<2x8x8xf32>
    %438 = math.exp %437 : vector<2x8x8xf32>
    %cst_134 = arith.constant dense<0.000000e+00> : vector<2x8xf32>
    %439 = vector.multi_reduction <add>, %438, %cst_134 [2] : vector<2x8x8xf32> to vector<2x8xf32>
    %440 = vector.shape_cast %439 : vector<2x8xf32> to vector<2x8x1xf32>
    %441 = tpu.reciprocal %440 {approx = true} : vector<2x8x1xf32> -> vector<2x8x1xf32>
    %442 = vector.broadcast %441 : vector<2x8x1xf32> to vector<2x8x8xf32>
    %443 = arith.mulf %438, %442 : vector<2x8x8xf32>
    %444 = arith.truncf %443 : vector<2x8x8xf32> to vector<2x8x8xbf16>
    "tpu.trace_start"() <{level = 10 : i32, message = "bqk,bkd->bqd"}> : () -> ()
    %cst_135 = arith.constant dense<0.000000e+00> : vector<2x8x32xf32>
    %445 = tpu.matmul %444, %432, %cst_135 {dimension_numbers = #tpu.dot_dimension_numbers<[2], [1], [1], [2], [0, 0, 0, 1, 1, 2], [0], [0]>} : vector<2x8x8xbf16>, vector<2x8x32xbf16>, vector<2x8x32xf32> -> vector<2x8x32xf32>
    "tpu.trace_stop"() : () -> ()
    %446 = tpu.concatenate %312, %331, %350, %369, %388, %407, %426, %445 in 2 : vector<2x8x32xf32>, vector<2x8x32xf32>, vector<2x8x32xf32>, vector<2x8x32xf32>, vector<2x8x32xf32>, vector<2x8x32xf32>, vector<2x8x32xf32>, vector<2x8x32xf32> -> vector<2x8x256xf32>
    %447 = vector.shape_cast %446 : vector<2x8x256xf32> to vector<16x256xf32>
    %448 = arith.truncf %447 : vector<16x256xf32> to vector<16x256xbf16>
    %c1_136 = arith.constant 1 : index
    %c0_137 = arith.constant 0 : index
    %c0_138 = arith.constant 0 : index
    %449 = vector.load %arg4[%c1_136, %c0_137, %c0_138] : memref<3x256x256xbf16, #tpu.memory_space<vmem>>, vector<1x256x256xbf16>
    %450 = vector.shape_cast %449 : vector<1x256x256xbf16> to vector<256x256xbf16>
    %cst_139 = arith.constant dense<0.000000e+00> : vector<16x256xf32>
    %451 = tpu.matmul %448, %450, %cst_139 {dimension_numbers = #tpu.dot_dimension_numbers<[1], [0], [0], [1], [0, 0, 1, 1], [], []>} : vector<16x256xbf16>, vector<256x256xbf16>, vector<16x256xf32> -> vector<16x256xf32>
    %c1_140 = arith.constant 1 : index
    %c0_141 = arith.constant 0 : index
    %c0_142 = arith.constant 0 : index
    %452 = vector.load %arg5[%c1_140, %c0_141, %c0_142] : memref<3x1x256xf32, #tpu.memory_space<vmem>>, vector<1x1x256xf32>
    %453 = vector.shape_cast %452 : vector<1x1x256xf32> to vector<1x256xf32>
    %454 = vector.broadcast %453 : vector<1x256xf32> to vector<16x256xf32>
    %455 = arith.addf %451, %454 : vector<16x256xf32>
    %456 = arith.addf %279, %455 : vector<16x256xf32>
    %c1_143 = arith.constant 1 : index
    %c0_144 = arith.constant 0 : index
    %c0_145 = arith.constant 0 : index
    %457 = vector.load %arg11[%c1_143, %c0_144, %c0_145] : memref<3x1x256xf32, #tpu.memory_space<vmem>>, vector<1x1x256xf32>
    %458 = vector.shape_cast %457 : vector<1x1x256xf32> to vector<1x256xf32>
    %c1_146 = arith.constant 1 : index
    %c0_147 = arith.constant 0 : index
    %c0_148 = arith.constant 0 : index
    %459 = vector.load %arg12[%c1_146, %c0_147, %c0_148] : memref<3x1x256xf32, #tpu.memory_space<vmem>>, vector<1x1x256xf32>
    %460 = vector.shape_cast %459 : vector<1x1x256xf32> to vector<1x256xf32>
    %cst_149 = arith.constant dense<0.000000e+00> : vector<16xf32>
    %461 = vector.multi_reduction <add>, %456, %cst_149 [1] : vector<16x256xf32> to vector<16xf32>
    %462 = vector.shape_cast %461 : vector<16xf32> to vector<16x1xf32>
    %cst_150 = arith.constant 2.560000e+02 : f32
    %463 = vector.broadcast %cst_150 : f32 to vector<16x1xf32>
    %464 = arith.divf %462, %463 : vector<16x1xf32>
    %465 = arith.mulf %456, %456 : vector<16x256xf32>
    %cst_151 = arith.constant dense<0.000000e+00> : vector<16xf32>
    %466 = vector.multi_reduction <add>, %465, %cst_151 [1] : vector<16x256xf32> to vector<16xf32>
    %467 = vector.shape_cast %466 : vector<16xf32> to vector<16x1xf32>
    %cst_152 = arith.constant 2.560000e+02 : f32
    %468 = vector.broadcast %cst_152 : f32 to vector<16x1xf32>
    %469 = arith.divf %467, %468 : vector<16x1xf32>
    %470 = arith.mulf %464, %464 : vector<16x1xf32>
    %471 = arith.subf %469, %470 : vector<16x1xf32>
    %472 = vector.broadcast %464 : vector<16x1xf32> to vector<16x256xf32>
    %473 = arith.subf %456, %472 : vector<16x256xf32>
    %cst_153 = arith.constant 9.99999974E-6 : f32
    %474 = vector.broadcast %cst_153 : f32 to vector<16x1xf32>
    %475 = arith.addf %471, %474 : vector<16x1xf32>
    %476 = math.rsqrt %475 : vector<16x1xf32>
    %477 = vector.broadcast %476 : vector<16x1xf32> to vector<16x256xf32>
    %478 = arith.mulf %473, %477 : vector<16x256xf32>
    %479 = vector.broadcast %458 : vector<1x256xf32> to vector<16x256xf32>
    %480 = arith.mulf %478, %479 : vector<16x256xf32>
    %481 = vector.broadcast %460 : vector<1x256xf32> to vector<16x256xf32>
    %482 = arith.addf %480, %481 : vector<16x256xf32>
    %c1_154 = arith.constant 1 : index
    %c0_155 = arith.constant 0 : index
    %c0_156 = arith.constant 0 : index
    %483 = vector.load %arg6[%c1_154, %c0_155, %c0_156] : memref<3x1x256xf32, #tpu.memory_space<vmem>>, vector<1x1x256xf32>
    %484 = vector.shape_cast %483 : vector<1x1x256xf32> to vector<1x256xf32>
    %485 = vector.broadcast %484 : vector<1x256xf32> to vector<16x256xf32>
    %486 = arith.addf %482, %485 : vector<16x256xf32>
    %c1_157 = arith.constant 1 : index
    %c0_158 = arith.constant 0 : index
    %c0_159 = arith.constant 0 : index
    %487 = vector.load %arg13[%c1_157, %c0_158, %c0_159] : memref<3x1x256xf32, #tpu.memory_space<vmem>>, vector<1x1x256xf32>
    %488 = vector.shape_cast %487 : vector<1x1x256xf32> to vector<1x256xf32>
    %c1_160 = arith.constant 1 : index
    %c0_161 = arith.constant 0 : index
    %c0_162 = arith.constant 0 : index
    %489 = vector.load %arg14[%c1_160, %c0_161, %c0_162] : memref<3x1x256xf32, #tpu.memory_space<vmem>>, vector<1x1x256xf32>
    %490 = vector.shape_cast %489 : vector<1x1x256xf32> to vector<1x256xf32>
    %cst_163 = arith.constant dense<0.000000e+00> : vector<16xf32>
    %491 = vector.multi_reduction <add>, %486, %cst_163 [1] : vector<16x256xf32> to vector<16xf32>
    %492 = vector.shape_cast %491 : vector<16xf32> to vector<16x1xf32>
    %cst_164 = arith.constant 2.560000e+02 : f32
    %493 = vector.broadcast %cst_164 : f32 to vector<16x1xf32>
    %494 = arith.divf %492, %493 : vector<16x1xf32>
    %495 = arith.mulf %486, %486 : vector<16x256xf32>
    %cst_165 = arith.constant dense<0.000000e+00> : vector<16xf32>
    %496 = vector.multi_reduction <add>, %495, %cst_165 [1] : vector<16x256xf32> to vector<16xf32>
    %497 = vector.shape_cast %496 : vector<16xf32> to vector<16x1xf32>
    %cst_166 = arith.constant 2.560000e+02 : f32
    %498 = vector.broadcast %cst_166 : f32 to vector<16x1xf32>
    %499 = arith.divf %497, %498 : vector<16x1xf32>
    %500 = arith.mulf %494, %494 : vector<16x1xf32>
    %501 = arith.subf %499, %500 : vector<16x1xf32>
    %502 = vector.broadcast %494 : vector<16x1xf32> to vector<16x256xf32>
    %503 = arith.subf %486, %502 : vector<16x256xf32>
    %cst_167 = arith.constant 9.99999974E-6 : f32
    %504 = vector.broadcast %cst_167 : f32 to vector<16x1xf32>
    %505 = arith.addf %501, %504 : vector<16x1xf32>
    %506 = math.rsqrt %505 : vector<16x1xf32>
    %507 = vector.broadcast %506 : vector<16x1xf32> to vector<16x256xf32>
    %508 = arith.mulf %503, %507 : vector<16x256xf32>
    %509 = vector.broadcast %488 : vector<1x256xf32> to vector<16x256xf32>
    %510 = arith.mulf %508, %509 : vector<16x256xf32>
    %511 = vector.broadcast %490 : vector<1x256xf32> to vector<16x256xf32>
    %512 = arith.addf %510, %511 : vector<16x256xf32>
    %513 = arith.truncf %512 : vector<16x256xf32> to vector<16x256xbf16>
    %c1_168 = arith.constant 1 : index
    %c0_169 = arith.constant 0 : index
    %c0_170 = arith.constant 0 : index
    %514 = vector.load %arg7[%c1_168, %c0_169, %c0_170] : memref<3x256x512xbf16, #tpu.memory_space<vmem>>, vector<1x256x512xbf16>
    %515 = vector.shape_cast %514 : vector<1x256x512xbf16> to vector<256x512xbf16>
    %cst_171 = arith.constant dense<0.000000e+00> : vector<16x512xf32>
    %516 = tpu.matmul %513, %515, %cst_171 {dimension_numbers = #tpu.dot_dimension_numbers<[1], [0], [0], [1], [0, 0, 1, 1], [], []>} : vector<16x256xbf16>, vector<256x512xbf16>, vector<16x512xf32> -> vector<16x512xf32>
    %c1_172 = arith.constant 1 : index
    %c0_173 = arith.constant 0 : index
    %c0_174 = arith.constant 0 : index
    %517 = vector.load %arg8[%c1_172, %c0_173, %c0_174] : memref<3x1x512xf32, #tpu.memory_space<vmem>>, vector<1x1x512xf32>
    %518 = vector.shape_cast %517 : vector<1x1x512xf32> to vector<1x512xf32>
    %519 = vector.broadcast %518 : vector<1x512xf32> to vector<16x512xf32>
    %520 = arith.addf %516, %519 : vector<16x512xf32>
    %cst_175 = arith.constant 0.000000e+00 : f32
    %521 = vector.broadcast %cst_175 : f32 to vector<16x512xf32>
    %522 = arith.maximumf %520, %521 : vector<16x512xf32>
    %523 = arith.truncf %522 : vector<16x512xf32> to vector<16x512xbf16>
    %c1_176 = arith.constant 1 : index
    %c0_177 = arith.constant 0 : index
    %c0_178 = arith.constant 0 : index
    %524 = vector.load %arg9[%c1_176, %c0_177, %c0_178] : memref<3x512x256xbf16, #tpu.memory_space<vmem>>, vector<1x512x256xbf16>
    %525 = vector.shape_cast %524 : vector<1x512x256xbf16> to vector<512x256xbf16>
    %cst_179 = arith.constant dense<0.000000e+00> : vector<16x256xf32>
    %526 = tpu.matmul %523, %525, %cst_179 {dimension_numbers = #tpu.dot_dimension_numbers<[1], [0], [0], [1], [0, 0, 1, 1], [], []>} : vector<16x512xbf16>, vector<512x256xbf16>, vector<16x256xf32> -> vector<16x256xf32>
    %c1_180 = arith.constant 1 : index
    %c0_181 = arith.constant 0 : index
    %c0_182 = arith.constant 0 : index
    %527 = vector.load %arg10[%c1_180, %c0_181, %c0_182] : memref<3x1x256xf32, #tpu.memory_space<vmem>>, vector<1x1x256xf32>
    %528 = vector.shape_cast %527 : vector<1x1x256xf32> to vector<1x256xf32>
    %529 = vector.broadcast %528 : vector<1x256xf32> to vector<16x256xf32>
    %530 = arith.addf %526, %529 : vector<16x256xf32>
    %531 = arith.addf %512, %530 : vector<16x256xf32>
    %c1_183 = arith.constant 1 : index
    %c0_184 = arith.constant 0 : index
    %c0_185 = arith.constant 0 : index
    %532 = vector.load %arg15[%c1_183, %c0_184, %c0_185] : memref<3x1x256xf32, #tpu.memory_space<vmem>>, vector<1x1x256xf32>
    %533 = vector.shape_cast %532 : vector<1x1x256xf32> to vector<1x256xf32>
    %c1_186 = arith.constant 1 : index
    %c0_187 = arith.constant 0 : index
    %c0_188 = arith.constant 0 : index
    %534 = vector.load %arg16[%c1_186, %c0_187, %c0_188] : memref<3x1x256xf32, #tpu.memory_space<vmem>>, vector<1x1x256xf32>
    %535 = vector.shape_cast %534 : vector<1x1x256xf32> to vector<1x256xf32>
    %cst_189 = arith.constant dense<0.000000e+00> : vector<16xf32>
    %536 = vector.multi_reduction <add>, %531, %cst_189 [1] : vector<16x256xf32> to vector<16xf32>
    %537 = vector.shape_cast %536 : vector<16xf32> to vector<16x1xf32>
    %cst_190 = arith.constant 2.560000e+02 : f32
    %538 = vector.broadcast %cst_190 : f32 to vector<16x1xf32>
    %539 = arith.divf %537, %538 : vector<16x1xf32>
    %540 = arith.mulf %531, %531 : vector<16x256xf32>
    %cst_191 = arith.constant dense<0.000000e+00> : vector<16xf32>
    %541 = vector.multi_reduction <add>, %540, %cst_191 [1] : vector<16x256xf32> to vector<16xf32>
    %542 = vector.shape_cast %541 : vector<16xf32> to vector<16x1xf32>
    %cst_192 = arith.constant 2.560000e+02 : f32
    %543 = vector.broadcast %cst_192 : f32 to vector<16x1xf32>
    %544 = arith.divf %542, %543 : vector<16x1xf32>
    %545 = arith.mulf %539, %539 : vector<16x1xf32>
    %546 = arith.subf %544, %545 : vector<16x1xf32>
    %547 = vector.broadcast %539 : vector<16x1xf32> to vector<16x256xf32>
    %548 = arith.subf %531, %547 : vector<16x256xf32>
    %cst_193 = arith.constant 9.99999974E-6 : f32
    %549 = vector.broadcast %cst_193 : f32 to vector<16x1xf32>
    %550 = arith.addf %546, %549 : vector<16x1xf32>
    %551 = math.rsqrt %550 : vector<16x1xf32>
    %552 = vector.broadcast %551 : vector<16x1xf32> to vector<16x256xf32>
    %553 = arith.mulf %548, %552 : vector<16x256xf32>
    %554 = vector.broadcast %533 : vector<1x256xf32> to vector<16x256xf32>
    %555 = arith.mulf %553, %554 : vector<16x256xf32>
    %556 = vector.broadcast %535 : vector<1x256xf32> to vector<16x256xf32>
    %557 = arith.addf %555, %556 : vector<16x256xf32>
    %558 = arith.truncf %557 : vector<16x256xf32> to vector<16x256xbf16>
    %c2 = arith.constant 2 : index
    %c0_194 = arith.constant 0 : index
    %c0_195 = arith.constant 0 : index
    %559 = vector.load %arg2[%c2, %c0_194, %c0_195] : memref<3x256x768xbf16, #tpu.memory_space<vmem>>, vector<1x256x768xbf16>
    %560 = vector.shape_cast %559 : vector<1x256x768xbf16> to vector<256x768xbf16>
    %cst_196 = arith.constant dense<0.000000e+00> : vector<16x768xf32>
    %561 = tpu.matmul %558, %560, %cst_196 {dimension_numbers = #tpu.dot_dimension_numbers<[1], [0], [0], [1], [0, 0, 1, 1], [], []>} : vector<16x256xbf16>, vector<256x768xbf16>, vector<16x768xf32> -> vector<16x768xf32>
    %c2_197 = arith.constant 2 : index
    %c0_198 = arith.constant 0 : index
    %c0_199 = arith.constant 0 : index
    %562 = vector.load %arg3[%c2_197, %c0_198, %c0_199] : memref<3x1x768xf32, #tpu.memory_space<vmem>>, vector<1x1x768xf32>
    %563 = vector.shape_cast %562 : vector<1x1x768xf32> to vector<1x768xf32>
    %564 = vector.broadcast %563 : vector<1x768xf32> to vector<16x768xf32>
    %565 = arith.addf %561, %564 : vector<16x768xf32>
    %566 = vector.extract_strided_slice %565 {offsets = [0, 0], sizes = [16, 256], strides = [1, 1]} : vector<16x768xf32> to vector<16x256xf32>
    %567 = vector.shape_cast %566 : vector<16x256xf32> to vector<2x8x256xf32>
    %568 = vector.extract_strided_slice %565 {offsets = [0, 256], sizes = [16, 256], strides = [1, 1]} : vector<16x768xf32> to vector<16x256xf32>
    %569 = vector.shape_cast %568 : vector<16x256xf32> to vector<2x8x256xf32>
    %570 = vector.extract_strided_slice %565 {offsets = [0, 512], sizes = [16, 256], strides = [1, 1]} : vector<16x768xf32> to vector<16x256xf32>
    %571 = vector.shape_cast %570 : vector<16x256xf32> to vector<2x8x256xf32>
    %572 = vector.extract_strided_slice %567 {offsets = [0, 0, 0], sizes = [2, 8, 32], strides = [1, 1, 1]} : vector<2x8x256xf32> to vector<2x8x32xf32>
    %573 = arith.truncf %572 : vector<2x8x32xf32> to vector<2x8x32xbf16>
    %574 = vector.extract_strided_slice %569 {offsets = [0, 0, 0], sizes = [2, 8, 32], strides = [1, 1, 1]} : vector<2x8x256xf32> to vector<2x8x32xf32>
    %575 = arith.truncf %574 : vector<2x8x32xf32> to vector<2x8x32xbf16>
    %576 = vector.extract_strided_slice %571 {offsets = [0, 0, 0], sizes = [2, 8, 32], strides = [1, 1, 1]} : vector<2x8x256xf32> to vector<2x8x32xf32>
    %577 = arith.truncf %576 : vector<2x8x32xf32> to vector<2x8x32xbf16>
    "tpu.trace_start"() <{level = 10 : i32, message = "bqd,bkd->bqk"}> : () -> ()
    %cst_200 = arith.constant dense<0.000000e+00> : vector<2x8x8xf32>
    %578 = tpu.matmul %573, %575, %cst_200 {dimension_numbers = #tpu.dot_dimension_numbers<[2], [2], [1], [1], [0, 0, 0, 1, 1, 1], [0], [0]>} : vector<2x8x32xbf16>, vector<2x8x32xbf16>, vector<2x8x8xf32> -> vector<2x8x8xf32>
    "tpu.trace_stop"() : () -> ()
    %cst_201 = arith.constant dense<0xFF800000> : vector<2x8xf32>
    %579 = vector.multi_reduction <maximumf>, %578, %cst_201 [2] : vector<2x8x8xf32> to vector<2x8xf32>
    %580 = vector.shape_cast %579 : vector<2x8xf32> to vector<2x8x1xf32>
    %581 = vector.broadcast %580 : vector<2x8x1xf32> to vector<2x8x8xf32>
    %582 = arith.subf %578, %581 : vector<2x8x8xf32>
    %583 = math.exp %582 : vector<2x8x8xf32>
    %cst_202 = arith.constant dense<0.000000e+00> : vector<2x8xf32>
    %584 = vector.multi_reduction <add>, %583, %cst_202 [2] : vector<2x8x8xf32> to vector<2x8xf32>
    %585 = vector.shape_cast %584 : vector<2x8xf32> to vector<2x8x1xf32>
    %586 = tpu.reciprocal %585 {approx = true} : vector<2x8x1xf32> -> vector<2x8x1xf32>
    %587 = vector.broadcast %586 : vector<2x8x1xf32> to vector<2x8x8xf32>
    %588 = arith.mulf %583, %587 : vector<2x8x8xf32>
    %589 = arith.truncf %588 : vector<2x8x8xf32> to vector<2x8x8xbf16>
    "tpu.trace_start"() <{level = 10 : i32, message = "bqk,bkd->bqd"}> : () -> ()
    %cst_203 = arith.constant dense<0.000000e+00> : vector<2x8x32xf32>
    %590 = tpu.matmul %589, %577, %cst_203 {dimension_numbers = #tpu.dot_dimension_numbers<[2], [1], [1], [2], [0, 0, 0, 1, 1, 2], [0], [0]>} : vector<2x8x8xbf16>, vector<2x8x32xbf16>, vector<2x8x32xf32> -> vector<2x8x32xf32>
    "tpu.trace_stop"() : () -> ()
    %591 = vector.extract_strided_slice %567 {offsets = [0, 0, 32], sizes = [2, 8, 32], strides = [1, 1, 1]} : vector<2x8x256xf32> to vector<2x8x32xf32>
    %592 = arith.truncf %591 : vector<2x8x32xf32> to vector<2x8x32xbf16>
    %593 = vector.extract_strided_slice %569 {offsets = [0, 0, 32], sizes = [2, 8, 32], strides = [1, 1, 1]} : vector<2x8x256xf32> to vector<2x8x32xf32>
    %594 = arith.truncf %593 : vector<2x8x32xf32> to vector<2x8x32xbf16>
    %595 = vector.extract_strided_slice %571 {offsets = [0, 0, 32], sizes = [2, 8, 32], strides = [1, 1, 1]} : vector<2x8x256xf32> to vector<2x8x32xf32>
    %596 = arith.truncf %595 : vector<2x8x32xf32> to vector<2x8x32xbf16>
    "tpu.trace_start"() <{level = 10 : i32, message = "bqd,bkd->bqk"}> : () -> ()
    %cst_204 = arith.constant dense<0.000000e+00> : vector<2x8x8xf32>
    %597 = tpu.matmul %592, %594, %cst_204 {dimension_numbers = #tpu.dot_dimension_numbers<[2], [2], [1], [1], [0, 0, 0, 1, 1, 1], [0], [0]>} : vector<2x8x32xbf16>, vector<2x8x32xbf16>, vector<2x8x8xf32> -> vector<2x8x8xf32>
    "tpu.trace_stop"() : () -> ()
    %cst_205 = arith.constant dense<0xFF800000> : vector<2x8xf32>
    %598 = vector.multi_reduction <maximumf>, %597, %cst_205 [2] : vector<2x8x8xf32> to vector<2x8xf32>
    %599 = vector.shape_cast %598 : vector<2x8xf32> to vector<2x8x1xf32>
    %600 = vector.broadcast %599 : vector<2x8x1xf32> to vector<2x8x8xf32>
    %601 = arith.subf %597, %600 : vector<2x8x8xf32>
    %602 = math.exp %601 : vector<2x8x8xf32>
    %cst_206 = arith.constant dense<0.000000e+00> : vector<2x8xf32>
    %603 = vector.multi_reduction <add>, %602, %cst_206 [2] : vector<2x8x8xf32> to vector<2x8xf32>
    %604 = vector.shape_cast %603 : vector<2x8xf32> to vector<2x8x1xf32>
    %605 = tpu.reciprocal %604 {approx = true} : vector<2x8x1xf32> -> vector<2x8x1xf32>
    %606 = vector.broadcast %605 : vector<2x8x1xf32> to vector<2x8x8xf32>
    %607 = arith.mulf %602, %606 : vector<2x8x8xf32>
    %608 = arith.truncf %607 : vector<2x8x8xf32> to vector<2x8x8xbf16>
    "tpu.trace_start"() <{level = 10 : i32, message = "bqk,bkd->bqd"}> : () -> ()
    %cst_207 = arith.constant dense<0.000000e+00> : vector<2x8x32xf32>
    %609 = tpu.matmul %608, %596, %cst_207 {dimension_numbers = #tpu.dot_dimension_numbers<[2], [1], [1], [2], [0, 0, 0, 1, 1, 2], [0], [0]>} : vector<2x8x8xbf16>, vector<2x8x32xbf16>, vector<2x8x32xf32> -> vector<2x8x32xf32>
    "tpu.trace_stop"() : () -> ()
    %610 = vector.extract_strided_slice %567 {offsets = [0, 0, 64], sizes = [2, 8, 32], strides = [1, 1, 1]} : vector<2x8x256xf32> to vector<2x8x32xf32>
    %611 = arith.truncf %610 : vector<2x8x32xf32> to vector<2x8x32xbf16>
    %612 = vector.extract_strided_slice %569 {offsets = [0, 0, 64], sizes = [2, 8, 32], strides = [1, 1, 1]} : vector<2x8x256xf32> to vector<2x8x32xf32>
    %613 = arith.truncf %612 : vector<2x8x32xf32> to vector<2x8x32xbf16>
    %614 = vector.extract_strided_slice %571 {offsets = [0, 0, 64], sizes = [2, 8, 32], strides = [1, 1, 1]} : vector<2x8x256xf32> to vector<2x8x32xf32>
    %615 = arith.truncf %614 : vector<2x8x32xf32> to vector<2x8x32xbf16>
    "tpu.trace_start"() <{level = 10 : i32, message = "bqd,bkd->bqk"}> : () -> ()
    %cst_208 = arith.constant dense<0.000000e+00> : vector<2x8x8xf32>
    %616 = tpu.matmul %611, %613, %cst_208 {dimension_numbers = #tpu.dot_dimension_numbers<[2], [2], [1], [1], [0, 0, 0, 1, 1, 1], [0], [0]>} : vector<2x8x32xbf16>, vector<2x8x32xbf16>, vector<2x8x8xf32> -> vector<2x8x8xf32>
    "tpu.trace_stop"() : () -> ()
    %cst_209 = arith.constant dense<0xFF800000> : vector<2x8xf32>
    %617 = vector.multi_reduction <maximumf>, %616, %cst_209 [2] : vector<2x8x8xf32> to vector<2x8xf32>
    %618 = vector.shape_cast %617 : vector<2x8xf32> to vector<2x8x1xf32>
    %619 = vector.broadcast %618 : vector<2x8x1xf32> to vector<2x8x8xf32>
    %620 = arith.subf %616, %619 : vector<2x8x8xf32>
    %621 = math.exp %620 : vector<2x8x8xf32>
    %cst_210 = arith.constant dense<0.000000e+00> : vector<2x8xf32>
    %622 = vector.multi_reduction <add>, %621, %cst_210 [2] : vector<2x8x8xf32> to vector<2x8xf32>
    %623 = vector.shape_cast %622 : vector<2x8xf32> to vector<2x8x1xf32>
    %624 = tpu.reciprocal %623 {approx = true} : vector<2x8x1xf32> -> vector<2x8x1xf32>
    %625 = vector.broadcast %624 : vector<2x8x1xf32> to vector<2x8x8xf32>
    %626 = arith.mulf %621, %625 : vector<2x8x8xf32>
    %627 = arith.truncf %626 : vector<2x8x8xf32> to vector<2x8x8xbf16>
    "tpu.trace_start"() <{level = 10 : i32, message = "bqk,bkd->bqd"}> : () -> ()
    %cst_211 = arith.constant dense<0.000000e+00> : vector<2x8x32xf32>
    %628 = tpu.matmul %627, %615, %cst_211 {dimension_numbers = #tpu.dot_dimension_numbers<[2], [1], [1], [2], [0, 0, 0, 1, 1, 2], [0], [0]>} : vector<2x8x8xbf16>, vector<2x8x32xbf16>, vector<2x8x32xf32> -> vector<2x8x32xf32>
    "tpu.trace_stop"() : () -> ()
    %629 = vector.extract_strided_slice %567 {offsets = [0, 0, 96], sizes = [2, 8, 32], strides = [1, 1, 1]} : vector<2x8x256xf32> to vector<2x8x32xf32>
    %630 = arith.truncf %629 : vector<2x8x32xf32> to vector<2x8x32xbf16>
    %631 = vector.extract_strided_slice %569 {offsets = [0, 0, 96], sizes = [2, 8, 32], strides = [1, 1, 1]} : vector<2x8x256xf32> to vector<2x8x32xf32>
    %632 = arith.truncf %631 : vector<2x8x32xf32> to vector<2x8x32xbf16>
    %633 = vector.extract_strided_slice %571 {offsets = [0, 0, 96], sizes = [2, 8, 32], strides = [1, 1, 1]} : vector<2x8x256xf32> to vector<2x8x32xf32>
    %634 = arith.truncf %633 : vector<2x8x32xf32> to vector<2x8x32xbf16>
    "tpu.trace_start"() <{level = 10 : i32, message = "bqd,bkd->bqk"}> : () -> ()
    %cst_212 = arith.constant dense<0.000000e+00> : vector<2x8x8xf32>
    %635 = tpu.matmul %630, %632, %cst_212 {dimension_numbers = #tpu.dot_dimension_numbers<[2], [2], [1], [1], [0, 0, 0, 1, 1, 1], [0], [0]>} : vector<2x8x32xbf16>, vector<2x8x32xbf16>, vector<2x8x8xf32> -> vector<2x8x8xf32>
    "tpu.trace_stop"() : () -> ()
    %cst_213 = arith.constant dense<0xFF800000> : vector<2x8xf32>
    %636 = vector.multi_reduction <maximumf>, %635, %cst_213 [2] : vector<2x8x8xf32> to vector<2x8xf32>
    %637 = vector.shape_cast %636 : vector<2x8xf32> to vector<2x8x1xf32>
    %638 = vector.broadcast %637 : vector<2x8x1xf32> to vector<2x8x8xf32>
    %639 = arith.subf %635, %638 : vector<2x8x8xf32>
    %640 = math.exp %639 : vector<2x8x8xf32>
    %cst_214 = arith.constant dense<0.000000e+00> : vector<2x8xf32>
    %641 = vector.multi_reduction <add>, %640, %cst_214 [2] : vector<2x8x8xf32> to vector<2x8xf32>
    %642 = vector.shape_cast %641 : vector<2x8xf32> to vector<2x8x1xf32>
    %643 = tpu.reciprocal %642 {approx = true} : vector<2x8x1xf32> -> vector<2x8x1xf32>
    %644 = vector.broadcast %643 : vector<2x8x1xf32> to vector<2x8x8xf32>
    %645 = arith.mulf %640, %644 : vector<2x8x8xf32>
    %646 = arith.truncf %645 : vector<2x8x8xf32> to vector<2x8x8xbf16>
    "tpu.trace_start"() <{level = 10 : i32, message = "bqk,bkd->bqd"}> : () -> ()
    %cst_215 = arith.constant dense<0.000000e+00> : vector<2x8x32xf32>
    %647 = tpu.matmul %646, %634, %cst_215 {dimension_numbers = #tpu.dot_dimension_numbers<[2], [1], [1], [2], [0, 0, 0, 1, 1, 2], [0], [0]>} : vector<2x8x8xbf16>, vector<2x8x32xbf16>, vector<2x8x32xf32> -> vector<2x8x32xf32>
    "tpu.trace_stop"() : () -> ()
    %648 = vector.extract_strided_slice %567 {offsets = [0, 0, 128], sizes = [2, 8, 32], strides = [1, 1, 1]} : vector<2x8x256xf32> to vector<2x8x32xf32>
    %649 = arith.truncf %648 : vector<2x8x32xf32> to vector<2x8x32xbf16>
    %650 = vector.extract_strided_slice %569 {offsets = [0, 0, 128], sizes = [2, 8, 32], strides = [1, 1, 1]} : vector<2x8x256xf32> to vector<2x8x32xf32>
    %651 = arith.truncf %650 : vector<2x8x32xf32> to vector<2x8x32xbf16>
    %652 = vector.extract_strided_slice %571 {offsets = [0, 0, 128], sizes = [2, 8, 32], strides = [1, 1, 1]} : vector<2x8x256xf32> to vector<2x8x32xf32>
    %653 = arith.truncf %652 : vector<2x8x32xf32> to vector<2x8x32xbf16>
    "tpu.trace_start"() <{level = 10 : i32, message = "bqd,bkd->bqk"}> : () -> ()
    %cst_216 = arith.constant dense<0.000000e+00> : vector<2x8x8xf32>
    %654 = tpu.matmul %649, %651, %cst_216 {dimension_numbers = #tpu.dot_dimension_numbers<[2], [2], [1], [1], [0, 0, 0, 1, 1, 1], [0], [0]>} : vector<2x8x32xbf16>, vector<2x8x32xbf16>, vector<2x8x8xf32> -> vector<2x8x8xf32>
    "tpu.trace_stop"() : () -> ()
    %cst_217 = arith.constant dense<0xFF800000> : vector<2x8xf32>
    %655 = vector.multi_reduction <maximumf>, %654, %cst_217 [2] : vector<2x8x8xf32> to vector<2x8xf32>
    %656 = vector.shape_cast %655 : vector<2x8xf32> to vector<2x8x1xf32>
    %657 = vector.broadcast %656 : vector<2x8x1xf32> to vector<2x8x8xf32>
    %658 = arith.subf %654, %657 : vector<2x8x8xf32>
    %659 = math.exp %658 : vector<2x8x8xf32>
    %cst_218 = arith.constant dense<0.000000e+00> : vector<2x8xf32>
    %660 = vector.multi_reduction <add>, %659, %cst_218 [2] : vector<2x8x8xf32> to vector<2x8xf32>
    %661 = vector.shape_cast %660 : vector<2x8xf32> to vector<2x8x1xf32>
    %662 = tpu.reciprocal %661 {approx = true} : vector<2x8x1xf32> -> vector<2x8x1xf32>
    %663 = vector.broadcast %662 : vector<2x8x1xf32> to vector<2x8x8xf32>
    %664 = arith.mulf %659, %663 : vector<2x8x8xf32>
    %665 = arith.truncf %664 : vector<2x8x8xf32> to vector<2x8x8xbf16>
    "tpu.trace_start"() <{level = 10 : i32, message = "bqk,bkd->bqd"}> : () -> ()
    %cst_219 = arith.constant dense<0.000000e+00> : vector<2x8x32xf32>
    %666 = tpu.matmul %665, %653, %cst_219 {dimension_numbers = #tpu.dot_dimension_numbers<[2], [1], [1], [2], [0, 0, 0, 1, 1, 2], [0], [0]>} : vector<2x8x8xbf16>, vector<2x8x32xbf16>, vector<2x8x32xf32> -> vector<2x8x32xf32>
    "tpu.trace_stop"() : () -> ()
    %667 = vector.extract_strided_slice %567 {offsets = [0, 0, 160], sizes = [2, 8, 32], strides = [1, 1, 1]} : vector<2x8x256xf32> to vector<2x8x32xf32>
    %668 = arith.truncf %667 : vector<2x8x32xf32> to vector<2x8x32xbf16>
    %669 = vector.extract_strided_slice %569 {offsets = [0, 0, 160], sizes = [2, 8, 32], strides = [1, 1, 1]} : vector<2x8x256xf32> to vector<2x8x32xf32>
    %670 = arith.truncf %669 : vector<2x8x32xf32> to vector<2x8x32xbf16>
    %671 = vector.extract_strided_slice %571 {offsets = [0, 0, 160], sizes = [2, 8, 32], strides = [1, 1, 1]} : vector<2x8x256xf32> to vector<2x8x32xf32>
    %672 = arith.truncf %671 : vector<2x8x32xf32> to vector<2x8x32xbf16>
    "tpu.trace_start"() <{level = 10 : i32, message = "bqd,bkd->bqk"}> : () -> ()
    %cst_220 = arith.constant dense<0.000000e+00> : vector<2x8x8xf32>
    %673 = tpu.matmul %668, %670, %cst_220 {dimension_numbers = #tpu.dot_dimension_numbers<[2], [2], [1], [1], [0, 0, 0, 1, 1, 1], [0], [0]>} : vector<2x8x32xbf16>, vector<2x8x32xbf16>, vector<2x8x8xf32> -> vector<2x8x8xf32>
    "tpu.trace_stop"() : () -> ()
    %cst_221 = arith.constant dense<0xFF800000> : vector<2x8xf32>
    %674 = vector.multi_reduction <maximumf>, %673, %cst_221 [2] : vector<2x8x8xf32> to vector<2x8xf32>
    %675 = vector.shape_cast %674 : vector<2x8xf32> to vector<2x8x1xf32>
    %676 = vector.broadcast %675 : vector<2x8x1xf32> to vector<2x8x8xf32>
    %677 = arith.subf %673, %676 : vector<2x8x8xf32>
    %678 = math.exp %677 : vector<2x8x8xf32>
    %cst_222 = arith.constant dense<0.000000e+00> : vector<2x8xf32>
    %679 = vector.multi_reduction <add>, %678, %cst_222 [2] : vector<2x8x8xf32> to vector<2x8xf32>
    %680 = vector.shape_cast %679 : vector<2x8xf32> to vector<2x8x1xf32>
    %681 = tpu.reciprocal %680 {approx = true} : vector<2x8x1xf32> -> vector<2x8x1xf32>
    %682 = vector.broadcast %681 : vector<2x8x1xf32> to vector<2x8x8xf32>
    %683 = arith.mulf %678, %682 : vector<2x8x8xf32>
    %684 = arith.truncf %683 : vector<2x8x8xf32> to vector<2x8x8xbf16>
    "tpu.trace_start"() <{level = 10 : i32, message = "bqk,bkd->bqd"}> : () -> ()
    %cst_223 = arith.constant dense<0.000000e+00> : vector<2x8x32xf32>
    %685 = tpu.matmul %684, %672, %cst_223 {dimension_numbers = #tpu.dot_dimension_numbers<[2], [1], [1], [2], [0, 0, 0, 1, 1, 2], [0], [0]>} : vector<2x8x8xbf16>, vector<2x8x32xbf16>, vector<2x8x32xf32> -> vector<2x8x32xf32>
    "tpu.trace_stop"() : () -> ()
    %686 = vector.extract_strided_slice %567 {offsets = [0, 0, 192], sizes = [2, 8, 32], strides = [1, 1, 1]} : vector<2x8x256xf32> to vector<2x8x32xf32>
    %687 = arith.truncf %686 : vector<2x8x32xf32> to vector<2x8x32xbf16>
    %688 = vector.extract_strided_slice %569 {offsets = [0, 0, 192], sizes = [2, 8, 32], strides = [1, 1, 1]} : vector<2x8x256xf32> to vector<2x8x32xf32>
    %689 = arith.truncf %688 : vector<2x8x32xf32> to vector<2x8x32xbf16>
    %690 = vector.extract_strided_slice %571 {offsets = [0, 0, 192], sizes = [2, 8, 32], strides = [1, 1, 1]} : vector<2x8x256xf32> to vector<2x8x32xf32>
    %691 = arith.truncf %690 : vector<2x8x32xf32> to vector<2x8x32xbf16>
    "tpu.trace_start"() <{level = 10 : i32, message = "bqd,bkd->bqk"}> : () -> ()
    %cst_224 = arith.constant dense<0.000000e+00> : vector<2x8x8xf32>
    %692 = tpu.matmul %687, %689, %cst_224 {dimension_numbers = #tpu.dot_dimension_numbers<[2], [2], [1], [1], [0, 0, 0, 1, 1, 1], [0], [0]>} : vector<2x8x32xbf16>, vector<2x8x32xbf16>, vector<2x8x8xf32> -> vector<2x8x8xf32>
    "tpu.trace_stop"() : () -> ()
    %cst_225 = arith.constant dense<0xFF800000> : vector<2x8xf32>
    %693 = vector.multi_reduction <maximumf>, %692, %cst_225 [2] : vector<2x8x8xf32> to vector<2x8xf32>
    %694 = vector.shape_cast %693 : vector<2x8xf32> to vector<2x8x1xf32>
    %695 = vector.broadcast %694 : vector<2x8x1xf32> to vector<2x8x8xf32>
    %696 = arith.subf %692, %695 : vector<2x8x8xf32>
    %697 = math.exp %696 : vector<2x8x8xf32>
    %cst_226 = arith.constant dense<0.000000e+00> : vector<2x8xf32>
    %698 = vector.multi_reduction <add>, %697, %cst_226 [2] : vector<2x8x8xf32> to vector<2x8xf32>
    %699 = vector.shape_cast %698 : vector<2x8xf32> to vector<2x8x1xf32>
    %700 = tpu.reciprocal %699 {approx = true} : vector<2x8x1xf32> -> vector<2x8x1xf32>
    %701 = vector.broadcast %700 : vector<2x8x1xf32> to vector<2x8x8xf32>
    %702 = arith.mulf %697, %701 : vector<2x8x8xf32>
    %703 = arith.truncf %702 : vector<2x8x8xf32> to vector<2x8x8xbf16>
    "tpu.trace_start"() <{level = 10 : i32, message = "bqk,bkd->bqd"}> : () -> ()
    %cst_227 = arith.constant dense<0.000000e+00> : vector<2x8x32xf32>
    %704 = tpu.matmul %703, %691, %cst_227 {dimension_numbers = #tpu.dot_dimension_numbers<[2], [1], [1], [2], [0, 0, 0, 1, 1, 2], [0], [0]>} : vector<2x8x8xbf16>, vector<2x8x32xbf16>, vector<2x8x32xf32> -> vector<2x8x32xf32>
    "tpu.trace_stop"() : () -> ()
    %705 = vector.extract_strided_slice %567 {offsets = [0, 0, 224], sizes = [2, 8, 32], strides = [1, 1, 1]} : vector<2x8x256xf32> to vector<2x8x32xf32>
    %706 = arith.truncf %705 : vector<2x8x32xf32> to vector<2x8x32xbf16>
    %707 = vector.extract_strided_slice %569 {offsets = [0, 0, 224], sizes = [2, 8, 32], strides = [1, 1, 1]} : vector<2x8x256xf32> to vector<2x8x32xf32>
    %708 = arith.truncf %707 : vector<2x8x32xf32> to vector<2x8x32xbf16>
    %709 = vector.extract_strided_slice %571 {offsets = [0, 0, 224], sizes = [2, 8, 32], strides = [1, 1, 1]} : vector<2x8x256xf32> to vector<2x8x32xf32>
    %710 = arith.truncf %709 : vector<2x8x32xf32> to vector<2x8x32xbf16>
    "tpu.trace_start"() <{level = 10 : i32, message = "bqd,bkd->bqk"}> : () -> ()
    %cst_228 = arith.constant dense<0.000000e+00> : vector<2x8x8xf32>
    %711 = tpu.matmul %706, %708, %cst_228 {dimension_numbers = #tpu.dot_dimension_numbers<[2], [2], [1], [1], [0, 0, 0, 1, 1, 1], [0], [0]>} : vector<2x8x32xbf16>, vector<2x8x32xbf16>, vector<2x8x8xf32> -> vector<2x8x8xf32>
    "tpu.trace_stop"() : () -> ()
    %cst_229 = arith.constant dense<0xFF800000> : vector<2x8xf32>
    %712 = vector.multi_reduction <maximumf>, %711, %cst_229 [2] : vector<2x8x8xf32> to vector<2x8xf32>
    %713 = vector.shape_cast %712 : vector<2x8xf32> to vector<2x8x1xf32>
    %714 = vector.broadcast %713 : vector<2x8x1xf32> to vector<2x8x8xf32>
    %715 = arith.subf %711, %714 : vector<2x8x8xf32>
    %716 = math.exp %715 : vector<2x8x8xf32>
    %cst_230 = arith.constant dense<0.000000e+00> : vector<2x8xf32>
    %717 = vector.multi_reduction <add>, %716, %cst_230 [2] : vector<2x8x8xf32> to vector<2x8xf32>
    %718 = vector.shape_cast %717 : vector<2x8xf32> to vector<2x8x1xf32>
    %719 = tpu.reciprocal %718 {approx = true} : vector<2x8x1xf32> -> vector<2x8x1xf32>
    %720 = vector.broadcast %719 : vector<2x8x1xf32> to vector<2x8x8xf32>
    %721 = arith.mulf %716, %720 : vector<2x8x8xf32>
    %722 = arith.truncf %721 : vector<2x8x8xf32> to vector<2x8x8xbf16>
    "tpu.trace_start"() <{level = 10 : i32, message = "bqk,bkd->bqd"}> : () -> ()
    %cst_231 = arith.constant dense<0.000000e+00> : vector<2x8x32xf32>
    %723 = tpu.matmul %722, %710, %cst_231 {dimension_numbers = #tpu.dot_dimension_numbers<[2], [1], [1], [2], [0, 0, 0, 1, 1, 2], [0], [0]>} : vector<2x8x8xbf16>, vector<2x8x32xbf16>, vector<2x8x32xf32> -> vector<2x8x32xf32>
    "tpu.trace_stop"() : () -> ()
    %724 = tpu.concatenate %590, %609, %628, %647, %666, %685, %704, %723 in 2 : vector<2x8x32xf32>, vector<2x8x32xf32>, vector<2x8x32xf32>, vector<2x8x32xf32>, vector<2x8x32xf32>, vector<2x8x32xf32>, vector<2x8x32xf32>, vector<2x8x32xf32> -> vector<2x8x256xf32>
    %725 = vector.shape_cast %724 : vector<2x8x256xf32> to vector<16x256xf32>
    %726 = arith.truncf %725 : vector<16x256xf32> to vector<16x256xbf16>
    %c2_232 = arith.constant 2 : index
    %c0_233 = arith.constant 0 : index
    %c0_234 = arith.constant 0 : index
    %727 = vector.load %arg4[%c2_232, %c0_233, %c0_234] : memref<3x256x256xbf16, #tpu.memory_space<vmem>>, vector<1x256x256xbf16>
    %728 = vector.shape_cast %727 : vector<1x256x256xbf16> to vector<256x256xbf16>
    %cst_235 = arith.constant dense<0.000000e+00> : vector<16x256xf32>
    %729 = tpu.matmul %726, %728, %cst_235 {dimension_numbers = #tpu.dot_dimension_numbers<[1], [0], [0], [1], [0, 0, 1, 1], [], []>} : vector<16x256xbf16>, vector<256x256xbf16>, vector<16x256xf32> -> vector<16x256xf32>
    %c2_236 = arith.constant 2 : index
    %c0_237 = arith.constant 0 : index
    %c0_238 = arith.constant 0 : index
    %730 = vector.load %arg5[%c2_236, %c0_237, %c0_238] : memref<3x1x256xf32, #tpu.memory_space<vmem>>, vector<1x1x256xf32>
    %731 = vector.shape_cast %730 : vector<1x1x256xf32> to vector<1x256xf32>
    %732 = vector.broadcast %731 : vector<1x256xf32> to vector<16x256xf32>
    %733 = arith.addf %729, %732 : vector<16x256xf32>
    %734 = arith.addf %557, %733 : vector<16x256xf32>
    %c2_239 = arith.constant 2 : index
    %c0_240 = arith.constant 0 : index
    %c0_241 = arith.constant 0 : index
    %735 = vector.load %arg11[%c2_239, %c0_240, %c0_241] : memref<3x1x256xf32, #tpu.memory_space<vmem>>, vector<1x1x256xf32>
    %736 = vector.shape_cast %735 : vector<1x1x256xf32> to vector<1x256xf32>
    %c2_242 = arith.constant 2 : index
    %c0_243 = arith.constant 0 : index
    %c0_244 = arith.constant 0 : index
    %737 = vector.load %arg12[%c2_242, %c0_243, %c0_244] : memref<3x1x256xf32, #tpu.memory_space<vmem>>, vector<1x1x256xf32>
    %738 = vector.shape_cast %737 : vector<1x1x256xf32> to vector<1x256xf32>
    %cst_245 = arith.constant dense<0.000000e+00> : vector<16xf32>
    %739 = vector.multi_reduction <add>, %734, %cst_245 [1] : vector<16x256xf32> to vector<16xf32>
    %740 = vector.shape_cast %739 : vector<16xf32> to vector<16x1xf32>
    %cst_246 = arith.constant 2.560000e+02 : f32
    %741 = vector.broadcast %cst_246 : f32 to vector<16x1xf32>
    %742 = arith.divf %740, %741 : vector<16x1xf32>
    %743 = arith.mulf %734, %734 : vector<16x256xf32>
    %cst_247 = arith.constant dense<0.000000e+00> : vector<16xf32>
    %744 = vector.multi_reduction <add>, %743, %cst_247 [1] : vector<16x256xf32> to vector<16xf32>
    %745 = vector.shape_cast %744 : vector<16xf32> to vector<16x1xf32>
    %cst_248 = arith.constant 2.560000e+02 : f32
    %746 = vector.broadcast %cst_248 : f32 to vector<16x1xf32>
    %747 = arith.divf %745, %746 : vector<16x1xf32>
    %748 = arith.mulf %742, %742 : vector<16x1xf32>
    %749 = arith.subf %747, %748 : vector<16x1xf32>
    %750 = vector.broadcast %742 : vector<16x1xf32> to vector<16x256xf32>
    %751 = arith.subf %734, %750 : vector<16x256xf32>
    %cst_249 = arith.constant 9.99999974E-6 : f32
    %752 = vector.broadcast %cst_249 : f32 to vector<16x1xf32>
    %753 = arith.addf %749, %752 : vector<16x1xf32>
    %754 = math.rsqrt %753 : vector<16x1xf32>
    %755 = vector.broadcast %754 : vector<16x1xf32> to vector<16x256xf32>
    %756 = arith.mulf %751, %755 : vector<16x256xf32>
    %757 = vector.broadcast %736 : vector<1x256xf32> to vector<16x256xf32>
    %758 = arith.mulf %756, %757 : vector<16x256xf32>
    %759 = vector.broadcast %738 : vector<1x256xf32> to vector<16x256xf32>
    %760 = arith.addf %758, %759 : vector<16x256xf32>
    %c2_250 = arith.constant 2 : index
    %c0_251 = arith.constant 0 : index
    %c0_252 = arith.constant 0 : index
    %761 = vector.load %arg6[%c2_250, %c0_251, %c0_252] : memref<3x1x256xf32, #tpu.memory_space<vmem>>, vector<1x1x256xf32>
    %762 = vector.shape_cast %761 : vector<1x1x256xf32> to vector<1x256xf32>
    %763 = vector.broadcast %762 : vector<1x256xf32> to vector<16x256xf32>
    %764 = arith.addf %760, %763 : vector<16x256xf32>
    %c2_253 = arith.constant 2 : index
    %c0_254 = arith.constant 0 : index
    %c0_255 = arith.constant 0 : index
    %765 = vector.load %arg13[%c2_253, %c0_254, %c0_255] : memref<3x1x256xf32, #tpu.memory_space<vmem>>, vector<1x1x256xf32>
    %766 = vector.shape_cast %765 : vector<1x1x256xf32> to vector<1x256xf32>
    %c2_256 = arith.constant 2 : index
    %c0_257 = arith.constant 0 : index
    %c0_258 = arith.constant 0 : index
    %767 = vector.load %arg14[%c2_256, %c0_257, %c0_258] : memref<3x1x256xf32, #tpu.memory_space<vmem>>, vector<1x1x256xf32>
    %768 = vector.shape_cast %767 : vector<1x1x256xf32> to vector<1x256xf32>
    %cst_259 = arith.constant dense<0.000000e+00> : vector<16xf32>
    %769 = vector.multi_reduction <add>, %764, %cst_259 [1] : vector<16x256xf32> to vector<16xf32>
    %770 = vector.shape_cast %769 : vector<16xf32> to vector<16x1xf32>
    %cst_260 = arith.constant 2.560000e+02 : f32
    %771 = vector.broadcast %cst_260 : f32 to vector<16x1xf32>
    %772 = arith.divf %770, %771 : vector<16x1xf32>
    %773 = arith.mulf %764, %764 : vector<16x256xf32>
    %cst_261 = arith.constant dense<0.000000e+00> : vector<16xf32>
    %774 = vector.multi_reduction <add>, %773, %cst_261 [1] : vector<16x256xf32> to vector<16xf32>
    %775 = vector.shape_cast %774 : vector<16xf32> to vector<16x1xf32>
    %cst_262 = arith.constant 2.560000e+02 : f32
    %776 = vector.broadcast %cst_262 : f32 to vector<16x1xf32>
    %777 = arith.divf %775, %776 : vector<16x1xf32>
    %778 = arith.mulf %772, %772 : vector<16x1xf32>
    %779 = arith.subf %777, %778 : vector<16x1xf32>
    %780 = vector.broadcast %772 : vector<16x1xf32> to vector<16x256xf32>
    %781 = arith.subf %764, %780 : vector<16x256xf32>
    %cst_263 = arith.constant 9.99999974E-6 : f32
    %782 = vector.broadcast %cst_263 : f32 to vector<16x1xf32>
    %783 = arith.addf %779, %782 : vector<16x1xf32>
    %784 = math.rsqrt %783 : vector<16x1xf32>
    %785 = vector.broadcast %784 : vector<16x1xf32> to vector<16x256xf32>
    %786 = arith.mulf %781, %785 : vector<16x256xf32>
    %787 = vector.broadcast %766 : vector<1x256xf32> to vector<16x256xf32>
    %788 = arith.mulf %786, %787 : vector<16x256xf32>
    %789 = vector.broadcast %768 : vector<1x256xf32> to vector<16x256xf32>
    %790 = arith.addf %788, %789 : vector<16x256xf32>
    %791 = arith.truncf %790 : vector<16x256xf32> to vector<16x256xbf16>
    %c2_264 = arith.constant 2 : index
    %c0_265 = arith.constant 0 : index
    %c0_266 = arith.constant 0 : index
    %792 = vector.load %arg7[%c2_264, %c0_265, %c0_266] : memref<3x256x512xbf16, #tpu.memory_space<vmem>>, vector<1x256x512xbf16>
    %793 = vector.shape_cast %792 : vector<1x256x512xbf16> to vector<256x512xbf16>
    %cst_267 = arith.constant dense<0.000000e+00> : vector<16x512xf32>
    %794 = tpu.matmul %791, %793, %cst_267 {dimension_numbers = #tpu.dot_dimension_numbers<[1], [0], [0], [1], [0, 0, 1, 1], [], []>} : vector<16x256xbf16>, vector<256x512xbf16>, vector<16x512xf32> -> vector<16x512xf32>
    %c2_268 = arith.constant 2 : index
    %c0_269 = arith.constant 0 : index
    %c0_270 = arith.constant 0 : index
    %795 = vector.load %arg8[%c2_268, %c0_269, %c0_270] : memref<3x1x512xf32, #tpu.memory_space<vmem>>, vector<1x1x512xf32>
    %796 = vector.shape_cast %795 : vector<1x1x512xf32> to vector<1x512xf32>
    %797 = vector.broadcast %796 : vector<1x512xf32> to vector<16x512xf32>
    %798 = arith.addf %794, %797 : vector<16x512xf32>
    %cst_271 = arith.constant 0.000000e+00 : f32
    %799 = vector.broadcast %cst_271 : f32 to vector<16x512xf32>
    %800 = arith.maximumf %798, %799 : vector<16x512xf32>
    %801 = arith.truncf %800 : vector<16x512xf32> to vector<16x512xbf16>
    %c2_272 = arith.constant 2 : index
    %c0_273 = arith.constant 0 : index
    %c0_274 = arith.constant 0 : index
    %802 = vector.load %arg9[%c2_272, %c0_273, %c0_274] : memref<3x512x256xbf16, #tpu.memory_space<vmem>>, vector<1x512x256xbf16>
    %803 = vector.shape_cast %802 : vector<1x512x256xbf16> to vector<512x256xbf16>
    %cst_275 = arith.constant dense<0.000000e+00> : vector<16x256xf32>
    %804 = tpu.matmul %801, %803, %cst_275 {dimension_numbers = #tpu.dot_dimension_numbers<[1], [0], [0], [1], [0, 0, 1, 1], [], []>} : vector<16x512xbf16>, vector<512x256xbf16>, vector<16x256xf32> -> vector<16x256xf32>
    %c2_276 = arith.constant 2 : index
    %c0_277 = arith.constant 0 : index
    %c0_278 = arith.constant 0 : index
    %805 = vector.load %arg10[%c2_276, %c0_277, %c0_278] : memref<3x1x256xf32, #tpu.memory_space<vmem>>, vector<1x1x256xf32>
    %806 = vector.shape_cast %805 : vector<1x1x256xf32> to vector<1x256xf32>
    %807 = vector.broadcast %806 : vector<1x256xf32> to vector<16x256xf32>
    %808 = arith.addf %804, %807 : vector<16x256xf32>
    %809 = arith.addf %790, %808 : vector<16x256xf32>
    %c2_279 = arith.constant 2 : index
    %c0_280 = arith.constant 0 : index
    %c0_281 = arith.constant 0 : index
    %810 = vector.load %arg15[%c2_279, %c0_280, %c0_281] : memref<3x1x256xf32, #tpu.memory_space<vmem>>, vector<1x1x256xf32>
    %811 = vector.shape_cast %810 : vector<1x1x256xf32> to vector<1x256xf32>
    %c2_282 = arith.constant 2 : index
    %c0_283 = arith.constant 0 : index
    %c0_284 = arith.constant 0 : index
    %812 = vector.load %arg16[%c2_282, %c0_283, %c0_284] : memref<3x1x256xf32, #tpu.memory_space<vmem>>, vector<1x1x256xf32>
    %813 = vector.shape_cast %812 : vector<1x1x256xf32> to vector<1x256xf32>
    %cst_285 = arith.constant dense<0.000000e+00> : vector<16xf32>
    %814 = vector.multi_reduction <add>, %809, %cst_285 [1] : vector<16x256xf32> to vector<16xf32>
    %815 = vector.shape_cast %814 : vector<16xf32> to vector<16x1xf32>
    %cst_286 = arith.constant 2.560000e+02 : f32
    %816 = vector.broadcast %cst_286 : f32 to vector<16x1xf32>
    %817 = arith.divf %815, %816 : vector<16x1xf32>
    %818 = arith.mulf %809, %809 : vector<16x256xf32>
    %cst_287 = arith.constant dense<0.000000e+00> : vector<16xf32>
    %819 = vector.multi_reduction <add>, %818, %cst_287 [1] : vector<16x256xf32> to vector<16xf32>
    %820 = vector.shape_cast %819 : vector<16xf32> to vector<16x1xf32>
    %cst_288 = arith.constant 2.560000e+02 : f32
    %821 = vector.broadcast %cst_288 : f32 to vector<16x1xf32>
    %822 = arith.divf %820, %821 : vector<16x1xf32>
    %823 = arith.mulf %817, %817 : vector<16x1xf32>
    %824 = arith.subf %822, %823 : vector<16x1xf32>
    %825 = vector.broadcast %817 : vector<16x1xf32> to vector<16x256xf32>
    %826 = arith.subf %809, %825 : vector<16x256xf32>
    %cst_289 = arith.constant 9.99999974E-6 : f32
    %827 = vector.broadcast %cst_289 : f32 to vector<16x1xf32>
    %828 = arith.addf %824, %827 : vector<16x1xf32>
    %829 = math.rsqrt %828 : vector<16x1xf32>
    %830 = vector.broadcast %829 : vector<16x1xf32> to vector<16x256xf32>
    %831 = arith.mulf %826, %830 : vector<16x256xf32>
    %832 = vector.broadcast %811 : vector<1x256xf32> to vector<16x256xf32>
    %833 = arith.mulf %831, %832 : vector<16x256xf32>
    %834 = vector.broadcast %813 : vector<1x256xf32> to vector<16x256xf32>
    %835 = arith.addf %833, %834 : vector<16x256xf32>
    %836 = vector.shape_cast %835 : vector<16x256xf32> to vector<2x8x256xf32>
    %837 = arith.truncf %836 : vector<2x8x256xf32> to vector<2x8x256xbf16>
    %c0_290 = arith.constant 0 : index
    %c0_291 = arith.constant 0 : index
    %c0_292 = arith.constant 0 : index
    %838 = vector.load %arg17[%c0_290, %c0_291, %c0_292] : memref<2x8x256xbf16, #tpu.memory_space<vmem>>, vector<2x8x256xbf16>
    tpu.vector_store %arg17[%c0_290, %c0_291, %c0_292], %837 {strides = array<i32>} : memref<2x8x256xbf16, #tpu.memory_space<vmem>>, vector<2x8x256xbf16>,
    return
  }
  func.func @transform_0(%arg0: i32) -> (i32, i32, i32) {
    %c0_i32 = arith.constant 0 : i32
    %c0_i32_0 = arith.constant 0 : i32
    %c0_i32_1 = arith.constant 0 : i32
    return %arg0, %c0_i32, %c0_i32_0 : i32, i32, i32
  }
  func.func @transform_1(%arg0: i32) -> (i32, i32, i32) {
    %c0_i32 = arith.constant 0 : i32
    %c0_i32_0 = arith.constant 0 : i32
    %c0_i32_1 = arith.constant 0 : i32
    %c0_i32_2 = arith.constant 0 : i32
    return %c0_i32, %c0_i32_0, %c0_i32_1 : i32, i32, i32
  }
  func.func @transform_2(%arg0: i32) -> (i32, i32, i32) {
    %c0_i32 = arith.constant 0 : i32
    %c0_i32_0 = arith.constant 0 : i32
    %c0_i32_1 = arith.constant 0 : i32
    %c0_i32_2 = arith.constant 0 : i32
    return %c0_i32, %c0_i32_0, %c0_i32_1 : i32, i32, i32
  }
  func.func @transform_3(%arg0: i32) -> (i32, i32, i32) {
    %c0_i32 = arith.constant 0 : i32
    %c0_i32_0 = arith.constant 0 : i32
    %c0_i32_1 = arith.constant 0 : i32
    %c0_i32_2 = arith.constant 0 : i32
    return %c0_i32, %c0_i32_0, %c0_i32_1 : i32, i32, i32
  }
  func.func @transform_4(%arg0: i32) -> (i32, i32, i32) {
    %c0_i32 = arith.constant 0 : i32
    %c0_i32_0 = arith.constant 0 : i32
    %c0_i32_1 = arith.constant 0 : i32
    %c0_i32_2 = arith.constant 0 : i32
    return %c0_i32, %c0_i32_0, %c0_i32_1 : i32, i32, i32
  }
  func.func @transform_5(%arg0: i32) -> (i32, i32, i32) {
    %c0_i32 = arith.constant 0 : i32
    %c0_i32_0 = arith.constant 0 : i32
    %c0_i32_1 = arith.constant 0 : i32
    %c0_i32_2 = arith.constant 0 : i32
    return %c0_i32, %c0_i32_0, %c0_i32_1 : i32, i32, i32
  }
  func.func @transform_6(%arg0: i32) -> (i32, i32, i32) {
    %c0_i32 = arith.constant 0 : i32
    %c0_i32_0 = arith.constant 0 : i32
    %c0_i32_1 = arith.constant 0 : i32
    %c0_i32_2 = arith.constant 0 : i32
    return %c0_i32, %c0_i32_0, %c0_i32_1 : i32, i32, i32
  }
  func.func @transform_7(%arg0: i32) -> (i32, i32, i32) {
    %c0_i32 = arith.constant 0 : i32
    %c0_i32_0 = arith.constant 0 : i32
    %c0_i32_1 = arith.constant 0 : i32
    %c0_i32_2 = arith.constant 0 : i32
    return %c0_i32, %c0_i32_0, %c0_i32_1 : i32, i32, i32
  }
  func.func @transform_8(%arg0: i32) -> (i32, i32, i32) {
    %c0_i32 = arith.constant 0 : i32
    %c0_i32_0 = arith.constant 0 : i32
    %c0_i32_1 = arith.constant 0 : i32
    %c0_i32_2 = arith.constant 0 : i32
    return %c0_i32, %c0_i32_0, %c0_i32_1 : i32, i32, i32
  }
  func.func @transform_9(%arg0: i32) -> (i32, i32, i32) {
    %c0_i32 = arith.constant 0 : i32
    %c0_i32_0 = arith.constant 0 : i32
    %c0_i32_1 = arith.constant 0 : i32
    %c0_i32_2 = arith.constant 0 : i32
    return %c0_i32, %c0_i32_0, %c0_i32_1 : i32, i32, i32
  }
  func.func @transform_10(%arg0: i32) -> (i32, i32, i32) {
    %c0_i32 = arith.constant 0 : i32
    %c0_i32_0 = arith.constant 0 : i32
    %c0_i32_1 = arith.constant 0 : i32
    %c0_i32_2 = arith.constant 0 : i32
    return %c0_i32, %c0_i32_0, %c0_i32_1 : i32, i32, i32
  }
  func.func @transform_11(%arg0: i32) -> (i32, i32, i32) {
    %c0_i32 = arith.constant 0 : i32
    %c0_i32_0 = arith.constant 0 : i32
    %c0_i32_1 = arith.constant 0 : i32
    %c0_i32_2 = arith.constant 0 : i32
    return %c0_i32, %c0_i32_0, %c0_i32_1 : i32, i32, i32
  }
  func.func @transform_12(%arg0: i32) -> (i32, i32, i32) {
    %c0_i32 = arith.constant 0 : i32
    %c0_i32_0 = arith.constant 0 : i32
    %c0_i32_1 = arith.constant 0 : i32
    %c0_i32_2 = arith.constant 0 : i32
    return %c0_i32, %c0_i32_0, %c0_i32_1 : i32, i32, i32
  }
  func.func @transform_13(%arg0: i32) -> (i32, i32, i32) {
    %c0_i32 = arith.constant 0 : i32
    %c0_i32_0 = arith.constant 0 : i32
    %c0_i32_1 = arith.constant 0 : i32
    %c0_i32_2 = arith.constant 0 : i32
    return %c0_i32, %c0_i32_0, %c0_i32_1 : i32, i32, i32
  }
  func.func @transform_14(%arg0: i32) -> (i32, i32, i32) {
    %c0_i32 = arith.constant 0 : i32
    %c0_i32_0 = arith.constant 0 : i32
    %c0_i32_1 = arith.constant 0 : i32
    %c0_i32_2 = arith.constant 0 : i32
    return %c0_i32, %c0_i32_0, %c0_i32_1 : i32, i32, i32
  }
  func.func @transform_15(%arg0: i32) -> (i32, i32, i32) {
    %c0_i32 = arith.constant 0 : i32
    %c0_i32_0 = arith.constant 0 : i32
    %c0_i32_1 = arith.constant 0 : i32
    %c0_i32_2 = arith.constant 0 : i32
    return %c0_i32, %c0_i32_0, %c0_i32_1 : i32, i32, i32
  }
  func.func @transform_16(%arg0: i32) -> (i32, i32, i32) {
    %c0_i32 = arith.constant 0 : i32
    %c0_i32_0 = arith.constant 0 : i32
    %c0_i32_1 = arith.constant 0 : i32
    return %arg0, %c0_i32, %c0_i32_0 : i32, i32, i32
  }
}

</mosaic_0001>

<llo_original>
// kernel: tpu_custom_call.1
$region0: #{tpu_custom_call.1}
  #allocation0 [shape = 'u32[]', space=smem, size = 0x4, offset = 0x4, fixed_abs, tag = 'smem constant byte address 0x4 - core index']
  #allocation1 [shape = 'u32[72,128]{1,0:T(1,128)}', space=vmem, size = 0x9000, scoped, tag = 'internal scratch']
  %s0 = inlined_call_operand.hbm [shape: f32[2,8,256], index: 0, kind: input, shape index: {}]
  %s1 = inlined_call_operand.hbm [shape: bf16[3,256,768], index: 1, kind: input, shape index: {}]
  %s2 = inlined_call_operand.hbm [shape: f32[3,1,768], index: 2, kind: input, shape index: {}]
  %s3 = inlined_call_operand.hbm [shape: bf16[3,256,256], index: 3, kind: input, shape index: {}]
  %s4 = inlined_call_operand.hbm [shape: f32[3,1,256], index: 4, kind: input, shape index: {}]
  %s5 = inlined_call_operand.hbm [shape: f32[3,1,256], index: 5, kind: input, shape index: {}]
  %s6 = inlined_call_operand.hbm [shape: bf16[3,256,512], index: 6, kind: input, shape index: {}]
  %s7 = inlined_call_operand.hbm [shape: f32[3,1,512], index: 7, kind: input, shape index: {}]
  %s8 = inlined_call_operand.hbm [shape: bf16[3,512,256], index: 8, kind: input, shape index: {}]
  %s9 = inlined_call_operand.hbm [shape: f32[3,1,256], index: 9, kind: input, shape index: {}]
  %s10 = inlined_call_operand.hbm [shape: f32[3,1,256], index: 10, kind: input, shape index: {}]
  %s11 = inlined_call_operand.hbm [shape: f32[3,1,256], index: 11, kind: input, shape index: {}]
  %s12 = inlined_call_operand.hbm [shape: f32[3,1,256], index: 12, kind: input, shape index: {}]
  %s13 = inlined_call_operand.hbm [shape: f32[3,1,256], index: 13, kind: input, shape index: {}]
  %s14 = inlined_call_operand.hbm [shape: f32[3,1,256], index: 14, kind: input, shape index: {}]
  %s15 = inlined_call_operand.hbm [shape: f32[3,1,256], index: 15, kind: input, shape index: {}]
  %s16 = inlined_call_operand.hbm [shape: bf16[2,8,256], index: 16, kind: output, shape index: {}]
  %s17 = sld [smem:[#allocation0]]
  $region138: #{tpu_custom_call.1} parent=0
    _
  %s19 = ssub.s32 1, %s17
  %s20 = scalar_select 0, %s19, %s17
  $region1: #{tpu_custom_call.1} parent=0
    #allocation2 [shape = 'u8[16384]{0}', space=vmem, size = 0x4000, scoped, tag = 'input window, operand 0, single buffered']
    #allocation3 [shape = 's32[1]{0}', space=sflag, size = 0x4, scoped, tag = 'scoped memory for tpu_custom_call.1']
    #allocation4 [shape = 's32[1]{0}', space=sflag, size = 0x4, scoped, tag = 'scoped memory for tpu_custom_call.1']
    #allocation5 [shape = 'u8[1179648]{0}', space=vmem, size = 0x120000, scoped, tag = 'input window, operand 1, single buffered']
    #allocation6 [shape = 's32[1]{0}', space=sflag, size = 0x4, scoped, tag = 'scoped memory for tpu_custom_call.1']
    #allocation7 [shape = 'u8[9216]{0}', space=vmem, size = 0x2400, scoped, tag = 'input window, operand 2, single buffered']
    #allocation8 [shape = 'u8[393216]{0}', space=vmem, size = 0x60000, scoped, tag = 'input window, operand 3, single buffered']
    #allocation9 [shape = 's32[1]{0}', space=sflag, size = 0x4, scoped, tag = 'scoped memory for tpu_custom_call.1']
    #allocation10 [shape = 'u8[3072]{0}', space=vmem, size = 0xc00, scoped, tag = 'input window, operand 4, single buffered']
    #allocation11 [shape = 'u8[3072]{0}', space=vmem, size = 0xc00, scoped, tag = 'input window, operand 5, single buffered']
    #allocation12 [shape = 's32[1]{0}', space=sflag, size = 0x4, scoped, tag = 'scoped memory for tpu_custom_call.1']
    #allocation13 [shape = 'u8[786432]{0}', space=vmem, size = 0xc0000, scoped, tag = 'input window, operand 6, single buffered']
    #allocation14 [shape = 'u8[6144]{0}', space=vmem, size = 0x1800, scoped, tag = 'input window, operand 7, single buffered']
    #allocation15 [shape = 's32[1]{0}', space=sflag, size = 0x4, scoped, tag = 'scoped memory for tpu_custom_call.1']
    #allocation16 [shape = 'u8[786432]{0}', space=vmem, size = 0xc0000, scoped, tag = 'input window, operand 8, single buffered']
    #allocation17 [shape = 'u8[3072]{0}', space=vmem, size = 0xc00, scoped, tag = 'input window, operand 9, single buffered']
    #allocation18 [shape = 's32[1]{0}', space=sflag, size = 0x4, scoped, tag = 'scoped memory for tpu_custom_call.1']
    #allocation19 [shape = 'u8[3072]{0}', space=vmem, size = 0xc00, scoped, tag = 'input window, operand 10, single buffered']
    #allocation20 [shape = 'u8[3072]{0}', space=vmem, size = 0xc00, scoped, tag = 'input window, operand 11, single buffered']
    #allocation21 [shape = 's32[1]{0}', space=sflag, size = 0x4, scoped, tag = 'scoped memory for tpu_custom_call.1']
    #allocation22 [shape = 'u8[3072]{0}', space=vmem, size = 0xc00, scoped, tag = 'input window, operand 12, single buffered']
    #allocation23 [shape = 'u8[3072]{0}', space=vmem, size = 0xc00, scoped, tag = 'input window, operand 13, single buffered']
    #allocation24 [shape = 's32[1]{0}', space=sflag, size = 0x4, scoped, tag = 'scoped memory for tpu_custom_call.1']
    #allocation25 [shape = 'u8[3072]{0}', space=vmem, size = 0xc00, scoped, tag = 'input window, operand 14, single buffered']
    #allocation26 [shape = 'u8[3072]{0}', space=vmem, size = 0xc00, scoped, tag = 'input window, operand 15, single buffered']
    #allocation27 [shape = 's32[1]{0}', space=sflag, size = 0x4, scoped, tag = 'scoped memory for tpu_custom_call.1']
    #allocation28 [shape = 'u8[8192]{0}', space=vmem, size = 0x2000, scoped, tag = 'output window, operand 0, single buffered']
    %21 = vsyncpa [#allocation3], 0
    %22 = vsyncpa [#allocation6], 0
    %23 = vsyncpa [#allocation9], 0
    %24 = vsyncpa [#allocation12], 0
    %25 = vsyncpa [#allocation15], 0
    %26 = vsyncpa [#allocation18], 0
    %27 = vsyncpa [#allocation21], 0
    %28 = vsyncpa [#allocation24], 0
    %29 = vsyncpa [#allocation27], 0
    %30 = vsyncpa [#allocation4], 0
    // Predicated region
    $region2: #{tpu_custom_call.1} parent=1 // pred_check
      _
    $region3: #{tpu_custom_call.1} parent=1 // pred_check_branch
      %32 = sbr.rel (0) target = $region5
    $region4: #{tpu_custom_call.1} parent=1 // pred_region
      %34 = vsyncadd [#allocation3], 0
      %s35 = sshll.u32 %s0, 4
      %s36 = int_to_ptr.hbm [resolvable:$true] %s35
      %s37 = sshll.u32 [#allocation2], 4
      %s38 = int_to_ptr.vmem [resolvable:$true] %s37
      %43 = dma.hbm_to_vmem [thread:$0]  %s36, 512, %s38, [#allocation3], 256, 256, 16
    $region5: #{tpu_custom_call.1} parent=1 // pred_fallthru
      _
    // Predicated region
    $region6: #{tpu_custom_call.1} parent=1 // pred_check
      _
    $region7: #{tpu_custom_call.1} parent=1 // pred_check_branch
      %45 = sbr.rel (0) target = $region9
    $region8: #{tpu_custom_call.1} parent=1 // pred_region
      %47 = vsyncadd [#allocation6], 0
      %s48 = sshll.u32 %s1, 4
      %s49 = int_to_ptr.hbm [resolvable:$true] %s48
      %s50 = sshll.u32 [#allocation5], 4
      %s51 = int_to_ptr.vmem [resolvable:$true] %s50
      %56 = dma.hbm_to_vmem [thread:$0]  %s49, 36864, %s51, [#allocation6], 384, 384, 24
    $region9: #{tpu_custom_call.1} parent=1 // pred_fallthru
      _
    // Predicated region
    $region10: #{tpu_custom_call.1} parent=1 // pred_check
      _
    $region11: #{tpu_custom_call.1} parent=1 // pred_check_branch
      %58 = sbr.rel (0) target = $region13
    $region12: #{tpu_custom_call.1} parent=1 // pred_region
      %60 = vsyncadd [#allocation6], 0
      %s61 = sshll.u32 %s2, 4
      %s62 = int_to_ptr.hbm [resolvable:$true] %s61
      %s63 = sshll.u32 [#allocation7], 4
      %s64 = int_to_ptr.vmem [resolvable:$true] %s63
      %69 = dma.hbm_to_vmem [thread:$0]  %s62, 288, %s64, [#allocation6], 96, 96, 6
    $region13: #{tpu_custom_call.1} parent=1 // pred_fallthru
      _
    // Predicated region
    $region14: #{tpu_custom_call.1} parent=1 // pred_check
      _
    $region15: #{tpu_custom_call.1} parent=1 // pred_check_branch
      %71 = sbr.rel (0) target = $region17
    $region16: #{tpu_custom_call.1} parent=1 // pred_region
      %73 = vsyncadd [#allocation9], 0
      %s74 = sshll.u32 %s3, 4
      %s75 = int_to_ptr.hbm [resolvable:$true] %s74
      %s76 = sshll.u32 [#allocation8], 4
      %s77 = int_to_ptr.vmem [resolvable:$true] %s76
      %82 = dma.hbm_to_vmem [thread:$0]  %s75, 12288, %s77, [#allocation9], 128, 128, 8
    $region17: #{tpu_custom_call.1} parent=1 // pred_fallthru
      _
    // Predicated region
    $region18: #{tpu_custom_call.1} parent=1 // pred_check
      _
    $region19: #{tpu_custom_call.1} parent=1 // pred_check_branch
      %84 = sbr.rel (0) target = $region21
    $region20: #{tpu_custom_call.1} parent=1 // pred_region
      %86 = vsyncadd [#allocation9], 0
      %s87 = sshll.u32 %s4, 4
      %s88 = int_to_ptr.hbm [resolvable:$true] %s87
      %s89 = sshll.u32 [#allocation10], 4
      %s90 = int_to_ptr.vmem [resolvable:$true] %s89
      %95 = dma.hbm_to_vmem [thread:$0]  %s88, 96, %s90, [#allocation9], 32, 32, 2
    $region21: #{tpu_custom_call.1} parent=1 // pred_fallthru
      _
    // Predicated region
    $region22: #{tpu_custom_call.1} parent=1 // pred_check
      _
    $region23: #{tpu_custom_call.1} parent=1 // pred_check_branch
      %97 = sbr.rel (0) target = $region25
    $region24: #{tpu_custom_call.1} parent=1 // pred_region
      %99 = vsyncadd [#allocation12], 0
      %s100 = sshll.u32 %s5, 4
      %s101 = int_to_ptr.hbm [resolvable:$true] %s100
      %s102 = sshll.u32 [#allocation11], 4
      %s103 = int_to_ptr.vmem [resolvable:$true] %s102
      %108 = dma.hbm_to_vmem [thread:$0]  %s101, 96, %s103, [#allocation12], 32, 32, 2
    $region25: #{tpu_custom_call.1} parent=1 // pred_fallthru
      _
    // Predicated region
    $region26: #{tpu_custom_call.1} parent=1 // pred_check
      _
    $region27: #{tpu_custom_call.1} parent=1 // pred_check_branch
      %110 = sbr.rel (0) target = $region29
    $region28: #{tpu_custom_call.1} parent=1 // pred_region
      %112 = vsyncadd [#allocation12], 0
      %s113 = sshll.u32 %s6, 4
      %s114 = int_to_ptr.hbm [resolvable:$true] %s113
      %s115 = sshll.u32 [#allocation13], 4
      %s116 = int_to_ptr.vmem [resolvable:$true] %s115
      %121 = dma.hbm_to_vmem [thread:$0]  %s114, 24576, %s116, [#allocation12], 256, 256, 16
    $region29: #{tpu_custom_call.1} parent=1 // pred_fallthru
      _
    // Predicated region
    $region30: #{tpu_custom_call.1} parent=1 // pred_check
      _
    $region31: #{tpu_custom_call.1} parent=1 // pred_check_branch
      %123 = sbr.rel (0) target = $region33
    $region32: #{tpu_custom_call.1} parent=1 // pred_region
      %125 = vsyncadd [#allocation15], 0
      %s126 = sshll.u32 %s7, 4
      %s127 = int_to_ptr.hbm [resolvable:$true] %s126
      %s128 = sshll.u32 [#allocation14], 4
      %s129 = int_to_ptr.vmem [resolvable:$true] %s128
      %134 = dma.hbm_to_vmem [thread:$0]  %s127, 192, %s129, [#allocation15], 64, 64, 4
    $region33: #{tpu_custom_call.1} parent=1 // pred_fallthru
      _
    // Predicated region
    $region34: #{tpu_custom_call.1} parent=1 // pred_check
      _
    $region35: #{tpu_custom_call.1} parent=1 // pred_check_branch
      %136 = sbr.rel (0) target = $region37
    $region36: #{tpu_custom_call.1} parent=1 // pred_region
      %138 = vsyncadd [#allocation15], 0
      %s139 = sshll.u32 %s8, 4
      %s140 = int_to_ptr.hbm [resolvable:$true] %s139
      %s141 = sshll.u32 [#allocation16], 4
      %s142 = int_to_ptr.vmem [resolvable:$true] %s141
      %147 = dma.hbm_to_vmem [thread:$0]  %s140, 24576, %s142, [#allocation15], 128, 128, 8
    $region37: #{tpu_custom_call.1} parent=1 // pred_fallthru
      _
    // Predicated region
    $region38: #{tpu_custom_call.1} parent=1 // pred_check
      _
    $region39: #{tpu_custom_call.1} parent=1 // pred_check_branch
      %149 = sbr.rel (0) target = $region41
    $region40: #{tpu_custom_call.1} parent=1 // pred_region
      %151 = vsyncadd [#allocation18], 0
      %s152 = sshll.u32 %s9, 4
      %s153 = int_to_ptr.hbm [resolvable:$true] %s152
      %s154 = sshll.u32 [#allocation17], 4
      %s155 = int_to_ptr.vmem [resolvable:$true] %s154
      %160 = dma.hbm_to_vmem [thread:$0]  %s153, 96, %s155, [#allocation18], 32, 32, 2
    $region41: #{tpu_custom_call.1} parent=1 // pred_fallthru
      _
    // Predicated region
    $region42: #{tpu_custom_call.1} parent=1 // pred_check
      _
    $region43: #{tpu_custom_call.1} parent=1 // pred_check_branch
      %162 = sbr.rel (0) target = $region45
    $region44: #{tpu_custom_call.1} parent=1 // pred_region
      %164 = vsyncadd [#allocation18], 0
      %s165 = sshll.u32 %s10, 4
      %s166 = int_to_ptr.hbm [resolvable:$true] %s165
      %s167 = sshll.u32 [#allocation19], 4
      %s168 = int_to_ptr.vmem [resolvable:$true] %s167
      %173 = dma.hbm_to_vmem [thread:$0]  %s166, 96, %s168, [#allocation18], 32, 32, 2
    $region45: #{tpu_custom_call.1} parent=1 // pred_fallthru
      _
    // Predicated region
    $region46: #{tpu_custom_call.1} parent=1 // pred_check
      _
    $region47: #{tpu_custom_call.1} parent=1 // pred_check_branch
      %175 = sbr.rel (0) target = $region49
    $region48: #{tpu_custom_call.1} parent=1 // pred_region
      %177 = vsyncadd [#allocation21], 0
      %s178 = sshll.u32 %s11, 4
      %s179 = int_to_ptr.hbm [resolvable:$true] %s178
      %s180 = sshll.u32 [#allocation20], 4
      %s181 = int_to_ptr.vmem [resolvable:$true] %s180
      %186 = dma.hbm_to_vmem [thread:$0]  %s179, 96, %s181, [#allocation21], 32, 32, 2
    $region49: #{tpu_custom_call.1} parent=1 // pred_fallthru
      _
    // Predicated region
    $region50: #{tpu_custom_call.1} parent=1 // pred_check
      _
    $region51: #{tpu_custom_call.1} parent=1 // pred_check_branch
      %188 = sbr.rel (0) target = $region53
    $region52: #{tpu_custom_call.1} parent=1 // pred_region
      %190 = vsyncadd [#allocation21], 0
      %s191 = sshll.u32 %s12, 4
      %s192 = int_to_ptr.hbm [resolvable:$true] %s191
      %s193 = sshll.u32 [#allocation22], 4
      %s194 = int_to_ptr.vmem [resolvable:$true] %s193
      %199 = dma.hbm_to_vmem [thread:$0]  %s192, 96, %s194, [#allocation21], 32, 32, 2
    $region53: #{tpu_custom_call.1} parent=1 // pred_fallthru
      _
    // Predicated region
    $region54: #{tpu_custom_call.1} parent=1 // pred_check
      _
    $region55: #{tpu_custom_call.1} parent=1 // pred_check_branch
      %201 = sbr.rel (0) target = $region57
    $region56: #{tpu_custom_call.1} parent=1 // pred_region
      %203 = vsyncadd [#allocation24], 0
      %s204 = sshll.u32 %s13, 4
      %s205 = int_to_ptr.hbm [resolvable:$true] %s204
      %s206 = sshll.u32 [#allocation23], 4
      %s207 = int_to_ptr.vmem [resolvable:$true] %s206
      %212 = dma.hbm_to_vmem [thread:$0]  %s205, 96, %s207, [#allocation24], 32, 32, 2
    $region57: #{tpu_custom_call.1} parent=1 // pred_fallthru
      _
    // Predicated region
    $region58: #{tpu_custom_call.1} parent=1 // pred_check
      _
    $region59: #{tpu_custom_call.1} parent=1 // pred_check_branch
      %214 = sbr.rel (0) target = $region61
    $region60: #{tpu_custom_call.1} parent=1 // pred_region
      %216 = vsyncadd [#allocation24], 0
      %s217 = sshll.u32 %s14, 4
      %s218 = int_to_ptr.hbm [resolvable:$true] %s217
      %s219 = sshll.u32 [#allocation25], 4
      %s220 = int_to_ptr.vmem [resolvable:$true] %s219
      %225 = dma.hbm_to_vmem [thread:$0]  %s218, 96, %s220, [#allocation24], 32, 32, 2
    $region61: #{tpu_custom_call.1} parent=1 // pred_fallthru
      _
    // Predicated region
    $region62: #{tpu_custom_call.1} parent=1 // pred_check
      _
    $region63: #{tpu_custom_call.1} parent=1 // pred_check_branch
      %227 = sbr.rel (0) target = $region65
    $region64: #{tpu_custom_call.1} parent=1 // pred_region
      %229 = vsyncadd [#allocation27], 0
      %s230 = sshll.u32 %s15, 4
      %s231 = int_to_ptr.hbm [resolvable:$true] %s230
      %s232 = sshll.u32 [#allocation26], 4
      %s233 = int_to_ptr.vmem [resolvable:$true] %s232
      %238 = dma.hbm_to_vmem [thread:$0]  %s231, 96, %s233, [#allocation27], 32, 32, 2
    $region65: #{tpu_custom_call.1} parent=1 // pred_fallthru
      _
    // Predicated region
    $region66: #{tpu_custom_call.1} parent=1 // pred_check
      _
    $region67: #{tpu_custom_call.1} parent=1 // pred_check_branch
      %240 = sbr.rel (0) target = $region69
    $region68: #{tpu_custom_call.1} parent=1 // pred_region
      %242 = dma.done [#allocation3], 512
    $region69: #{tpu_custom_call.1} parent=1 // pred_fallthru
      _
    // Predicated region
    $region70: #{tpu_custom_call.1} parent=1 // pred_check
      _
    $region71: #{tpu_custom_call.1} parent=1 // pred_check_branch
      %244 = sbr.rel (0) target = $region73
    $region72: #{tpu_custom_call.1} parent=1 // pred_region
      %246 = dma.done [#allocation6], 36864
    $region73: #{tpu_custom_call.1} parent=1 // pred_fallthru
      _
    // Predicated region
    $region74: #{tpu_custom_call.1} parent=1 // pred_check
      _
    $region75: #{tpu_custom_call.1} parent=1 // pred_check_branch
      %248 = sbr.rel (0) target = $region77
    $region76: #{tpu_custom_call.1} parent=1 // pred_region
      %250 = dma.done [#allocation6], 288
    $region77: #{tpu_custom_call.1} parent=1 // pred_fallthru
      _
    // Predicated region
    $region78: #{tpu_custom_call.1} parent=1 // pred_check
      _
    $region79: #{tpu_custom_call.1} parent=1 // pred_check_branch
      %252 = sbr.rel (0) target = $region81
    $region80: #{tpu_custom_call.1} parent=1 // pred_region
      %254 = dma.done [#allocation9], 12288
    $region81: #{tpu_custom_call.1} parent=1 // pred_fallthru
      _
    // Predicated region
    $region82: #{tpu_custom_call.1} parent=1 // pred_check
      _
    $region83: #{tpu_custom_call.1} parent=1 // pred_check_branch
      %256 = sbr.rel (0) target = $region85
    $region84: #{tpu_custom_call.1} parent=1 // pred_region
      %258 = dma.done [#allocation9], 96
    $region85: #{tpu_custom_call.1} parent=1 // pred_fallthru
      _
    // Predicated region
    $region86: #{tpu_custom_call.1} parent=1 // pred_check
      _
    $region87: #{tpu_custom_call.1} parent=1 // pred_check_branch
      %260 = sbr.rel (0) target = $region89
    $region88: #{tpu_custom_call.1} parent=1 // pred_region
      %262 = dma.done [#allocation12], 96
    $region89: #{tpu_custom_call.1} parent=1 // pred_fallthru
      _
    // Predicated region
    $region90: #{tpu_custom_call.1} parent=1 // pred_check
      _
    $region91: #{tpu_custom_call.1} parent=1 // pred_check_branch
      %264 = sbr.rel (0) target = $region93
    $region92: #{tpu_custom_call.1} parent=1 // pred_region
      %266 = dma.done [#allocation12], 24576
    $region93: #{tpu_custom_call.1} parent=1 // pred_fallthru
      _
    // Predicated region
    $region94: #{tpu_custom_call.1} parent=1 // pred_check
      _
    $region95: #{tpu_custom_call.1} parent=1 // pred_check_branch
      %268 = sbr.rel (0) target = $region97
    $region96: #{tpu_custom_call.1} parent=1 // pred_region
      %270 = dma.done [#allocation15], 192
    $region97: #{tpu_custom_call.1} parent=1 // pred_fallthru
      _
    // Predicated region
    $region98: #{tpu_custom_call.1} parent=1 // pred_check
      _
    $region99: #{tpu_custom_call.1} parent=1 // pred_check_branch
      %272 = sbr.rel (0) target = $region101
    $region100: #{tpu_custom_call.1} parent=1 // pred_region
      %274 = dma.done [#allocation15], 24576
    $region101: #{tpu_custom_call.1} parent=1 // pred_fallthru
      _
    // Predicated region
    $region102: #{tpu_custom_call.1} parent=1 // pred_check
      _
    $region103: #{tpu_custom_call.1} parent=1 // pred_check_branch
      %276 = sbr.rel (0) target = $region105
    $region104: #{tpu_custom_call.1} parent=1 // pred_region
      %278 = dma.done [#allocation18], 96
    $region105: #{tpu_custom_call.1} parent=1 // pred_fallthru
      _
    // Predicated region
    $region106: #{tpu_custom_call.1} parent=1 // pred_check
      _
    $region107: #{tpu_custom_call.1} parent=1 // pred_check_branch
      %280 = sbr.rel (0) target = $region109
    $region108: #{tpu_custom_call.1} parent=1 // pred_region
      %282 = dma.done [#allocation18], 96
    $region109: #{tpu_custom_call.1} parent=1 // pred_fallthru
      _
    // Predicated region
    $region110: #{tpu_custom_call.1} parent=1 // pred_check
      _
    $region111: #{tpu_custom_call.1} parent=1 // pred_check_branch
      %284 = sbr.rel (0) target = $region113
    $region112: #{tpu_custom_call.1} parent=1 // pred_region
      %286 = dma.done [#allocation21], 96
    $region113: #{tpu_custom_call.1} parent=1 // pred_fallthru
      _
    // Predicated region
    $region114: #{tpu_custom_call.1} parent=1 // pred_check
      _
    $region115: #{tpu_custom_call.1} parent=1 // pred_check_branch
      %288 = sbr.rel (0) target = $region117
    $region116: #{tpu_custom_call.1} parent=1 // pred_region
      %290 = dma.done [#allocation21], 96
    $region117: #{tpu_custom_call.1} parent=1 // pred_fallthru
      _
    // Predicated region
    $region118: #{tpu_custom_call.1} parent=1 // pred_check
      _
    $region119: #{tpu_custom_call.1} parent=1 // pred_check_branch
      %292 = sbr.rel (0) target = $region121
    $region120: #{tpu_custom_call.1} parent=1 // pred_region
      %294 = dma.done [#allocation24], 96
    $region121: #{tpu_custom_call.1} parent=1 // pred_fallthru
      _
    // Predicated region
    $region122: #{tpu_custom_call.1} parent=1 // pred_check
      _
    $region123: #{tpu_custom_call.1} parent=1 // pred_check_branch
      %296 = sbr.rel (0) target = $region125
    $region124: #{tpu_custom_call.1} parent=1 // pred_region
      %298 = dma.done [#allocation24], 96
    $region125: #{tpu_custom_call.1} parent=1 // pred_fallthru
      _
    // Predicated region
    $region126: #{tpu_custom_call.1} parent=1 // pred_check
      _
    $region127: #{tpu_custom_call.1} parent=1 // pred_check_branch
      %300 = sbr.rel (0) target = $region129
    $region128: #{tpu_custom_call.1} parent=1 // pred_region
      %302 = dma.done [#allocation27], 96
    $region129: #{tpu_custom_call.1} parent=1 // pred_fallthru
      _
    %v304 = vld [vmem:[#allocation2] sm:$0xff]
    %v305 = vld [vmem:[#allocation2 + $0x8] sm:$0xff]
    %v306 = vld [vmem:[#allocation2 + $0x10] sm:$0xff]
    %v307 = vld [vmem:[#allocation2 + $0x18] sm:$0xff]
    %v308 = vpack.c.bf16 %v306, %v304
    %v309 = vpack.c.bf16 %v307, %v305
    %v310 = vld [vmem:[#allocation5] sm:$0xff]
    %v311 = vld [vmem:[#allocation5 + $0x8] sm:$0xff]
    %v312 = vld [vmem:[#allocation5 + $0x10] sm:$0xff]
    %v313 = vld [vmem:[#allocation5 + $0x18] sm:$0xff]
    %v314 = vld [vmem:[#allocation5 + $0x20] sm:$0xff]
    %v315 = vld [vmem:[#allocation5 + $0x28] sm:$0xff]
    %v316 = vld [vmem:[#allocation5 + $0x30] sm:$0xff]
    %v317 = vld [vmem:[#allocation5 + $0x38] sm:$0xff]
    %v318 = vld [vmem:[#allocation5 + $0x40] sm:$0xff]
    %v319 = vld [vmem:[#allocation5 + $0x48] sm:$0xff]
    %v320 = vld [vmem:[#allocation5 + $0x50] sm:$0xff]
    %v321 = vld [vmem:[#allocation5 + $0x58] sm:$0xff]
    %v322 = vld [vmem:[#allocation5 + $0x60] sm:$0xff]
    %v323 = vld [vmem:[#allocation5 + $0x68] sm:$0xff]
    %v324 = vld [vmem:[#allocation5 + $0x70] sm:$0xff]
    %v325 = vld [vmem:[#allocation5 + $0x78] sm:$0xff]
    %v326 = vld [vmem:[#allocation5 + $0x80] sm:$0xff]
    %v327 = vld [vmem:[#allocation5 + $0x88] sm:$0xff]
    %v328 = vld [vmem:[#allocation5 + $0x90] sm:$0xff]
    %v329 = vld [vmem:[#allocation5 + $0x98] sm:$0xff]
    %v330 = vld [vmem:[#allocation5 + $0xa0] sm:$0xff]
    %v331 = vld [vmem:[#allocation5 + $0xa8] sm:$0xff]
    %v332 = vld [vmem:[#allocation5 + $0xb0] sm:$0xff]
    %v333 = vld [vmem:[#allocation5 + $0xb8] sm:$0xff]
    %v334 = vld [vmem:[#allocation5 + $0xc0] sm:$0xff]
    %v335 = vld [vmem:[#allocation5 + $0xc8] sm:$0xff]
    %v336 = vld [vmem:[#allocation5 + $0xd0] sm:$0xff]
    %v337 = vld [vmem:[#allocation5 + $0xd8] sm:$0xff]
    %v338 = vld [vmem:[#allocation5 + $0xe0] sm:$0xff]
    %v339 = vld [vmem:[#allocation5 + $0xe8] sm:$0xff]
    %v340 = vld [vmem:[#allocation5 + $0xf0] sm:$0xff]
    %v341 = vld [vmem:[#allocation5 + $0xf8] sm:$0xff]
    %v342 = vld [vmem:[#allocation5 + $0x100] sm:$0xff]
    %v343 = vld [vmem:[#allocation5 + $0x108] sm:$0xff]
    %v344 = vld [vmem:[#allocation5 + $0x110] sm:$0xff]
    %v345 = vld [vmem:[#allocation5 + $0x118] sm:$0xff]
    %v346 = vld [vmem:[#allocation5 + $0x120] sm:$0xff]
    %v347 = vld [vmem:[#allocation5 + $0x128] sm:$0xff]
    %v348 = vld [vmem:[#allocation5 + $0x130] sm:$0xff]
    %v349 = vld [vmem:[#allocation5 + $0x138] sm:$0xff]
    %v350 = vld [vmem:[#allocation5 + $0x140] sm:$0xff]
    %v351 = vld [vmem:[#allocation5 + $0x148] sm:$0xff]
    %v352 = vld [vmem:[#allocation5 + $0x150] sm:$0xff]
    %v353 = vld [vmem:[#allocation5 + $0x158] sm:$0xff]
    %v354 = vld [vmem:[#allocation5 + $0x160] sm:$0xff]
    %v355 = vld [vmem:[#allocation5 + $0x168] sm:$0xff]
    %v356 = vld [vmem:[#allocation5 + $0x170] sm:$0xff]
    %v357 = vld [vmem:[#allocation5 + $0x178] sm:$0xff]
    %v358 = vld [vmem:[#allocation5 + $0x180] sm:$0xff]
    %v359 = vld [vmem:[#allocation5 + $0x188] sm:$0xff]
    %v360 = vld [vmem:[#allocation5 + $0x190] sm:$0xff]
    %v361 = vld [vmem:[#allocation5 + $0x198] sm:$0xff]
    %v362 = vld [vmem:[#allocation5 + $0x1a0] sm:$0xff]
    %v363 = vld [vmem:[#allocation5 + $0x1a8] sm:$0xff]
    %v364 = vld [vmem:[#allocation5 + $0x1b0] sm:$0xff]
    %v365 = vld [vmem:[#allocation5 + $0x1b8] sm:$0xff]
    %v366 = vld [vmem:[#allocation5 + $0x1c0] sm:$0xff]
    %v367 = vld [vmem:[#allocation5 + $0x1c8] sm:$0xff]
    %v368 = vld [vmem:[#allocation5 + $0x1d0] sm:$0xff]
    %v369 = vld [vmem:[#allocation5 + $0x1d8] sm:$0xff]
    %v370 = vld [vmem:[#allocation5 + $0x1e0] sm:$0xff]
    %v371 = vld [vmem:[#allocation5 + $0x1e8] sm:$0xff]
    %v372 = vld [vmem:[#allocation5 + $0x1f0] sm:$0xff]
    %v373 = vld [vmem:[#allocation5 + $0x1f8] sm:$0xff]
    %v374 = vld [vmem:[#allocation5 + $0x200] sm:$0xff]
    %v375 = vld [vmem:[#allocation5 + $0x208] sm:$0xff]
    %v376 = vld [vmem:[#allocation5 + $0x210] sm:$0xff]
    %v377 = vld [vmem:[#allocation5 + $0x218] sm:$0xff]
    %v378 = vld [vmem:[#allocation5 + $0x220] sm:$0xff]
    %v379 = vld [vmem:[#allocation5 + $0x228] sm:$0xff]
    %v380 = vld [vmem:[#allocation5 + $0x230] sm:$0xff]
    %v381 = vld [vmem:[#allocation5 + $0x238] sm:$0xff]
    %v382 = vld [vmem:[#allocation5 + $0x240] sm:$0xff]
    %v383 = vld [vmem:[#allocation5 + $0x248] sm:$0xff]
    %v384 = vld [vmem:[#allocation5 + $0x250] sm:$0xff]
    %v385 = vld [vmem:[#allocation5 + $0x258] sm:$0xff]
    %v386 = vld [vmem:[#allocation5 + $0x260] sm:$0xff]
    %v387 = vld [vmem:[#allocation5 + $0x268] sm:$0xff]
    %v388 = vld [vmem:[#allocation5 + $0x270] sm:$0xff]
    %v389 = vld [vmem:[#allocation5 + $0x278] sm:$0xff]
    %v390 = vld [vmem:[#allocation5 + $0x280] sm:$0xff]
    %v391 = vld [vmem:[#allocation5 + $0x288] sm:$0xff]
    %v392 = vld [vmem:[#allocation5 + $0x290] sm:$0xff]
    %v393 = vld [vmem:[#allocation5 + $0x298] sm:$0xff]
    %v394 = vld [vmem:[#allocation5 + $0x2a0] sm:$0xff]
    %v395 = vld [vmem:[#allocation5 + $0x2a8] sm:$0xff]
    %v396 = vld [vmem:[#allocation5 + $0x2b0] sm:$0xff]
    %v397 = vld [vmem:[#allocation5 + $0x2b8] sm:$0xff]
    %v398 = vld [vmem:[#allocation5 + $0x2c0] sm:$0xff]
    %v399 = vld [vmem:[#allocation5 + $0x2c8] sm:$0xff]
    %v400 = vld [vmem:[#allocation5 + $0x2d0] sm:$0xff]
    %v401 = vld [vmem:[#allocation5 + $0x2d8] sm:$0xff]
    %v402 = vld [vmem:[#allocation5 + $0x2e0] sm:$0xff]
    %v403 = vld [vmem:[#allocation5 + $0x2e8] sm:$0xff]
    %v404 = vld [vmem:[#allocation5 + $0x2f0] sm:$0xff]
    %v405 = vld [vmem:[#allocation5 + $0x2f8] sm:$0xff]
    %v406 = vld [vmem:[#allocation7] sm:$0x3f]
    %v408 = vperm.slane %v406, 0
    %v409 = vperm.slane %v406, 1
    %v410 = vperm.slane %v406, 2
    %v411 = vperm.slane %v406, 3
    %v412 = vperm.slane %v406, 4
    %v413 = vperm.slane %v406, 5
    %v516 = vunpack.c.l.b16 %v310
    %v517 = vunpack.c.h.b16 %v310
    %v518 = vunpack.c.l.b16 %v311
    %v519 = vunpack.c.h.b16 %v311
    %v520 = vunpack.c.l.b16 %v312
    %v521 = vunpack.c.h.b16 %v312
    %v522 = vunpack.c.l.b16 %v313
    %v523 = vunpack.c.h.b16 %v313
    %v524 = vunpack.c.l.b16 %v314
    %v525 = vunpack.c.h.b16 %v314
    %v526 = vunpack.c.l.b16 %v315
    %v527 = vunpack.c.h.b16 %v315
    %v528 = vunpack.c.l.b16 %v316
    %v529 = vunpack.c.h.b16 %v316
    %v530 = vunpack.c.l.b16 %v317
    %v531 = vunpack.c.h.b16 %v317
    %v532 = vunpack.c.l.b16 %v318
    %v533 = vunpack.c.h.b16 %v318
    %v534 = vunpack.c.l.b16 %v319
    %v535 = vunpack.c.h.b16 %v319
    %v536 = vunpack.c.l.b16 %v320
    %v537 = vunpack.c.h.b16 %v320
    %v538 = vunpack.c.l.b16 %v321
    %v539 = vunpack.c.h.b16 %v321
    %v540 = vunpack.c.l.b16 %v322
    %v541 = vunpack.c.h.b16 %v322
    %v542 = vunpack.c.l.b16 %v323
    %v543 = vunpack.c.h.b16 %v323
    %v544 = vunpack.c.l.b16 %v324
    %v545 = vunpack.c.h.b16 %v324
    %v546 = vunpack.c.l.b16 %v325
    %v547 = vunpack.c.h.b16 %v325
    %v548 = vunpack.c.l.b16 %v326
    %v549 = vunpack.c.h.b16 %v326
    %v550 = vunpack.c.l.b16 %v327
    %v551 = vunpack.c.h.b16 %v327
    %v552 = vunpack.c.l.b16 %v328
    %v553 = vunpack.c.h.b16 %v328
    %v554 = vunpack.c.l.b16 %v329
    %v555 = vunpack.c.h.b16 %v329
    %v556 = vunpack.c.l.b16 %v330
    %v557 = vunpack.c.h.b16 %v330
    %v558 = vunpack.c.l.b16 %v331
    %v559 = vunpack.c.h.b16 %v331
    %v560 = vunpack.c.l.b16 %v332
    %v561 = vunpack.c.h.b16 %v332
    %v562 = vunpack.c.l.b16 %v333
    %v563 = vunpack.c.h.b16 %v333
    %v564 = vunpack.c.l.b16 %v334
    %v565 = vunpack.c.h.b16 %v334
    %v566 = vunpack.c.l.b16 %v335
    %v567 = vunpack.c.h.b16 %v335
    %v568 = vunpack.c.l.b16 %v336
    %v569 = vunpack.c.h.b16 %v336
    %v570 = vunpack.c.l.b16 %v337
    %v571 = vunpack.c.h.b16 %v337
    %v572 = vunpack.c.l.b16 %v338
    %v573 = vunpack.c.h.b16 %v338
    %v574 = vunpack.c.l.b16 %v339
    %v575 = vunpack.c.h.b16 %v339
    %v576 = vunpack.c.l.b16 %v340
    %v577 = vunpack.c.h.b16 %v340
    %v578 = vunpack.c.l.b16 %v341
    %v579 = vunpack.c.h.b16 %v341
    %v580 = vunpack.c.l.b16 %v342
    %v581 = vunpack.c.h.b16 %v342
    %v582 = vunpack.c.l.b16 %v343
    %v583 = vunpack.c.h.b16 %v343
    %v584 = vunpack.c.l.b16 %v344
    %v585 = vunpack.c.h.b16 %v344
    %v586 = vunpack.c.l.b16 %v345
    %v587 = vunpack.c.h.b16 %v345
    %v588 = vunpack.c.l.b16 %v346
    %v589 = vunpack.c.h.b16 %v346
    %v590 = vunpack.c.l.b16 %v347
    %v591 = vunpack.c.h.b16 %v347
    %v592 = vunpack.c.l.b16 %v348
    %v593 = vunpack.c.h.b16 %v348
    %v594 = vunpack.c.l.b16 %v349
    %v595 = vunpack.c.h.b16 %v349
    %v596 = vunpack.c.l.b16 %v350
    %v597 = vunpack.c.h.b16 %v350
    %v598 = vunpack.c.l.b16 %v351
    %v599 = vunpack.c.h.b16 %v351
    %v600 = vunpack.c.l.b16 %v352
    %v601 = vunpack.c.h.b16 %v352
    %v602 = vunpack.c.l.b16 %v353
    %v603 = vunpack.c.h.b16 %v353
    %v604 = vunpack.c.l.b16 %v354
    %v605 = vunpack.c.h.b16 %v354
    %v606 = vunpack.c.l.b16 %v355
    %v607 = vunpack.c.h.b16 %v355
    %v608 = vunpack.c.l.b16 %v356
    %v609 = vunpack.c.h.b16 %v356
    %v610 = vunpack.c.l.b16 %v357
    %v611 = vunpack.c.h.b16 %v357
    %v612 = vunpack.c.l.b16 %v358
    %v613 = vunpack.c.h.b16 %v358
    %v614 = vunpack.c.l.b16 %v359
    %v615 = vunpack.c.h.b16 %v359
    %v616 = vunpack.c.l.b16 %v360
    %v617 = vunpack.c.h.b16 %v360
    %v618 = vunpack.c.l.b16 %v361
    %v619 = vunpack.c.h.b16 %v361
    %v620 = vunpack.c.l.b16 %v362
    %v621 = vunpack.c.h.b16 %v362
    %v622 = vunpack.c.l.b16 %v363
    %v623 = vunpack.c.h.b16 %v363
    %v624 = vunpack.c.l.b16 %v364
    %v625 = vunpack.c.h.b16 %v364
    %v626 = vunpack.c.l.b16 %v365
    %v627 = vunpack.c.h.b16 %v365
    %v628 = vunpack.c.l.b16 %v366
    %v629 = vunpack.c.h.b16 %v366
    %v630 = vunpack.c.l.b16 %v367
    %v631 = vunpack.c.h.b16 %v367
    %v632 = vunpack.c.l.b16 %v368
    %v633 = vunpack.c.h.b16 %v368
    %v634 = vunpack.c.l.b16 %v369
    %v635 = vunpack.c.h.b16 %v369
    %v636 = vunpack.c.l.b16 %v370
    %v637 = vunpack.c.h.b16 %v370
    %v638 = vunpack.c.l.b16 %v371
    %v639 = vunpack.c.h.b16 %v371
    %v640 = vunpack.c.l.b16 %v372
    %v641 = vunpack.c.h.b16 %v372
    %v642 = vunpack.c.l.b16 %v373
    %v643 = vunpack.c.h.b16 %v373
    %v644 = vunpack.c.l.b16 %v374
    %v645 = vunpack.c.h.b16 %v374
    %v646 = vunpack.c.l.b16 %v375
    %v647 = vunpack.c.h.b16 %v375
    %v648 = vunpack.c.l.b16 %v376
    %v649 = vunpack.c.h.b16 %v376
    %v650 = vunpack.c.l.b16 %v377
    %v651 = vunpack.c.h.b16 %v377
    %v652 = vunpack.c.l.b16 %v378
    %v653 = vunpack.c.h.b16 %v378
    %v654 = vunpack.c.l.b16 %v379
    %v655 = vunpack.c.h.b16 %v379
    %v656 = vunpack.c.l.b16 %v380
    %v657 = vunpack.c.h.b16 %v380
    %v658 = vunpack.c.l.b16 %v381
    %v659 = vunpack.c.h.b16 %v381
    %v660 = vunpack.c.l.b16 %v382
    %v661 = vunpack.c.h.b16 %v382
    %v662 = vunpack.c.l.b16 %v383
    %v663 = vunpack.c.h.b16 %v383
    %v664 = vunpack.c.l.b16 %v384
    %v665 = vunpack.c.h.b16 %v384
    %v666 = vunpack.c.l.b16 %v385
    %v667 = vunpack.c.h.b16 %v385
    %v668 = vunpack.c.l.b16 %v386
    %v669 = vunpack.c.h.b16 %v386
    %v670 = vunpack.c.l.b16 %v387
    %v671 = vunpack.c.h.b16 %v387
    %v672 = vunpack.c.l.b16 %v388
    %v673 = vunpack.c.h.b16 %v388
    %v674 = vunpack.c.l.b16 %v389
    %v675 = vunpack.c.h.b16 %v389
    %v676 = vunpack.c.l.b16 %v390
    %v677 = vunpack.c.h.b16 %v390
    %v678 = vunpack.c.l.b16 %v391
    %v679 = vunpack.c.h.b16 %v391
    %v680 = vunpack.c.l.b16 %v392
    %v681 = vunpack.c.h.b16 %v392
    %v682 = vunpack.c.l.b16 %v393
    %v683 = vunpack.c.h.b16 %v393
    %v684 = vunpack.c.l.b16 %v394
    %v685 = vunpack.c.h.b16 %v394
    %v686 = vunpack.c.l.b16 %v395
    %v687 = vunpack.c.h.b16 %v395
    %v688 = vunpack.c.l.b16 %v396
    %v689 = vunpack.c.h.b16 %v396
    %v690 = vunpack.c.l.b16 %v397
    %v691 = vunpack.c.h.b16 %v397
    %v692 = vunpack.c.l.b16 %v398
    %v693 = vunpack.c.h.b16 %v398
    %v694 = vunpack.c.l.b16 %v399
    %v695 = vunpack.c.h.b16 %v399
    %v696 = vunpack.c.l.b16 %v400
    %v697 = vunpack.c.h.b16 %v400
    %v698 = vunpack.c.l.b16 %v401
    %v699 = vunpack.c.h.b16 %v401
    %v700 = vunpack.c.l.b16 %v402
    %v701 = vunpack.c.h.b16 %v402
    %v702 = vunpack.c.l.b16 %v403
    %v703 = vunpack.c.h.b16 %v403
    %v704 = vunpack.c.l.b16 %v404
    %v705 = vunpack.c.h.b16 %v404
    %v706 = vunpack.c.l.b16 %v405
    %v707 = vunpack.c.h.b16 %v405
    %v708 = vpack.c.b16 %v522, %v516
    %v709 = vpack.c.b16 %v523, %v517
    %v710 = vpack.c.b16 %v524, %v518
    %v711 = vpack.c.b16 %v525, %v519
    %v712 = vpack.c.b16 %v526, %v520
    %v713 = vpack.c.b16 %v527, %v521
    %v714 = vpack.c.b16 %v534, %v528
    %v715 = vpack.c.b16 %v535, %v529
    %v716 = vpack.c.b16 %v536, %v530
    %v717 = vpack.c.b16 %v537, %v531
    %v718 = vpack.c.b16 %v538, %v532
    %v719 = vpack.c.b16 %v539, %v533
    %v720 = vpack.c.b16 %v546, %v540
    %v721 = vpack.c.b16 %v547, %v541
    %v722 = vpack.c.b16 %v548, %v542
    %v723 = vpack.c.b16 %v549, %v543
    %v724 = vpack.c.b16 %v550, %v544
    %v725 = vpack.c.b16 %v551, %v545
    %v726 = vpack.c.b16 %v558, %v552
    %v727 = vpack.c.b16 %v559, %v553
    %v728 = vpack.c.b16 %v560, %v554
    %v729 = vpack.c.b16 %v561, %v555
    %v730 = vpack.c.b16 %v562, %v556
    %v731 = vpack.c.b16 %v563, %v557
    %v732 = vpack.c.b16 %v570, %v564
    %v733 = vpack.c.b16 %v571, %v565
    %v734 = vpack.c.b16 %v572, %v566
    %v735 = vpack.c.b16 %v573, %v567
    %v736 = vpack.c.b16 %v574, %v568
    %v737 = vpack.c.b16 %v575, %v569
    %v738 = vpack.c.b16 %v582, %v576
    %v739 = vpack.c.b16 %v583, %v577
    %v740 = vpack.c.b16 %v584, %v578
    %v741 = vpack.c.b16 %v585, %v579
    %v742 = vpack.c.b16 %v586, %v580
    %v743 = vpack.c.b16 %v587, %v581
    %v744 = vpack.c.b16 %v594, %v588
    %v745 = vpack.c.b16 %v595, %v589
    %v746 = vpack.c.b16 %v596, %v590
    %v747 = vpack.c.b16 %v597, %v591
    %v748 = vpack.c.b16 %v598, %v592
    %v749 = vpack.c.b16 %v599, %v593
    %v750 = vpack.c.b16 %v606, %v600
    %v751 = vpack.c.b16 %v607, %v601
    %v752 = vpack.c.b16 %v608, %v602
    %v753 = vpack.c.b16 %v609, %v603
    %v754 = vpack.c.b16 %v610, %v604
    %v755 = vpack.c.b16 %v611, %v605
    %v756 = vpack.c.b16 %v618, %v612
    %v757 = vpack.c.b16 %v619, %v613
    %v758 = vpack.c.b16 %v620, %v614
    %v759 = vpack.c.b16 %v621, %v615
    %v760 = vpack.c.b16 %v622, %v616
    %v761 = vpack.c.b16 %v623, %v617
    %v762 = vpack.c.b16 %v630, %v624
    %v763 = vpack.c.b16 %v631, %v625
    %v764 = vpack.c.b16 %v632, %v626
    %v765 = vpack.c.b16 %v633, %v627
    %v766 = vpack.c.b16 %v634, %v628
    %v767 = vpack.c.b16 %v635, %v629
    %v768 = vpack.c.b16 %v642, %v636
    %v769 = vpack.c.b16 %v643, %v637
    %v770 = vpack.c.b16 %v644, %v638
    %v771 = vpack.c.b16 %v645, %v639
    %v772 = vpack.c.b16 %v646, %v640
    %v773 = vpack.c.b16 %v647, %v641
    %v774 = vpack.c.b16 %v654, %v648
    %v775 = vpack.c.b16 %v655, %v649
    %v776 = vpack.c.b16 %v656, %v650
    %v777 = vpack.c.b16 %v657, %v651
    %v778 = vpack.c.b16 %v658, %v652
    %v779 = vpack.c.b16 %v659, %v653
    %v780 = vpack.c.b16 %v666, %v660
    %v781 = vpack.c.b16 %v667, %v661
    %v782 = vpack.c.b16 %v668, %v662
    %v783 = vpack.c.b16 %v669, %v663
    %v784 = vpack.c.b16 %v670, %v664
    %v785 = vpack.c.b16 %v671, %v665
    %v786 = vpack.c.b16 %v678, %v672
    %v787 = vpack.c.b16 %v679, %v673
    %v788 = vpack.c.b16 %v680, %v674
    %v789 = vpack.c.b16 %v681, %v675
    %v790 = vpack.c.b16 %v682, %v676
    %v791 = vpack.c.b16 %v683, %v677
    %v792 = vpack.c.b16 %v690, %v684
    %v793 = vpack.c.b16 %v691, %v685
    %v794 = vpack.c.b16 %v692, %v686
    %v795 = vpack.c.b16 %v693, %v687
    %v796 = vpack.c.b16 %v694, %v688
    %v797 = vpack.c.b16 %v695, %v689
    %v798 = vpack.c.b16 %v702, %v696
    %v799 = vpack.c.b16 %v703, %v697
    %v800 = vpack.c.b16 %v704, %v698
    %v801 = vpack.c.b16 %v705, %v699
    %v802 = vpack.c.b16 %v706, %v700
    %v803 = vpack.c.b16 %v707, %v701
    %900 = vmatpush.bf16.msra.mxu0 %v750
    %901 = vmatpush.bf16.msra.mxu0 %v744
    %902 = vmatpush.bf16.msra.mxu0 %v738
    %903 = vmatpush.bf16.msra.mxu0 %v732
    %904 = vmatpush.bf16.msra.mxu0 %v726
    %905 = vmatpush.bf16.msra.mxu0 %v720
    %906 = vmatpush.bf16.msra.mxu0 %v714
    %907 = vmatpush.bf16.msra.mxu0 %v708
    %908 = vmatmul.bf16.gmra.mxu0 %v308
    %v909 = vpop.f32.mrf.mxu0
    %v910 = vadd.f32 %v408, %v909
    %v911 = vpop.f32.mrf.mxu0
    %v912 = vadd.f32 %v408, %v911
    %913 = vdwg.mxu0
    %914 = vmatpush.bf16.msra.mxu0 %v798
    %915 = vmatpush.bf16.msra.mxu0 %v792
    %916 = vmatpush.bf16.msra.mxu0 %v786
    %917 = vmatpush.bf16.msra.mxu0 %v780
    %918 = vmatpush.bf16.msra.mxu0 %v774
    %919 = vmatpush.bf16.msra.mxu0 %v768
    %920 = vmatpush.bf16.msra.mxu0 %v762
    %921 = vmatpush.bf16.msra.mxu0 %v756
    %922 = vmatmul.bf16.gmra.mxu0 %v309
    %v923 = vpop.f32.mrf.mxu0
    %v924 = vadd.f32 %v910, %v923
    %v925 = vpop.f32.mrf.mxu0
    %v926 = vadd.f32 %v912, %v925
    %927 = vdwg.mxu0
    %928 = vmatpush.bf16.msra.mxu0 %v751
    %929 = vmatpush.bf16.msra.mxu0 %v745
    %930 = vmatpush.bf16.msra.mxu0 %v739
    %931 = vmatpush.bf16.msra.mxu0 %v733
    %932 = vmatpush.bf16.msra.mxu0 %v727
    %933 = vmatpush.bf16.msra.mxu0 %v721
    %934 = vmatpush.bf16.msra.mxu0 %v715
    %935 = vmatpush.bf16.msra.mxu0 %v709
    %936 = vmatmul.bf16.gmra.mxu0 %v308
    %v937 = vpop.f32.mrf.mxu0
    %v938 = vadd.f32 %v409, %v937
    %v939 = vpop.f32.mrf.mxu0
    %v940 = vadd.f32 %v409, %v939
    %941 = vdwg.mxu0
    %942 = vmatpush.bf16.msra.mxu0 %v799
    %943 = vmatpush.bf16.msra.mxu0 %v793
    %944 = vmatpush.bf16.msra.mxu0 %v787
    %945 = vmatpush.bf16.msra.mxu0 %v781
    %946 = vmatpush.bf16.msra.mxu0 %v775
    %947 = vmatpush.bf16.msra.mxu0 %v769
    %948 = vmatpush.bf16.msra.mxu0 %v763
    %949 = vmatpush.bf16.msra.mxu0 %v757
    %950 = vmatmul.bf16.gmra.mxu0 %v309
    %v951 = vpop.f32.mrf.mxu0
    %v952 = vadd.f32 %v938, %v951
    %v953 = vpop.f32.mrf.mxu0
    %v954 = vadd.f32 %v940, %v953
    %955 = vdwg.mxu0
    %956 = vmatpush.bf16.msra.mxu0 %v752
    %957 = vmatpush.bf16.msra.mxu0 %v746
    %958 = vmatpush.bf16.msra.mxu0 %v740
    %959 = vmatpush.bf16.msra.mxu0 %v734
    %960 = vmatpush.bf16.msra.mxu0 %v728
    %961 = vmatpush.bf16.msra.mxu0 %v722
    %962 = vmatpush.bf16.msra.mxu0 %v716
    %963 = vmatpush.bf16.msra.mxu0 %v710
    %964 = vmatmul.bf16.gmra.mxu0 %v308
    %v965 = vpop.f32.mrf.mxu0
    %v966 = vadd.f32 %v410, %v965
    %v967 = vpop.f32.mrf.mxu0
    %v968 = vadd.f32 %v410, %v967
    %969 = vdwg.mxu0
    %970 = vmatpush.bf16.msra.mxu0 %v800
    %971 = vmatpush.bf16.msra.mxu0 %v794
    %972 = vmatpush.bf16.msra.mxu0 %v788
    %973 = vmatpush.bf16.msra.mxu0 %v782
    %974 = vmatpush.bf16.msra.mxu0 %v776
    %975 = vmatpush.bf16.msra.mxu0 %v770
    %976 = vmatpush.bf16.msra.mxu0 %v764
    %977 = vmatpush.bf16.msra.mxu0 %v758
    %978 = vmatmul.bf16.gmra.mxu0 %v309
    %v979 = vpop.f32.mrf.mxu0
    %v980 = vadd.f32 %v966, %v979
    %v981 = vpop.f32.mrf.mxu0
    %v982 = vadd.f32 %v968, %v981
    %983 = vdwg.mxu0
    %984 = vmatpush.bf16.msra.mxu0 %v753
    %985 = vmatpush.bf16.msra.mxu0 %v747
    %986 = vmatpush.bf16.msra.mxu0 %v741
    %987 = vmatpush.bf16.msra.mxu0 %v735
    %988 = vmatpush.bf16.msra.mxu0 %v729
    %989 = vmatpush.bf16.msra.mxu0 %v723
    %990 = vmatpush.bf16.msra.mxu0 %v717
    %991 = vmatpush.bf16.msra.mxu0 %v711
    %992 = vmatmul.bf16.gmra.mxu0 %v308
    %v993 = vpop.f32.mrf.mxu0
    %v994 = vadd.f32 %v411, %v993
    %v995 = vpop.f32.mrf.mxu0
    %v996 = vadd.f32 %v411, %v995
    %997 = vdwg.mxu0
    %998 = vmatpush.bf16.msra.mxu0 %v801
    %999 = vmatpush.bf16.msra.mxu0 %v795
    %1000 = vmatpush.bf16.msra.mxu0 %v789
    %1001 = vmatpush.bf16.msra.mxu0 %v783
    %1002 = vmatpush.bf16.msra.mxu0 %v777
    %1003 = vmatpush.bf16.msra.mxu0 %v771
    %1004 = vmatpush.bf16.msra.mxu0 %v765
    %1005 = vmatpush.bf16.msra.mxu0 %v759
    %1006 = vmatmul.bf16.gmra.mxu0 %v309
    %v1007 = vpop.f32.mrf.mxu0
    %v1008 = vadd.f32 %v994, %v1007
    %v1009 = vpop.f32.mrf.mxu0
    %v1010 = vadd.f32 %v996, %v1009
    %1011 = vdwg.mxu0
    %1012 = vmatpush.bf16.msra.mxu0 %v754
    %1013 = vmatpush.bf16.msra.mxu0 %v748
    %1014 = vmatpush.bf16.msra.mxu0 %v742
    %1015 = vmatpush.bf16.msra.mxu0 %v736
    %1016 = vmatpush.bf16.msra.mxu0 %v730
    %1017 = vmatpush.bf16.msra.mxu0 %v724
    %1018 = vmatpush.bf16.msra.mxu0 %v718
    %1019 = vmatpush.bf16.msra.mxu0 %v712
    %1020 = vmatmul.bf16.gmra.mxu0 %v308
    %v1021 = vpop.f32.mrf.mxu0
    %v1022 = vadd.f32 %v412, %v1021
    %v1023 = vpop.f32.mrf.mxu0
    %v1024 = vadd.f32 %v412, %v1023
    %1025 = vdwg.mxu0
    %1026 = vmatpush.bf16.msra.mxu0 %v802
    %1027 = vmatpush.bf16.msra.mxu0 %v796
    %1028 = vmatpush.bf16.msra.mxu0 %v790
    %1029 = vmatpush.bf16.msra.mxu0 %v784
    %1030 = vmatpush.bf16.msra.mxu0 %v778
    %1031 = vmatpush.bf16.msra.mxu0 %v772
    %1032 = vmatpush.bf16.msra.mxu0 %v766
    %1033 = vmatpush.bf16.msra.mxu0 %v760
    %1034 = vmatmul.bf16.gmra.mxu0 %v309
    %v1035 = vpop.f32.mrf.mxu0
    %v1036 = vadd.f32 %v1022, %v1035
    %v1037 = vpop.f32.mrf.mxu0
    %v1038 = vadd.f32 %v1024, %v1037
    %1039 = vdwg.mxu0
    %1040 = vmatpush.bf16.msra.mxu0 %v755
    %1041 = vmatpush.bf16.msra.mxu0 %v749
    %1042 = vmatpush.bf16.msra.mxu0 %v743
    %1043 = vmatpush.bf16.msra.mxu0 %v737
    %1044 = vmatpush.bf16.msra.mxu0 %v731
    %1045 = vmatpush.bf16.msra.mxu0 %v725
    %1046 = vmatpush.bf16.msra.mxu0 %v719
    %1047 = vmatpush.bf16.msra.mxu0 %v713
    %1048 = vmatmul.bf16.gmra.mxu0 %v308
    %v1049 = vpop.f32.mrf.mxu0
    %v1050 = vadd.f32 %v413, %v1049
    %v1051 = vpop.f32.mrf.mxu0
    %v1052 = vadd.f32 %v413, %v1051
    %1053 = vdwg.mxu0
    %1054 = vmatpush.bf16.msra.mxu0 %v803
    %1055 = vmatpush.bf16.msra.mxu0 %v797
    %1056 = vmatpush.bf16.msra.mxu0 %v791
    %1057 = vmatpush.bf16.msra.mxu0 %v785
    %1058 = vmatpush.bf16.msra.mxu0 %v779
    %1059 = vmatpush.bf16.msra.mxu0 %v773
    %1060 = vmatpush.bf16.msra.mxu0 %v767
    %1061 = vmatpush.bf16.msra.mxu0 %v761
    %1062 = vmatmul.bf16.gmra.mxu0 %v309
    %v1063 = vpop.f32.mrf.mxu0
    %v1064 = vadd.f32 %v1050, %v1063
    %v1065 = vpop.f32.mrf.mxu0
    %v1066 = vadd.f32 %v1052, %v1065
    %1067 = vdwg.mxu0
    %v1068 = vpack.c.bf16 %v924, %v924
    %v1069 = vpack.c.bf16 %v926, %v926
    %v1070 = vpack.c.bf16 %v980, %v980
    %v1071 = vpack.c.bf16 %v982, %v982
    %v1072 = vpack.c.bf16 %v1036, %v1036
    %v1073 = vpack.c.bf16 %v1038, %v1038
    %vm1074 = vcmask 261120
    %v1076 = vsel %vm1074, %v1068, 0
    %v1079 = vsel %vm1074, %v1070, 0
    %1081 = vmatpush.bf16.xpose.msra.mxu0 0
    %1082 = vmatpush.bf16.xpose.msra.mxu0 0
    %1083 = vmatpush.bf16.xpose.msra.mxu0 0
    %1084 = vmatpush.bf16.xpose.msra.mxu0 0
    %1085 = vmatpush.bf16.xpose.msra.mxu0 0
    %1086 = vmatpush.bf16.xpose.msra.mxu0 0
    %1087 = vmatpush.bf16.xpose.msra.mxu0 0
    %1088 = vmatpush.bf16.xpose.msra.mxu0 %v1079
    %1089 = vmatmul.bf16.gmra.mxu0 %v1076
    %v1090 = vpop.f32.mrf.mxu0
    %v1091 = vadd.f32 0.0, %v1090
    %v1092 = vpop.f32.mrf.mxu0
    %1093 = vdwg.mxu0
    %v1095 = vsel %vm1074, %v1069, 0
    %v1098 = vsel %vm1074, %v1071, 0
    %1100 = vmatpush.bf16.xpose.msra.mxu0 0
    %1101 = vmatpush.bf16.xpose.msra.mxu0 0
    %1102 = vmatpush.bf16.xpose.msra.mxu0 0
    %1103 = vmatpush.bf16.xpose.msra.mxu0 0
    %1104 = vmatpush.bf16.xpose.msra.mxu0 0
    %1105 = vmatpush.bf16.xpose.msra.mxu0 0
    %1106 = vmatpush.bf16.xpose.msra.mxu0 0
    %1107 = vmatpush.bf16.xpose.msra.mxu0 %v1098
    %1108 = vmatmul.bf16.gmra.mxu0 %v1095
    %v1109 = vpop.f32.mrf.mxu0
    %v1110 = vadd.f32 0.0, %v1109
    %v1111 = vpop.f32.mrf.mxu0
    %1112 = vdwg.mxu0
    %vm1113 = vcmask 64512
    %v1114 = vsel %vm1113, %v1091, -inf
    %1115 = vmax.xlane.f32.xlu0 %v1114
    %v1116 = vpop.xlane.xlu0 %1115
    %v1117 = vsel %vm1113, %v1110, -inf
    %1118 = vmax.xlane.f32.xlu0 %v1117
    %v1119 = vpop.xlane.xlu0 %1118
    %v1120 = vsub.f32 %v1091, %v1116
    %v1121 = vsub.f32 %v1110, %v1119
    %v1122 = vmul.f32 %v1120, 1.442695
    %v1123 = vpow.pop %v1122
    %v1124 = vmul.f32 %v1121, 1.442695
    %v1125 = vpow.pop %v1124
    %v1126 = vsel %vm1113, %v1123, 0.0
    %1127 = vadd.xlane.f32.xlu0 %v1126
    %v1128 = vpop.xlane.xlu0 %1127
    %v1129 = vsel %vm1113, %v1125, 0.0
    %1130 = vadd.xlane.f32.xlu0 %v1129
    %v1131 = vpop.xlane.xlu0 %1130
    %v1132 = vrcp.pop %v1128
    %v1133 = vrcp.pop %v1131
    %v1134 = vmul.f32 %v1123, %v1132
    %v1135 = vmul.f32 %v1125, %v1133
    %v1136 = vpack.c.bf16 %v1134, %v1134
    %v1137 = vpack.c.bf16 %v1135, %v1135
    %v1139 = vsel %vm1113, %v1136, 0
    %vm1141 = vcmask 1043456
    %v1143 = vsel %vm1141, %v1072, 0
    %1145 = vmatpush.bf16.msra.mxu0 0
    %1146 = vmatpush.bf16.msra.mxu0 0
    %1147 = vmatpush.bf16.msra.mxu0 0
    %1148 = vmatpush.bf16.msra.mxu0 0
    %1149 = vmatpush.bf16.msra.mxu0 0
    %1150 = vmatpush.bf16.msra.mxu0 0
    %1151 = vmatpush.bf16.msra.mxu0 0
    %1152 = vmatpush.bf16.msra.mxu0 %v1143
    %1153 = vmatmul.bf16.gmra.mxu0 %v1139
    %v1154 = vpop.f32.mrf.mxu0
    %v1155 = vadd.f32 0.0, %v1154
    %v1156 = vpop.f32.mrf.mxu0
    %1157 = vdwg.mxu0
    %v1159 = vsel %vm1113, %v1137, 0
    %v1162 = vsel %vm1141, %v1073, 0
    %1164 = vmatpush.bf16.msra.mxu0 0
    %1165 = vmatpush.bf16.msra.mxu0 0
    %1166 = vmatpush.bf16.msra.mxu0 0
    %1167 = vmatpush.bf16.msra.mxu0 0
    %1168 = vmatpush.bf16.msra.mxu0 0
    %1169 = vmatpush.bf16.msra.mxu0 0
    %1170 = vmatpush.bf16.msra.mxu0 0
    %1171 = vmatpush.bf16.msra.mxu0 %v1162
    %1172 = vmatmul.bf16.gmra.mxu0 %v1159
    %v1173 = vpop.f32.mrf.mxu0
    %v1174 = vadd.f32 0.0, %v1173
    %v1175 = vpop.f32.mrf.mxu0
    %1176 = vdwg.mxu0
    %v1178 = vunpack.c.l.b16 %v1068
    %v1179 = vpack.c.b16 %v1178, %v1178
    %1180 = vrot.lane.b32.xlu0 %v1179, 96
    %v1181 = vpop.permute.xlu0 %1180
    %v1183 = vunpack.c.l.b16 %v1070
    %v1184 = vpack.c.b16 %v1183, %v1183
    %1185 = vrot.lane.b32.xlu0 %v1184, 96
    %v1186 = vpop.permute.xlu0 %1185
    %v1188 = vsel %vm1074, %v1181, 0
    %v1191 = vsel %vm1074, %v1186, 0
    %1193 = vmatpush.bf16.xpose.msra.mxu0 0
    %1194 = vmatpush.bf16.xpose.msra.mxu0 0
    %1195 = vmatpush.bf16.xpose.msra.mxu0 0
    %1196 = vmatpush.bf16.xpose.msra.mxu0 0
    %1197 = vmatpush.bf16.xpose.msra.mxu0 0
    %1198 = vmatpush.bf16.xpose.msra.mxu0 0
    %1199 = vmatpush.bf16.xpose.msra.mxu0 0
    %1200 = vmatpush.bf16.xpose.msra.mxu0 %v1191
    %1201 = vmatmul.bf16.gmra.mxu0 %v1188
    %v1202 = vpop.f32.mrf.mxu0
    %v1203 = vadd.f32 0.0, %v1202
    %v1204 = vpop.f32.mrf.mxu0
    %1205 = vdwg.mxu0
    %v1207 = vunpack.c.l.b16 %v1069
    %v1208 = vpack.c.b16 %v1207, %v1207
    %1209 = vrot.lane.b32.xlu0 %v1208, 96
    %v1210 = vpop.permute.xlu0 %1209
    %v1212 = vunpack.c.l.b16 %v1071
    %v1213 = vpack.c.b16 %v1212, %v1212
    %1214 = vrot.lane.b32.xlu0 %v1213, 96
    %v1215 = vpop.permute.xlu0 %1214
    %v1217 = vsel %vm1074, %v1210, 0
    %v1220 = vsel %vm1074, %v1215, 0
    %1222 = vmatpush.bf16.xpose.msra.mxu0 0
    %1223 = vmatpush.bf16.xpose.msra.mxu0 0
    %1224 = vmatpush.bf16.xpose.msra.mxu0 0
    %1225 = vmatpush.bf16.xpose.msra.mxu0 0
    %1226 = vmatpush.bf16.xpose.msra.mxu0 0
    %1227 = vmatpush.bf16.xpose.msra.mxu0 0
    %1228 = vmatpush.bf16.xpose.msra.mxu0 0
    %1229 = vmatpush.bf16.xpose.msra.mxu0 %v1220
    %1230 = vmatmul.bf16.gmra.mxu0 %v1217
    %v1231 = vpop.f32.mrf.mxu0
    %v1232 = vadd.f32 0.0, %v1231
    %v1233 = vpop.f32.mrf.mxu0
    %1234 = vdwg.mxu0
    %v1235 = vsel %vm1113, %v1203, -inf
    %1236 = vmax.xlane.f32.xlu0 %v1235
    %v1237 = vpop.xlane.xlu0 %1236
    %v1238 = vsel %vm1113, %v1232, -inf
    %1239 = vmax.xlane.f32.xlu0 %v1238
    %v1240 = vpop.xlane.xlu0 %1239
    %v1241 = vsub.f32 %v1203, %v1237
    %v1242 = vsub.f32 %v1232, %v1240
    %v1243 = vmul.f32 %v1241, 1.442695
    %v1244 = vpow.pop %v1243
    %v1245 = vmul.f32 %v1242, 1.442695
    %v1246 = vpow.pop %v1245
    %v1247 = vsel %vm1113, %v1244, 0.0
    %1248 = vadd.xlane.f32.xlu0 %v1247
    %v1249 = vpop.xlane.xlu0 %1248
    %v1250 = vsel %vm1113, %v1246, 0.0
    %1251 = vadd.xlane.f32.xlu0 %v1250
    %v1252 = vpop.xlane.xlu0 %1251
    %v1253 = vrcp.pop %v1249
    %v1254 = vrcp.pop %v1252
    %v1255 = vmul.f32 %v1244, %v1253
    %v1256 = vmul.f32 %v1246, %v1254
    %v1257 = vpack.c.bf16 %v1255, %v1255
    %v1258 = vpack.c.bf16 %v1256, %v1256
    %v1260 = vunpack.c.l.b16 %v1072
    %v1261 = vpack.c.b16 %v1260, %v1260
    %1262 = vrot.lane.b32.xlu0 %v1261, 96
    %v1263 = vpop.permute.xlu0 %1262
    %v1265 = vsel %vm1113, %v1257, 0
    %v1268 = vsel %vm1141, %v1263, 0
    %1270 = vmatpush.bf16.msra.mxu0 0
    %1271 = vmatpush.bf16.msra.mxu0 0
    %1272 = vmatpush.bf16.msra.mxu0 0
    %1273 = vmatpush.bf16.msra.mxu0 0
    %1274 = vmatpush.bf16.msra.mxu0 0
    %1275 = vmatpush.bf16.msra.mxu0 0
    %1276 = vmatpush.bf16.msra.mxu0 0
    %1277 = vmatpush.bf16.msra.mxu0 %v1268
    %1278 = vmatmul.bf16.gmra.mxu0 %v1265
    %v1279 = vpop.f32.mrf.mxu0
    %v1280 = vadd.f32 0.0, %v1279
    %v1281 = vpop.f32.mrf.mxu0
    %1282 = vdwg.mxu0
    %v1284 = vunpack.c.l.b16 %v1073
    %v1285 = vpack.c.b16 %v1284, %v1284
    %1286 = vrot.lane.b32.xlu0 %v1285, 96
    %v1287 = vpop.permute.xlu0 %1286
    %v1289 = vsel %vm1113, %v1258, 0
    %v1292 = vsel %vm1141, %v1287, 0
    %1294 = vmatpush.bf16.msra.mxu0 0
    %1295 = vmatpush.bf16.msra.mxu0 0
    %1296 = vmatpush.bf16.msra.mxu0 0
    %1297 = vmatpush.bf16.msra.mxu0 0
    %1298 = vmatpush.bf16.msra.mxu0 0
    %1299 = vmatpush.bf16.msra.mxu0 0
    %1300 = vmatpush.bf16.msra.mxu0 0
    %1301 = vmatpush.bf16.msra.mxu0 %v1292
    %1302 = vmatmul.bf16.gmra.mxu0 %v1289
    %v1303 = vpop.f32.mrf.mxu0
    %v1304 = vadd.f32 0.0, %v1303
    %v1305 = vpop.f32.mrf.mxu0
    %1306 = vdwg.mxu0
    %1307 = vrot.lane.b32.xlu0 %v1179, 64
    %v1308 = vpop.permute.xlu0 %1307
    %1309 = vrot.lane.b32.xlu0 %v1184, 64
    %v1310 = vpop.permute.xlu0 %1309
    %v1312 = vsel %vm1074, %v1308, 0
    %v1315 = vsel %vm1074, %v1310, 0
    %1317 = vmatpush.bf16.xpose.msra.mxu0 0
    %1318 = vmatpush.bf16.xpose.msra.mxu0 0
    %1319 = vmatpush.bf16.xpose.msra.mxu0 0
    %1320 = vmatpush.bf16.xpose.msra.mxu0 0
    %1321 = vmatpush.bf16.xpose.msra.mxu0 0
    %1322 = vmatpush.bf16.xpose.msra.mxu0 0
    %1323 = vmatpush.bf16.xpose.msra.mxu0 0
    %1324 = vmatpush.bf16.xpose.msra.mxu0 %v1315
    %1325 = vmatmul.bf16.gmra.mxu0 %v1312
    %v1326 = vpop.f32.mrf.mxu0
    %v1327 = vadd.f32 0.0, %v1326
    %v1328 = vpop.f32.mrf.mxu0
    %1329 = vdwg.mxu0
    %1330 = vrot.lane.b32.xlu0 %v1208, 64
    %v1331 = vpop.permute.xlu0 %1330
    %1332 = vrot.lane.b32.xlu0 %v1213, 64
    %v1333 = vpop.permute.xlu0 %1332
    %v1335 = vsel %vm1074, %v1331, 0
    %v1338 = vsel %vm1074, %v1333, 0
    %1340 = vmatpush.bf16.xpose.msra.mxu0 0
    %1341 = vmatpush.bf16.xpose.msra.mxu0 0
    %1342 = vmatpush.bf16.xpose.msra.mxu0 0
    %1343 = vmatpush.bf16.xpose.msra.mxu0 0
    %1344 = vmatpush.bf16.xpose.msra.mxu0 0
    %1345 = vmatpush.bf16.xpose.msra.mxu0 0
    %1346 = vmatpush.bf16.xpose.msra.mxu0 0
    %1347 = vmatpush.bf16.xpose.msra.mxu0 %v1338
    %1348 = vmatmul.bf16.gmra.mxu0 %v1335
    %v1349 = vpop.f32.mrf.mxu0
    %v1350 = vadd.f32 0.0, %v1349
    %v1351 = vpop.f32.mrf.mxu0
    %1352 = vdwg.mxu0
    %v1353 = vsel %vm1113, %v1327, -inf
    %1354 = vmax.xlane.f32.xlu0 %v1353
    %v1355 = vpop.xlane.xlu0 %1354
    %v1356 = vsel %vm1113, %v1350, -inf
    %1357 = vmax.xlane.f32.xlu0 %v1356
    %v1358 = vpop.xlane.xlu0 %1357
    %v1359 = vsub.f32 %v1327, %v1355
    %v1360 = vsub.f32 %v1350, %v1358
    %v1361 = vmul.f32 %v1359, 1.442695
    %v1362 = vpow.pop %v1361
    %v1363 = vmul.f32 %v1360, 1.442695
    %v1364 = vpow.pop %v1363
    %v1365 = vsel %vm1113, %v1362, 0.0
    %1366 = vadd.xlane.f32.xlu0 %v1365
    %v1367 = vpop.xlane.xlu0 %1366
    %v1368 = vsel %vm1113, %v1364, 0.0
    %1369 = vadd.xlane.f32.xlu0 %v1368
    %v1370 = vpop.xlane.xlu0 %1369
    %v1371 = vrcp.pop %v1367
    %v1372 = vrcp.pop %v1370
    %v1373 = vmul.f32 %v1362, %v1371
    %v1374 = vmul.f32 %v1364, %v1372
    %v1375 = vpack.c.bf16 %v1373, %v1373
    %v1376 = vpack.c.bf16 %v1374, %v1374
    %1377 = vrot.lane.b32.xlu0 %v1261, 64
    %v1378 = vpop.permute.xlu0 %1377
    %v1380 = vsel %vm1113, %v1375, 0
    %v1383 = vsel %vm1141, %v1378, 0
    %1385 = vmatpush.bf16.msra.mxu0 0
    %1386 = vmatpush.bf16.msra.mxu0 0
    %1387 = vmatpush.bf16.msra.mxu0 0
    %1388 = vmatpush.bf16.msra.mxu0 0
    %1389 = vmatpush.bf16.msra.mxu0 0
    %1390 = vmatpush.bf16.msra.mxu0 0
    %1391 = vmatpush.bf16.msra.mxu0 0
    %1392 = vmatpush.bf16.msra.mxu0 %v1383
    %1393 = vmatmul.bf16.gmra.mxu0 %v1380
    %v1394 = vpop.f32.mrf.mxu0
    %v1395 = vadd.f32 0.0, %v1394
    %v1396 = vpop.f32.mrf.mxu0
    %1397 = vdwg.mxu0
    %1398 = vrot.lane.b32.xlu0 %v1285, 64
    %v1399 = vpop.permute.xlu0 %1398
    %v1401 = vsel %vm1113, %v1376, 0
    %v1404 = vsel %vm1141, %v1399, 0
    %1406 = vmatpush.bf16.msra.mxu0 0
    %1407 = vmatpush.bf16.msra.mxu0 0
    %1408 = vmatpush.bf16.msra.mxu0 0
    %1409 = vmatpush.bf16.msra.mxu0 0
    %1410 = vmatpush.bf16.msra.mxu0 0
    %1411 = vmatpush.bf16.msra.mxu0 0
    %1412 = vmatpush.bf16.msra.mxu0 0
    %1413 = vmatpush.bf16.msra.mxu0 %v1404
    %1414 = vmatmul.bf16.gmra.mxu0 %v1401
    %v1415 = vpop.f32.mrf.mxu0
    %v1416 = vadd.f32 0.0, %v1415
    %v1417 = vpop.f32.mrf.mxu0
    %1418 = vdwg.mxu0
    %1419 = vrot.lane.b32.xlu0 %v1179, 32
    %v1420 = vpop.permute.xlu0 %1419
    %1421 = vrot.lane.b32.xlu0 %v1184, 32
    %v1422 = vpop.permute.xlu0 %1421
    %v1424 = vsel %vm1074, %v1420, 0
    %v1427 = vsel %vm1074, %v1422, 0
    %1429 = vmatpush.bf16.xpose.msra.mxu0 0
    %1430 = vmatpush.bf16.xpose.msra.mxu0 0
    %1431 = vmatpush.bf16.xpose.msra.mxu0 0
    %1432 = vmatpush.bf16.xpose.msra.mxu0 0
    %1433 = vmatpush.bf16.xpose.msra.mxu0 0
    %1434 = vmatpush.bf16.xpose.msra.mxu0 0
    %1435 = vmatpush.bf16.xpose.msra.mxu0 0
    %1436 = vmatpush.bf16.xpose.msra.mxu0 %v1427
    %1437 = vmatmul.bf16.gmra.mxu0 %v1424
    %v1438 = vpop.f32.mrf.mxu0
    %v1439 = vadd.f32 0.0, %v1438
    %v1440 = vpop.f32.mrf.mxu0
    %1441 = vdwg.mxu0
    %1442 = vrot.lane.b32.xlu0 %v1208, 32
    %v1443 = vpop.permute.xlu0 %1442
    %1444 = vrot.lane.b32.xlu0 %v1213, 32
    %v1445 = vpop.permute.xlu0 %1444
    %v1447 = vsel %vm1074, %v1443, 0
    %v1450 = vsel %vm1074, %v1445, 0
    %1452 = vmatpush.bf16.xpose.msra.mxu0 0
    %1453 = vmatpush.bf16.xpose.msra.mxu0 0
    %1454 = vmatpush.bf16.xpose.msra.mxu0 0
    %1455 = vmatpush.bf16.xpose.msra.mxu0 0
    %1456 = vmatpush.bf16.xpose.msra.mxu0 0
    %1457 = vmatpush.bf16.xpose.msra.mxu0 0
    %1458 = vmatpush.bf16.xpose.msra.mxu0 0
    %1459 = vmatpush.bf16.xpose.msra.mxu0 %v1450
    %1460 = vmatmul.bf16.gmra.mxu0 %v1447
    %v1461 = vpop.f32.mrf.mxu0
    %v1462 = vadd.f32 0.0, %v1461
    %v1463 = vpop.f32.mrf.mxu0
    %1464 = vdwg.mxu0
    %v1465 = vsel %vm1113, %v1439, -inf
    %1466 = vmax.xlane.f32.xlu0 %v1465
    %v1467 = vpop.xlane.xlu0 %1466
    %v1468 = vsel %vm1113, %v1462, -inf
    %1469 = vmax.xlane.f32.xlu0 %v1468
    %v1470 = vpop.xlane.xlu0 %1469
    %v1471 = vsub.f32 %v1439, %v1467
    %v1472 = vsub.f32 %v1462, %v1470
    %v1473 = vmul.f32 %v1471, 1.442695
    %v1474 = vpow.pop %v1473
    %v1475 = vmul.f32 %v1472, 1.442695
    %v1476 = vpow.pop %v1475
    %v1477 = vsel %vm1113, %v1474, 0.0
    %1478 = vadd.xlane.f32.xlu0 %v1477
    %v1479 = vpop.xlane.xlu0 %1478
    %v1480 = vsel %vm1113, %v1476, 0.0
    %1481 = vadd.xlane.f32.xlu0 %v1480
    %v1482 = vpop.xlane.xlu0 %1481
    %v1483 = vrcp.pop %v1479
    %v1484 = vrcp.pop %v1482
    %v1485 = vmul.f32 %v1474, %v1483
    %v1486 = vmul.f32 %v1476, %v1484
    %v1487 = vpack.c.bf16 %v1485, %v1485
    %v1488 = vpack.c.bf16 %v1486, %v1486
    %1489 = vrot.lane.b32.xlu0 %v1261, 32
    %v1490 = vpop.permute.xlu0 %1489
    %v1492 = vsel %vm1113, %v1487, 0
    %v1495 = vsel %vm1141, %v1490, 0
    %1497 = vmatpush.bf16.msra.mxu0 0
    %1498 = vmatpush.bf16.msra.mxu0 0
    %1499 = vmatpush.bf16.msra.mxu0 0
    %1500 = vmatpush.bf16.msra.mxu0 0
    %1501 = vmatpush.bf16.msra.mxu0 0
    %1502 = vmatpush.bf16.msra.mxu0 0
    %1503 = vmatpush.bf16.msra.mxu0 0
    %1504 = vmatpush.bf16.msra.mxu0 %v1495
    %1505 = vmatmul.bf16.gmra.mxu0 %v1492
    %v1506 = vpop.f32.mrf.mxu0
    %v1507 = vadd.f32 0.0, %v1506
    %v1508 = vpop.f32.mrf.mxu0
    %1509 = vdwg.mxu0
    %1510 = vrot.lane.b32.xlu0 %v1285, 32
    %v1511 = vpop.permute.xlu0 %1510
    %v1513 = vsel %vm1113, %v1488, 0
    %v1516 = vsel %vm1141, %v1511, 0
    %1518 = vmatpush.bf16.msra.mxu0 0
    %1519 = vmatpush.bf16.msra.mxu0 0
    %1520 = vmatpush.bf16.msra.mxu0 0
    %1521 = vmatpush.bf16.msra.mxu0 0
    %1522 = vmatpush.bf16.msra.mxu0 0
    %1523 = vmatpush.bf16.msra.mxu0 0
    %1524 = vmatpush.bf16.msra.mxu0 0
    %1525 = vmatpush.bf16.msra.mxu0 %v1516
    %1526 = vmatmul.bf16.gmra.mxu0 %v1513
    %v1527 = vpop.f32.mrf.mxu0
    %v1528 = vadd.f32 0.0, %v1527
    %v1529 = vpop.f32.mrf.mxu0
    %1530 = vdwg.mxu0
    %v1531 = vpack.c.bf16 %v952, %v952
    %v1532 = vpack.c.bf16 %v954, %v954
    %v1533 = vpack.c.bf16 %v1008, %v1008
    %v1534 = vpack.c.bf16 %v1010, %v1010
    %v1535 = vpack.c.bf16 %v1064, %v1064
    %v1536 = vpack.c.bf16 %v1066, %v1066
    %v1538 = vsel %vm1074, %v1531, 0
    %v1541 = vsel %vm1074, %v1533, 0
    %1543 = vmatpush.bf16.xpose.msra.mxu0 0
    %1544 = vmatpush.bf16.xpose.msra.mxu0 0
    %1545 = vmatpush.bf16.xpose.msra.mxu0 0
    %1546 = vmatpush.bf16.xpose.msra.mxu0 0
    %1547 = vmatpush.bf16.xpose.msra.mxu0 0
    %1548 = vmatpush.bf16.xpose.msra.mxu0 0
    %1549 = vmatpush.bf16.xpose.msra.mxu0 0
    %1550 = vmatpush.bf16.xpose.msra.mxu0 %v1541
    %1551 = vmatmul.bf16.gmra.mxu0 %v1538
    %v1552 = vpop.f32.mrf.mxu0
    %v1553 = vadd.f32 0.0, %v1552
    %v1554 = vpop.f32.mrf.mxu0
    %1555 = vdwg.mxu0
    %v1557 = vsel %vm1074, %v1532, 0
    %v1560 = vsel %vm1074, %v1534, 0
    %1562 = vmatpush.bf16.xpose.msra.mxu0 0
    %1563 = vmatpush.bf16.xpose.msra.mxu0 0
    %1564 = vmatpush.bf16.xpose.msra.mxu0 0
    %1565 = vmatpush.bf16.xpose.msra.mxu0 0
    %1566 = vmatpush.bf16.xpose.msra.mxu0 0
    %1567 = vmatpush.bf16.xpose.msra.mxu0 0
    %1568 = vmatpush.bf16.xpose.msra.mxu0 0
    %1569 = vmatpush.bf16.xpose.msra.mxu0 %v1560
    %1570 = vmatmul.bf16.gmra.mxu0 %v1557
    %v1571 = vpop.f32.mrf.mxu0
    %v1572 = vadd.f32 0.0, %v1571
    %v1573 = vpop.f32.mrf.mxu0
    %1574 = vdwg.mxu0
    %v1575 = vsel %vm1113, %v1553, -inf
    %1576 = vmax.xlane.f32.xlu0 %v1575
    %v1577 = vpop.xlane.xlu0 %1576
    %v1578 = vsel %vm1113, %v1572, -inf
    %1579 = vmax.xlane.f32.xlu0 %v1578
    %v1580 = vpop.xlane.xlu0 %1579
    %v1581 = vsub.f32 %v1553, %v1577
    %v1582 = vsub.f32 %v1572, %v1580
    %v1583 = vmul.f32 %v1581, 1.442695
    %v1584 = vpow.pop %v1583
    %v1585 = vmul.f32 %v1582, 1.442695
    %v1586 = vpow.pop %v1585
    %v1587 = vsel %vm1113, %v1584, 0.0
    %1588 = vadd.xlane.f32.xlu0 %v1587
    %v1589 = vpop.xlane.xlu0 %1588
    %v1590 = vsel %vm1113, %v1586, 0.0
    %1591 = vadd.xlane.f32.xlu0 %v1590
    %v1592 = vpop.xlane.xlu0 %1591
    %v1593 = vrcp.pop %v1589
    %v1594 = vrcp.pop %v1592
    %v1595 = vmul.f32 %v1584, %v1593
    %v1596 = vmul.f32 %v1586, %v1594
    %v1597 = vpack.c.bf16 %v1595, %v1595
    %v1598 = vpack.c.bf16 %v1596, %v1596
    %v1600 = vsel %vm1113, %v1597, 0
    %v1603 = vsel %vm1141, %v1535, 0
    %1605 = vmatpush.bf16.msra.mxu0 0
    %1606 = vmatpush.bf16.msra.mxu0 0
    %1607 = vmatpush.bf16.msra.mxu0 0
    %1608 = vmatpush.bf16.msra.mxu0 0
    %1609 = vmatpush.bf16.msra.mxu0 0
    %1610 = vmatpush.bf16.msra.mxu0 0
    %1611 = vmatpush.bf16.msra.mxu0 0
    %1612 = vmatpush.bf16.msra.mxu0 %v1603
    %1613 = vmatmul.bf16.gmra.mxu0 %v1600
    %v1614 = vpop.f32.mrf.mxu0
    %v1615 = vadd.f32 0.0, %v1614
    %v1616 = vpop.f32.mrf.mxu0
    %1617 = vdwg.mxu0
    %v1619 = vsel %vm1113, %v1598, 0
    %v1622 = vsel %vm1141, %v1536, 0
    %1624 = vmatpush.bf16.msra.mxu0 0
    %1625 = vmatpush.bf16.msra.mxu0 0
    %1626 = vmatpush.bf16.msra.mxu0 0
    %1627 = vmatpush.bf16.msra.mxu0 0
    %1628 = vmatpush.bf16.msra.mxu0 0
    %1629 = vmatpush.bf16.msra.mxu0 0
    %1630 = vmatpush.bf16.msra.mxu0 0
    %1631 = vmatpush.bf16.msra.mxu0 %v1622
    %1632 = vmatmul.bf16.gmra.mxu0 %v1619
    %v1633 = vpop.f32.mrf.mxu0
    %v1634 = vadd.f32 0.0, %v1633
    %v1635 = vpop.f32.mrf.mxu0
    %1636 = vdwg.mxu0
    %v1638 = vunpack.c.l.b16 %v1531
    %v1639 = vpack.c.b16 %v1638, %v1638
    %1640 = vrot.lane.b32.xlu0 %v1639, 96
    %v1641 = vpop.permute.xlu0 %1640
    %v1643 = vunpack.c.l.b16 %v1533
    %v1644 = vpack.c.b16 %v1643, %v1643
    %1645 = vrot.lane.b32.xlu0 %v1644, 96
    %v1646 = vpop.permute.xlu0 %1645
    %v1648 = vsel %vm1074, %v1641, 0
    %v1651 = vsel %vm1074, %v1646, 0
    %1653 = vmatpush.bf16.xpose.msra.mxu0 0
    %1654 = vmatpush.bf16.xpose.msra.mxu0 0
    %1655 = vmatpush.bf16.xpose.msra.mxu0 0
    %1656 = vmatpush.bf16.xpose.msra.mxu0 0
    %1657 = vmatpush.bf16.xpose.msra.mxu0 0
    %1658 = vmatpush.bf16.xpose.msra.mxu0 0
    %1659 = vmatpush.bf16.xpose.msra.mxu0 0
    %1660 = vmatpush.bf16.xpose.msra.mxu0 %v1651
    %1661 = vmatmul.bf16.gmra.mxu0 %v1648
    %v1662 = vpop.f32.mrf.mxu0
    %v1663 = vadd.f32 0.0, %v1662
    %v1664 = vpop.f32.mrf.mxu0
    %1665 = vdwg.mxu0
    %v1667 = vunpack.c.l.b16 %v1532
    %v1668 = vpack.c.b16 %v1667, %v1667
    %1669 = vrot.lane.b32.xlu0 %v1668, 96
    %v1670 = vpop.permute.xlu0 %1669
    %v1672 = vunpack.c.l.b16 %v1534
    %v1673 = vpack.c.b16 %v1672, %v1672
    %1674 = vrot.lane.b32.xlu0 %v1673, 96
    %v1675 = vpop.permute.xlu0 %1674
    %v1677 = vsel %vm1074, %v1670, 0
    %v1680 = vsel %vm1074, %v1675, 0
    %1682 = vmatpush.bf16.xpose.msra.mxu0 0
    %1683 = vmatpush.bf16.xpose.msra.mxu0 0
    %1684 = vmatpush.bf16.xpose.msra.mxu0 0
    %1685 = vmatpush.bf16.xpose.msra.mxu0 0
    %1686 = vmatpush.bf16.xpose.msra.mxu0 0
    %1687 = vmatpush.bf16.xpose.msra.mxu0 0
    %1688 = vmatpush.bf16.xpose.msra.mxu0 0
    %1689 = vmatpush.bf16.xpose.msra.mxu0 %v1680
    %1690 = vmatmul.bf16.gmra.mxu0 %v1677
    %v1691 = vpop.f32.mrf.mxu0
    %v1692 = vadd.f32 0.0, %v1691
    %v1693 = vpop.f32.mrf.mxu0
    %1694 = vdwg.mxu0
    %v1695 = vsel %vm1113, %v1663, -inf
    %1696 = vmax.xlane.f32.xlu0 %v1695
    %v1697 = vpop.xlane.xlu0 %1696
    %v1698 = vsel %vm1113, %v1692, -inf
    %1699 = vmax.xlane.f32.xlu0 %v1698
    %v1700 = vpop.xlane.xlu0 %1699
    %v1701 = vsub.f32 %v1663, %v1697
    %v1702 = vsub.f32 %v1692, %v1700
    %v1703 = vmul.f32 %v1701, 1.442695
    %v1704 = vpow.pop %v1703
    %v1705 = vmul.f32 %v1702, 1.442695
    %v1706 = vpow.pop %v1705
    %v1707 = vsel %vm1113, %v1704, 0.0
    %1708 = vadd.xlane.f32.xlu0 %v1707
    %v1709 = vpop.xlane.xlu0 %1708
    %v1710 = vsel %vm1113, %v1706, 0.0
    %1711 = vadd.xlane.f32.xlu0 %v1710
    %v1712 = vpop.xlane.xlu0 %1711
    %v1713 = vrcp.pop %v1709
    %v1714 = vrcp.pop %v1712
    %v1715 = vmul.f32 %v1704, %v1713
    %v1716 = vmul.f32 %v1706, %v1714
    %v1717 = vpack.c.bf16 %v1715, %v1715
    %v1718 = vpack.c.bf16 %v1716, %v1716
    %v1720 = vunpack.c.l.b16 %v1535
    %v1721 = vpack.c.b16 %v1720, %v1720
    %1722 = vrot.lane.b32.xlu0 %v1721, 96
    %v1723 = vpop.permute.xlu0 %1722
    %v1725 = vsel %vm1113, %v1717, 0
    %v1728 = vsel %vm1141, %v1723, 0
    %1730 = vmatpush.bf16.msra.mxu0 0
    %1731 = vmatpush.bf16.msra.mxu0 0
    %1732 = vmatpush.bf16.msra.mxu0 0
    %1733 = vmatpush.bf16.msra.mxu0 0
    %1734 = vmatpush.bf16.msra.mxu0 0
    %1735 = vmatpush.bf16.msra.mxu0 0
    %1736 = vmatpush.bf16.msra.mxu0 0
    %1737 = vmatpush.bf16.msra.mxu0 %v1728
    %1738 = vmatmul.bf16.gmra.mxu0 %v1725
    %v1739 = vpop.f32.mrf.mxu0
    %v1740 = vadd.f32 0.0, %v1739
    %v1741 = vpop.f32.mrf.mxu0
    %1742 = vdwg.mxu0
    %v1744 = vunpack.c.l.b16 %v1536
    %v1745 = vpack.c.b16 %v1744, %v1744
    %1746 = vrot.lane.b32.xlu0 %v1745, 96
    %v1747 = vpop.permute.xlu0 %1746
    %v1749 = vsel %vm1113, %v1718, 0
    %v1752 = vsel %vm1141, %v1747, 0
    %1754 = vmatpush.bf16.msra.mxu0 0
    %1755 = vmatpush.bf16.msra.mxu0 0
    %1756 = vmatpush.bf16.msra.mxu0 0
    %1757 = vmatpush.bf16.msra.mxu0 0
    %1758 = vmatpush.bf16.msra.mxu0 0
    %1759 = vmatpush.bf16.msra.mxu0 0
    %1760 = vmatpush.bf16.msra.mxu0 0
    %1761 = vmatpush.bf16.msra.mxu0 %v1752
    %1762 = vmatmul.bf16.gmra.mxu0 %v1749
    %v1763 = vpop.f32.mrf.mxu0
    %v1764 = vadd.f32 0.0, %v1763
    %v1765 = vpop.f32.mrf.mxu0
    %1766 = vdwg.mxu0
    %1767 = vrot.lane.b32.xlu0 %v1639, 64
    %v1768 = vpop.permute.xlu0 %1767
    %1769 = vrot.lane.b32.xlu0 %v1644, 64
    %v1770 = vpop.permute.xlu0 %1769
    %v1772 = vsel %vm1074, %v1768, 0
    %v1775 = vsel %vm1074, %v1770, 0
    %1777 = vmatpush.bf16.xpose.msra.mxu0 0
    %1778 = vmatpush.bf16.xpose.msra.mxu0 0
    %1779 = vmatpush.bf16.xpose.msra.mxu0 0
    %1780 = vmatpush.bf16.xpose.msra.mxu0 0
    %1781 = vmatpush.bf16.xpose.msra.mxu0 0
    %1782 = vmatpush.bf16.xpose.msra.mxu0 0
    %1783 = vmatpush.bf16.xpose.msra.mxu0 0
    %1784 = vmatpush.bf16.xpose.msra.mxu0 %v1775
    %1785 = vmatmul.bf16.gmra.mxu0 %v1772
    %v1786 = vpop.f32.mrf.mxu0
    %v1787 = vadd.f32 0.0, %v1786
    %v1788 = vpop.f32.mrf.mxu0
    %1789 = vdwg.mxu0
    %1790 = vrot.lane.b32.xlu0 %v1668, 64
    %v1791 = vpop.permute.xlu0 %1790
    %1792 = vrot.lane.b32.xlu0 %v1673, 64
    %v1793 = vpop.permute.xlu0 %1792
    %v1795 = vsel %vm1074, %v1791, 0
    %v1798 = vsel %vm1074, %v1793, 0
    %1800 = vmatpush.bf16.xpose.msra.mxu0 0
    %1801 = vmatpush.bf16.xpose.msra.mxu0 0
    %1802 = vmatpush.bf16.xpose.msra.mxu0 0
    %1803 = vmatpush.bf16.xpose.msra.mxu0 0
    %1804 = vmatpush.bf16.xpose.msra.mxu0 0
    %1805 = vmatpush.bf16.xpose.msra.mxu0 0
    %1806 = vmatpush.bf16.xpose.msra.mxu0 0
    %1807 = vmatpush.bf16.xpose.msra.mxu0 %v1798
    %1808 = vmatmul.bf16.gmra.mxu0 %v1795
    %v1809 = vpop.f32.mrf.mxu0
    %v1810 = vadd.f32 0.0, %v1809
    %v1811 = vpop.f32.mrf.mxu0
    %1812 = vdwg.mxu0
    %v1813 = vsel %vm1113, %v1787, -inf
    %1814 = vmax.xlane.f32.xlu0 %v1813
    %v1815 = vpop.xlane.xlu0 %1814
    %v1816 = vsel %vm1113, %v1810, -inf
    %1817 = vmax.xlane.f32.xlu0 %v1816
    %v1818 = vpop.xlane.xlu0 %1817
    %v1819 = vsub.f32 %v1787, %v1815
    %v1820 = vsub.f32 %v1810, %v1818
    %v1821 = vmul.f32 %v1819, 1.442695
    %v1822 = vpow.pop %v1821
    %v1823 = vmul.f32 %v1820, 1.442695
    %v1824 = vpow.pop %v1823
    %v1825 = vsel %vm1113, %v1822, 0.0
    %1826 = vadd.xlane.f32.xlu0 %v1825
    %v1827 = vpop.xlane.xlu0 %1826
    %v1828 = vsel %vm1113, %v1824, 0.0
    %1829 = vadd.xlane.f32.xlu0 %v1828
    %v1830 = vpop.xlane.xlu0 %1829
    %v1831 = vrcp.pop %v1827
    %v1832 = vrcp.pop %v1830
    %v1833 = vmul.f32 %v1822, %v1831
    %v1834 = vmul.f32 %v1824, %v1832
    %v1835 = vpack.c.bf16 %v1833, %v1833
    %v1836 = vpack.c.bf16 %v1834, %v1834
    %1837 = vrot.lane.b32.xlu0 %v1721, 64
    %v1838 = vpop.permute.xlu0 %1837
    %v1840 = vsel %vm1113, %v1835, 0
    %v1843 = vsel %vm1141, %v1838, 0
    %1845 = vmatpush.bf16.msra.mxu0 0
    %1846 = vmatpush.bf16.msra.mxu0 0
    %1847 = vmatpush.bf16.msra.mxu0 0
    %1848 = vmatpush.bf16.msra.mxu0 0
    %1849 = vmatpush.bf16.msra.mxu0 0
    %1850 = vmatpush.bf16.msra.mxu0 0
    %1851 = vmatpush.bf16.msra.mxu0 0
    %1852 = vmatpush.bf16.msra.mxu0 %v1843
    %1853 = vmatmul.bf16.gmra.mxu0 %v1840
    %v1854 = vpop.f32.mrf.mxu0
    %v1855 = vadd.f32 0.0, %v1854
    %v1856 = vpop.f32.mrf.mxu0
    %1857 = vdwg.mxu0
    %1858 = vrot.lane.b32.xlu0 %v1745, 64
    %v1859 = vpop.permute.xlu0 %1858
    %v1861 = vsel %vm1113, %v1836, 0
    %v1864 = vsel %vm1141, %v1859, 0
    %1866 = vmatpush.bf16.msra.mxu0 0
    %1867 = vmatpush.bf16.msra.mxu0 0
    %1868 = vmatpush.bf16.msra.mxu0 0
    %1869 = vmatpush.bf16.msra.mxu0 0
    %1870 = vmatpush.bf16.msra.mxu0 0
    %1871 = vmatpush.bf16.msra.mxu0 0
    %1872 = vmatpush.bf16.msra.mxu0 0
    %1873 = vmatpush.bf16.msra.mxu0 %v1864
    %1874 = vmatmul.bf16.gmra.mxu0 %v1861
    %v1875 = vpop.f32.mrf.mxu0
    %v1876 = vadd.f32 0.0, %v1875
    %v1877 = vpop.f32.mrf.mxu0
    %1878 = vdwg.mxu0
    %1879 = vrot.lane.b32.xlu0 %v1639, 32
    %v1880 = vpop.permute.xlu0 %1879
    %1881 = vrot.lane.b32.xlu0 %v1644, 32
    %v1882 = vpop.permute.xlu0 %1881
    %v1884 = vsel %vm1074, %v1880, 0
    %v1887 = vsel %vm1074, %v1882, 0
    %1889 = vmatpush.bf16.xpose.msra.mxu0 0
    %1890 = vmatpush.bf16.xpose.msra.mxu0 0
    %1891 = vmatpush.bf16.xpose.msra.mxu0 0
    %1892 = vmatpush.bf16.xpose.msra.mxu0 0
    %1893 = vmatpush.bf16.xpose.msra.mxu0 0
    %1894 = vmatpush.bf16.xpose.msra.mxu0 0
    %1895 = vmatpush.bf16.xpose.msra.mxu0 0
    %1896 = vmatpush.bf16.xpose.msra.mxu0 %v1887
    %1897 = vmatmul.bf16.gmra.mxu0 %v1884
    %v1898 = vpop.f32.mrf.mxu0
    %v1899 = vadd.f32 0.0, %v1898
    %v1900 = vpop.f32.mrf.mxu0
    %1901 = vdwg.mxu0
    %1902 = vrot.lane.b32.xlu0 %v1668, 32
    %v1903 = vpop.permute.xlu0 %1902
    %1904 = vrot.lane.b32.xlu0 %v1673, 32
    %v1905 = vpop.permute.xlu0 %1904
    %v1907 = vsel %vm1074, %v1903, 0
    %v1910 = vsel %vm1074, %v1905, 0
    %1912 = vmatpush.bf16.xpose.msra.mxu0 0
    %1913 = vmatpush.bf16.xpose.msra.mxu0 0
    %1914 = vmatpush.bf16.xpose.msra.mxu0 0
    %1915 = vmatpush.bf16.xpose.msra.mxu0 0
    %1916 = vmatpush.bf16.xpose.msra.mxu0 0
    %1917 = vmatpush.bf16.xpose.msra.mxu0 0
    %1918 = vmatpush.bf16.xpose.msra.mxu0 0
    %1919 = vmatpush.bf16.xpose.msra.mxu0 %v1910
    %1920 = vmatmul.bf16.gmra.mxu0 %v1907
    %v1921 = vpop.f32.mrf.mxu0
    %v1922 = vadd.f32 0.0, %v1921
    %v1923 = vpop.f32.mrf.mxu0
    %1924 = vdwg.mxu0
    %v1925 = vsel %vm1113, %v1899, -inf
    %1926 = vmax.xlane.f32.xlu0 %v1925
    %v1927 = vpop.xlane.xlu0 %1926
    %v1928 = vsel %vm1113, %v1922, -inf
    %1929 = vmax.xlane.f32.xlu0 %v1928
    %v1930 = vpop.xlane.xlu0 %1929
    %v1931 = vsub.f32 %v1899, %v1927
    %v1932 = vsub.f32 %v1922, %v1930
    %v1933 = vmul.f32 %v1931, 1.442695
    %v1934 = vpow.pop %v1933
    %v1935 = vmul.f32 %v1932, 1.442695
    %v1936 = vpow.pop %v1935
    %v1937 = vsel %vm1113, %v1934, 0.0
    %1938 = vadd.xlane.f32.xlu0 %v1937
    %v1939 = vpop.xlane.xlu0 %1938
    %v1940 = vsel %vm1113, %v1936, 0.0
    %1941 = vadd.xlane.f32.xlu0 %v1940
    %v1942 = vpop.xlane.xlu0 %1941
    %v1943 = vrcp.pop %v1939
    %v1944 = vrcp.pop %v1942
    %v1945 = vmul.f32 %v1934, %v1943
    %v1946 = vmul.f32 %v1936, %v1944
    %v1947 = vpack.c.bf16 %v1945, %v1945
    %v1948 = vpack.c.bf16 %v1946, %v1946
    %1949 = vrot.lane.b32.xlu0 %v1721, 32
    %v1950 = vpop.permute.xlu0 %1949
    %v1952 = vsel %vm1113, %v1947, 0
    %v1955 = vsel %vm1141, %v1950, 0
    %1957 = vmatpush.bf16.msra.mxu0 0
    %1958 = vmatpush.bf16.msra.mxu0 0
    %1959 = vmatpush.bf16.msra.mxu0 0
    %1960 = vmatpush.bf16.msra.mxu0 0
    %1961 = vmatpush.bf16.msra.mxu0 0
    %1962 = vmatpush.bf16.msra.mxu0 0
    %1963 = vmatpush.bf16.msra.mxu0 0
    %1964 = vmatpush.bf16.msra.mxu0 %v1955
    %1965 = vmatmul.bf16.gmra.mxu0 %v1952
    %v1966 = vpop.f32.mrf.mxu0
    %v1967 = vadd.f32 0.0, %v1966
    %v1968 = vpop.f32.mrf.mxu0
    %1969 = vdwg.mxu0
    %1970 = vrot.lane.b32.xlu0 %v1745, 32
    %v1971 = vpop.permute.xlu0 %1970
    %v1973 = vsel %vm1113, %v1948, 0
    %v1976 = vsel %vm1141, %v1971, 0
    %1978 = vmatpush.bf16.msra.mxu0 0
    %1979 = vmatpush.bf16.msra.mxu0 0
    %1980 = vmatpush.bf16.msra.mxu0 0
    %1981 = vmatpush.bf16.msra.mxu0 0
    %1982 = vmatpush.bf16.msra.mxu0 0
    %1983 = vmatpush.bf16.msra.mxu0 0
    %1984 = vmatpush.bf16.msra.mxu0 0
    %1985 = vmatpush.bf16.msra.mxu0 %v1976
    %1986 = vmatmul.bf16.gmra.mxu0 %v1973
    %v1987 = vpop.f32.mrf.mxu0
    %v1988 = vadd.f32 0.0, %v1987
    %v1989 = vpop.f32.mrf.mxu0
    %1990 = vdwg.mxu0
    %1993 = vrot.lane.b32.xlu0 %v1280, 32
    %v1994 = vpop.permute.xlu0 %1993
    %1995 = vrot.lane.b32.xlu0 %v1304, 32
    %v1996 = vpop.permute.xlu0 %1995
    %2001 = vrot.lane.b32.xlu0 %v1395, 64
    %v2002 = vpop.permute.xlu0 %2001
    %2003 = vrot.lane.b32.xlu0 %v1416, 64
    %v2004 = vpop.permute.xlu0 %2003
    %2009 = vrot.lane.b32.xlu0 %v1507, 96
    %v2010 = vpop.permute.xlu0 %2009
    %2011 = vrot.lane.b32.xlu0 %v1528, 96
    %v2012 = vpop.permute.xlu0 %2011
    %2017 = vrot.lane.b32.xlu0 %v1740, 32
    %v2018 = vpop.permute.xlu0 %2017
    %2019 = vrot.lane.b32.xlu0 %v1764, 32
    %v2020 = vpop.permute.xlu0 %2019
    %2025 = vrot.lane.b32.xlu0 %v1855, 64
    %v2026 = vpop.permute.xlu0 %2025
    %2027 = vrot.lane.b32.xlu0 %v1876, 64
    %v2028 = vpop.permute.xlu0 %2027
    %2033 = vrot.lane.b32.xlu0 %v1967, 96
    %v2034 = vpop.permute.xlu0 %2033
    %2035 = vrot.lane.b32.xlu0 %v1988, 96
    %v2036 = vpop.permute.xlu0 %2035
    %v2039 = vsel %vm1074, %v1155, %v1994
    %v2040 = vsel %vm1074, %v1174, %v1996
    %vm2041 = vcmask 523264
    %v2042 = vsel %vm2041, %v2039, %v2002
    %v2043 = vsel %vm2041, %v2040, %v2004
    %vm2044 = vcmask 785408
    %v2045 = vsel %vm2044, %v2042, %v2010
    %v2046 = vsel %vm2044, %v2043, %v2012
    %v2047 = vsel %vm1074, %v1615, %v2018
    %v2048 = vsel %vm1074, %v1634, %v2020
    %v2049 = vsel %vm2041, %v2047, %v2026
    %v2050 = vsel %vm2041, %v2048, %v2028
    %v2051 = vsel %vm2044, %v2049, %v2034
    %v2052 = vsel %vm2044, %v2050, %v2036
    %v2053 = vpack.c.bf16 %v2046, %v2045
    %v2054 = vpack.c.bf16 %v2052, %v2051
    %v2055 = vld [vmem:[#allocation8] sm:$0xff]
    %v2056 = vld [vmem:[#allocation8 + $0x8] sm:$0xff]
    %v2057 = vld [vmem:[#allocation8 + $0x10] sm:$0xff]
    %v2058 = vld [vmem:[#allocation8 + $0x18] sm:$0xff]
    %v2059 = vld [vmem:[#allocation8 + $0x20] sm:$0xff]
    %v2060 = vld [vmem:[#allocation8 + $0x28] sm:$0xff]
    %v2061 = vld [vmem:[#allocation8 + $0x30] sm:$0xff]
    %v2062 = vld [vmem:[#allocation8 + $0x38] sm:$0xff]
    %v2063 = vld [vmem:[#allocation8 + $0x40] sm:$0xff]
    %v2064 = vld [vmem:[#allocation8 + $0x48] sm:$0xff]
    %v2065 = vld [vmem:[#allocation8 + $0x50] sm:$0xff]
    %v2066 = vld [vmem:[#allocation8 + $0x58] sm:$0xff]
    %v2067 = vld [vmem:[#allocation8 + $0x60] sm:$0xff]
    %v2068 = vld [vmem:[#allocation8 + $0x68] sm:$0xff]
    %v2069 = vld [vmem:[#allocation8 + $0x70] sm:$0xff]
    %v2070 = vld [vmem:[#allocation8 + $0x78] sm:$0xff]
    %v2071 = vld [vmem:[#allocation8 + $0x80] sm:$0xff]
    %v2072 = vld [vmem:[#allocation8 + $0x88] sm:$0xff]
    %v2073 = vld [vmem:[#allocation8 + $0x90] sm:$0xff]
    %v2074 = vld [vmem:[#allocation8 + $0x98] sm:$0xff]
    %v2075 = vld [vmem:[#allocation8 + $0xa0] sm:$0xff]
    %v2076 = vld [vmem:[#allocation8 + $0xa8] sm:$0xff]
    %v2077 = vld [vmem:[#allocation8 + $0xb0] sm:$0xff]
    %v2078 = vld [vmem:[#allocation8 + $0xb8] sm:$0xff]
    %v2079 = vld [vmem:[#allocation8 + $0xc0] sm:$0xff]
    %v2080 = vld [vmem:[#allocation8 + $0xc8] sm:$0xff]
    %v2081 = vld [vmem:[#allocation8 + $0xd0] sm:$0xff]
    %v2082 = vld [vmem:[#allocation8 + $0xd8] sm:$0xff]
    %v2083 = vld [vmem:[#allocation8 + $0xe0] sm:$0xff]
    %v2084 = vld [vmem:[#allocation8 + $0xe8] sm:$0xff]
    %v2085 = vld [vmem:[#allocation8 + $0xf0] sm:$0xff]
    %v2086 = vld [vmem:[#allocation8 + $0xf8] sm:$0xff]
    %v2087 = vld [vmem:[#allocation10] sm:$0x3]
    %v2089 = vperm.slane %v2087, 0
    %v2090 = vperm.slane %v2087, 1
    %v2125 = vunpack.c.l.b16 %v2055
    %v2126 = vunpack.c.h.b16 %v2055
    %v2127 = vunpack.c.l.b16 %v2056
    %v2128 = vunpack.c.h.b16 %v2056
    %v2129 = vunpack.c.l.b16 %v2057
    %v2130 = vunpack.c.h.b16 %v2057
    %v2131 = vunpack.c.l.b16 %v2058
    %v2132 = vunpack.c.h.b16 %v2058
    %v2133 = vunpack.c.l.b16 %v2059
    %v2134 = vunpack.c.h.b16 %v2059
    %v2135 = vunpack.c.l.b16 %v2060
    %v2136 = vunpack.c.h.b16 %v2060
    %v2137 = vunpack.c.l.b16 %v2061
    %v2138 = vunpack.c.h.b16 %v2061
    %v2139 = vunpack.c.l.b16 %v2062
    %v2140 = vunpack.c.h.b16 %v2062
    %v2141 = vunpack.c.l.b16 %v2063
    %v2142 = vunpack.c.h.b16 %v2063
    %v2143 = vunpack.c.l.b16 %v2064
    %v2144 = vunpack.c.h.b16 %v2064
    %v2145 = vunpack.c.l.b16 %v2065
    %v2146 = vunpack.c.h.b16 %v2065
    %v2147 = vunpack.c.l.b16 %v2066
    %v2148 = vunpack.c.h.b16 %v2066
    %v2149 = vunpack.c.l.b16 %v2067
    %v2150 = vunpack.c.h.b16 %v2067
    %v2151 = vunpack.c.l.b16 %v2068
    %v2152 = vunpack.c.h.b16 %v2068
    %v2153 = vunpack.c.l.b16 %v2069
    %v2154 = vunpack.c.h.b16 %v2069
    %v2155 = vunpack.c.l.b16 %v2070
    %v2156 = vunpack.c.h.b16 %v2070
    %v2157 = vunpack.c.l.b16 %v2071
    %v2158 = vunpack.c.h.b16 %v2071
    %v2159 = vunpack.c.l.b16 %v2072
    %v2160 = vunpack.c.h.b16 %v2072
    %v2161 = vunpack.c.l.b16 %v2073
    %v2162 = vunpack.c.h.b16 %v2073
    %v2163 = vunpack.c.l.b16 %v2074
    %v2164 = vunpack.c.h.b16 %v2074
    %v2165 = vunpack.c.l.b16 %v2075
    %v2166 = vunpack.c.h.b16 %v2075
    %v2167 = vunpack.c.l.b16 %v2076
    %v2168 = vunpack.c.h.b16 %v2076
    %v2169 = vunpack.c.l.b16 %v2077
    %v2170 = vunpack.c.h.b16 %v2077
    %v2171 = vunpack.c.l.b16 %v2078
    %v2172 = vunpack.c.h.b16 %v2078
    %v2173 = vunpack.c.l.b16 %v2079
    %v2174 = vunpack.c.h.b16 %v2079
    %v2175 = vunpack.c.l.b16 %v2080
    %v2176 = vunpack.c.h.b16 %v2080
    %v2177 = vunpack.c.l.b16 %v2081
    %v2178 = vunpack.c.h.b16 %v2081
    %v2179 = vunpack.c.l.b16 %v2082
    %v2180 = vunpack.c.h.b16 %v2082
    %v2181 = vunpack.c.l.b16 %v2083
    %v2182 = vunpack.c.h.b16 %v2083
    %v2183 = vunpack.c.l.b16 %v2084
    %v2184 = vunpack.c.h.b16 %v2084
    %v2185 = vunpack.c.l.b16 %v2085
    %v2186 = vunpack.c.h.b16 %v2085
    %v2187 = vunpack.c.l.b16 %v2086
    %v2188 = vunpack.c.h.b16 %v2086
    %v2189 = vpack.c.b16 %v2127, %v2125
    %v2190 = vpack.c.b16 %v2128, %v2126
    %v2191 = vpack.c.b16 %v2131, %v2129
    %v2192 = vpack.c.b16 %v2132, %v2130
    %v2193 = vpack.c.b16 %v2135, %v2133
    %v2194 = vpack.c.b16 %v2136, %v2134
    %v2195 = vpack.c.b16 %v2139, %v2137
    %v2196 = vpack.c.b16 %v2140, %v2138
    %v2197 = vpack.c.b16 %v2143, %v2141
    %v2198 = vpack.c.b16 %v2144, %v2142
    %v2199 = vpack.c.b16 %v2147, %v2145
    %v2200 = vpack.c.b16 %v2148, %v2146
    %v2201 = vpack.c.b16 %v2151, %v2149
    %v2202 = vpack.c.b16 %v2152, %v2150
    %v2203 = vpack.c.b16 %v2155, %v2153
    %v2204 = vpack.c.b16 %v2156, %v2154
    %v2205 = vpack.c.b16 %v2159, %v2157
    %v2206 = vpack.c.b16 %v2160, %v2158
    %v2207 = vpack.c.b16 %v2163, %v2161
    %v2208 = vpack.c.b16 %v2164, %v2162
    %v2209 = vpack.c.b16 %v2167, %v2165
    %v2210 = vpack.c.b16 %v2168, %v2166
    %v2211 = vpack.c.b16 %v2171, %v2169
    %v2212 = vpack.c.b16 %v2172, %v2170
    %v2213 = vpack.c.b16 %v2175, %v2173
    %v2214 = vpack.c.b16 %v2176, %v2174
    %v2215 = vpack.c.b16 %v2179, %v2177
    %v2216 = vpack.c.b16 %v2180, %v2178
    %v2217 = vpack.c.b16 %v2183, %v2181
    %v2218 = vpack.c.b16 %v2184, %v2182
    %v2219 = vpack.c.b16 %v2187, %v2185
    %v2220 = vpack.c.b16 %v2188, %v2186
    %2253 = vmatpush.bf16.msra.mxu0 %v2203
    %2254 = vmatpush.bf16.msra.mxu0 %v2201
    %2255 = vmatpush.bf16.msra.mxu0 %v2199
    %2256 = vmatpush.bf16.msra.mxu0 %v2197
    %2257 = vmatpush.bf16.msra.mxu0 %v2195
    %2258 = vmatpush.bf16.msra.mxu0 %v2193
    %2259 = vmatpush.bf16.msra.mxu0 %v2191
    %2260 = vmatpush.bf16.msra.mxu0 %v2189
    %2261 = vmatmul.bf16.gmra.mxu0 %v2053
    %v2262 = vpop.f32.mrf.mxu0
    %v2263 = vadd.f32 %v2089, %v2262
    %v2264 = vpop.f32.mrf.mxu0
    %v2265 = vadd.f32 %v2089, %v2264
    %2266 = vdwg.mxu0
    %2267 = vmatpush.bf16.msra.mxu0 %v2219
    %2268 = vmatpush.bf16.msra.mxu0 %v2217
    %2269 = vmatpush.bf16.msra.mxu0 %v2215
    %2270 = vmatpush.bf16.msra.mxu0 %v2213
    %2271 = vmatpush.bf16.msra.mxu0 %v2211
    %2272 = vmatpush.bf16.msra.mxu0 %v2209
    %2273 = vmatpush.bf16.msra.mxu0 %v2207
    %2274 = vmatpush.bf16.msra.mxu0 %v2205
    %2275 = vmatmul.bf16.gmra.mxu0 %v2054
    %v2276 = vpop.f32.mrf.mxu0
    %v2277 = vadd.f32 %v2263, %v2276
    %v2278 = vpop.f32.mrf.mxu0
    %v2279 = vadd.f32 %v2265, %v2278
    %2280 = vdwg.mxu0
    %2281 = vmatpush.bf16.msra.mxu0 %v2204
    %2282 = vmatpush.bf16.msra.mxu0 %v2202
    %2283 = vmatpush.bf16.msra.mxu0 %v2200
    %2284 = vmatpush.bf16.msra.mxu0 %v2198
    %2285 = vmatpush.bf16.msra.mxu0 %v2196
    %2286 = vmatpush.bf16.msra.mxu0 %v2194
    %2287 = vmatpush.bf16.msra.mxu0 %v2192
    %2288 = vmatpush.bf16.msra.mxu0 %v2190
    %2289 = vmatmul.bf16.gmra.mxu0 %v2053
    %v2290 = vpop.f32.mrf.mxu0
    %v2291 = vadd.f32 %v2090, %v2290
    %v2292 = vpop.f32.mrf.mxu0
    %v2293 = vadd.f32 %v2090, %v2292
    %2294 = vdwg.mxu0
    %2295 = vmatpush.bf16.msra.mxu0 %v2220
    %2296 = vmatpush.bf16.msra.mxu0 %v2218
    %2297 = vmatpush.bf16.msra.mxu0 %v2216
    %2298 = vmatpush.bf16.msra.mxu0 %v2214
    %2299 = vmatpush.bf16.msra.mxu0 %v2212
    %2300 = vmatpush.bf16.msra.mxu0 %v2210
    %2301 = vmatpush.bf16.msra.mxu0 %v2208
    %2302 = vmatpush.bf16.msra.mxu0 %v2206
    %2303 = vmatmul.bf16.gmra.mxu0 %v2054
    %v2304 = vpop.f32.mrf.mxu0
    %v2305 = vadd.f32 %v2291, %v2304
    %v2306 = vpop.f32.mrf.mxu0
    %v2307 = vadd.f32 %v2293, %v2306
    %2308 = vdwg.mxu0
    %v2309 = vadd.f32 %v304, %v2277
    %v2310 = vadd.f32 %v305, %v2305
    %v2311 = vadd.f32 %v306, %v2279
    %v2312 = vadd.f32 %v307, %v2307
    %v2313 = vld [vmem:[#allocation19] sm:$0x3]
    %v2314 = vld [vmem:[#allocation20] sm:$0x3]
    %v2315 = vadd.f32 %v2309, %v2310
    %2316 = vadd.xlane.f32.xlu0 %v2315
    %v2317 = vpop.xlane.xlu0 %2316
    %v2318 = vadd.f32 %v2311, %v2312
    %2319 = vadd.xlane.f32.xlu0 %v2318
    %v2320 = vpop.xlane.xlu0 %2319
    %v2321 = vrcp.pop 256.0
    %v2322 = vmul.f32 256.0, %v2321
    %v2323 = vsub.f32 1.0, %v2322
    %v2324 = vmul.f32 %v2321, %v2323
    %v2325 = vadd.f32 %v2321, %v2324
    %vm2326 = vweird.f32 %v2321
    %v2327 = vsel %vm2326, %v2321, %v2325
    %v2328 = vmul.f32 %v2317, %v2327
    %v2329 = vmul.f32 %v2320, %v2327
    %v2330 = vmul.f32 %v2309, %v2309
    %v2331 = vmul.f32 %v2310, %v2310
    %v2332 = vmul.f32 %v2311, %v2311
    %v2333 = vmul.f32 %v2312, %v2312
    %v2334 = vadd.f32 %v2330, %v2331
    %2335 = vadd.xlane.f32.xlu0 %v2334
    %v2336 = vpop.xlane.xlu0 %2335
    %v2337 = vadd.f32 %v2332, %v2333
    %2338 = vadd.xlane.f32.xlu0 %v2337
    %v2339 = vpop.xlane.xlu0 %2338
    %v2340 = vmul.f32 %v2336, %v2327
    %v2341 = vmul.f32 %v2339, %v2327
    %v2342 = vmul.f32 %v2328, %v2328
    %v2343 = vmul.f32 %v2329, %v2329
    %v2344 = vsub.f32 %v2340, %v2342
    %v2345 = vsub.f32 %v2341, %v2343
    %v2346 = vsub.f32 %v2309, %v2328
    %v2347 = vsub.f32 %v2310, %v2328
    %v2348 = vsub.f32 %v2311, %v2329
    %v2349 = vsub.f32 %v2312, %v2329
    %v2350 = vadd.f32 %v2344, 1e-05
    %v2351 = vadd.f32 %v2345, 1e-05
    %v2352 = vrsqrt.pop %v2350
    %v2353 = vmul.f32 %v2352, %v2350
    %v2354 = vmul.f32 %v2353, %v2352
    %v2355 = vmul.f32 0.5, %v2354
    %v2356 = vsub.f32 1.5, %v2355
    %v2357 = vmul.f32 %v2352, %v2356
    %vm2358 = vweird.f32 %v2350
    %vm2359 = vweird.f32 %v2352
    %vm2360 = vmor %vm2358, %vm2359
    %v2361 = vsel %vm2360, %v2352, %v2357
    %v2362 = vrsqrt.pop %v2351
    %v2363 = vmul.f32 %v2362, %v2351
    %v2364 = vmul.f32 %v2363, %v2362
    %v2365 = vmul.f32 0.5, %v2364
    %v2366 = vsub.f32 1.5, %v2365
    %v2367 = vmul.f32 %v2362, %v2366
    %vm2368 = vweird.f32 %v2351
    %vm2369 = vweird.f32 %v2362
    %vm2370 = vmor %vm2368, %vm2369
    %v2371 = vsel %vm2370, %v2362, %v2367
    %v2372 = vmul.f32 %v2346, %v2361
    %v2373 = vmul.f32 %v2347, %v2361
    %v2374 = vmul.f32 %v2348, %v2371
    %v2375 = vmul.f32 %v2349, %v2371
    %v2377 = vperm.slane %v2313, 0
    %v2378 = vperm.slane %v2313, 1
    %v2381 = vmul.f32 %v2372, %v2377
    %v2382 = vmul.f32 %v2373, %v2378
    %v2383 = vmul.f32 %v2374, %v2377
    %v2384 = vmul.f32 %v2375, %v2378
    %v2386 = vperm.slane %v2314, 0
    %v2387 = vperm.slane %v2314, 1
    %v2390 = vadd.f32 %v2381, %v2386
    %v2391 = vadd.f32 %v2382, %v2387
    %v2392 = vadd.f32 %v2383, %v2386
    %v2393 = vadd.f32 %v2384, %v2387
    %v2394 = vld [vmem:[#allocation11] sm:$0x3]
    %v2396 = vperm.slane %v2394, 0
    %v2397 = vperm.slane %v2394, 1
    %v2400 = vadd.f32 %v2390, %v2396
    %v2401 = vadd.f32 %v2391, %v2397
    %v2402 = vadd.f32 %v2392, %v2396
    %v2403 = vadd.f32 %v2393, %v2397
    %v2404 = vld [vmem:[#allocation22] sm:$0x3]
    %v2405 = vld [vmem:[#allocation23] sm:$0x3]
    %v2406 = vadd.f32 %v2400, %v2401
    %2407 = vadd.xlane.f32.xlu0 %v2406
    %v2408 = vpop.xlane.xlu0 %2407
    %v2409 = vadd.f32 %v2402, %v2403
    %2410 = vadd.xlane.f32.xlu0 %v2409
    %v2411 = vpop.xlane.xlu0 %2410
    %v2412 = vmul.f32 %v2408, %v2327
    %v2413 = vmul.f32 %v2411, %v2327
    %v2414 = vmul.f32 %v2400, %v2400
    %v2415 = vmul.f32 %v2401, %v2401
    %v2416 = vmul.f32 %v2402, %v2402
    %v2417 = vmul.f32 %v2403, %v2403
    %v2418 = vadd.f32 %v2414, %v2415
    %2419 = vadd.xlane.f32.xlu0 %v2418
    %v2420 = vpop.xlane.xlu0 %2419
    %v2421 = vadd.f32 %v2416, %v2417
    %2422 = vadd.xlane.f32.xlu0 %v2421
    %v2423 = vpop.xlane.xlu0 %2422
    %v2424 = vmul.f32 %v2420, %v2327
    %v2425 = vmul.f32 %v2423, %v2327
    %v2426 = vmul.f32 %v2412, %v2412
    %v2427 = vmul.f32 %v2413, %v2413
    %v2428 = vsub.f32 %v2424, %v2426
    %v2429 = vsub.f32 %v2425, %v2427
    %v2430 = vsub.f32 %v2400, %v2412
    %v2431 = vsub.f32 %v2401, %v2412
    %v2432 = vsub.f32 %v2402, %v2413
    %v2433 = vsub.f32 %v2403, %v2413
    %v2434 = vadd.f32 %v2428, 1e-05
    %v2435 = vadd.f32 %v2429, 1e-05
    %v2436 = vrsqrt.pop %v2434
    %v2437 = vmul.f32 %v2436, %v2434
    %v2438 = vmul.f32 %v2437, %v2436
    %v2439 = vmul.f32 0.5, %v2438
    %v2440 = vsub.f32 1.5, %v2439
    %v2441 = vmul.f32 %v2436, %v2440
    %vm2442 = vweird.f32 %v2434
    %vm2443 = vweird.f32 %v2436
    %vm2444 = vmor %vm2442, %vm2443
    %v2445 = vsel %vm2444, %v2436, %v2441
    %v2446 = vrsqrt.pop %v2435
    %v2447 = vmul.f32 %v2446, %v2435
    %v2448 = vmul.f32 %v2447, %v2446
    %v2449 = vmul.f32 0.5, %v2448
    %v2450 = vsub.f32 1.5, %v2449
    %v2451 = vmul.f32 %v2446, %v2450
    %vm2452 = vweird.f32 %v2435
    %vm2453 = vweird.f32 %v2446
    %vm2454 = vmor %vm2452, %vm2453
    %v2455 = vsel %vm2454, %v2446, %v2451
    %v2456 = vmul.f32 %v2430, %v2445
    %v2457 = vmul.f32 %v2431, %v2445
    %v2458 = vmul.f32 %v2432, %v2455
    %v2459 = vmul.f32 %v2433, %v2455
    %v2461 = vperm.slane %v2404, 0
    %v2462 = vperm.slane %v2404, 1
    %v2465 = vmul.f32 %v2456, %v2461
    %v2466 = vmul.f32 %v2457, %v2462
    %v2467 = vmul.f32 %v2458, %v2461
    %v2468 = vmul.f32 %v2459, %v2462
    %v2470 = vperm.slane %v2405, 0
    %v2471 = vperm.slane %v2405, 1
    %v2474 = vadd.f32 %v2465, %v2470
    %v2475 = vadd.f32 %v2466, %v2471
    %v2476 = vadd.f32 %v2467, %v2470
    %v2477 = vadd.f32 %v2468, %v2471
    %v2478 = vpack.c.bf16 %v2476, %v2474
    %v2479 = vpack.c.bf16 %v2477, %v2475
    %v2480 = vld [vmem:[#allocation13] sm:$0xff]
    %v2481 = vld [vmem:[#allocation13 + $0x8] sm:$0xff]
    %v2482 = vld [vmem:[#allocation13 + $0x10] sm:$0xff]
    %v2483 = vld [vmem:[#allocation13 + $0x18] sm:$0xff]
    %v2484 = vld [vmem:[#allocation13 + $0x20] sm:$0xff]
    %v2485 = vld [vmem:[#allocation13 + $0x28] sm:$0xff]
    %v2486 = vld [vmem:[#allocation13 + $0x30] sm:$0xff]
    %v2487 = vld [vmem:[#allocation13 + $0x38] sm:$0xff]
    %v2488 = vld [vmem:[#allocation13 + $0x40] sm:$0xff]
    %v2489 = vld [vmem:[#allocation13 + $0x48] sm:$0xff]
    %v2490 = vld [vmem:[#allocation13 + $0x50] sm:$0xff]
    %v2491 = vld [vmem:[#allocation13 + $0x58] sm:$0xff]
    %v2492 = vld [vmem:[#allocation13 + $0x60] sm:$0xff]
    %v2493 = vld [vmem:[#allocation13 + $0x68] sm:$0xff]
    %v2494 = vld [vmem:[#allocation13 + $0x70] sm:$0xff]
    %v2495 = vld [vmem:[#allocation13 + $0x78] sm:$0xff]
    %v2496 = vld [vmem:[#allocation13 + $0x80] sm:$0xff]
    %v2497 = vld [vmem:[#allocation13 + $0x88] sm:$0xff]
    %v2498 = vld [vmem:[#allocation13 + $0x90] sm:$0xff]
    %v2499 = vld [vmem:[#allocation13 + $0x98] sm:$0xff]
    %v2500 = vld [vmem:[#allocation13 + $0xa0] sm:$0xff]
    %v2501 = vld [vmem:[#allocation13 + $0xa8] sm:$0xff]
    %v2502 = vld [vmem:[#allocation13 + $0xb0] sm:$0xff]
    %v2503 = vld [vmem:[#allocation13 + $0xb8] sm:$0xff]
    %v2504 = vld [vmem:[#allocation13 + $0xc0] sm:$0xff]
    %v2505 = vld [vmem:[#allocation13 + $0xc8] sm:$0xff]
    %v2506 = vld [vmem:[#allocation13 + $0xd0] sm:$0xff]
    %v2507 = vld [vmem:[#allocation13 + $0xd8] sm:$0xff]
    %v2508 = vld [vmem:[#allocation13 + $0xe0] sm:$0xff]
    %v2509 = vld [vmem:[#allocation13 + $0xe8] sm:$0xff]
    %v2510 = vld [vmem:[#allocation13 + $0xf0] sm:$0xff]
    %v2511 = vld [vmem:[#allocation13 + $0xf8] sm:$0xff]
    %v2512 = vld [vmem:[#allocation13 + $0x100] sm:$0xff]
    %v2513 = vld [vmem:[#allocation13 + $0x108] sm:$0xff]
    %v2514 = vld [vmem:[#allocation13 + $0x110] sm:$0xff]
    %v2515 = vld [vmem:[#allocation13 + $0x118] sm:$0xff]
    %v2516 = vld [vmem:[#allocation13 + $0x120] sm:$0xff]
    %v2517 = vld [vmem:[#allocation13 + $0x128] sm:$0xff]
    %v2518 = vld [vmem:[#allocation13 + $0x130] sm:$0xff]
    %v2519 = vld [vmem:[#allocation13 + $0x138] sm:$0xff]
    %v2520 = vld [vmem:[#allocation13 + $0x140] sm:$0xff]
    %v2521 = vld [vmem:[#allocation13 + $0x148] sm:$0xff]
    %v2522 = vld [vmem:[#allocation13 + $0x150] sm:$0xff]
    %v2523 = vld [vmem:[#allocation13 + $0x158] sm:$0xff]
    %v2524 = vld [vmem:[#allocation13 + $0x160] sm:$0xff]
    %v2525 = vld [vmem:[#allocation13 + $0x168] sm:$0xff]
    %v2526 = vld [vmem:[#allocation13 + $0x170] sm:$0xff]
    %v2527 = vld [vmem:[#allocation13 + $0x178] sm:$0xff]
    %v2528 = vld [vmem:[#allocation13 + $0x180] sm:$0xff]
    %v2529 = vld [vmem:[#allocation13 + $0x188] sm:$0xff]
    %v2530 = vld [vmem:[#allocation13 + $0x190] sm:$0xff]
    %v2531 = vld [vmem:[#allocation13 + $0x198] sm:$0xff]
    %v2532 = vld [vmem:[#allocation13 + $0x1a0] sm:$0xff]
    %v2533 = vld [vmem:[#allocation13 + $0x1a8] sm:$0xff]
    %v2534 = vld [vmem:[#allocation13 + $0x1b0] sm:$0xff]
    %v2535 = vld [vmem:[#allocation13 + $0x1b8] sm:$0xff]
    %v2536 = vld [vmem:[#allocation13 + $0x1c0] sm:$0xff]
    %v2537 = vld [vmem:[#allocation13 + $0x1c8] sm:$0xff]
    %v2538 = vld [vmem:[#allocation13 + $0x1d0] sm:$0xff]
    %v2539 = vld [vmem:[#allocation13 + $0x1d8] sm:$0xff]
    %v2540 = vld [vmem:[#allocation13 + $0x1e0] sm:$0xff]
    %v2541 = vld [vmem:[#allocation13 + $0x1e8] sm:$0xff]
    %v2542 = vld [vmem:[#allocation13 + $0x1f0] sm:$0xff]
    %v2543 = vld [vmem:[#allocation13 + $0x1f8] sm:$0xff]
    %v2544 = vld [vmem:[#allocation14] sm:$0xf]
    %v2546 = vperm.slane %v2544, 0
    %v2547 = vperm.slane %v2544, 1
    %v2548 = vperm.slane %v2544, 2
    %v2549 = vperm.slane %v2544, 3
    %v2618 = vunpack.c.l.b16 %v2480
    %v2619 = vunpack.c.h.b16 %v2480
    %v2620 = vunpack.c.l.b16 %v2481
    %v2621 = vunpack.c.h.b16 %v2481
    %v2622 = vunpack.c.l.b16 %v2482
    %v2623 = vunpack.c.h.b16 %v2482
    %v2624 = vunpack.c.l.b16 %v2483
    %v2625 = vunpack.c.h.b16 %v2483
    %v2626 = vunpack.c.l.b16 %v2484
    %v2627 = vunpack.c.h.b16 %v2484
    %v2628 = vunpack.c.l.b16 %v2485
    %v2629 = vunpack.c.h.b16 %v2485
    %v2630 = vunpack.c.l.b16 %v2486
    %v2631 = vunpack.c.h.b16 %v2486
    %v2632 = vunpack.c.l.b16 %v2487
    %v2633 = vunpack.c.h.b16 %v2487
    %v2634 = vunpack.c.l.b16 %v2488
    %v2635 = vunpack.c.h.b16 %v2488
    %v2636 = vunpack.c.l.b16 %v2489
    %v2637 = vunpack.c.h.b16 %v2489
    %v2638 = vunpack.c.l.b16 %v2490
    %v2639 = vunpack.c.h.b16 %v2490
    %v2640 = vunpack.c.l.b16 %v2491
    %v2641 = vunpack.c.h.b16 %v2491
    %v2642 = vunpack.c.l.b16 %v2492
    %v2643 = vunpack.c.h.b16 %v2492
    %v2644 = vunpack.c.l.b16 %v2493
    %v2645 = vunpack.c.h.b16 %v2493
    %v2646 = vunpack.c.l.b16 %v2494
    %v2647 = vunpack.c.h.b16 %v2494
    %v2648 = vunpack.c.l.b16 %v2495
    %v2649 = vunpack.c.h.b16 %v2495
    %v2650 = vunpack.c.l.b16 %v2496
    %v2651 = vunpack.c.h.b16 %v2496
    %v2652 = vunpack.c.l.b16 %v2497
    %v2653 = vunpack.c.h.b16 %v2497
    %v2654 = vunpack.c.l.b16 %v2498
    %v2655 = vunpack.c.h.b16 %v2498
    %v2656 = vunpack.c.l.b16 %v2499
    %v2657 = vunpack.c.h.b16 %v2499
    %v2658 = vunpack.c.l.b16 %v2500
    %v2659 = vunpack.c.h.b16 %v2500
    %v2660 = vunpack.c.l.b16 %v2501
    %v2661 = vunpack.c.h.b16 %v2501
    %v2662 = vunpack.c.l.b16 %v2502
    %v2663 = vunpack.c.h.b16 %v2502
    %v2664 = vunpack.c.l.b16 %v2503
    %v2665 = vunpack.c.h.b16 %v2503
    %v2666 = vunpack.c.l.b16 %v2504
    %v2667 = vunpack.c.h.b16 %v2504
    %v2668 = vunpack.c.l.b16 %v2505
    %v2669 = vunpack.c.h.b16 %v2505
    %v2670 = vunpack.c.l.b16 %v2506
    %v2671 = vunpack.c.h.b16 %v2506
    %v2672 = vunpack.c.l.b16 %v2507
    %v2673 = vunpack.c.h.b16 %v2507
    %v2674 = vunpack.c.l.b16 %v2508
    %v2675 = vunpack.c.h.b16 %v2508
    %v2676 = vunpack.c.l.b16 %v2509
    %v2677 = vunpack.c.h.b16 %v2509
    %v2678 = vunpack.c.l.b16 %v2510
    %v2679 = vunpack.c.h.b16 %v2510
    %v2680 = vunpack.c.l.b16 %v2511
    %v2681 = vunpack.c.h.b16 %v2511
    %v2682 = vunpack.c.l.b16 %v2512
    %v2683 = vunpack.c.h.b16 %v2512
    %v2684 = vunpack.c.l.b16 %v2513
    %v2685 = vunpack.c.h.b16 %v2513
    %v2686 = vunpack.c.l.b16 %v2514
    %v2687 = vunpack.c.h.b16 %v2514
    %v2688 = vunpack.c.l.b16 %v2515
    %v2689 = vunpack.c.h.b16 %v2515
    %v2690 = vunpack.c.l.b16 %v2516
    %v2691 = vunpack.c.h.b16 %v2516
    %v2692 = vunpack.c.l.b16 %v2517
    %v2693 = vunpack.c.h.b16 %v2517
    %v2694 = vunpack.c.l.b16 %v2518
    %v2695 = vunpack.c.h.b16 %v2518
    %v2696 = vunpack.c.l.b16 %v2519
    %v2697 = vunpack.c.h.b16 %v2519
    %v2698 = vunpack.c.l.b16 %v2520
    %v2699 = vunpack.c.h.b16 %v2520
    %v2700 = vunpack.c.l.b16 %v2521
    %v2701 = vunpack.c.h.b16 %v2521
    %v2702 = vunpack.c.l.b16 %v2522
    %v2703 = vunpack.c.h.b16 %v2522
    %v2704 = vunpack.c.l.b16 %v2523
    %v2705 = vunpack.c.h.b16 %v2523
    %v2706 = vunpack.c.l.b16 %v2524
    %v2707 = vunpack.c.h.b16 %v2524
    %v2708 = vunpack.c.l.b16 %v2525
    %v2709 = vunpack.c.h.b16 %v2525
    %v2710 = vunpack.c.l.b16 %v2526
    %v2711 = vunpack.c.h.b16 %v2526
    %v2712 = vunpack.c.l.b16 %v2527
    %v2713 = vunpack.c.h.b16 %v2527
    %v2714 = vunpack.c.l.b16 %v2528
    %v2715 = vunpack.c.h.b16 %v2528
    %v2716 = vunpack.c.l.b16 %v2529
    %v2717 = vunpack.c.h.b16 %v2529
    %v2718 = vunpack.c.l.b16 %v2530
    %v2719 = vunpack.c.h.b16 %v2530
    %v2720 = vunpack.c.l.b16 %v2531
    %v2721 = vunpack.c.h.b16 %v2531
    %v2722 = vunpack.c.l.b16 %v2532
    %v2723 = vunpack.c.h.b16 %v2532
    %v2724 = vunpack.c.l.b16 %v2533
    %v2725 = vunpack.c.h.b16 %v2533
    %v2726 = vunpack.c.l.b16 %v2534
    %v2727 = vunpack.c.h.b16 %v2534
    %v2728 = vunpack.c.l.b16 %v2535
    %v2729 = vunpack.c.h.b16 %v2535
    %v2730 = vunpack.c.l.b16 %v2536
    %v2731 = vunpack.c.h.b16 %v2536
    %v2732 = vunpack.c.l.b16 %v2537
    %v2733 = vunpack.c.h.b16 %v2537
    %v2734 = vunpack.c.l.b16 %v2538
    %v2735 = vunpack.c.h.b16 %v2538
    %v2736 = vunpack.c.l.b16 %v2539
    %v2737 = vunpack.c.h.b16 %v2539
    %v2738 = vunpack.c.l.b16 %v2540
    %v2739 = vunpack.c.h.b16 %v2540
    %v2740 = vunpack.c.l.b16 %v2541
    %v2741 = vunpack.c.h.b16 %v2541
    %v2742 = vunpack.c.l.b16 %v2542
    %v2743 = vunpack.c.h.b16 %v2542
    %v2744 = vunpack.c.l.b16 %v2543
    %v2745 = vunpack.c.h.b16 %v2543
    %v2746 = vpack.c.b16 %v2622, %v2618
    %v2747 = vpack.c.b16 %v2623, %v2619
    %v2748 = vpack.c.b16 %v2624, %v2620
    %v2749 = vpack.c.b16 %v2625, %v2621
    %v2750 = vpack.c.b16 %v2630, %v2626
    %v2751 = vpack.c.b16 %v2631, %v2627
    %v2752 = vpack.c.b16 %v2632, %v2628
    %v2753 = vpack.c.b16 %v2633, %v2629
    %v2754 = vpack.c.b16 %v2638, %v2634
    %v2755 = vpack.c.b16 %v2639, %v2635
    %v2756 = vpack.c.b16 %v2640, %v2636
    %v2757 = vpack.c.b16 %v2641, %v2637
    %v2758 = vpack.c.b16 %v2646, %v2642
    %v2759 = vpack.c.b16 %v2647, %v2643
    %v2760 = vpack.c.b16 %v2648, %v2644
    %v2761 = vpack.c.b16 %v2649, %v2645
    %v2762 = vpack.c.b16 %v2654, %v2650
    %v2763 = vpack.c.b16 %v2655, %v2651
    %v2764 = vpack.c.b16 %v2656, %v2652
    %v2765 = vpack.c.b16 %v2657, %v2653
    %v2766 = vpack.c.b16 %v2662, %v2658
    %v2767 = vpack.c.b16 %v2663, %v2659
    %v2768 = vpack.c.b16 %v2664, %v2660
    %v2769 = vpack.c.b16 %v2665, %v2661
    %v2770 = vpack.c.b16 %v2670, %v2666
    %v2771 = vpack.c.b16 %v2671, %v2667
    %v2772 = vpack.c.b16 %v2672, %v2668
    %v2773 = vpack.c.b16 %v2673, %v2669
    %v2774 = vpack.c.b16 %v2678, %v2674
    %v2775 = vpack.c.b16 %v2679, %v2675
    %v2776 = vpack.c.b16 %v2680, %v2676
    %v2777 = vpack.c.b16 %v2681, %v2677
    %v2778 = vpack.c.b16 %v2686, %v2682
    %v2779 = vpack.c.b16 %v2687, %v2683
    %v2780 = vpack.c.b16 %v2688, %v2684
    %v2781 = vpack.c.b16 %v2689, %v2685
    %v2782 = vpack.c.b16 %v2694, %v2690
    %v2783 = vpack.c.b16 %v2695, %v2691
    %v2784 = vpack.c.b16 %v2696, %v2692
    %v2785 = vpack.c.b16 %v2697, %v2693
    %v2786 = vpack.c.b16 %v2702, %v2698
    %v2787 = vpack.c.b16 %v2703, %v2699
    %v2788 = vpack.c.b16 %v2704, %v2700
    %v2789 = vpack.c.b16 %v2705, %v2701
    %v2790 = vpack.c.b16 %v2710, %v2706
    %v2791 = vpack.c.b16 %v2711, %v2707
    %v2792 = vpack.c.b16 %v2712, %v2708
    %v2793 = vpack.c.b16 %v2713, %v2709
    %v2794 = vpack.c.b16 %v2718, %v2714
    %v2795 = vpack.c.b16 %v2719, %v2715
    %v2796 = vpack.c.b16 %v2720, %v2716
    %v2797 = vpack.c.b16 %v2721, %v2717
    %v2798 = vpack.c.b16 %v2726, %v2722
    %v2799 = vpack.c.b16 %v2727, %v2723
    %v2800 = vpack.c.b16 %v2728, %v2724
    %v2801 = vpack.c.b16 %v2729, %v2725
    %v2802 = vpack.c.b16 %v2734, %v2730
    %v2803 = vpack.c.b16 %v2735, %v2731
    %v2804 = vpack.c.b16 %v2736, %v2732
    %v2805 = vpack.c.b16 %v2737, %v2733
    %v2806 = vpack.c.b16 %v2742, %v2738
    %v2807 = vpack.c.b16 %v2743, %v2739
    %v2808 = vpack.c.b16 %v2744, %v2740
    %v2809 = vpack.c.b16 %v2745, %v2741
    %2874 = vmatpush.bf16.msra.mxu0 %v2774
    %2875 = vmatpush.bf16.msra.mxu0 %v2770
    %2876 = vmatpush.bf16.msra.mxu0 %v2766
    %2877 = vmatpush.bf16.msra.mxu0 %v2762
    %2878 = vmatpush.bf16.msra.mxu0 %v2758
    %2879 = vmatpush.bf16.msra.mxu0 %v2754
    %2880 = vmatpush.bf16.msra.mxu0 %v2750
    %2881 = vmatpush.bf16.msra.mxu0 %v2746
    %2882 = vmatmul.bf16.gmra.mxu0 %v2478
    %v2883 = vpop.f32.mrf.mxu0
    %v2884 = vadd.f32 %v2546, %v2883
    %v2885 = vpop.f32.mrf.mxu0
    %v2886 = vadd.f32 %v2546, %v2885
    %2887 = vdwg.mxu0
    %2888 = vmatpush.bf16.msra.mxu0 %v2806
    %2889 = vmatpush.bf16.msra.mxu0 %v2802
    %2890 = vmatpush.bf16.msra.mxu0 %v2798
    %2891 = vmatpush.bf16.msra.mxu0 %v2794
    %2892 = vmatpush.bf16.msra.mxu0 %v2790
    %2893 = vmatpush.bf16.msra.mxu0 %v2786
    %2894 = vmatpush.bf16.msra.mxu0 %v2782
    %2895 = vmatpush.bf16.msra.mxu0 %v2778
    %2896 = vmatmul.bf16.gmra.mxu0 %v2479
    %v2897 = vpop.f32.mrf.mxu0
    %v2898 = vadd.f32 %v2884, %v2897
    %v2899 = vpop.f32.mrf.mxu0
    %v2900 = vadd.f32 %v2886, %v2899
    %2901 = vdwg.mxu0
    %2902 = vmatpush.bf16.msra.mxu0 %v2775
    %2903 = vmatpush.bf16.msra.mxu0 %v2771
    %2904 = vmatpush.bf16.msra.mxu0 %v2767
    %2905 = vmatpush.bf16.msra.mxu0 %v2763
    %2906 = vmatpush.bf16.msra.mxu0 %v2759
    %2907 = vmatpush.bf16.msra.mxu0 %v2755
    %2908 = vmatpush.bf16.msra.mxu0 %v2751
    %2909 = vmatpush.bf16.msra.mxu0 %v2747
    %2910 = vmatmul.bf16.gmra.mxu0 %v2478
    %v2911 = vpop.f32.mrf.mxu0
    %v2912 = vadd.f32 %v2547, %v2911
    %v2913 = vpop.f32.mrf.mxu0
    %v2914 = vadd.f32 %v2547, %v2913
    %2915 = vdwg.mxu0
    %2916 = vmatpush.bf16.msra.mxu0 %v2807
    %2917 = vmatpush.bf16.msra.mxu0 %v2803
    %2918 = vmatpush.bf16.msra.mxu0 %v2799
    %2919 = vmatpush.bf16.msra.mxu0 %v2795
    %2920 = vmatpush.bf16.msra.mxu0 %v2791
    %2921 = vmatpush.bf16.msra.mxu0 %v2787
    %2922 = vmatpush.bf16.msra.mxu0 %v2783
    %2923 = vmatpush.bf16.msra.mxu0 %v2779
    %2924 = vmatmul.bf16.gmra.mxu0 %v2479
    %v2925 = vpop.f32.mrf.mxu0
    %v2926 = vadd.f32 %v2912, %v2925
    %v2927 = vpop.f32.mrf.mxu0
    %v2928 = vadd.f32 %v2914, %v2927
    %2929 = vdwg.mxu0
    %2930 = vmatpush.bf16.msra.mxu0 %v2776
    %2931 = vmatpush.bf16.msra.mxu0 %v2772
    %2932 = vmatpush.bf16.msra.mxu0 %v2768
    %2933 = vmatpush.bf16.msra.mxu0 %v2764
    %2934 = vmatpush.bf16.msra.mxu0 %v2760
    %2935 = vmatpush.bf16.msra.mxu0 %v2756
    %2936 = vmatpush.bf16.msra.mxu0 %v2752
    %2937 = vmatpush.bf16.msra.mxu0 %v2748
    %2938 = vmatmul.bf16.gmra.mxu0 %v2478
    %v2939 = vpop.f32.mrf.mxu0
    %v2940 = vadd.f32 %v2548, %v2939
    %v2941 = vpop.f32.mrf.mxu0
    %v2942 = vadd.f32 %v2548, %v2941
    %2943 = vdwg.mxu0
    %2944 = vmatpush.bf16.msra.mxu0 %v2808
    %2945 = vmatpush.bf16.msra.mxu0 %v2804
    %2946 = vmatpush.bf16.msra.mxu0 %v2800
    %2947 = vmatpush.bf16.msra.mxu0 %v2796
    %2948 = vmatpush.bf16.msra.mxu0 %v2792
    %2949 = vmatpush.bf16.msra.mxu0 %v2788
    %2950 = vmatpush.bf16.msra.mxu0 %v2784
    %2951 = vmatpush.bf16.msra.mxu0 %v2780
    %2952 = vmatmul.bf16.gmra.mxu0 %v2479
    %v2953 = vpop.f32.mrf.mxu0
    %v2954 = vadd.f32 %v2940, %v2953
    %v2955 = vpop.f32.mrf.mxu0
    %v2956 = vadd.f32 %v2942, %v2955
    %2957 = vdwg.mxu0
    %2958 = vmatpush.bf16.msra.mxu0 %v2777
    %2959 = vmatpush.bf16.msra.mxu0 %v2773
    %2960 = vmatpush.bf16.msra.mxu0 %v2769
    %2961 = vmatpush.bf16.msra.mxu0 %v2765
    %2962 = vmatpush.bf16.msra.mxu0 %v2761
    %2963 = vmatpush.bf16.msra.mxu0 %v2757
    %2964 = vmatpush.bf16.msra.mxu0 %v2753
    %2965 = vmatpush.bf16.msra.mxu0 %v2749
    %2966 = vmatmul.bf16.gmra.mxu0 %v2478
    %v2967 = vpop.f32.mrf.mxu0
    %v2968 = vadd.f32 %v2549, %v2967
    %v2969 = vpop.f32.mrf.mxu0
    %v2970 = vadd.f32 %v2549, %v2969
    %2971 = vdwg.mxu0
    %2972 = vmatpush.bf16.msra.mxu0 %v2809
    %2973 = vmatpush.bf16.msra.mxu0 %v2805
    %2974 = vmatpush.bf16.msra.mxu0 %v2801
    %2975 = vmatpush.bf16.msra.mxu0 %v2797
    %2976 = vmatpush.bf16.msra.mxu0 %v2793
    %2977 = vmatpush.bf16.msra.mxu0 %v2789
    %2978 = vmatpush.bf16.msra.mxu0 %v2785
    %2979 = vmatpush.bf16.msra.mxu0 %v2781
    %2980 = vmatmul.bf16.gmra.mxu0 %v2479
    %v2981 = vpop.f32.mrf.mxu0
    %v2982 = vadd.f32 %v2968, %v2981
    %v2983 = vpop.f32.mrf.mxu0
    %v2984 = vadd.f32 %v2970, %v2983
    %2985 = vdwg.mxu0
    %v2986 = vmax.f32 %v2898, 0.0
    %v2987 = vmax.f32 %v2926, 0.0
    %v2988 = vmax.f32 %v2954, 0.0
    %v2989 = vmax.f32 %v2982, 0.0
    %v2990 = vmax.f32 %v2900, 0.0
    %v2991 = vmax.f32 %v2928, 0.0
    %v2992 = vmax.f32 %v2956, 0.0
    %v2993 = vmax.f32 %v2984, 0.0
    %v2994 = vpack.c.bf16 %v2990, %v2986
    %v2995 = vpack.c.bf16 %v2991, %v2987
    %v2996 = vpack.c.bf16 %v2992, %v2988
    %v2997 = vpack.c.bf16 %v2993, %v2989
    %v2998 = vld [vmem:[#allocation16] sm:$0xff]
    %v2999 = vld [vmem:[#allocation16 + $0x8] sm:$0xff]
    %v3000 = vld [vmem:[#allocation16 + $0x10] sm:$0xff]
    %v3001 = vld [vmem:[#allocation16 + $0x18] sm:$0xff]
    %v3002 = vld [vmem:[#allocation16 + $0x20] sm:$0xff]
    %v3003 = vld [vmem:[#allocation16 + $0x28] sm:$0xff]
    %v3004 = vld [vmem:[#allocation16 + $0x30] sm:$0xff]
    %v3005 = vld [vmem:[#allocation16 + $0x38] sm:$0xff]
    %v3006 = vld [vmem:[#allocation16 + $0x40] sm:$0xff]
    %v3007 = vld [vmem:[#allocation16 + $0x48] sm:$0xff]
    %v3008 = vld [vmem:[#allocation16 + $0x50] sm:$0xff]
    %v3009 = vld [vmem:[#allocation16 + $0x58] sm:$0xff]
    %v3010 = vld [vmem:[#allocation16 + $0x60] sm:$0xff]
    %v3011 = vld [vmem:[#allocation16 + $0x68] sm:$0xff]
    %v3012 = vld [vmem:[#allocation16 + $0x70] sm:$0xff]
    %v3013 = vld [vmem:[#allocation16 + $0x78] sm:$0xff]
    %v3014 = vld [vmem:[#allocation16 + $0x80] sm:$0xff]
    %v3015 = vld [vmem:[#allocation16 + $0x88] sm:$0xff]
    %v3016 = vld [vmem:[#allocation16 + $0x90] sm:$0xff]
    %v3017 = vld [vmem:[#allocation16 + $0x98] sm:$0xff]
    %v3018 = vld [vmem:[#allocation16 + $0xa0] sm:$0xff]
    %v3019 = vld [vmem:[#allocation16 + $0xa8] sm:$0xff]
    %v3020 = vld [vmem:[#allocation16 + $0xb0] sm:$0xff]
    %v3021 = vld [vmem:[#allocation16 + $0xb8] sm:$0xff]
    %v3022 = vld [vmem:[#allocation16 + $0xc0] sm:$0xff]
    %v3023 = vld [vmem:[#allocation16 + $0xc8] sm:$0xff]
    %v3024 = vld [vmem:[#allocation16 + $0xd0] sm:$0xff]
    %v3025 = vld [vmem:[#allocation16 + $0xd8] sm:$0xff]
    %v3026 = vld [vmem:[#allocation16 + $0xe0] sm:$0xff]
    %v3027 = vld [vmem:[#allocation16 + $0xe8] sm:$0xff]
    %v3028 = vld [vmem:[#allocation16 + $0xf0] sm:$0xff]
    %v3029 = vld [vmem:[#allocation16 + $0xf8] sm:$0xff]
    %v3030 = vld [vmem:[#allocation16 + $0x100] sm:$0xff]
    %v3031 = vld [vmem:[#allocation16 + $0x108] sm:$0xff]
    %v3032 = vld [vmem:[#allocation16 + $0x110] sm:$0xff]
    %v3033 = vld [vmem:[#allocation16 + $0x118] sm:$0xff]
    %v3034 = vld [vmem:[#allocation16 + $0x120] sm:$0xff]
    %v3035 = vld [vmem:[#allocation16 + $0x128] sm:$0xff]
    %v3036 = vld [vmem:[#allocation16 + $0x130] sm:$0xff]
    %v3037 = vld [vmem:[#allocation16 + $0x138] sm:$0xff]
    %v3038 = vld [vmem:[#allocation16 + $0x140] sm:$0xff]
    %v3039 = vld [vmem:[#allocation16 + $0x148] sm:$0xff]
    %v3040 = vld [vmem:[#allocation16 + $0x150] sm:$0xff]
    %v3041 = vld [vmem:[#allocation16 + $0x158] sm:$0xff]
    %v3042 = vld [vmem:[#allocation16 + $0x160] sm:$0xff]
    %v3043 = vld [vmem:[#allocation16 + $0x168] sm:$0xff]
    %v3044 = vld [vmem:[#allocation16 + $0x170] sm:$0xff]
    %v3045 = vld [vmem:[#allocation16 + $0x178] sm:$0xff]
    %v3046 = vld [vmem:[#allocation16 + $0x180] sm:$0xff]
    %v3047 = vld [vmem:[#allocation16 + $0x188] sm:$0xff]
    %v3048 = vld [vmem:[#allocation16 + $0x190] sm:$0xff]
    %v3049 = vld [vmem:[#allocation16 + $0x198] sm:$0xff]
    %v3050 = vld [vmem:[#allocation16 + $0x1a0] sm:$0xff]
    %v3051 = vld [vmem:[#allocation16 + $0x1a8] sm:$0xff]
    %v3052 = vld [vmem:[#allocation16 + $0x1b0] sm:$0xff]
    %v3053 = vld [vmem:[#allocation16 + $0x1b8] sm:$0xff]
    %v3054 = vld [vmem:[#allocation16 + $0x1c0] sm:$0xff]
    %v3055 = vld [vmem:[#allocation16 + $0x1c8] sm:$0xff]
    %v3056 = vld [vmem:[#allocation16 + $0x1d0] sm:$0xff]
    %v3057 = vld [vmem:[#allocation16 + $0x1d8] sm:$0xff]
    %v3058 = vld [vmem:[#allocation16 + $0x1e0] sm:$0xff]
    %v3059 = vld [vmem:[#allocation16 + $0x1e8] sm:$0xff]
    %v3060 = vld [vmem:[#allocation16 + $0x1f0] sm:$0xff]
    %v3061 = vld [vmem:[#allocation16 + $0x1f8] sm:$0xff]
    %v3062 = vld [vmem:[#allocation17] sm:$0x3]
    %v3064 = vperm.slane %v3062, 0
    %v3065 = vperm.slane %v3062, 1
    %v3132 = vunpack.c.l.b16 %v2998
    %v3133 = vunpack.c.h.b16 %v2998
    %v3134 = vunpack.c.l.b16 %v2999
    %v3135 = vunpack.c.h.b16 %v2999
    %v3136 = vunpack.c.l.b16 %v3000
    %v3137 = vunpack.c.h.b16 %v3000
    %v3138 = vunpack.c.l.b16 %v3001
    %v3139 = vunpack.c.h.b16 %v3001
    %v3140 = vunpack.c.l.b16 %v3002
    %v3141 = vunpack.c.h.b16 %v3002
    %v3142 = vunpack.c.l.b16 %v3003
    %v3143 = vunpack.c.h.b16 %v3003
    %v3144 = vunpack.c.l.b16 %v3004
    %v3145 = vunpack.c.h.b16 %v3004
    %v3146 = vunpack.c.l.b16 %v3005
    %v3147 = vunpack.c.h.b16 %v3005
    %v3148 = vunpack.c.l.b16 %v3006
    %v3149 = vunpack.c.h.b16 %v3006
    %v3150 = vunpack.c.l.b16 %v3007
    %v3151 = vunpack.c.h.b16 %v3007
    %v3152 = vunpack.c.l.b16 %v3008
    %v3153 = vunpack.c.h.b16 %v3008
    %v3154 = vunpack.c.l.b16 %v3009
    %v3155 = vunpack.c.h.b16 %v3009
    %v3156 = vunpack.c.l.b16 %v3010
    %v3157 = vunpack.c.h.b16 %v3010
    %v3158 = vunpack.c.l.b16 %v3011
    %v3159 = vunpack.c.h.b16 %v3011
    %v3160 = vunpack.c.l.b16 %v3012
    %v3161 = vunpack.c.h.b16 %v3012
    %v3162 = vunpack.c.l.b16 %v3013
    %v3163 = vunpack.c.h.b16 %v3013
    %v3164 = vunpack.c.l.b16 %v3014
    %v3165 = vunpack.c.h.b16 %v3014
    %v3166 = vunpack.c.l.b16 %v3015
    %v3167 = vunpack.c.h.b16 %v3015
    %v3168 = vunpack.c.l.b16 %v3016
    %v3169 = vunpack.c.h.b16 %v3016
    %v3170 = vunpack.c.l.b16 %v3017
    %v3171 = vunpack.c.h.b16 %v3017
    %v3172 = vunpack.c.l.b16 %v3018
    %v3173 = vunpack.c.h.b16 %v3018
    %v3174 = vunpack.c.l.b16 %v3019
    %v3175 = vunpack.c.h.b16 %v3019
    %v3176 = vunpack.c.l.b16 %v3020
    %v3177 = vunpack.c.h.b16 %v3020
    %v3178 = vunpack.c.l.b16 %v3021
    %v3179 = vunpack.c.h.b16 %v3021
    %v3180 = vunpack.c.l.b16 %v3022
    %v3181 = vunpack.c.h.b16 %v3022
    %v3182 = vunpack.c.l.b16 %v3023
    %v3183 = vunpack.c.h.b16 %v3023
    %v3184 = vunpack.c.l.b16 %v3024
    %v3185 = vunpack.c.h.b16 %v3024
    %v3186 = vunpack.c.l.b16 %v3025
    %v3187 = vunpack.c.h.b16 %v3025
    %v3188 = vunpack.c.l.b16 %v3026
    %v3189 = vunpack.c.h.b16 %v3026
    %v3190 = vunpack.c.l.b16 %v3027
    %v3191 = vunpack.c.h.b16 %v3027
    %v3192 = vunpack.c.l.b16 %v3028
    %v3193 = vunpack.c.h.b16 %v3028
    %v3194 = vunpack.c.l.b16 %v3029
    %v3195 = vunpack.c.h.b16 %v3029
    %v3196 = vunpack.c.l.b16 %v3030
    %v3197 = vunpack.c.h.b16 %v3030
    %v3198 = vunpack.c.l.b16 %v3031
    %v3199 = vunpack.c.h.b16 %v3031
    %v3200 = vunpack.c.l.b16 %v3032
    %v3201 = vunpack.c.h.b16 %v3032
    %v3202 = vunpack.c.l.b16 %v3033
    %v3203 = vunpack.c.h.b16 %v3033
    %v3204 = vunpack.c.l.b16 %v3034
    %v3205 = vunpack.c.h.b16 %v3034
    %v3206 = vunpack.c.l.b16 %v3035
    %v3207 = vunpack.c.h.b16 %v3035
    %v3208 = vunpack.c.l.b16 %v3036
    %v3209 = vunpack.c.h.b16 %v3036
    %v3210 = vunpack.c.l.b16 %v3037
    %v3211 = vunpack.c.h.b16 %v3037
    %v3212 = vunpack.c.l.b16 %v3038
    %v3213 = vunpack.c.h.b16 %v3038
    %v3214 = vunpack.c.l.b16 %v3039
    %v3215 = vunpack.c.h.b16 %v3039
    %v3216 = vunpack.c.l.b16 %v3040
    %v3217 = vunpack.c.h.b16 %v3040
    %v3218 = vunpack.c.l.b16 %v3041
    %v3219 = vunpack.c.h.b16 %v3041
    %v3220 = vunpack.c.l.b16 %v3042
    %v3221 = vunpack.c.h.b16 %v3042
    %v3222 = vunpack.c.l.b16 %v3043
    %v3223 = vunpack.c.h.b16 %v3043
    %v3224 = vunpack.c.l.b16 %v3044
    %v3225 = vunpack.c.h.b16 %v3044
    %v3226 = vunpack.c.l.b16 %v3045
    %v3227 = vunpack.c.h.b16 %v3045
    %v3228 = vunpack.c.l.b16 %v3046
    %v3229 = vunpack.c.h.b16 %v3046
    %v3230 = vunpack.c.l.b16 %v3047
    %v3231 = vunpack.c.h.b16 %v3047
    %v3232 = vunpack.c.l.b16 %v3048
    %v3233 = vunpack.c.h.b16 %v3048
    %v3234 = vunpack.c.l.b16 %v3049
    %v3235 = vunpack.c.h.b16 %v3049
    %v3236 = vunpack.c.l.b16 %v3050
    %v3237 = vunpack.c.h.b16 %v3050
    %v3238 = vunpack.c.l.b16 %v3051
    %v3239 = vunpack.c.h.b16 %v3051
    %v3240 = vunpack.c.l.b16 %v3052
    %v3241 = vunpack.c.h.b16 %v3052
    %v3242 = vunpack.c.l.b16 %v3053
    %v3243 = vunpack.c.h.b16 %v3053
    %v3244 = vunpack.c.l.b16 %v3054
    %v3245 = vunpack.c.h.b16 %v3054
    %v3246 = vunpack.c.l.b16 %v3055
    %v3247 = vunpack.c.h.b16 %v3055
    %v3248 = vunpack.c.l.b16 %v3056
    %v3249 = vunpack.c.h.b16 %v3056
    %v3250 = vunpack.c.l.b16 %v3057
    %v3251 = vunpack.c.h.b16 %v3057
    %v3252 = vunpack.c.l.b16 %v3058
    %v3253 = vunpack.c.h.b16 %v3058
    %v3254 = vunpack.c.l.b16 %v3059
    %v3255 = vunpack.c.h.b16 %v3059
    %v3256 = vunpack.c.l.b16 %v3060
    %v3257 = vunpack.c.h.b16 %v3060
    %v3258 = vunpack.c.l.b16 %v3061
    %v3259 = vunpack.c.h.b16 %v3061
    %v3260 = vpack.c.b16 %v3134, %v3132
    %v3261 = vpack.c.b16 %v3135, %v3133
    %v3262 = vpack.c.b16 %v3138, %v3136
    %v3263 = vpack.c.b16 %v3139, %v3137
    %v3264 = vpack.c.b16 %v3142, %v3140
    %v3265 = vpack.c.b16 %v3143, %v3141
    %v3266 = vpack.c.b16 %v3146, %v3144
    %v3267 = vpack.c.b16 %v3147, %v3145
    %v3268 = vpack.c.b16 %v3150, %v3148
    %v3269 = vpack.c.b16 %v3151, %v3149
    %v3270 = vpack.c.b16 %v3154, %v3152
    %v3271 = vpack.c.b16 %v3155, %v3153
    %v3272 = vpack.c.b16 %v3158, %v3156
    %v3273 = vpack.c.b16 %v3159, %v3157
    %v3274 = vpack.c.b16 %v3162, %v3160
    %v3275 = vpack.c.b16 %v3163, %v3161
    %v3276 = vpack.c.b16 %v3166, %v3164
    %v3277 = vpack.c.b16 %v3167, %v3165
    %v3278 = vpack.c.b16 %v3170, %v3168
    %v3279 = vpack.c.b16 %v3171, %v3169
    %v3280 = vpack.c.b16 %v3174, %v3172
    %v3281 = vpack.c.b16 %v3175, %v3173
    %v3282 = vpack.c.b16 %v3178, %v3176
    %v3283 = vpack.c.b16 %v3179, %v3177
    %v3284 = vpack.c.b16 %v3182, %v3180
    %v3285 = vpack.c.b16 %v3183, %v3181
    %v3286 = vpack.c.b16 %v3186, %v3184
    %v3287 = vpack.c.b16 %v3187, %v3185
    %v3288 = vpack.c.b16 %v3190, %v3188
    %v3289 = vpack.c.b16 %v3191, %v3189
    %v3290 = vpack.c.b16 %v3194, %v3192
    %v3291 = vpack.c.b16 %v3195, %v3193
    %v3292 = vpack.c.b16 %v3198, %v3196
    %v3293 = vpack.c.b16 %v3199, %v3197
    %v3294 = vpack.c.b16 %v3202, %v3200
    %v3295 = vpack.c.b16 %v3203, %v3201
    %v3296 = vpack.c.b16 %v3206, %v3204
    %v3297 = vpack.c.b16 %v3207, %v3205
    %v3298 = vpack.c.b16 %v3210, %v3208
    %v3299 = vpack.c.b16 %v3211, %v3209
    %v3300 = vpack.c.b16 %v3214, %v3212
    %v3301 = vpack.c.b16 %v3215, %v3213
    %v3302 = vpack.c.b16 %v3218, %v3216
    %v3303 = vpack.c.b16 %v3219, %v3217
    %v3304 = vpack.c.b16 %v3222, %v3220
    %v3305 = vpack.c.b16 %v3223, %v3221
    %v3306 = vpack.c.b16 %v3226, %v3224
    %v3307 = vpack.c.b16 %v3227, %v3225
    %v3308 = vpack.c.b16 %v3230, %v3228
    %v3309 = vpack.c.b16 %v3231, %v3229
    %v3310 = vpack.c.b16 %v3234, %v3232
    %v3311 = vpack.c.b16 %v3235, %v3233
    %v3312 = vpack.c.b16 %v3238, %v3236
    %v3313 = vpack.c.b16 %v3239, %v3237
    %v3314 = vpack.c.b16 %v3242, %v3240
    %v3315 = vpack.c.b16 %v3243, %v3241
    %v3316 = vpack.c.b16 %v3246, %v3244
    %v3317 = vpack.c.b16 %v3247, %v3245
    %v3318 = vpack.c.b16 %v3250, %v3248
    %v3319 = vpack.c.b16 %v3251, %v3249
    %v3320 = vpack.c.b16 %v3254, %v3252
    %v3321 = vpack.c.b16 %v3255, %v3253
    %v3322 = vpack.c.b16 %v3258, %v3256
    %v3323 = vpack.c.b16 %v3259, %v3257
    %3388 = vmatpush.bf16.msra.mxu0 %v3274
    %3389 = vmatpush.bf16.msra.mxu0 %v3272
    %3390 = vmatpush.bf16.msra.mxu0 %v3270
    %3391 = vmatpush.bf16.msra.mxu0 %v3268
    %3392 = vmatpush.bf16.msra.mxu0 %v3266
    %3393 = vmatpush.bf16.msra.mxu0 %v3264
    %3394 = vmatpush.bf16.msra.mxu0 %v3262
    %3395 = vmatpush.bf16.msra.mxu0 %v3260
    %3396 = vmatmul.bf16.gmra.mxu0 %v2994
    %v3397 = vpop.f32.mrf.mxu0
    %v3398 = vadd.f32 %v3064, %v3397
    %v3399 = vpop.f32.mrf.mxu0
    %v3400 = vadd.f32 %v3064, %v3399
    %3401 = vdwg.mxu0
    %3402 = vmatpush.bf16.msra.mxu0 %v3290
    %3403 = vmatpush.bf16.msra.mxu0 %v3288
    %3404 = vmatpush.bf16.msra.mxu0 %v3286
    %3405 = vmatpush.bf16.msra.mxu0 %v3284
    %3406 = vmatpush.bf16.msra.mxu0 %v3282
    %3407 = vmatpush.bf16.msra.mxu0 %v3280
    %3408 = vmatpush.bf16.msra.mxu0 %v3278
    %3409 = vmatpush.bf16.msra.mxu0 %v3276
    %3410 = vmatmul.bf16.gmra.mxu0 %v2995
    %v3411 = vpop.f32.mrf.mxu0
    %v3412 = vadd.f32 %v3398, %v3411
    %v3413 = vpop.f32.mrf.mxu0
    %v3414 = vadd.f32 %v3400, %v3413
    %3415 = vdwg.mxu0
    %3416 = vmatpush.bf16.msra.mxu0 %v3306
    %3417 = vmatpush.bf16.msra.mxu0 %v3304
    %3418 = vmatpush.bf16.msra.mxu0 %v3302
    %3419 = vmatpush.bf16.msra.mxu0 %v3300
    %3420 = vmatpush.bf16.msra.mxu0 %v3298
    %3421 = vmatpush.bf16.msra.mxu0 %v3296
    %3422 = vmatpush.bf16.msra.mxu0 %v3294
    %3423 = vmatpush.bf16.msra.mxu0 %v3292
    %3424 = vmatmul.bf16.gmra.mxu0 %v2996
    %v3425 = vpop.f32.mrf.mxu0
    %v3426 = vadd.f32 %v3412, %v3425
    %v3427 = vpop.f32.mrf.mxu0
    %v3428 = vadd.f32 %v3414, %v3427
    %3429 = vdwg.mxu0
    %3430 = vmatpush.bf16.msra.mxu0 %v3322
    %3431 = vmatpush.bf16.msra.mxu0 %v3320
    %3432 = vmatpush.bf16.msra.mxu0 %v3318
    %3433 = vmatpush.bf16.msra.mxu0 %v3316
    %3434 = vmatpush.bf16.msra.mxu0 %v3314
    %3435 = vmatpush.bf16.msra.mxu0 %v3312
    %3436 = vmatpush.bf16.msra.mxu0 %v3310
    %3437 = vmatpush.bf16.msra.mxu0 %v3308
    %3438 = vmatmul.bf16.gmra.mxu0 %v2997
    %v3439 = vpop.f32.mrf.mxu0
    %v3440 = vadd.f32 %v3426, %v3439
    %v3441 = vpop.f32.mrf.mxu0
    %v3442 = vadd.f32 %v3428, %v3441
    %3443 = vdwg.mxu0
    %3444 = vmatpush.bf16.msra.mxu0 %v3275
    %3445 = vmatpush.bf16.msra.mxu0 %v3273
    %3446 = vmatpush.bf16.msra.mxu0 %v3271
    %3447 = vmatpush.bf16.msra.mxu0 %v3269
    %3448 = vmatpush.bf16.msra.mxu0 %v3267
    %3449 = vmatpush.bf16.msra.mxu0 %v3265
    %3450 = vmatpush.bf16.msra.mxu0 %v3263
    %3451 = vmatpush.bf16.msra.mxu0 %v3261
    %3452 = vmatmul.bf16.gmra.mxu0 %v2994
    %v3453 = vpop.f32.mrf.mxu0
    %v3454 = vadd.f32 %v3065, %v3453
    %v3455 = vpop.f32.mrf.mxu0
    %v3456 = vadd.f32 %v3065, %v3455
    %3457 = vdwg.mxu0
    %3458 = vmatpush.bf16.msra.mxu0 %v3291
    %3459 = vmatpush.bf16.msra.mxu0 %v3289
    %3460 = vmatpush.bf16.msra.mxu0 %v3287
    %3461 = vmatpush.bf16.msra.mxu0 %v3285
    %3462 = vmatpush.bf16.msra.mxu0 %v3283
    %3463 = vmatpush.bf16.msra.mxu0 %v3281
    %3464 = vmatpush.bf16.msra.mxu0 %v3279
    %3465 = vmatpush.bf16.msra.mxu0 %v3277
    %3466 = vmatmul.bf16.gmra.mxu0 %v2995
    %v3467 = vpop.f32.mrf.mxu0
    %v3468 = vadd.f32 %v3454, %v3467
    %v3469 = vpop.f32.mrf.mxu0
    %v3470 = vadd.f32 %v3456, %v3469
    %3471 = vdwg.mxu0
    %3472 = vmatpush.bf16.msra.mxu0 %v3307
    %3473 = vmatpush.bf16.msra.mxu0 %v3305
    %3474 = vmatpush.bf16.msra.mxu0 %v3303
    %3475 = vmatpush.bf16.msra.mxu0 %v3301
    %3476 = vmatpush.bf16.msra.mxu0 %v3299
    %3477 = vmatpush.bf16.msra.mxu0 %v3297
    %3478 = vmatpush.bf16.msra.mxu0 %v3295
    %3479 = vmatpush.bf16.msra.mxu0 %v3293
    %3480 = vmatmul.bf16.gmra.mxu0 %v2996
    %v3481 = vpop.f32.mrf.mxu0
    %v3482 = vadd.f32 %v3468, %v3481
    %v3483 = vpop.f32.mrf.mxu0
    %v3484 = vadd.f32 %v3470, %v3483
    %3485 = vdwg.mxu0
    %3486 = vmatpush.bf16.msra.mxu0 %v3323
    %3487 = vmatpush.bf16.msra.mxu0 %v3321
    %3488 = vmatpush.bf16.msra.mxu0 %v3319
    %3489 = vmatpush.bf16.msra.mxu0 %v3317
    %3490 = vmatpush.bf16.msra.mxu0 %v3315
    %3491 = vmatpush.bf16.msra.mxu0 %v3313
    %3492 = vmatpush.bf16.msra.mxu0 %v3311
    %3493 = vmatpush.bf16.msra.mxu0 %v3309
    %3494 = vmatmul.bf16.gmra.mxu0 %v2997
    %v3495 = vpop.f32.mrf.mxu0
    %v3496 = vadd.f32 %v3482, %v3495
    %v3497 = vpop.f32.mrf.mxu0
    %v3498 = vadd.f32 %v3484, %v3497
    %3499 = vdwg.mxu0
    %v3500 = vadd.f32 %v2474, %v3440
    %v3501 = vadd.f32 %v2475, %v3496
    %v3502 = vadd.f32 %v2476, %v3442
    %v3503 = vadd.f32 %v2477, %v3498
    %v3504 = vld [vmem:[#allocation25] sm:$0x3]
    %v3505 = vld [vmem:[#allocation26] sm:$0x3]
    %v3506 = vadd.f32 %v3500, %v3501
    %3507 = vadd.xlane.f32.xlu0 %v3506
    %v3508 = vpop.xlane.xlu0 %3507
    %v3509 = vadd.f32 %v3502, %v3503
    %3510 = vadd.xlane.f32.xlu0 %v3509
    %v3511 = vpop.xlane.xlu0 %3510
    %v3512 = vmul.f32 %v3508, %v2327
    %v3513 = vmul.f32 %v3511, %v2327
    %v3514 = vmul.f32 %v3500, %v3500
    %v3515 = vmul.f32 %v3501, %v3501
    %v3516 = vmul.f32 %v3502, %v3502
    %v3517 = vmul.f32 %v3503, %v3503
    %v3518 = vadd.f32 %v3514, %v3515
    %3519 = vadd.xlane.f32.xlu0 %v3518
    %v3520 = vpop.xlane.xlu0 %3519
    %v3521 = vadd.f32 %v3516, %v3517
    %3522 = vadd.xlane.f32.xlu0 %v3521
    %v3523 = vpop.xlane.xlu0 %3522
    %v3524 = vmul.f32 %v3520, %v2327
    %v3525 = vmul.f32 %v3523, %v2327
    %v3526 = vmul.f32 %v3512, %v3512
    %v3527 = vmul.f32 %v3513, %v3513
    %v3528 = vsub.f32 %v3524, %v3526
    %v3529 = vsub.f32 %v3525, %v3527
    %v3530 = vsub.f32 %v3500, %v3512
    %v3531 = vsub.f32 %v3501, %v3512
    %v3532 = vsub.f32 %v3502, %v3513
    %v3533 = vsub.f32 %v3503, %v3513
    %v3534 = vadd.f32 %v3528, 1e-05
    %v3535 = vadd.f32 %v3529, 1e-05
    %v3536 = vrsqrt.pop %v3534
    %v3537 = vmul.f32 %v3536, %v3534
    %v3538 = vmul.f32 %v3537, %v3536
    %v3539 = vmul.f32 0.5, %v3538
    %v3540 = vsub.f32 1.5, %v3539
    %v3541 = vmul.f32 %v3536, %v3540
    %vm3542 = vweird.f32 %v3534
    %vm3543 = vweird.f32 %v3536
    %vm3544 = vmor %vm3542, %vm3543
    %v3545 = vsel %vm3544, %v3536, %v3541
    %v3546 = vrsqrt.pop %v3535
    %v3547 = vmul.f32 %v3546, %v3535
    %v3548 = vmul.f32 %v3547, %v3546
    %v3549 = vmul.f32 0.5, %v3548
    %v3550 = vsub.f32 1.5, %v3549
    %v3551 = vmul.f32 %v3546, %v3550
    %vm3552 = vweird.f32 %v3535
    %vm3553 = vweird.f32 %v3546
    %vm3554 = vmor %vm3552, %vm3553
    %v3555 = vsel %vm3554, %v3546, %v3551
    %v3556 = vmul.f32 %v3530, %v3545
    %v3557 = vmul.f32 %v3531, %v3545
    %v3558 = vmul.f32 %v3532, %v3555
    %v3559 = vmul.f32 %v3533, %v3555
    %v3561 = vperm.slane %v3504, 0
    %v3562 = vperm.slane %v3504, 1
    %v3565 = vmul.f32 %v3556, %v3561
    %v3566 = vmul.f32 %v3557, %v3562
    %v3567 = vmul.f32 %v3558, %v3561
    %v3568 = vmul.f32 %v3559, %v3562
    %v3570 = vperm.slane %v3505, 0
    %v3571 = vperm.slane %v3505, 1
    %v3574 = vadd.f32 %v3565, %v3570
    %v3575 = vadd.f32 %v3566, %v3571
    %v3576 = vadd.f32 %v3567, %v3570
    %v3577 = vadd.f32 %v3568, %v3571
    %v3578 = vpack.c.bf16 %v3576, %v3574
    %v3579 = vpack.c.bf16 %v3577, %v3575
    %s3580 = scalar_lea.vmem [#allocation5], 768
    %v3581 = vld [vmem:[%s3580] sm:$0xff]
    %v3582 = vld [vmem:[%s3580 + $0x8] sm:$0xff]
    %v3583 = vld [vmem:[%s3580 + $0x10] sm:$0xff]
    %v3584 = vld [vmem:[%s3580 + $0x18] sm:$0xff]
    %v3585 = vld [vmem:[%s3580 + $0x20] sm:$0xff]
    %v3586 = vld [vmem:[%s3580 + $0x28] sm:$0xff]
    %v3587 = vld [vmem:[%s3580 + $0x30] sm:$0xff]
    %v3588 = vld [vmem:[%s3580 + $0x38] sm:$0xff]
    %v3589 = vld [vmem:[%s3580 + $0x40] sm:$0xff]
    %v3590 = vld [vmem:[%s3580 + $0x48] sm:$0xff]
    %v3591 = vld [vmem:[%s3580 + $0x50] sm:$0xff]
    %v3592 = vld [vmem:[%s3580 + $0x58] sm:$0xff]
    %v3593 = vld [vmem:[%s3580 + $0x60] sm:$0xff]
    %v3594 = vld [vmem:[%s3580 + $0x68] sm:$0xff]
    %v3595 = vld [vmem:[%s3580 + $0x70] sm:$0xff]
    %v3596 = vld [vmem:[%s3580 + $0x78] sm:$0xff]
    %v3597 = vld [vmem:[%s3580 + $0x80] sm:$0xff]
    %v3598 = vld [vmem:[%s3580 + $0x88] sm:$0xff]
    %v3599 = vld [vmem:[%s3580 + $0x90] sm:$0xff]
    %v3600 = vld [vmem:[%s3580 + $0x98] sm:$0xff]
    %v3601 = vld [vmem:[%s3580 + $0xa0] sm:$0xff]
    %v3602 = vld [vmem:[%s3580 + $0xa8] sm:$0xff]
    %v3603 = vld [vmem:[%s3580 + $0xb0] sm:$0xff]
    %v3604 = vld [vmem:[%s3580 + $0xb8] sm:$0xff]
    %v3605 = vld [vmem:[%s3580 + $0xc0] sm:$0xff]
    %v3606 = vld [vmem:[%s3580 + $0xc8] sm:$0xff]
    %v3607 = vld [vmem:[%s3580 + $0xd0] sm:$0xff]
    %v3608 = vld [vmem:[%s3580 + $0xd8] sm:$0xff]
    %v3609 = vld [vmem:[%s3580 + $0xe0] sm:$0xff]
    %v3610 = vld [vmem:[%s3580 + $0xe8] sm:$0xff]
    %v3611 = vld [vmem:[%s3580 + $0xf0] sm:$0xff]
    %v3612 = vld [vmem:[%s3580 + $0xf8] sm:$0xff]
    %v3613 = vld [vmem:[%s3580 + $0x100] sm:$0xff]
    %v3614 = vld [vmem:[%s3580 + $0x108] sm:$0xff]
    %v3615 = vld [vmem:[%s3580 + $0x110] sm:$0xff]
    %v3616 = vld [vmem:[%s3580 + $0x118] sm:$0xff]
    %v3617 = vld [vmem:[%s3580 + $0x120] sm:$0xff]
    %v3618 = vld [vmem:[%s3580 + $0x128] sm:$0xff]
    %v3619 = vld [vmem:[%s3580 + $0x130] sm:$0xff]
    %v3620 = vld [vmem:[%s3580 + $0x138] sm:$0xff]
    %v3621 = vld [vmem:[%s3580 + $0x140] sm:$0xff]
    %v3622 = vld [vmem:[%s3580 + $0x148] sm:$0xff]
    %v3623 = vld [vmem:[%s3580 + $0x150] sm:$0xff]
    %v3624 = vld [vmem:[%s3580 + $0x158] sm:$0xff]
    %v3625 = vld [vmem:[%s3580 + $0x160] sm:$0xff]
    %v3626 = vld [vmem:[%s3580 + $0x168] sm:$0xff]
    %v3627 = vld [vmem:[%s3580 + $0x170] sm:$0xff]
    %v3628 = vld [vmem:[%s3580 + $0x178] sm:$0xff]
    %v3629 = vld [vmem:[%s3580 + $0x180] sm:$0xff]
    %v3630 = vld [vmem:[%s3580 + $0x188] sm:$0xff]
    %v3631 = vld [vmem:[%s3580 + $0x190] sm:$0xff]
    %v3632 = vld [vmem:[%s3580 + $0x198] sm:$0xff]
    %v3633 = vld [vmem:[%s3580 + $0x1a0] sm:$0xff]
    %v3634 = vld [vmem:[%s3580 + $0x1a8] sm:$0xff]
    %v3635 = vld [vmem:[%s3580 + $0x1b0] sm:$0xff]
    %v3636 = vld [vmem:[%s3580 + $0x1b8] sm:$0xff]
    %v3637 = vld [vmem:[%s3580 + $0x1c0] sm:$0xff]
    %v3638 = vld [vmem:[%s3580 + $0x1c8] sm:$0xff]
    %v3639 = vld [vmem:[%s3580 + $0x1d0] sm:$0xff]
    %v3640 = vld [vmem:[%s3580 + $0x1d8] sm:$0xff]
    %v3641 = vld [vmem:[%s3580 + $0x1e0] sm:$0xff]
    %v3642 = vld [vmem:[%s3580 + $0x1e8] sm:$0xff]
    %v3643 = vld [vmem:[%s3580 + $0x1f0] sm:$0xff]
    %v3644 = vld [vmem:[%s3580 + $0x1f8] sm:$0xff]
    %v3645 = vld [vmem:[%s3580 + $0x200] sm:$0xff]
    %v3646 = vld [vmem:[%s3580 + $0x208] sm:$0xff]
    %v3647 = vld [vmem:[%s3580 + $0x210] sm:$0xff]
    %v3648 = vld [vmem:[%s3580 + $0x218] sm:$0xff]
    %v3649 = vld [vmem:[%s3580 + $0x220] sm:$0xff]
    %v3650 = vld [vmem:[%s3580 + $0x228] sm:$0xff]
    %v3651 = vld [vmem:[%s3580 + $0x230] sm:$0xff]
    %v3652 = vld [vmem:[%s3580 + $0x238] sm:$0xff]
    %v3653 = vld [vmem:[%s3580 + $0x240] sm:$0xff]
    %v3654 = vld [vmem:[%s3580 + $0x248] sm:$0xff]
    %v3655 = vld [vmem:[%s3580 + $0x250] sm:$0xff]
    %v3656 = vld [vmem:[%s3580 + $0x258] sm:$0xff]
    %v3657 = vld [vmem:[%s3580 + $0x260] sm:$0xff]
    %v3658 = vld [vmem:[%s3580 + $0x268] sm:$0xff]
    %v3659 = vld [vmem:[%s3580 + $0x270] sm:$0xff]
    %v3660 = vld [vmem:[%s3580 + $0x278] sm:$0xff]
    %v3661 = vld [vmem:[%s3580 + $0x280] sm:$0xff]
    %v3662 = vld [vmem:[%s3580 + $0x288] sm:$0xff]
    %v3663 = vld [vmem:[%s3580 + $0x290] sm:$0xff]
    %v3664 = vld [vmem:[%s3580 + $0x298] sm:$0xff]
    %v3665 = vld [vmem:[%s3580 + $0x2a0] sm:$0xff]
    %v3666 = vld [vmem:[%s3580 + $0x2a8] sm:$0xff]
    %v3667 = vld [vmem:[%s3580 + $0x2b0] sm:$0xff]
    %v3668 = vld [vmem:[%s3580 + $0x2b8] sm:$0xff]
    %v3669 = vld [vmem:[%s3580 + $0x2c0] sm:$0xff]
    %v3670 = vld [vmem:[%s3580 + $0x2c8] sm:$0xff]
    %v3671 = vld [vmem:[%s3580 + $0x2d0] sm:$0xff]
    %v3672 = vld [vmem:[%s3580 + $0x2d8] sm:$0xff]
    %v3673 = vld [vmem:[%s3580 + $0x2e0] sm:$0xff]
    %v3674 = vld [vmem:[%s3580 + $0x2e8] sm:$0xff]
    %v3675 = vld [vmem:[%s3580 + $0x2f0] sm:$0xff]
    %v3676 = vld [vmem:[%s3580 + $0x2f8] sm:$0xff]
    %s3677 = scalar_lea.vmem [#allocation7], 6
    %v3678 = vld [vmem:[%s3677] sm:$0x3f]
    %v3680 = vperm.slane %v3678, 0
    %v3681 = vperm.slane %v3678, 1
    %v3682 = vperm.slane %v3678, 2
    %v3683 = vperm.slane %v3678, 3
    %v3684 = vperm.slane %v3678, 4
    %v3685 = vperm.slane %v3678, 5
    %v3788 = vunpack.c.l.b16 %v3581
    %v3789 = vunpack.c.h.b16 %v3581
    %v3790 = vunpack.c.l.b16 %v3582
    %v3791 = vunpack.c.h.b16 %v3582
    %v3792 = vunpack.c.l.b16 %v3583
    %v3793 = vunpack.c.h.b16 %v3583
    %v3794 = vunpack.c.l.b16 %v3584
    %v3795 = vunpack.c.h.b16 %v3584
    %v3796 = vunpack.c.l.b16 %v3585
    %v3797 = vunpack.c.h.b16 %v3585
    %v3798 = vunpack.c.l.b16 %v3586
    %v3799 = vunpack.c.h.b16 %v3586
    %v3800 = vunpack.c.l.b16 %v3587
    %v3801 = vunpack.c.h.b16 %v3587
    %v3802 = vunpack.c.l.b16 %v3588
    %v3803 = vunpack.c.h.b16 %v3588
    %v3804 = vunpack.c.l.b16 %v3589
    %v3805 = vunpack.c.h.b16 %v3589
    %v3806 = vunpack.c.l.b16 %v3590
    %v3807 = vunpack.c.h.b16 %v3590
    %v3808 = vunpack.c.l.b16 %v3591
    %v3809 = vunpack.c.h.b16 %v3591
    %v3810 = vunpack.c.l.b16 %v3592
    %v3811 = vunpack.c.h.b16 %v3592
    %v3812 = vunpack.c.l.b16 %v3593
    %v3813 = vunpack.c.h.b16 %v3593
    %v3814 = vunpack.c.l.b16 %v3594
    %v3815 = vunpack.c.h.b16 %v3594
    %v3816 = vunpack.c.l.b16 %v3595
    %v3817 = vunpack.c.h.b16 %v3595
    %v3818 = vunpack.c.l.b16 %v3596
    %v3819 = vunpack.c.h.b16 %v3596
    %v3820 = vunpack.c.l.b16 %v3597
    %v3821 = vunpack.c.h.b16 %v3597
    %v3822 = vunpack.c.l.b16 %v3598
    %v3823 = vunpack.c.h.b16 %v3598
    %v3824 = vunpack.c.l.b16 %v3599
    %v3825 = vunpack.c.h.b16 %v3599
    %v3826 = vunpack.c.l.b16 %v3600
    %v3827 = vunpack.c.h.b16 %v3600
    %v3828 = vunpack.c.l.b16 %v3601
    %v3829 = vunpack.c.h.b16 %v3601
    %v3830 = vunpack.c.l.b16 %v3602
    %v3831 = vunpack.c.h.b16 %v3602
    %v3832 = vunpack.c.l.b16 %v3603
    %v3833 = vunpack.c.h.b16 %v3603
    %v3834 = vunpack.c.l.b16 %v3604
    %v3835 = vunpack.c.h.b16 %v3604
    %v3836 = vunpack.c.l.b16 %v3605
    %v3837 = vunpack.c.h.b16 %v3605
    %v3838 = vunpack.c.l.b16 %v3606
    %v3839 = vunpack.c.h.b16 %v3606
    %v3840 = vunpack.c.l.b16 %v3607
    %v3841 = vunpack.c.h.b16 %v3607
    %v3842 = vunpack.c.l.b16 %v3608
    %v3843 = vunpack.c.h.b16 %v3608
    %v3844 = vunpack.c.l.b16 %v3609
    %v3845 = vunpack.c.h.b16 %v3609
    %v3846 = vunpack.c.l.b16 %v3610
    %v3847 = vunpack.c.h.b16 %v3610
    %v3848 = vunpack.c.l.b16 %v3611
    %v3849 = vunpack.c.h.b16 %v3611
    %v3850 = vunpack.c.l.b16 %v3612
    %v3851 = vunpack.c.h.b16 %v3612
    %v3852 = vunpack.c.l.b16 %v3613
    %v3853 = vunpack.c.h.b16 %v3613
    %v3854 = vunpack.c.l.b16 %v3614
    %v3855 = vunpack.c.h.b16 %v3614
    %v3856 = vunpack.c.l.b16 %v3615
    %v3857 = vunpack.c.h.b16 %v3615
    %v3858 = vunpack.c.l.b16 %v3616
    %v3859 = vunpack.c.h.b16 %v3616
    %v3860 = vunpack.c.l.b16 %v3617
    %v3861 = vunpack.c.h.b16 %v3617
    %v3862 = vunpack.c.l.b16 %v3618
    %v3863 = vunpack.c.h.b16 %v3618
    %v3864 = vunpack.c.l.b16 %v3619
    %v3865 = vunpack.c.h.b16 %v3619
    %v3866 = vunpack.c.l.b16 %v3620
    %v3867 = vunpack.c.h.b16 %v3620
    %v3868 = vunpack.c.l.b16 %v3621
    %v3869 = vunpack.c.h.b16 %v3621
    %v3870 = vunpack.c.l.b16 %v3622
    %v3871 = vunpack.c.h.b16 %v3622
    %v3872 = vunpack.c.l.b16 %v3623
    %v3873 = vunpack.c.h.b16 %v3623
    %v3874 = vunpack.c.l.b16 %v3624
    %v3875 = vunpack.c.h.b16 %v3624
    %v3876 = vunpack.c.l.b16 %v3625
    %v3877 = vunpack.c.h.b16 %v3625
    %v3878 = vunpack.c.l.b16 %v3626
    %v3879 = vunpack.c.h.b16 %v3626
    %v3880 = vunpack.c.l.b16 %v3627
    %v3881 = vunpack.c.h.b16 %v3627
    %v3882 = vunpack.c.l.b16 %v3628
    %v3883 = vunpack.c.h.b16 %v3628
    %v3884 = vunpack.c.l.b16 %v3629
    %v3885 = vunpack.c.h.b16 %v3629
    %v3886 = vunpack.c.l.b16 %v3630
    %v3887 = vunpack.c.h.b16 %v3630
    %v3888 = vunpack.c.l.b16 %v3631
    %v3889 = vunpack.c.h.b16 %v3631
    %v3890 = vunpack.c.l.b16 %v3632
    %v3891 = vunpack.c.h.b16 %v3632
    %v3892 = vunpack.c.l.b16 %v3633
    %v3893 = vunpack.c.h.b16 %v3633
    %v3894 = vunpack.c.l.b16 %v3634
    %v3895 = vunpack.c.h.b16 %v3634
    %v3896 = vunpack.c.l.b16 %v3635
    %v3897 = vunpack.c.h.b16 %v3635
    %v3898 = vunpack.c.l.b16 %v3636
    %v3899 = vunpack.c.h.b16 %v3636
    %v3900 = vunpack.c.l.b16 %v3637
    %v3901 = vunpack.c.h.b16 %v3637
    %v3902 = vunpack.c.l.b16 %v3638
    %v3903 = vunpack.c.h.b16 %v3638
    %v3904 = vunpack.c.l.b16 %v3639
    %v3905 = vunpack.c.h.b16 %v3639
    %v3906 = vunpack.c.l.b16 %v3640
    %v3907 = vunpack.c.h.b16 %v3640
    %v3908 = vunpack.c.l.b16 %v3641
    %v3909 = vunpack.c.h.b16 %v3641
    %v3910 = vunpack.c.l.b16 %v3642
    %v3911 = vunpack.c.h.b16 %v3642
    %v3912 = vunpack.c.l.b16 %v3643
    %v3913 = vunpack.c.h.b16 %v3643
    %v3914 = vunpack.c.l.b16 %v3644
    %v3915 = vunpack.c.h.b16 %v3644
    %v3916 = vunpack.c.l.b16 %v3645
    %v3917 = vunpack.c.h.b16 %v3645
    %v3918 = vunpack.c.l.b16 %v3646
    %v3919 = vunpack.c.h.b16 %v3646
    %v3920 = vunpack.c.l.b16 %v3647
    %v3921 = vunpack.c.h.b16 %v3647
    %v3922 = vunpack.c.l.b16 %v3648
    %v3923 = vunpack.c.h.b16 %v3648
    %v3924 = vunpack.c.l.b16 %v3649
    %v3925 = vunpack.c.h.b16 %v3649
    %v3926 = vunpack.c.l.b16 %v3650
    %v3927 = vunpack.c.h.b16 %v3650
    %v3928 = vunpack.c.l.b16 %v3651
    %v3929 = vunpack.c.h.b16 %v3651
    %v3930 = vunpack.c.l.b16 %v3652
    %v3931 = vunpack.c.h.b16 %v3652
    %v3932 = vunpack.c.l.b16 %v3653
    %v3933 = vunpack.c.h.b16 %v3653
    %v3934 = vunpack.c.l.b16 %v3654
    %v3935 = vunpack.c.h.b16 %v3654
    %v3936 = vunpack.c.l.b16 %v3655
    %v3937 = vunpack.c.h.b16 %v3655
    %v3938 = vunpack.c.l.b16 %v3656
    %v3939 = vunpack.c.h.b16 %v3656
    %v3940 = vunpack.c.l.b16 %v3657
    %v3941 = vunpack.c.h.b16 %v3657
    %v3942 = vunpack.c.l.b16 %v3658
    %v3943 = vunpack.c.h.b16 %v3658
    %v3944 = vunpack.c.l.b16 %v3659
    %v3945 = vunpack.c.h.b16 %v3659
    %v3946 = vunpack.c.l.b16 %v3660
    %v3947 = vunpack.c.h.b16 %v3660
    %v3948 = vunpack.c.l.b16 %v3661
    %v3949 = vunpack.c.h.b16 %v3661
    %v3950 = vunpack.c.l.b16 %v3662
    %v3951 = vunpack.c.h.b16 %v3662
    %v3952 = vunpack.c.l.b16 %v3663
    %v3953 = vunpack.c.h.b16 %v3663
    %v3954 = vunpack.c.l.b16 %v3664
    %v3955 = vunpack.c.h.b16 %v3664
    %v3956 = vunpack.c.l.b16 %v3665
    %v3957 = vunpack.c.h.b16 %v3665
    %v3958 = vunpack.c.l.b16 %v3666
    %v3959 = vunpack.c.h.b16 %v3666
    %v3960 = vunpack.c.l.b16 %v3667
    %v3961 = vunpack.c.h.b16 %v3667
    %v3962 = vunpack.c.l.b16 %v3668
    %v3963 = vunpack.c.h.b16 %v3668
    %v3964 = vunpack.c.l.b16 %v3669
    %v3965 = vunpack.c.h.b16 %v3669
    %v3966 = vunpack.c.l.b16 %v3670
    %v3967 = vunpack.c.h.b16 %v3670
    %v3968 = vunpack.c.l.b16 %v3671
    %v3969 = vunpack.c.h.b16 %v3671
    %v3970 = vunpack.c.l.b16 %v3672
    %v3971 = vunpack.c.h.b16 %v3672
    %v3972 = vunpack.c.l.b16 %v3673
    %v3973 = vunpack.c.h.b16 %v3673
    %v3974 = vunpack.c.l.b16 %v3674
    %v3975 = vunpack.c.h.b16 %v3674
    %v3976 = vunpack.c.l.b16 %v3675
    %v3977 = vunpack.c.h.b16 %v3675
    %v3978 = vunpack.c.l.b16 %v3676
    %v3979 = vunpack.c.h.b16 %v3676
    %v3980 = vpack.c.b16 %v3794, %v3788
    %v3981 = vpack.c.b16 %v3795, %v3789
    %v3982 = vpack.c.b16 %v3796, %v3790
    %v3983 = vpack.c.b16 %v3797, %v3791
    %v3984 = vpack.c.b16 %v3798, %v3792
    %v3985 = vpack.c.b16 %v3799, %v3793
    %v3986 = vpack.c.b16 %v3806, %v3800
    %v3987 = vpack.c.b16 %v3807, %v3801
    %v3988 = vpack.c.b16 %v3808, %v3802
    %v3989 = vpack.c.b16 %v3809, %v3803
    %v3990 = vpack.c.b16 %v3810, %v3804
    %v3991 = vpack.c.b16 %v3811, %v3805
    %v3992 = vpack.c.b16 %v3818, %v3812
    %v3993 = vpack.c.b16 %v3819, %v3813
    %v3994 = vpack.c.b16 %v3820, %v3814
    %v3995 = vpack.c.b16 %v3821, %v3815
    %v3996 = vpack.c.b16 %v3822, %v3816
    %v3997 = vpack.c.b16 %v3823, %v3817
    %v3998 = vpack.c.b16 %v3830, %v3824
    %v3999 = vpack.c.b16 %v3831, %v3825
    %v4000 = vpack.c.b16 %v3832, %v3826
    %v4001 = vpack.c.b16 %v3833, %v3827
    %v4002 = vpack.c.b16 %v3834, %v3828
    %v4003 = vpack.c.b16 %v3835, %v3829
    %v4004 = vpack.c.b16 %v3842, %v3836
    %v4005 = vpack.c.b16 %v3843, %v3837
    %v4006 = vpack.c.b16 %v3844, %v3838
    %v4007 = vpack.c.b16 %v3845, %v3839
    %v4008 = vpack.c.b16 %v3846, %v3840
    %v4009 = vpack.c.b16 %v3847, %v3841
    %v4010 = vpack.c.b16 %v3854, %v3848
    %v4011 = vpack.c.b16 %v3855, %v3849
    %v4012 = vpack.c.b16 %v3856, %v3850
    %v4013 = vpack.c.b16 %v3857, %v3851
    %v4014 = vpack.c.b16 %v3858, %v3852
    %v4015 = vpack.c.b16 %v3859, %v3853
    %v4016 = vpack.c.b16 %v3866, %v3860
    %v4017 = vpack.c.b16 %v3867, %v3861
    %v4018 = vpack.c.b16 %v3868, %v3862
    %v4019 = vpack.c.b16 %v3869, %v3863
    %v4020 = vpack.c.b16 %v3870, %v3864
    %v4021 = vpack.c.b16 %v3871, %v3865
    %v4022 = vpack.c.b16 %v3878, %v3872
    %v4023 = vpack.c.b16 %v3879, %v3873
    %v4024 = vpack.c.b16 %v3880, %v3874
    %v4025 = vpack.c.b16 %v3881, %v3875
    %v4026 = vpack.c.b16 %v3882, %v3876
    %v4027 = vpack.c.b16 %v3883, %v3877
    %v4028 = vpack.c.b16 %v3890, %v3884
    %v4029 = vpack.c.b16 %v3891, %v3885
    %v4030 = vpack.c.b16 %v3892, %v3886
    %v4031 = vpack.c.b16 %v3893, %v3887
    %v4032 = vpack.c.b16 %v3894, %v3888
    %v4033 = vpack.c.b16 %v3895, %v3889
    %v4034 = vpack.c.b16 %v3902, %v3896
    %v4035 = vpack.c.b16 %v3903, %v3897
    %v4036 = vpack.c.b16 %v3904, %v3898
    %v4037 = vpack.c.b16 %v3905, %v3899
    %v4038 = vpack.c.b16 %v3906, %v3900
    %v4039 = vpack.c.b16 %v3907, %v3901
    %v4040 = vpack.c.b16 %v3914, %v3908
    %v4041 = vpack.c.b16 %v3915, %v3909
    %v4042 = vpack.c.b16 %v3916, %v3910
    %v4043 = vpack.c.b16 %v3917, %v3911
    %v4044 = vpack.c.b16 %v3918, %v3912
    %v4045 = vpack.c.b16 %v3919, %v3913
    %v4046 = vpack.c.b16 %v3926, %v3920
    %v4047 = vpack.c.b16 %v3927, %v3921
    %v4048 = vpack.c.b16 %v3928, %v3922
    %v4049 = vpack.c.b16 %v3929, %v3923
    %v4050 = vpack.c.b16 %v3930, %v3924
    %v4051 = vpack.c.b16 %v3931, %v3925
    %v4052 = vpack.c.b16 %v3938, %v3932
    %v4053 = vpack.c.b16 %v3939, %v3933
    %v4054 = vpack.c.b16 %v3940, %v3934
    %v4055 = vpack.c.b16 %v3941, %v3935
    %v4056 = vpack.c.b16 %v3942, %v3936
    %v4057 = vpack.c.b16 %v3943, %v3937
    %v4058 = vpack.c.b16 %v3950, %v3944
    %v4059 = vpack.c.b16 %v3951, %v3945
    %v4060 = vpack.c.b16 %v3952, %v3946
    %v4061 = vpack.c.b16 %v3953, %v3947
    %v4062 = vpack.c.b16 %v3954, %v3948
    %v4063 = vpack.c.b16 %v3955, %v3949
    %v4064 = vpack.c.b16 %v3962, %v3956
    %v4065 = vpack.c.b16 %v3963, %v3957
    %v4066 = vpack.c.b16 %v3964, %v3958
    %v4067 = vpack.c.b16 %v3965, %v3959
    %v4068 = vpack.c.b16 %v3966, %v3960
    %v4069 = vpack.c.b16 %v3967, %v3961
    %v4070 = vpack.c.b16 %v3974, %v3968
    %v4071 = vpack.c.b16 %v3975, %v3969
    %v4072 = vpack.c.b16 %v3976, %v3970
    %v4073 = vpack.c.b16 %v3977, %v3971
    %v4074 = vpack.c.b16 %v3978, %v3972
    %v4075 = vpack.c.b16 %v3979, %v3973
    %4172 = vmatpush.bf16.msra.mxu0 %v4022
    %4173 = vmatpush.bf16.msra.mxu0 %v4016
    %4174 = vmatpush.bf16.msra.mxu0 %v4010
    %4175 = vmatpush.bf16.msra.mxu0 %v4004
    %4176 = vmatpush.bf16.msra.mxu0 %v3998
    %4177 = vmatpush.bf16.msra.mxu0 %v3992
    %4178 = vmatpush.bf16.msra.mxu0 %v3986
    %4179 = vmatpush.bf16.msra.mxu0 %v3980
    %4180 = vmatmul.bf16.gmra.mxu0 %v3578
    %v4181 = vpop.f32.mrf.mxu0
    %v4182 = vadd.f32 %v3680, %v4181
    %v4183 = vpop.f32.mrf.mxu0
    %v4184 = vadd.f32 %v3680, %v4183
    %4185 = vdwg.mxu0
    %4186 = vmatpush.bf16.msra.mxu0 %v4070
    %4187 = vmatpush.bf16.msra.mxu0 %v4064
    %4188 = vmatpush.bf16.msra.mxu0 %v4058
    %4189 = vmatpush.bf16.msra.mxu0 %v4052
    %4190 = vmatpush.bf16.msra.mxu0 %v4046
    %4191 = vmatpush.bf16.msra.mxu0 %v4040
    %4192 = vmatpush.bf16.msra.mxu0 %v4034
    %4193 = vmatpush.bf16.msra.mxu0 %v4028
    %4194 = vmatmul.bf16.gmra.mxu0 %v3579
    %v4195 = vpop.f32.mrf.mxu0
    %v4196 = vadd.f32 %v4182, %v4195
    %v4197 = vpop.f32.mrf.mxu0
    %v4198 = vadd.f32 %v4184, %v4197
    %4199 = vdwg.mxu0
    %4200 = vmatpush.bf16.msra.mxu0 %v4023
    %4201 = vmatpush.bf16.msra.mxu0 %v4017
    %4202 = vmatpush.bf16.msra.mxu0 %v4011
    %4203 = vmatpush.bf16.msra.mxu0 %v4005
    %4204 = vmatpush.bf16.msra.mxu0 %v3999
    %4205 = vmatpush.bf16.msra.mxu0 %v3993
    %4206 = vmatpush.bf16.msra.mxu0 %v3987
    %4207 = vmatpush.bf16.msra.mxu0 %v3981
    %4208 = vmatmul.bf16.gmra.mxu0 %v3578
    %v4209 = vpop.f32.mrf.mxu0
    %v4210 = vadd.f32 %v3681, %v4209
    %v4211 = vpop.f32.mrf.mxu0
    %v4212 = vadd.f32 %v3681, %v4211
    %4213 = vdwg.mxu0
    %4214 = vmatpush.bf16.msra.mxu0 %v4071
    %4215 = vmatpush.bf16.msra.mxu0 %v4065
    %4216 = vmatpush.bf16.msra.mxu0 %v4059
    %4217 = vmatpush.bf16.msra.mxu0 %v4053
    %4218 = vmatpush.bf16.msra.mxu0 %v4047
    %4219 = vmatpush.bf16.msra.mxu0 %v4041
    %4220 = vmatpush.bf16.msra.mxu0 %v4035
    %4221 = vmatpush.bf16.msra.mxu0 %v4029
    %4222 = vmatmul.bf16.gmra.mxu0 %v3579
    %v4223 = vpop.f32.mrf.mxu0
    %v4224 = vadd.f32 %v4210, %v4223
    %v4225 = vpop.f32.mrf.mxu0
    %v4226 = vadd.f32 %v4212, %v4225
    %4227 = vdwg.mxu0
    %4228 = vmatpush.bf16.msra.mxu0 %v4024
    %4229 = vmatpush.bf16.msra.mxu0 %v4018
    %4230 = vmatpush.bf16.msra.mxu0 %v4012
    %4231 = vmatpush.bf16.msra.mxu0 %v4006
    %4232 = vmatpush.bf16.msra.mxu0 %v4000
    %4233 = vmatpush.bf16.msra.mxu0 %v3994
    %4234 = vmatpush.bf16.msra.mxu0 %v3988
    %4235 = vmatpush.bf16.msra.mxu0 %v3982
    %4236 = vmatmul.bf16.gmra.mxu0 %v3578
    %v4237 = vpop.f32.mrf.mxu0
    %v4238 = vadd.f32 %v3682, %v4237
    %v4239 = vpop.f32.mrf.mxu0
    %v4240 = vadd.f32 %v3682, %v4239
    %4241 = vdwg.mxu0
    %4242 = vmatpush.bf16.msra.mxu0 %v4072
    %4243 = vmatpush.bf16.msra.mxu0 %v4066
    %4244 = vmatpush.bf16.msra.mxu0 %v4060
    %4245 = vmatpush.bf16.msra.mxu0 %v4054
    %4246 = vmatpush.bf16.msra.mxu0 %v4048
    %4247 = vmatpush.bf16.msra.mxu0 %v4042
    %4248 = vmatpush.bf16.msra.mxu0 %v4036
    %4249 = vmatpush.bf16.msra.mxu0 %v4030
    %4250 = vmatmul.bf16.gmra.mxu0 %v3579
    %v4251 = vpop.f32.mrf.mxu0
    %v4252 = vadd.f32 %v4238, %v4251
    %v4253 = vpop.f32.mrf.mxu0
    %v4254 = vadd.f32 %v4240, %v4253
    %4255 = vdwg.mxu0
    %4256 = vmatpush.bf16.msra.mxu0 %v4025
    %4257 = vmatpush.bf16.msra.mxu0 %v4019
    %4258 = vmatpush.bf16.msra.mxu0 %v4013
    %4259 = vmatpush.bf16.msra.mxu0 %v4007
    %4260 = vmatpush.bf16.msra.mxu0 %v4001
    %4261 = vmatpush.bf16.msra.mxu0 %v3995
    %4262 = vmatpush.bf16.msra.mxu0 %v3989
    %4263 = vmatpush.bf16.msra.mxu0 %v3983
    %4264 = vmatmul.bf16.gmra.mxu0 %v3578
    %v4265 = vpop.f32.mrf.mxu0
    %v4266 = vadd.f32 %v3683, %v4265
    %v4267 = vpop.f32.mrf.mxu0
    %v4268 = vadd.f32 %v3683, %v4267
    %4269 = vdwg.mxu0
    %4270 = vmatpush.bf16.msra.mxu0 %v4073
    %4271 = vmatpush.bf16.msra.mxu0 %v4067
    %4272 = vmatpush.bf16.msra.mxu0 %v4061
    %4273 = vmatpush.bf16.msra.mxu0 %v4055
    %4274 = vmatpush.bf16.msra.mxu0 %v4049
    %4275 = vmatpush.bf16.msra.mxu0 %v4043
    %4276 = vmatpush.bf16.msra.mxu0 %v4037
    %4277 = vmatpush.bf16.msra.mxu0 %v4031
    %4278 = vmatmul.bf16.gmra.mxu0 %v3579
    %v4279 = vpop.f32.mrf.mxu0
    %v4280 = vadd.f32 %v4266, %v4279
    %v4281 = vpop.f32.mrf.mxu0
    %v4282 = vadd.f32 %v4268, %v4281
    %4283 = vdwg.mxu0
    %4284 = vmatpush.bf16.msra.mxu0 %v4026
    %4285 = vmatpush.bf16.msra.mxu0 %v4020
    %4286 = vmatpush.bf16.msra.mxu0 %v4014
    %4287 = vmatpush.bf16.msra.mxu0 %v4008
    %4288 = vmatpush.bf16.msra.mxu0 %v4002
    %4289 = vmatpush.bf16.msra.mxu0 %v3996
    %4290 = vmatpush.bf16.msra.mxu0 %v3990
    %4291 = vmatpush.bf16.msra.mxu0 %v3984
    %4292 = vmatmul.bf16.gmra.mxu0 %v3578
    %v4293 = vpop.f32.mrf.mxu0
    %v4294 = vadd.f32 %v3684, %v4293
    %v4295 = vpop.f32.mrf.mxu0
    %v4296 = vadd.f32 %v3684, %v4295
    %4297 = vdwg.mxu0
    %4298 = vmatpush.bf16.msra.mxu0 %v4074
    %4299 = vmatpush.bf16.msra.mxu0 %v4068
    %4300 = vmatpush.bf16.msra.mxu0 %v4062
    %4301 = vmatpush.bf16.msra.mxu0 %v4056
    %4302 = vmatpush.bf16.msra.mxu0 %v4050
    %4303 = vmatpush.bf16.msra.mxu0 %v4044
    %4304 = vmatpush.bf16.msra.mxu0 %v4038
    %4305 = vmatpush.bf16.msra.mxu0 %v4032
    %4306 = vmatmul.bf16.gmra.mxu0 %v3579
    %v4307 = vpop.f32.mrf.mxu0
    %v4308 = vadd.f32 %v4294, %v4307
    %v4309 = vpop.f32.mrf.mxu0
    %v4310 = vadd.f32 %v4296, %v4309
    %4311 = vdwg.mxu0
    %4312 = vmatpush.bf16.msra.mxu0 %v4027
    %4313 = vmatpush.bf16.msra.mxu0 %v4021
    %4314 = vmatpush.bf16.msra.mxu0 %v4015
    %4315 = vmatpush.bf16.msra.mxu0 %v4009
    %4316 = vmatpush.bf16.msra.mxu0 %v4003
    %4317 = vmatpush.bf16.msra.mxu0 %v3997
    %4318 = vmatpush.bf16.msra.mxu0 %v3991
    %4319 = vmatpush.bf16.msra.mxu0 %v3985
    %4320 = vmatmul.bf16.gmra.mxu0 %v3578
    %v4321 = vpop.f32.mrf.mxu0
    %v4322 = vadd.f32 %v3685, %v4321
    %v4323 = vpop.f32.mrf.mxu0
    %v4324 = vadd.f32 %v3685, %v4323
    %4325 = vdwg.mxu0
    %4326 = vmatpush.bf16.msra.mxu0 %v4075
    %4327 = vmatpush.bf16.msra.mxu0 %v4069
    %4328 = vmatpush.bf16.msra.mxu0 %v4063
    %4329 = vmatpush.bf16.msra.mxu0 %v4057
    %4330 = vmatpush.bf16.msra.mxu0 %v4051
    %4331 = vmatpush.bf16.msra.mxu0 %v4045
    %4332 = vmatpush.bf16.msra.mxu0 %v4039
    %4333 = vmatpush.bf16.msra.mxu0 %v4033
    %4334 = vmatmul.bf16.gmra.mxu0 %v3579
    %v4335 = vpop.f32.mrf.mxu0
    %v4336 = vadd.f32 %v4322, %v4335
    %v4337 = vpop.f32.mrf.mxu0
    %v4338 = vadd.f32 %v4324, %v4337
    %4339 = vdwg.mxu0
    %v4340 = vpack.c.bf16 %v4196, %v4196
    %v4341 = vpack.c.bf16 %v4198, %v4198
    %v4342 = vpack.c.bf16 %v4252, %v4252
    %v4343 = vpack.c.bf16 %v4254, %v4254
    %v4344 = vpack.c.bf16 %v4308, %v4308
    %v4345 = vpack.c.bf16 %v4310, %v4310
    %v4347 = vsel %vm1074, %v4340, 0
    %v4350 = vsel %vm1074, %v4342, 0
    %4352 = vmatpush.bf16.xpose.msra.mxu0 0
    %4353 = vmatpush.bf16.xpose.msra.mxu0 0
    %4354 = vmatpush.bf16.xpose.msra.mxu0 0
    %4355 = vmatpush.bf16.xpose.msra.mxu0 0
    %4356 = vmatpush.bf16.xpose.msra.mxu0 0
    %4357 = vmatpush.bf16.xpose.msra.mxu0 0
    %4358 = vmatpush.bf16.xpose.msra.mxu0 0
    %4359 = vmatpush.bf16.xpose.msra.mxu0 %v4350
    %4360 = vmatmul.bf16.gmra.mxu0 %v4347
    %v4361 = vpop.f32.mrf.mxu0
    %v4362 = vadd.f32 0.0, %v4361
    %v4363 = vpop.f32.mrf.mxu0
    %4364 = vdwg.mxu0
    %v4366 = vsel %vm1074, %v4341, 0
    %v4369 = vsel %vm1074, %v4343, 0
    %4371 = vmatpush.bf16.xpose.msra.mxu0 0
    %4372 = vmatpush.bf16.xpose.msra.mxu0 0
    %4373 = vmatpush.bf16.xpose.msra.mxu0 0
    %4374 = vmatpush.bf16.xpose.msra.mxu0 0
    %4375 = vmatpush.bf16.xpose.msra.mxu0 0
    %4376 = vmatpush.bf16.xpose.msra.mxu0 0
    %4377 = vmatpush.bf16.xpose.msra.mxu0 0
    %4378 = vmatpush.bf16.xpose.msra.mxu0 %v4369
    %4379 = vmatmul.bf16.gmra.mxu0 %v4366
    %v4380 = vpop.f32.mrf.mxu0
    %v4381 = vadd.f32 0.0, %v4380
    %v4382 = vpop.f32.mrf.mxu0
    %4383 = vdwg.mxu0
    %v4384 = vsel %vm1113, %v4362, -inf
    %4385 = vmax.xlane.f32.xlu0 %v4384
    %v4386 = vpop.xlane.xlu0 %4385
    %v4387 = vsel %vm1113, %v4381, -inf
    %4388 = vmax.xlane.f32.xlu0 %v4387
    %v4389 = vpop.xlane.xlu0 %4388
    %v4390 = vsub.f32 %v4362, %v4386
    %v4391 = vsub.f32 %v4381, %v4389
    %v4392 = vmul.f32 %v4390, 1.442695
    %v4393 = vpow.pop %v4392
    %v4394 = vmul.f32 %v4391, 1.442695
    %v4395 = vpow.pop %v4394
    %v4396 = vsel %vm1113, %v4393, 0.0
    %4397 = vadd.xlane.f32.xlu0 %v4396
    %v4398 = vpop.xlane.xlu0 %4397
    %v4399 = vsel %vm1113, %v4395, 0.0
    %4400 = vadd.xlane.f32.xlu0 %v4399
    %v4401 = vpop.xlane.xlu0 %4400
    %v4402 = vrcp.pop %v4398
    %v4403 = vrcp.pop %v4401
    %v4404 = vmul.f32 %v4393, %v4402
    %v4405 = vmul.f32 %v4395, %v4403
    %v4406 = vpack.c.bf16 %v4404, %v4404
    %v4407 = vpack.c.bf16 %v4405, %v4405
    %v4409 = vsel %vm1113, %v4406, 0
    %v4412 = vsel %vm1141, %v4344, 0
    %4414 = vmatpush.bf16.msra.mxu0 0
    %4415 = vmatpush.bf16.msra.mxu0 0
    %4416 = vmatpush.bf16.msra.mxu0 0
    %4417 = vmatpush.bf16.msra.mxu0 0
    %4418 = vmatpush.bf16.msra.mxu0 0
    %4419 = vmatpush.bf16.msra.mxu0 0
    %4420 = vmatpush.bf16.msra.mxu0 0
    %4421 = vmatpush.bf16.msra.mxu0 %v4412
    %4422 = vmatmul.bf16.gmra.mxu0 %v4409
    %v4423 = vpop.f32.mrf.mxu0
    %v4424 = vadd.f32 0.0, %v4423
    %v4425 = vpop.f32.mrf.mxu0
    %4426 = vdwg.mxu0
    %v4428 = vsel %vm1113, %v4407, 0
    %v4431 = vsel %vm1141, %v4345, 0
    %4433 = vmatpush.bf16.msra.mxu0 0
    %4434 = vmatpush.bf16.msra.mxu0 0
    %4435 = vmatpush.bf16.msra.mxu0 0
    %4436 = vmatpush.bf16.msra.mxu0 0
    %4437 = vmatpush.bf16.msra.mxu0 0
    %4438 = vmatpush.bf16.msra.mxu0 0
    %4439 = vmatpush.bf16.msra.mxu0 0
    %4440 = vmatpush.bf16.msra.mxu0 %v4431
    %4441 = vmatmul.bf16.gmra.mxu0 %v4428
    %v4442 = vpop.f32.mrf.mxu0
    %v4443 = vadd.f32 0.0, %v4442
    %v4444 = vpop.f32.mrf.mxu0
    %4445 = vdwg.mxu0
    %v4447 = vunpack.c.l.b16 %v4340
    %v4448 = vpack.c.b16 %v4447, %v4447
    %4449 = vrot.lane.b32.xlu0 %v4448, 96
    %v4450 = vpop.permute.xlu0 %4449
    %v4452 = vunpack.c.l.b16 %v4342
    %v4453 = vpack.c.b16 %v4452, %v4452
    %4454 = vrot.lane.b32.xlu0 %v4453, 96
    %v4455 = vpop.permute.xlu0 %4454
    %v4457 = vsel %vm1074, %v4450, 0
    %v4460 = vsel %vm1074, %v4455, 0
    %4462 = vmatpush.bf16.xpose.msra.mxu0 0
    %4463 = vmatpush.bf16.xpose.msra.mxu0 0
    %4464 = vmatpush.bf16.xpose.msra.mxu0 0
    %4465 = vmatpush.bf16.xpose.msra.mxu0 0
    %4466 = vmatpush.bf16.xpose.msra.mxu0 0
    %4467 = vmatpush.bf16.xpose.msra.mxu0 0
    %4468 = vmatpush.bf16.xpose.msra.mxu0 0
    %4469 = vmatpush.bf16.xpose.msra.mxu0 %v4460
    %4470 = vmatmul.bf16.gmra.mxu0 %v4457
    %v4471 = vpop.f32.mrf.mxu0
    %v4472 = vadd.f32 0.0, %v4471
    %v4473 = vpop.f32.mrf.mxu0
    %4474 = vdwg.mxu0
    %v4476 = vunpack.c.l.b16 %v4341
    %v4477 = vpack.c.b16 %v4476, %v4476
    %4478 = vrot.lane.b32.xlu0 %v4477, 96
    %v4479 = vpop.permute.xlu0 %4478
    %v4481 = vunpack.c.l.b16 %v4343
    %v4482 = vpack.c.b16 %v4481, %v4481
    %4483 = vrot.lane.b32.xlu0 %v4482, 96
    %v4484 = vpop.permute.xlu0 %4483
    %v4486 = vsel %vm1074, %v4479, 0
    %v4489 = vsel %vm1074, %v4484, 0
    %4491 = vmatpush.bf16.xpose.msra.mxu0 0
    %4492 = vmatpush.bf16.xpose.msra.mxu0 0
    %4493 = vmatpush.bf16.xpose.msra.mxu0 0
    %4494 = vmatpush.bf16.xpose.msra.mxu0 0
    %4495 = vmatpush.bf16.xpose.msra.mxu0 0
    %4496 = vmatpush.bf16.xpose.msra.mxu0 0
    %4497 = vmatpush.bf16.xpose.msra.mxu0 0
    %4498 = vmatpush.bf16.xpose.msra.mxu0 %v4489
    %4499 = vmatmul.bf16.gmra.mxu0 %v4486
    %v4500 = vpop.f32.mrf.mxu0
    %v4501 = vadd.f32 0.0, %v4500
    %v4502 = vpop.f32.mrf.mxu0
    %4503 = vdwg.mxu0
    %v4504 = vsel %vm1113, %v4472, -inf
    %4505 = vmax.xlane.f32.xlu0 %v4504
    %v4506 = vpop.xlane.xlu0 %4505
    %v4507 = vsel %vm1113, %v4501, -inf
    %4508 = vmax.xlane.f32.xlu0 %v4507
    %v4509 = vpop.xlane.xlu0 %4508
    %v4510 = vsub.f32 %v4472, %v4506
    %v4511 = vsub.f32 %v4501, %v4509
    %v4512 = vmul.f32 %v4510, 1.442695
    %v4513 = vpow.pop %v4512
    %v4514 = vmul.f32 %v4511, 1.442695
    %v4515 = vpow.pop %v4514
    %v4516 = vsel %vm1113, %v4513, 0.0
    %4517 = vadd.xlane.f32.xlu0 %v4516
    %v4518 = vpop.xlane.xlu0 %4517
    %v4519 = vsel %vm1113, %v4515, 0.0
    %4520 = vadd.xlane.f32.xlu0 %v4519
    %v4521 = vpop.xlane.xlu0 %4520
    %v4522 = vrcp.pop %v4518
    %v4523 = vrcp.pop %v4521
    %v4524 = vmul.f32 %v4513, %v4522
    %v4525 = vmul.f32 %v4515, %v4523
    %v4526 = vpack.c.bf16 %v4524, %v4524
    %v4527 = vpack.c.bf16 %v4525, %v4525
    %v4529 = vunpack.c.l.b16 %v4344
    %v4530 = vpack.c.b16 %v4529, %v4529
    %4531 = vrot.lane.b32.xlu0 %v4530, 96
    %v4532 = vpop.permute.xlu0 %4531
    %v4534 = vsel %vm1113, %v4526, 0
    %v4537 = vsel %vm1141, %v4532, 0
    %4539 = vmatpush.bf16.msra.mxu0 0
    %4540 = vmatpush.bf16.msra.mxu0 0
    %4541 = vmatpush.bf16.msra.mxu0 0
    %4542 = vmatpush.bf16.msra.mxu0 0
    %4543 = vmatpush.bf16.msra.mxu0 0
    %4544 = vmatpush.bf16.msra.mxu0 0
    %4545 = vmatpush.bf16.msra.mxu0 0
    %4546 = vmatpush.bf16.msra.mxu0 %v4537
    %4547 = vmatmul.bf16.gmra.mxu0 %v4534
    %v4548 = vpop.f32.mrf.mxu0
    %v4549 = vadd.f32 0.0, %v4548
    %v4550 = vpop.f32.mrf.mxu0
    %4551 = vdwg.mxu0
    %v4553 = vunpack.c.l.b16 %v4345
    %v4554 = vpack.c.b16 %v4553, %v4553
    %4555 = vrot.lane.b32.xlu0 %v4554, 96
    %v4556 = vpop.permute.xlu0 %4555
    %v4558 = vsel %vm1113, %v4527, 0
    %v4561 = vsel %vm1141, %v4556, 0
    %4563 = vmatpush.bf16.msra.mxu0 0
    %4564 = vmatpush.bf16.msra.mxu0 0
    %4565 = vmatpush.bf16.msra.mxu0 0
    %4566 = vmatpush.bf16.msra.mxu0 0
    %4567 = vmatpush.bf16.msra.mxu0 0
    %4568 = vmatpush.bf16.msra.mxu0 0
    %4569 = vmatpush.bf16.msra.mxu0 0
    %4570 = vmatpush.bf16.msra.mxu0 %v4561
    %4571 = vmatmul.bf16.gmra.mxu0 %v4558
    %v4572 = vpop.f32.mrf.mxu0
    %v4573 = vadd.f32 0.0, %v4572
    %v4574 = vpop.f32.mrf.mxu0
    %4575 = vdwg.mxu0
    %4576 = vrot.lane.b32.xlu0 %v4448, 64
    %v4577 = vpop.permute.xlu0 %4576
    %4578 = vrot.lane.b32.xlu0 %v4453, 64
    %v4579 = vpop.permute.xlu0 %4578
    %v4581 = vsel %vm1074, %v4577, 0
    %v4584 = vsel %vm1074, %v4579, 0
    %4586 = vmatpush.bf16.xpose.msra.mxu0 0
    %4587 = vmatpush.bf16.xpose.msra.mxu0 0
    %4588 = vmatpush.bf16.xpose.msra.mxu0 0
    %4589 = vmatpush.bf16.xpose.msra.mxu0 0
    %4590 = vmatpush.bf16.xpose.msra.mxu0 0
    %4591 = vmatpush.bf16.xpose.msra.mxu0 0
    %4592 = vmatpush.bf16.xpose.msra.mxu0 0
    %4593 = vmatpush.bf16.xpose.msra.mxu0 %v4584
    %4594 = vmatmul.bf16.gmra.mxu0 %v4581
    %v4595 = vpop.f32.mrf.mxu0
    %v4596 = vadd.f32 0.0, %v4595
    %v4597 = vpop.f32.mrf.mxu0
    %4598 = vdwg.mxu0
    %4599 = vrot.lane.b32.xlu0 %v4477, 64
    %v4600 = vpop.permute.xlu0 %4599
    %4601 = vrot.lane.b32.xlu0 %v4482, 64
    %v4602 = vpop.permute.xlu0 %4601
    %v4604 = vsel %vm1074, %v4600, 0
    %v4607 = vsel %vm1074, %v4602, 0
    %4609 = vmatpush.bf16.xpose.msra.mxu0 0
    %4610 = vmatpush.bf16.xpose.msra.mxu0 0
    %4611 = vmatpush.bf16.xpose.msra.mxu0 0
    %4612 = vmatpush.bf16.xpose.msra.mxu0 0
    %4613 = vmatpush.bf16.xpose.msra.mxu0 0
    %4614 = vmatpush.bf16.xpose.msra.mxu0 0
    %4615 = vmatpush.bf16.xpose.msra.mxu0 0
    %4616 = vmatpush.bf16.xpose.msra.mxu0 %v4607
    %4617 = vmatmul.bf16.gmra.mxu0 %v4604
    %v4618 = vpop.f32.mrf.mxu0
    %v4619 = vadd.f32 0.0, %v4618
    %v4620 = vpop.f32.mrf.mxu0
    %4621 = vdwg.mxu0
    %v4622 = vsel %vm1113, %v4596, -inf
    %4623 = vmax.xlane.f32.xlu0 %v4622
    %v4624 = vpop.xlane.xlu0 %4623
    %v4625 = vsel %vm1113, %v4619, -inf
    %4626 = vmax.xlane.f32.xlu0 %v4625
    %v4627 = vpop.xlane.xlu0 %4626
    %v4628 = vsub.f32 %v4596, %v4624
    %v4629 = vsub.f32 %v4619, %v4627
    %v4630 = vmul.f32 %v4628, 1.442695
    %v4631 = vpow.pop %v4630
    %v4632 = vmul.f32 %v4629, 1.442695
    %v4633 = vpow.pop %v4632
    %v4634 = vsel %vm1113, %v4631, 0.0
    %4635 = vadd.xlane.f32.xlu0 %v4634
    %v4636 = vpop.xlane.xlu0 %4635
    %v4637 = vsel %vm1113, %v4633, 0.0
    %4638 = vadd.xlane.f32.xlu0 %v4637
    %v4639 = vpop.xlane.xlu0 %4638
    %v4640 = vrcp.pop %v4636
    %v4641 = vrcp.pop %v4639
    %v4642 = vmul.f32 %v4631, %v4640
    %v4643 = vmul.f32 %v4633, %v4641
    %v4644 = vpack.c.bf16 %v4642, %v4642
    %v4645 = vpack.c.bf16 %v4643, %v4643
    %4646 = vrot.lane.b32.xlu0 %v4530, 64
    %v4647 = vpop.permute.xlu0 %4646
    %v4649 = vsel %vm1113, %v4644, 0
    %v4652 = vsel %vm1141, %v4647, 0
    %4654 = vmatpush.bf16.msra.mxu0 0
    %4655 = vmatpush.bf16.msra.mxu0 0
    %4656 = vmatpush.bf16.msra.mxu0 0
    %4657 = vmatpush.bf16.msra.mxu0 0
    %4658 = vmatpush.bf16.msra.mxu0 0
    %4659 = vmatpush.bf16.msra.mxu0 0
    %4660 = vmatpush.bf16.msra.mxu0 0
    %4661 = vmatpush.bf16.msra.mxu0 %v4652
    %4662 = vmatmul.bf16.gmra.mxu0 %v4649
    %v4663 = vpop.f32.mrf.mxu0
    %v4664 = vadd.f32 0.0, %v4663
    %v4665 = vpop.f32.mrf.mxu0
    %4666 = vdwg.mxu0
    %4667 = vrot.lane.b32.xlu0 %v4554, 64
    %v4668 = vpop.permute.xlu0 %4667
    %v4670 = vsel %vm1113, %v4645, 0
    %v4673 = vsel %vm1141, %v4668, 0
    %4675 = vmatpush.bf16.msra.mxu0 0
    %4676 = vmatpush.bf16.msra.mxu0 0
    %4677 = vmatpush.bf16.msra.mxu0 0
    %4678 = vmatpush.bf16.msra.mxu0 0
    %4679 = vmatpush.bf16.msra.mxu0 0
    %4680 = vmatpush.bf16.msra.mxu0 0
    %4681 = vmatpush.bf16.msra.mxu0 0
    %4682 = vmatpush.bf16.msra.mxu0 %v4673
    %4683 = vmatmul.bf16.gmra.mxu0 %v4670
    %v4684 = vpop.f32.mrf.mxu0
    %v4685 = vadd.f32 0.0, %v4684
    %v4686 = vpop.f32.mrf.mxu0
    %4687 = vdwg.mxu0
    %4688 = vrot.lane.b32.xlu0 %v4448, 32
    %v4689 = vpop.permute.xlu0 %4688
    %4690 = vrot.lane.b32.xlu0 %v4453, 32
    %v4691 = vpop.permute.xlu0 %4690
    %v4693 = vsel %vm1074, %v4689, 0
    %v4696 = vsel %vm1074, %v4691, 0
    %4698 = vmatpush.bf16.xpose.msra.mxu0 0
    %4699 = vmatpush.bf16.xpose.msra.mxu0 0
    %4700 = vmatpush.bf16.xpose.msra.mxu0 0
    %4701 = vmatpush.bf16.xpose.msra.mxu0 0
    %4702 = vmatpush.bf16.xpose.msra.mxu0 0
    %4703 = vmatpush.bf16.xpose.msra.mxu0 0
    %4704 = vmatpush.bf16.xpose.msra.mxu0 0
    %4705 = vmatpush.bf16.xpose.msra.mxu0 %v4696
    %4706 = vmatmul.bf16.gmra.mxu0 %v4693
    %v4707 = vpop.f32.mrf.mxu0
    %v4708 = vadd.f32 0.0, %v4707
    %v4709 = vpop.f32.mrf.mxu0
    %4710 = vdwg.mxu0
    %4711 = vrot.lane.b32.xlu0 %v4477, 32
    %v4712 = vpop.permute.xlu0 %4711
    %4713 = vrot.lane.b32.xlu0 %v4482, 32
    %v4714 = vpop.permute.xlu0 %4713
    %v4716 = vsel %vm1074, %v4712, 0
    %v4719 = vsel %vm1074, %v4714, 0
    %4721 = vmatpush.bf16.xpose.msra.mxu0 0
    %4722 = vmatpush.bf16.xpose.msra.mxu0 0
    %4723 = vmatpush.bf16.xpose.msra.mxu0 0
    %4724 = vmatpush.bf16.xpose.msra.mxu0 0
    %4725 = vmatpush.bf16.xpose.msra.mxu0 0
    %4726 = vmatpush.bf16.xpose.msra.mxu0 0
    %4727 = vmatpush.bf16.xpose.msra.mxu0 0
    %4728 = vmatpush.bf16.xpose.msra.mxu0 %v4719
    %4729 = vmatmul.bf16.gmra.mxu0 %v4716
    %v4730 = vpop.f32.mrf.mxu0
    %v4731 = vadd.f32 0.0, %v4730
    %v4732 = vpop.f32.mrf.mxu0
    %4733 = vdwg.mxu0
    %v4734 = vsel %vm1113, %v4708, -inf
    %4735 = vmax.xlane.f32.xlu0 %v4734
    %v4736 = vpop.xlane.xlu0 %4735
    %v4737 = vsel %vm1113, %v4731, -inf
    %4738 = vmax.xlane.f32.xlu0 %v4737
    %v4739 = vpop.xlane.xlu0 %4738
    %v4740 = vsub.f32 %v4708, %v4736
    %v4741 = vsub.f32 %v4731, %v4739
    %v4742 = vmul.f32 %v4740, 1.442695
    %v4743 = vpow.pop %v4742
    %v4744 = vmul.f32 %v4741, 1.442695
    %v4745 = vpow.pop %v4744
    %v4746 = vsel %vm1113, %v4743, 0.0
    %4747 = vadd.xlane.f32.xlu0 %v4746
    %v4748 = vpop.xlane.xlu0 %4747
    %v4749 = vsel %vm1113, %v4745, 0.0
    %4750 = vadd.xlane.f32.xlu0 %v4749
    %v4751 = vpop.xlane.xlu0 %4750
    %v4752 = vrcp.pop %v4748
    %v4753 = vrcp.pop %v4751
    %v4754 = vmul.f32 %v4743, %v4752
    %v4755 = vmul.f32 %v4745, %v4753
    %v4756 = vpack.c.bf16 %v4754, %v4754
    %v4757 = vpack.c.bf16 %v4755, %v4755
    %4758 = vrot.lane.b32.xlu0 %v4530, 32
    %v4759 = vpop.permute.xlu0 %4758
    %v4761 = vsel %vm1113, %v4756, 0
    %v4764 = vsel %vm1141, %v4759, 0
    %4766 = vmatpush.bf16.msra.mxu0 0
    %4767 = vmatpush.bf16.msra.mxu0 0
    %4768 = vmatpush.bf16.msra.mxu0 0
    %4769 = vmatpush.bf16.msra.mxu0 0
    %4770 = vmatpush.bf16.msra.mxu0 0
    %4771 = vmatpush.bf16.msra.mxu0 0
    %4772 = vmatpush.bf16.msra.mxu0 0
    %4773 = vmatpush.bf16.msra.mxu0 %v4764
    %4774 = vmatmul.bf16.gmra.mxu0 %v4761
    %v4775 = vpop.f32.mrf.mxu0
    %v4776 = vadd.f32 0.0, %v4775
    %v4777 = vpop.f32.mrf.mxu0
    %4778 = vdwg.mxu0
    %4779 = vrot.lane.b32.xlu0 %v4554, 32
    %v4780 = vpop.permute.xlu0 %4779
    %v4782 = vsel %vm1113, %v4757, 0
    %v4785 = vsel %vm1141, %v4780, 0
    %4787 = vmatpush.bf16.msra.mxu0 0
    %4788 = vmatpush.bf16.msra.mxu0 0
    %4789 = vmatpush.bf16.msra.mxu0 0
    %4790 = vmatpush.bf16.msra.mxu0 0
    %4791 = vmatpush.bf16.msra.mxu0 0
    %4792 = vmatpush.bf16.msra.mxu0 0
    %4793 = vmatpush.bf16.msra.mxu0 0
    %4794 = vmatpush.bf16.msra.mxu0 %v4785
    %4795 = vmatmul.bf16.gmra.mxu0 %v4782
    %v4796 = vpop.f32.mrf.mxu0
    %v4797 = vadd.f32 0.0, %v4796
    %v4798 = vpop.f32.mrf.mxu0
    %4799 = vdwg.mxu0
    %v4800 = vpack.c.bf16 %v4224, %v4224
    %v4801 = vpack.c.bf16 %v4226, %v4226
    %v4802 = vpack.c.bf16 %v4280, %v4280
    %v4803 = vpack.c.bf16 %v4282, %v4282
    %v4804 = vpack.c.bf16 %v4336, %v4336
    %v4805 = vpack.c.bf16 %v4338, %v4338
    %v4807 = vsel %vm1074, %v4800, 0
    %v4810 = vsel %vm1074, %v4802, 0
    %4812 = vmatpush.bf16.xpose.msra.mxu0 0
    %4813 = vmatpush.bf16.xpose.msra.mxu0 0
    %4814 = vmatpush.bf16.xpose.msra.mxu0 0
    %4815 = vmatpush.bf16.xpose.msra.mxu0 0
    %4816 = vmatpush.bf16.xpose.msra.mxu0 0
    %4817 = vmatpush.bf16.xpose.msra.mxu0 0
    %4818 = vmatpush.bf16.xpose.msra.mxu0 0
    %4819 = vmatpush.bf16.xpose.msra.mxu0 %v4810
    %4820 = vmatmul.bf16.gmra.mxu0 %v4807
    %v4821 = vpop.f32.mrf.mxu0
    %v4822 = vadd.f32 0.0, %v4821
    %v4823 = vpop.f32.mrf.mxu0
    %4824 = vdwg.mxu0
    %v4826 = vsel %vm1074, %v4801, 0
    %v4829 = vsel %vm1074, %v4803, 0
    %4831 = vmatpush.bf16.xpose.msra.mxu0 0
    %4832 = vmatpush.bf16.xpose.msra.mxu0 0
    %4833 = vmatpush.bf16.xpose.msra.mxu0 0
    %4834 = vmatpush.bf16.xpose.msra.mxu0 0
    %4835 = vmatpush.bf16.xpose.msra.mxu0 0
    %4836 = vmatpush.bf16.xpose.msra.mxu0 0
    %4837 = vmatpush.bf16.xpose.msra.mxu0 0
    %4838 = vmatpush.bf16.xpose.msra.mxu0 %v4829
    %4839 = vmatmul.bf16.gmra.mxu0 %v4826
    %v4840 = vpop.f32.mrf.mxu0
    %v4841 = vadd.f32 0.0, %v4840
    %v4842 = vpop.f32.mrf.mxu0
    %4843 = vdwg.mxu0
    %v4844 = vsel %vm1113, %v4822, -inf
    %4845 = vmax.xlane.f32.xlu0 %v4844
    %v4846 = vpop.xlane.xlu0 %4845
    %v4847 = vsel %vm1113, %v4841, -inf
    %4848 = vmax.xlane.f32.xlu0 %v4847
    %v4849 = vpop.xlane.xlu0 %4848
    %v4850 = vsub.f32 %v4822, %v4846
    %v4851 = vsub.f32 %v4841, %v4849
    %v4852 = vmul.f32 %v4850, 1.442695
    %v4853 = vpow.pop %v4852
    %v4854 = vmul.f32 %v4851, 1.442695
    %v4855 = vpow.pop %v4854
    %v4856 = vsel %vm1113, %v4853, 0.0
    %4857 = vadd.xlane.f32.xlu0 %v4856
    %v4858 = vpop.xlane.xlu0 %4857
    %v4859 = vsel %vm1113, %v4855, 0.0
    %4860 = vadd.xlane.f32.xlu0 %v4859
    %v4861 = vpop.xlane.xlu0 %4860
    %v4862 = vrcp.pop %v4858
    %v4863 = vrcp.pop %v4861
    %v4864 = vmul.f32 %v4853, %v4862
    %v4865 = vmul.f32 %v4855, %v4863
    %v4866 = vpack.c.bf16 %v4864, %v4864
    %v4867 = vpack.c.bf16 %v4865, %v4865
    %v4869 = vsel %vm1113, %v4866, 0
    %v4872 = vsel %vm1141, %v4804, 0
    %4874 = vmatpush.bf16.msra.mxu0 0
    %4875 = vmatpush.bf16.msra.mxu0 0
    %4876 = vmatpush.bf16.msra.mxu0 0
    %4877 = vmatpush.bf16.msra.mxu0 0
    %4878 = vmatpush.bf16.msra.mxu0 0
    %4879 = vmatpush.bf16.msra.mxu0 0
    %4880 = vmatpush.bf16.msra.mxu0 0
    %4881 = vmatpush.bf16.msra.mxu0 %v4872
    %4882 = vmatmul.bf16.gmra.mxu0 %v4869
    %v4883 = vpop.f32.mrf.mxu0
    %v4884 = vadd.f32 0.0, %v4883
    %v4885 = vpop.f32.mrf.mxu0
    %4886 = vdwg.mxu0
    %v4888 = vsel %vm1113, %v4867, 0
    %v4891 = vsel %vm1141, %v4805, 0
    %4893 = vmatpush.bf16.msra.mxu0 0
    %4894 = vmatpush.bf16.msra.mxu0 0
    %4895 = vmatpush.bf16.msra.mxu0 0
    %4896 = vmatpush.bf16.msra.mxu0 0
    %4897 = vmatpush.bf16.msra.mxu0 0
    %4898 = vmatpush.bf16.msra.mxu0 0
    %4899 = vmatpush.bf16.msra.mxu0 0
    %4900 = vmatpush.bf16.msra.mxu0 %v4891
    %4901 = vmatmul.bf16.gmra.mxu0 %v4888
    %v4902 = vpop.f32.mrf.mxu0
    %v4903 = vadd.f32 0.0, %v4902
    %v4904 = vpop.f32.mrf.mxu0
    %4905 = vdwg.mxu0
    %v4907 = vunpack.c.l.b16 %v4800
    %v4908 = vpack.c.b16 %v4907, %v4907
    %4909 = vrot.lane.b32.xlu0 %v4908, 96
    %v4910 = vpop.permute.xlu0 %4909
    %v4912 = vunpack.c.l.b16 %v4802
    %v4913 = vpack.c.b16 %v4912, %v4912
    %4914 = vrot.lane.b32.xlu0 %v4913, 96
    %v4915 = vpop.permute.xlu0 %4914
    %v4917 = vsel %vm1074, %v4910, 0
    %v4920 = vsel %vm1074, %v4915, 0
    %4922 = vmatpush.bf16.xpose.msra.mxu0 0
    %4923 = vmatpush.bf16.xpose.msra.mxu0 0
    %4924 = vmatpush.bf16.xpose.msra.mxu0 0
    %4925 = vmatpush.bf16.xpose.msra.mxu0 0
    %4926 = vmatpush.bf16.xpose.msra.mxu0 0
    %4927 = vmatpush.bf16.xpose.msra.mxu0 0
    %4928 = vmatpush.bf16.xpose.msra.mxu0 0
    %4929 = vmatpush.bf16.xpose.msra.mxu0 %v4920
    %4930 = vmatmul.bf16.gmra.mxu0 %v4917
    %v4931 = vpop.f32.mrf.mxu0
    %v4932 = vadd.f32 0.0, %v4931
    %v4933 = vpop.f32.mrf.mxu0
    %4934 = vdwg.mxu0
    %v4936 = vunpack.c.l.b16 %v4801
    %v4937 = vpack.c.b16 %v4936, %v4936
    %4938 = vrot.lane.b32.xlu0 %v4937, 96
    %v4939 = vpop.permute.xlu0 %4938
    %v4941 = vunpack.c.l.b16 %v4803
    %v4942 = vpack.c.b16 %v4941, %v4941
    %4943 = vrot.lane.b32.xlu0 %v4942, 96
    %v4944 = vpop.permute.xlu0 %4943
    %v4946 = vsel %vm1074, %v4939, 0
    %v4949 = vsel %vm1074, %v4944, 0
    %4951 = vmatpush.bf16.xpose.msra.mxu0 0
    %4952 = vmatpush.bf16.xpose.msra.mxu0 0
    %4953 = vmatpush.bf16.xpose.msra.mxu0 0
    %4954 = vmatpush.bf16.xpose.msra.mxu0 0
    %4955 = vmatpush.bf16.xpose.msra.mxu0 0
    %4956 = vmatpush.bf16.xpose.msra.mxu0 0
    %4957 = vmatpush.bf16.xpose.msra.mxu0 0
    %4958 = vmatpush.bf16.xpose.msra.mxu0 %v4949
    %4959 = vmatmul.bf16.gmra.mxu0 %v4946
    %v4960 = vpop.f32.mrf.mxu0
    %v4961 = vadd.f32 0.0, %v4960
    %v4962 = vpop.f32.mrf.mxu0
    %4963 = vdwg.mxu0
    %v4964 = vsel %vm1113, %v4932, -inf
    %4965 = vmax.xlane.f32.xlu0 %v4964
    %v4966 = vpop.xlane.xlu0 %4965
    %v4967 = vsel %vm1113, %v4961, -inf
    %4968 = vmax.xlane.f32.xlu0 %v4967
    %v4969 = vpop.xlane.xlu0 %4968
    %v4970 = vsub.f32 %v4932, %v4966
    %v4971 = vsub.f32 %v4961, %v4969
    %v4972 = vmul.f32 %v4970, 1.442695
    %v4973 = vpow.pop %v4972
    %v4974 = vmul.f32 %v4971, 1.442695
    %v4975 = vpow.pop %v4974
    %v4976 = vsel %vm1113, %v4973, 0.0
    %4977 = vadd.xlane.f32.xlu0 %v4976
    %v4978 = vpop.xlane.xlu0 %4977
    %v4979 = vsel %vm1113, %v4975, 0.0
    %4980 = vadd.xlane.f32.xlu0 %v4979
    %v4981 = vpop.xlane.xlu0 %4980
    %v4982 = vrcp.pop %v4978
    %v4983 = vrcp.pop %v4981
    %v4984 = vmul.f32 %v4973, %v4982
    %v4985 = vmul.f32 %v4975, %v4983
    %v4986 = vpack.c.bf16 %v4984, %v4984
    %v4987 = vpack.c.bf16 %v4985, %v4985
    %v4989 = vunpack.c.l.b16 %v4804
    %v4990 = vpack.c.b16 %v4989, %v4989
    %4991 = vrot.lane.b32.xlu0 %v4990, 96
    %v4992 = vpop.permute.xlu0 %4991
    %v4994 = vsel %vm1113, %v4986, 0
    %v4997 = vsel %vm1141, %v4992, 0
    %4999 = vmatpush.bf16.msra.mxu0 0
    %5000 = vmatpush.bf16.msra.mxu0 0
    %5001 = vmatpush.bf16.msra.mxu0 0
    %5002 = vmatpush.bf16.msra.mxu0 0
    %5003 = vmatpush.bf16.msra.mxu0 0
    %5004 = vmatpush.bf16.msra.mxu0 0
    %5005 = vmatpush.bf16.msra.mxu0 0
    %5006 = vmatpush.bf16.msra.mxu0 %v4997
    %5007 = vmatmul.bf16.gmra.mxu0 %v4994
    %v5008 = vpop.f32.mrf.mxu0
    %v5009 = vadd.f32 0.0, %v5008
    %v5010 = vpop.f32.mrf.mxu0
    %5011 = vdwg.mxu0
    %v5013 = vunpack.c.l.b16 %v4805
    %v5014 = vpack.c.b16 %v5013, %v5013
    %5015 = vrot.lane.b32.xlu0 %v5014, 96
    %v5016 = vpop.permute.xlu0 %5015
    %v5018 = vsel %vm1113, %v4987, 0
    %v5021 = vsel %vm1141, %v5016, 0
    %5023 = vmatpush.bf16.msra.mxu0 0
    %5024 = vmatpush.bf16.msra.mxu0 0
    %5025 = vmatpush.bf16.msra.mxu0 0
    %5026 = vmatpush.bf16.msra.mxu0 0
    %5027 = vmatpush.bf16.msra.mxu0 0
    %5028 = vmatpush.bf16.msra.mxu0 0
    %5029 = vmatpush.bf16.msra.mxu0 0
    %5030 = vmatpush.bf16.msra.mxu0 %v5021
    %5031 = vmatmul.bf16.gmra.mxu0 %v5018
    %v5032 = vpop.f32.mrf.mxu0
    %v5033 = vadd.f32 0.0, %v5032
    %v5034 = vpop.f32.mrf.mxu0
    %5035 = vdwg.mxu0
    %5036 = vrot.lane.b32.xlu0 %v4908, 64
    %v5037 = vpop.permute.xlu0 %5036
    %5038 = vrot.lane.b32.xlu0 %v4913, 64
    %v5039 = vpop.permute.xlu0 %5038
    %v5041 = vsel %vm1074, %v5037, 0
    %v5044 = vsel %vm1074, %v5039, 0
    %5046 = vmatpush.bf16.xpose.msra.mxu0 0
    %5047 = vmatpush.bf16.xpose.msra.mxu0 0
    %5048 = vmatpush.bf16.xpose.msra.mxu0 0
    %5049 = vmatpush.bf16.xpose.msra.mxu0 0
    %5050 = vmatpush.bf16.xpose.msra.mxu0 0
    %5051 = vmatpush.bf16.xpose.msra.mxu0 0
    %5052 = vmatpush.bf16.xpose.msra.mxu0 0
    %5053 = vmatpush.bf16.xpose.msra.mxu0 %v5044
    %5054 = vmatmul.bf16.gmra.mxu0 %v5041
    %v5055 = vpop.f32.mrf.mxu0
    %v5056 = vadd.f32 0.0, %v5055
    %v5057 = vpop.f32.mrf.mxu0
    %5058 = vdwg.mxu0
    %5059 = vrot.lane.b32.xlu0 %v4937, 64
    %v5060 = vpop.permute.xlu0 %5059
    %5061 = vrot.lane.b32.xlu0 %v4942, 64
    %v5062 = vpop.permute.xlu0 %5061
    %v5064 = vsel %vm1074, %v5060, 0
    %v5067 = vsel %vm1074, %v5062, 0
    %5069 = vmatpush.bf16.xpose.msra.mxu0 0
    %5070 = vmatpush.bf16.xpose.msra.mxu0 0
    %5071 = vmatpush.bf16.xpose.msra.mxu0 0
    %5072 = vmatpush.bf16.xpose.msra.mxu0 0
    %5073 = vmatpush.bf16.xpose.msra.mxu0 0
    %5074 = vmatpush.bf16.xpose.msra.mxu0 0
    %5075 = vmatpush.bf16.xpose.msra.mxu0 0
    %5076 = vmatpush.bf16.xpose.msra.mxu0 %v5067
    %5077 = vmatmul.bf16.gmra.mxu0 %v5064
    %v5078 = vpop.f32.mrf.mxu0
    %v5079 = vadd.f32 0.0, %v5078
    %v5080 = vpop.f32.mrf.mxu0
    %5081 = vdwg.mxu0
    %v5082 = vsel %vm1113, %v5056, -inf
    %5083 = vmax.xlane.f32.xlu0 %v5082
    %v5084 = vpop.xlane.xlu0 %5083
    %v5085 = vsel %vm1113, %v5079, -inf
    %5086 = vmax.xlane.f32.xlu0 %v5085
    %v5087 = vpop.xlane.xlu0 %5086
    %v5088 = vsub.f32 %v5056, %v5084
    %v5089 = vsub.f32 %v5079, %v5087
    %v5090 = vmul.f32 %v5088, 1.442695
    %v5091 = vpow.pop %v5090
    %v5092 = vmul.f32 %v5089, 1.442695
    %v5093 = vpow.pop %v5092
    %v5094 = vsel %vm1113, %v5091, 0.0
    %5095 = vadd.xlane.f32.xlu0 %v5094
    %v5096 = vpop.xlane.xlu0 %5095
    %v5097 = vsel %vm1113, %v5093, 0.0
    %5098 = vadd.xlane.f32.xlu0 %v5097
    %v5099 = vpop.xlane.xlu0 %5098
    %v5100 = vrcp.pop %v5096
    %v5101 = vrcp.pop %v5099
    %v5102 = vmul.f32 %v5091, %v5100
    %v5103 = vmul.f32 %v5093, %v5101
    %v5104 = vpack.c.bf16 %v5102, %v5102
    %v5105 = vpack.c.bf16 %v5103, %v5103
    %5106 = vrot.lane.b32.xlu0 %v4990, 64
    %v5107 = vpop.permute.xlu0 %5106
    %v5109 = vsel %vm1113, %v5104, 0
    %v5112 = vsel %vm1141, %v5107, 0
    %5114 = vmatpush.bf16.msra.mxu0 0
    %5115 = vmatpush.bf16.msra.mxu0 0
    %5116 = vmatpush.bf16.msra.mxu0 0
    %5117 = vmatpush.bf16.msra.mxu0 0
    %5118 = vmatpush.bf16.msra.mxu0 0
    %5119 = vmatpush.bf16.msra.mxu0 0
    %5120 = vmatpush.bf16.msra.mxu0 0
    %5121 = vmatpush.bf16.msra.mxu0 %v5112
    %5122 = vmatmul.bf16.gmra.mxu0 %v5109
    %v5123 = vpop.f32.mrf.mxu0
    %v5124 = vadd.f32 0.0, %v5123
    %v5125 = vpop.f32.mrf.mxu0
    %5126 = vdwg.mxu0
    %5127 = vrot.lane.b32.xlu0 %v5014, 64
    %v5128 = vpop.permute.xlu0 %5127
    %v5130 = vsel %vm1113, %v5105, 0
    %v5133 = vsel %vm1141, %v5128, 0
    %5135 = vmatpush.bf16.msra.mxu0 0
    %5136 = vmatpush.bf16.msra.mxu0 0
    %5137 = vmatpush.bf16.msra.mxu0 0
    %5138 = vmatpush.bf16.msra.mxu0 0
    %5139 = vmatpush.bf16.msra.mxu0 0
    %5140 = vmatpush.bf16.msra.mxu0 0
    %5141 = vmatpush.bf16.msra.mxu0 0
    %5142 = vmatpush.bf16.msra.mxu0 %v5133
    %5143 = vmatmul.bf16.gmra.mxu0 %v5130
    %v5144 = vpop.f32.mrf.mxu0
    %v5145 = vadd.f32 0.0, %v5144
    %v5146 = vpop.f32.mrf.mxu0
    %5147 = vdwg.mxu0
    %5148 = vrot.lane.b32.xlu0 %v4908, 32
    %v5149 = vpop.permute.xlu0 %5148
    %5150 = vrot.lane.b32.xlu0 %v4913, 32
    %v5151 = vpop.permute.xlu0 %5150
    %v5153 = vsel %vm1074, %v5149, 0
    %v5156 = vsel %vm1074, %v5151, 0
    %5158 = vmatpush.bf16.xpose.msra.mxu0 0
    %5159 = vmatpush.bf16.xpose.msra.mxu0 0
    %5160 = vmatpush.bf16.xpose.msra.mxu0 0
    %5161 = vmatpush.bf16.xpose.msra.mxu0 0
    %5162 = vmatpush.bf16.xpose.msra.mxu0 0
    %5163 = vmatpush.bf16.xpose.msra.mxu0 0
    %5164 = vmatpush.bf16.xpose.msra.mxu0 0
    %5165 = vmatpush.bf16.xpose.msra.mxu0 %v5156
    %5166 = vmatmul.bf16.gmra.mxu0 %v5153
    %v5167 = vpop.f32.mrf.mxu0
    %v5168 = vadd.f32 0.0, %v5167
    %v5169 = vpop.f32.mrf.mxu0
    %5170 = vdwg.mxu0
    %5171 = vrot.lane.b32.xlu0 %v4937, 32
    %v5172 = vpop.permute.xlu0 %5171
    %5173 = vrot.lane.b32.xlu0 %v4942, 32
    %v5174 = vpop.permute.xlu0 %5173
    %v5176 = vsel %vm1074, %v5172, 0
    %v5179 = vsel %vm1074, %v5174, 0
    %5181 = vmatpush.bf16.xpose.msra.mxu0 0
    %5182 = vmatpush.bf16.xpose.msra.mxu0 0
    %5183 = vmatpush.bf16.xpose.msra.mxu0 0
    %5184 = vmatpush.bf16.xpose.msra.mxu0 0
    %5185 = vmatpush.bf16.xpose.msra.mxu0 0
    %5186 = vmatpush.bf16.xpose.msra.mxu0 0
    %5187 = vmatpush.bf16.xpose.msra.mxu0 0
    %5188 = vmatpush.bf16.xpose.msra.mxu0 %v5179
    %5189 = vmatmul.bf16.gmra.mxu0 %v5176
    %v5190 = vpop.f32.mrf.mxu0
    %v5191 = vadd.f32 0.0, %v5190
    %v5192 = vpop.f32.mrf.mxu0
    %5193 = vdwg.mxu0
    %v5194 = vsel %vm1113, %v5168, -inf
    %5195 = vmax.xlane.f32.xlu0 %v5194
    %v5196 = vpop.xlane.xlu0 %5195
    %v5197 = vsel %vm1113, %v5191, -inf
    %5198 = vmax.xlane.f32.xlu0 %v5197
    %v5199 = vpop.xlane.xlu0 %5198
    %v5200 = vsub.f32 %v5168, %v5196
    %v5201 = vsub.f32 %v5191, %v5199
    %v5202 = vmul.f32 %v5200, 1.442695
    %v5203 = vpow.pop %v5202
    %v5204 = vmul.f32 %v5201, 1.442695
    %v5205 = vpow.pop %v5204
    %v5206 = vsel %vm1113, %v5203, 0.0
    %5207 = vadd.xlane.f32.xlu0 %v5206
    %v5208 = vpop.xlane.xlu0 %5207
    %v5209 = vsel %vm1113, %v5205, 0.0
    %5210 = vadd.xlane.f32.xlu0 %v5209
    %v5211 = vpop.xlane.xlu0 %5210
    %v5212 = vrcp.pop %v5208
    %v5213 = vrcp.pop %v5211
    %v5214 = vmul.f32 %v5203, %v5212
    %v5215 = vmul.f32 %v5205, %v5213
    %v5216 = vpack.c.bf16 %v5214, %v5214
    %v5217 = vpack.c.bf16 %v5215, %v5215
    %5218 = vrot.lane.b32.xlu0 %v4990, 32
    %v5219 = vpop.permute.xlu0 %5218
    %v5221 = vsel %vm1113, %v5216, 0
    %v5224 = vsel %vm1141, %v5219, 0
    %5226 = vmatpush.bf16.msra.mxu0 0
    %5227 = vmatpush.bf16.msra.mxu0 0
    %5228 = vmatpush.bf16.msra.mxu0 0
    %5229 = vmatpush.bf16.msra.mxu0 0
    %5230 = vmatpush.bf16.msra.mxu0 0
    %5231 = vmatpush.bf16.msra.mxu0 0
    %5232 = vmatpush.bf16.msra.mxu0 0
    %5233 = vmatpush.bf16.msra.mxu0 %v5224
    %5234 = vmatmul.bf16.gmra.mxu0 %v5221
    %v5235 = vpop.f32.mrf.mxu0
    %v5236 = vadd.f32 0.0, %v5235
    %v5237 = vpop.f32.mrf.mxu0
    %5238 = vdwg.mxu0
    %5239 = vrot.lane.b32.xlu0 %v5014, 32
    %v5240 = vpop.permute.xlu0 %5239
    %v5242 = vsel %vm1113, %v5217, 0
    %v5245 = vsel %vm1141, %v5240, 0
    %5247 = vmatpush.bf16.msra.mxu0 0
    %5248 = vmatpush.bf16.msra.mxu0 0
    %5249 = vmatpush.bf16.msra.mxu0 0
    %5250 = vmatpush.bf16.msra.mxu0 0
    %5251 = vmatpush.bf16.msra.mxu0 0
    %5252 = vmatpush.bf16.msra.mxu0 0
    %5253 = vmatpush.bf16.msra.mxu0 0
    %5254 = vmatpush.bf16.msra.mxu0 %v5245
    %5255 = vmatmul.bf16.gmra.mxu0 %v5242
    %v5256 = vpop.f32.mrf.mxu0
    %v5257 = vadd.f32 0.0, %v5256
    %v5258 = vpop.f32.mrf.mxu0
    %5259 = vdwg.mxu0
    %5262 = vrot.lane.b32.xlu0 %v4549, 32
    %v5263 = vpop.permute.xlu0 %5262
    %5264 = vrot.lane.b32.xlu0 %v4573, 32
    %v5265 = vpop.permute.xlu0 %5264
    %5270 = vrot.lane.b32.xlu0 %v4664, 64
    %v5271 = vpop.permute.xlu0 %5270
    %5272 = vrot.lane.b32.xlu0 %v4685, 64
    %v5273 = vpop.permute.xlu0 %5272
    %5278 = vrot.lane.b32.xlu0 %v4776, 96
    %v5279 = vpop.permute.xlu0 %5278
    %5280 = vrot.lane.b32.xlu0 %v4797, 96
    %v5281 = vpop.permute.xlu0 %5280
    %5286 = vrot.lane.b32.xlu0 %v5009, 32
    %v5287 = vpop.permute.xlu0 %5286
    %5288 = vrot.lane.b32.xlu0 %v5033, 32
    %v5289 = vpop.permute.xlu0 %5288
    %5294 = vrot.lane.b32.xlu0 %v5124, 64
    %v5295 = vpop.permute.xlu0 %5294
    %5296 = vrot.lane.b32.xlu0 %v5145, 64
    %v5297 = vpop.permute.xlu0 %5296
    %5302 = vrot.lane.b32.xlu0 %v5236, 96
    %v5303 = vpop.permute.xlu0 %5302
    %5304 = vrot.lane.b32.xlu0 %v5257, 96
    %v5305 = vpop.permute.xlu0 %5304
    %v5308 = vsel %vm1074, %v4424, %v5263
    %v5309 = vsel %vm1074, %v4443, %v5265
    %v5310 = vsel %vm2041, %v5308, %v5271
    %v5311 = vsel %vm2041, %v5309, %v5273
    %v5312 = vsel %vm2044, %v5310, %v5279
    %v5313 = vsel %vm2044, %v5311, %v5281
    %v5314 = vsel %vm1074, %v4884, %v5287
    %v5315 = vsel %vm1074, %v4903, %v5289
    %v5316 = vsel %vm2041, %v5314, %v5295
    %v5317 = vsel %vm2041, %v5315, %v5297
    %v5318 = vsel %vm2044, %v5316, %v5303
    %v5319 = vsel %vm2044, %v5317, %v5305
    %v5320 = vpack.c.bf16 %v5313, %v5312
    %v5321 = vpack.c.bf16 %v5319, %v5318
    %s5322 = scalar_lea.vmem [#allocation8], 256
    %v5323 = vld [vmem:[%s5322] sm:$0xff]
    %v5324 = vld [vmem:[%s5322 + $0x8] sm:$0xff]
    %v5325 = vld [vmem:[%s5322 + $0x10] sm:$0xff]
    %v5326 = vld [vmem:[%s5322 + $0x18] sm:$0xff]
    %v5327 = vld [vmem:[%s5322 + $0x20] sm:$0xff]
    %v5328 = vld [vmem:[%s5322 + $0x28] sm:$0xff]
    %v5329 = vld [vmem:[%s5322 + $0x30] sm:$0xff]
    %v5330 = vld [vmem:[%s5322 + $0x38] sm:$0xff]
    %v5331 = vld [vmem:[%s5322 + $0x40] sm:$0xff]
    %v5332 = vld [vmem:[%s5322 + $0x48] sm:$0xff]
    %v5333 = vld [vmem:[%s5322 + $0x50] sm:$0xff]
    %v5334 = vld [vmem:[%s5322 + $0x58] sm:$0xff]
    %v5335 = vld [vmem:[%s5322 + $0x60] sm:$0xff]
    %v5336 = vld [vmem:[%s5322 + $0x68] sm:$0xff]
    %v5337 = vld [vmem:[%s5322 + $0x70] sm:$0xff]
    %v5338 = vld [vmem:[%s5322 + $0x78] sm:$0xff]
    %v5339 = vld [vmem:[%s5322 + $0x80] sm:$0xff]
    %v5340 = vld [vmem:[%s5322 + $0x88] sm:$0xff]
    %v5341 = vld [vmem:[%s5322 + $0x90] sm:$0xff]
    %v5342 = vld [vmem:[%s5322 + $0x98] sm:$0xff]
    %v5343 = vld [vmem:[%s5322 + $0xa0] sm:$0xff]
    %v5344 = vld [vmem:[%s5322 + $0xa8] sm:$0xff]
    %v5345 = vld [vmem:[%s5322 + $0xb0] sm:$0xff]
    %v5346 = vld [vmem:[%s5322 + $0xb8] sm:$0xff]
    %v5347 = vld [vmem:[%s5322 + $0xc0] sm:$0xff]
    %v5348 = vld [vmem:[%s5322 + $0xc8] sm:$0xff]
    %v5349 = vld [vmem:[%s5322 + $0xd0] sm:$0xff]
    %v5350 = vld [vmem:[%s5322 + $0xd8] sm:$0xff]
    %v5351 = vld [vmem:[%s5322 + $0xe0] sm:$0xff]
    %v5352 = vld [vmem:[%s5322 + $0xe8] sm:$0xff]
    %v5353 = vld [vmem:[%s5322 + $0xf0] sm:$0xff]
    %v5354 = vld [vmem:[%s5322 + $0xf8] sm:$0xff]
    %s5355 = scalar_lea.vmem [#allocation10], 2
    %v5356 = vld [vmem:[%s5355] sm:$0x3]
    %v5358 = vperm.slane %v5356, 0
    %v5359 = vperm.slane %v5356, 1
    %v5394 = vunpack.c.l.b16 %v5323
    %v5395 = vunpack.c.h.b16 %v5323
    %v5396 = vunpack.c.l.b16 %v5324
    %v5397 = vunpack.c.h.b16 %v5324
    %v5398 = vunpack.c.l.b16 %v5325
    %v5399 = vunpack.c.h.b16 %v5325
    %v5400 = vunpack.c.l.b16 %v5326
    %v5401 = vunpack.c.h.b16 %v5326
    %v5402 = vunpack.c.l.b16 %v5327
    %v5403 = vunpack.c.h.b16 %v5327
    %v5404 = vunpack.c.l.b16 %v5328
    %v5405 = vunpack.c.h.b16 %v5328
    %v5406 = vunpack.c.l.b16 %v5329
    %v5407 = vunpack.c.h.b16 %v5329
    %v5408 = vunpack.c.l.b16 %v5330
    %v5409 = vunpack.c.h.b16 %v5330
    %v5410 = vunpack.c.l.b16 %v5331
    %v5411 = vunpack.c.h.b16 %v5331
    %v5412 = vunpack.c.l.b16 %v5332
    %v5413 = vunpack.c.h.b16 %v5332
    %v5414 = vunpack.c.l.b16 %v5333
    %v5415 = vunpack.c.h.b16 %v5333
    %v5416 = vunpack.c.l.b16 %v5334
    %v5417 = vunpack.c.h.b16 %v5334
    %v5418 = vunpack.c.l.b16 %v5335
    %v5419 = vunpack.c.h.b16 %v5335
    %v5420 = vunpack.c.l.b16 %v5336
    %v5421 = vunpack.c.h.b16 %v5336
    %v5422 = vunpack.c.l.b16 %v5337
    %v5423 = vunpack.c.h.b16 %v5337
    %v5424 = vunpack.c.l.b16 %v5338
    %v5425 = vunpack.c.h.b16 %v5338
    %v5426 = vunpack.c.l.b16 %v5339
    %v5427 = vunpack.c.h.b16 %v5339
    %v5428 = vunpack.c.l.b16 %v5340
    %v5429 = vunpack.c.h.b16 %v5340
    %v5430 = vunpack.c.l.b16 %v5341
    %v5431 = vunpack.c.h.b16 %v5341
    %v5432 = vunpack.c.l.b16 %v5342
    %v5433 = vunpack.c.h.b16 %v5342
    %v5434 = vunpack.c.l.b16 %v5343
    %v5435 = vunpack.c.h.b16 %v5343
    %v5436 = vunpack.c.l.b16 %v5344
    %v5437 = vunpack.c.h.b16 %v5344
    %v5438 = vunpack.c.l.b16 %v5345
    %v5439 = vunpack.c.h.b16 %v5345
    %v5440 = vunpack.c.l.b16 %v5346
    %v5441 = vunpack.c.h.b16 %v5346
    %v5442 = vunpack.c.l.b16 %v5347
    %v5443 = vunpack.c.h.b16 %v5347
    %v5444 = vunpack.c.l.b16 %v5348
    %v5445 = vunpack.c.h.b16 %v5348
    %v5446 = vunpack.c.l.b16 %v5349
    %v5447 = vunpack.c.h.b16 %v5349
    %v5448 = vunpack.c.l.b16 %v5350
    %v5449 = vunpack.c.h.b16 %v5350
    %v5450 = vunpack.c.l.b16 %v5351
    %v5451 = vunpack.c.h.b16 %v5351
    %v5452 = vunpack.c.l.b16 %v5352
    %v5453 = vunpack.c.h.b16 %v5352
    %v5454 = vunpack.c.l.b16 %v5353
    %v5455 = vunpack.c.h.b16 %v5353
    %v5456 = vunpack.c.l.b16 %v5354
    %v5457 = vunpack.c.h.b16 %v5354
    %v5458 = vpack.c.b16 %v5396, %v5394
    %v5459 = vpack.c.b16 %v5397, %v5395
    %v5460 = vpack.c.b16 %v5400, %v5398
    %v5461 = vpack.c.b16 %v5401, %v5399
    %v5462 = vpack.c.b16 %v5404, %v5402
    %v5463 = vpack.c.b16 %v5405, %v5403
    %v5464 = vpack.c.b16 %v5408, %v5406
    %v5465 = vpack.c.b16 %v5409, %v5407
    %v5466 = vpack.c.b16 %v5412, %v5410
    %v5467 = vpack.c.b16 %v5413, %v5411
    %v5468 = vpack.c.b16 %v5416, %v5414
    %v5469 = vpack.c.b16 %v5417, %v5415
    %v5470 = vpack.c.b16 %v5420, %v5418
    %v5471 = vpack.c.b16 %v5421, %v5419
    %v5472 = vpack.c.b16 %v5424, %v5422
    %v5473 = vpack.c.b16 %v5425, %v5423
    %v5474 = vpack.c.b16 %v5428, %v5426
    %v5475 = vpack.c.b16 %v5429, %v5427
    %v5476 = vpack.c.b16 %v5432, %v5430
    %v5477 = vpack.c.b16 %v5433, %v5431
    %v5478 = vpack.c.b16 %v5436, %v5434
    %v5479 = vpack.c.b16 %v5437, %v5435
    %v5480 = vpack.c.b16 %v5440, %v5438
    %v5481 = vpack.c.b16 %v5441, %v5439
    %v5482 = vpack.c.b16 %v5444, %v5442
    %v5483 = vpack.c.b16 %v5445, %v5443
    %v5484 = vpack.c.b16 %v5448, %v5446
    %v5485 = vpack.c.b16 %v5449, %v5447
    %v5486 = vpack.c.b16 %v5452, %v5450
    %v5487 = vpack.c.b16 %v5453, %v5451
    %v5488 = vpack.c.b16 %v5456, %v5454
    %v5489 = vpack.c.b16 %v5457, %v5455
    %5522 = vmatpush.bf16.msra.mxu0 %v5472
    %5523 = vmatpush.bf16.msra.mxu0 %v5470
    %5524 = vmatpush.bf16.msra.mxu0 %v5468
    %5525 = vmatpush.bf16.msra.mxu0 %v5466
    %5526 = vmatpush.bf16.msra.mxu0 %v5464
    %5527 = vmatpush.bf16.msra.mxu0 %v5462
    %5528 = vmatpush.bf16.msra.mxu0 %v5460
    %5529 = vmatpush.bf16.msra.mxu0 %v5458
    %5530 = vmatmul.bf16.gmra.mxu0 %v5320
    %v5531 = vpop.f32.mrf.mxu0
    %v5532 = vadd.f32 %v5358, %v5531
    %v5533 = vpop.f32.mrf.mxu0
    %v5534 = vadd.f32 %v5358, %v5533
    %5535 = vdwg.mxu0
    %5536 = vmatpush.bf16.msra.mxu0 %v5488
    %5537 = vmatpush.bf16.msra.mxu0 %v5486
    %5538 = vmatpush.bf16.msra.mxu0 %v5484
    %5539 = vmatpush.bf16.msra.mxu0 %v5482
    %5540 = vmatpush.bf16.msra.mxu0 %v5480
    %5541 = vmatpush.bf16.msra.mxu0 %v5478
    %5542 = vmatpush.bf16.msra.mxu0 %v5476
    %5543 = vmatpush.bf16.msra.mxu0 %v5474
    %5544 = vmatmul.bf16.gmra.mxu0 %v5321
    %v5545 = vpop.f32.mrf.mxu0
    %v5546 = vadd.f32 %v5532, %v5545
    %v5547 = vpop.f32.mrf.mxu0
    %v5548 = vadd.f32 %v5534, %v5547
    %5549 = vdwg.mxu0
    %5550 = vmatpush.bf16.msra.mxu0 %v5473
    %5551 = vmatpush.bf16.msra.mxu0 %v5471
    %5552 = vmatpush.bf16.msra.mxu0 %v5469
    %5553 = vmatpush.bf16.msra.mxu0 %v5467
    %5554 = vmatpush.bf16.msra.mxu0 %v5465
    %5555 = vmatpush.bf16.msra.mxu0 %v5463
    %5556 = vmatpush.bf16.msra.mxu0 %v5461
    %5557 = vmatpush.bf16.msra.mxu0 %v5459
    %5558 = vmatmul.bf16.gmra.mxu0 %v5320
    %v5559 = vpop.f32.mrf.mxu0
    %v5560 = vadd.f32 %v5359, %v5559
    %v5561 = vpop.f32.mrf.mxu0
    %v5562 = vadd.f32 %v5359, %v5561
    %5563 = vdwg.mxu0
    %5564 = vmatpush.bf16.msra.mxu0 %v5489
    %5565 = vmatpush.bf16.msra.mxu0 %v5487
    %5566 = vmatpush.bf16.msra.mxu0 %v5485
    %5567 = vmatpush.bf16.msra.mxu0 %v5483
    %5568 = vmatpush.bf16.msra.mxu0 %v5481
    %5569 = vmatpush.bf16.msra.mxu0 %v5479
    %5570 = vmatpush.bf16.msra.mxu0 %v5477
    %5571 = vmatpush.bf16.msra.mxu0 %v5475
    %5572 = vmatmul.bf16.gmra.mxu0 %v5321
    %v5573 = vpop.f32.mrf.mxu0
    %v5574 = vadd.f32 %v5560, %v5573
    %v5575 = vpop.f32.mrf.mxu0
    %v5576 = vadd.f32 %v5562, %v5575
    %5577 = vdwg.mxu0
    %v5578 = vadd.f32 %v3574, %v5546
    %v5579 = vadd.f32 %v3575, %v5574
    %v5580 = vadd.f32 %v3576, %v5548
    %v5581 = vadd.f32 %v3577, %v5576
    %s5582 = scalar_lea.vmem [#allocation19], 2
    %v5583 = vld [vmem:[%s5582] sm:$0x3]
    %s5584 = scalar_lea.vmem [#allocation20], 2
    %v5585 = vld [vmem:[%s5584] sm:$0x3]
    %v5586 = vadd.f32 %v5578, %v5579
    %5587 = vadd.xlane.f32.xlu0 %v5586
    %v5588 = vpop.xlane.xlu0 %5587
    %v5589 = vadd.f32 %v5580, %v5581
    %5590 = vadd.xlane.f32.xlu0 %v5589
    %v5591 = vpop.xlane.xlu0 %5590
    %v5592 = vmul.f32 %v5588, %v2327
    %v5593 = vmul.f32 %v5591, %v2327
    %v5594 = vmul.f32 %v5578, %v5578
    %v5595 = vmul.f32 %v5579, %v5579
    %v5596 = vmul.f32 %v5580, %v5580
    %v5597 = vmul.f32 %v5581, %v5581
    %v5598 = vadd.f32 %v5594, %v5595
    %5599 = vadd.xlane.f32.xlu0 %v5598
    %v5600 = vpop.xlane.xlu0 %5599
    %v5601 = vadd.f32 %v5596, %v5597
    %5602 = vadd.xlane.f32.xlu0 %v5601
    %v5603 = vpop.xlane.xlu0 %5602
    %v5604 = vmul.f32 %v5600, %v2327
    %v5605 = vmul.f32 %v5603, %v2327
    %v5606 = vmul.f32 %v5592, %v5592
    %v5607 = vmul.f32 %v5593, %v5593
    %v5608 = vsub.f32 %v5604, %v5606
    %v5609 = vsub.f32 %v5605, %v5607
    %v5610 = vsub.f32 %v5578, %v5592
    %v5611 = vsub.f32 %v5579, %v5592
    %v5612 = vsub.f32 %v5580, %v5593
    %v5613 = vsub.f32 %v5581, %v5593
    %v5614 = vadd.f32 %v5608, 1e-05
    %v5615 = vadd.f32 %v5609, 1e-05
    %v5616 = vrsqrt.pop %v5614
    %v5617 = vmul.f32 %v5616, %v5614
    %v5618 = vmul.f32 %v5617, %v5616
    %v5619 = vmul.f32 0.5, %v5618
    %v5620 = vsub.f32 1.5, %v5619
    %v5621 = vmul.f32 %v5616, %v5620
    %vm5622 = vweird.f32 %v5614
    %vm5623 = vweird.f32 %v5616
    %vm5624 = vmor %vm5622, %vm5623
    %v5625 = vsel %vm5624, %v5616, %v5621
    %v5626 = vrsqrt.pop %v5615
    %v5627 = vmul.f32 %v5626, %v5615
    %v5628 = vmul.f32 %v5627, %v5626
    %v5629 = vmul.f32 0.5, %v5628
    %v5630 = vsub.f32 1.5, %v5629
    %v5631 = vmul.f32 %v5626, %v5630
    %vm5632 = vweird.f32 %v5615
    %vm5633 = vweird.f32 %v5626
    %vm5634 = vmor %vm5632, %vm5633
    %v5635 = vsel %vm5634, %v5626, %v5631
    %v5636 = vmul.f32 %v5610, %v5625
    %v5637 = vmul.f32 %v5611, %v5625
    %v5638 = vmul.f32 %v5612, %v5635
    %v5639 = vmul.f32 %v5613, %v5635
    %v5641 = vperm.slane %v5583, 0
    %v5642 = vperm.slane %v5583, 1
    %v5645 = vmul.f32 %v5636, %v5641
    %v5646 = vmul.f32 %v5637, %v5642
    %v5647 = vmul.f32 %v5638, %v5641
    %v5648 = vmul.f32 %v5639, %v5642
    %v5650 = vperm.slane %v5585, 0
    %v5651 = vperm.slane %v5585, 1
    %v5654 = vadd.f32 %v5645, %v5650
    %v5655 = vadd.f32 %v5646, %v5651
    %v5656 = vadd.f32 %v5647, %v5650
    %v5657 = vadd.f32 %v5648, %v5651
    %s5658 = scalar_lea.vmem [#allocation11], 2
    %v5659 = vld [vmem:[%s5658] sm:$0x3]
    %v5661 = vperm.slane %v5659, 0
    %v5662 = vperm.slane %v5659, 1
    %v5665 = vadd.f32 %v5654, %v5661
    %v5666 = vadd.f32 %v5655, %v5662
    %v5667 = vadd.f32 %v5656, %v5661
    %v5668 = vadd.f32 %v5657, %v5662
    %s5669 = scalar_lea.vmem [#allocation22], 2
    %v5670 = vld [vmem:[%s5669] sm:$0x3]
    %s5671 = scalar_lea.vmem [#allocation23], 2
    %v5672 = vld [vmem:[%s5671] sm:$0x3]
    %v5673 = vadd.f32 %v5665, %v5666
    %5674 = vadd.xlane.f32.xlu0 %v5673
    %v5675 = vpop.xlane.xlu0 %5674
    %v5676 = vadd.f32 %v5667, %v5668
    %5677 = vadd.xlane.f32.xlu0 %v5676
    %v5678 = vpop.xlane.xlu0 %5677
    %v5679 = vmul.f32 %v5675, %v2327
    %v5680 = vmul.f32 %v5678, %v2327
    %v5681 = vmul.f32 %v5665, %v5665
    %v5682 = vmul.f32 %v5666, %v5666
    %v5683 = vmul.f32 %v5667, %v5667
    %v5684 = vmul.f32 %v5668, %v5668
    %v5685 = vadd.f32 %v5681, %v5682
    %5686 = vadd.xlane.f32.xlu0 %v5685
    %v5687 = vpop.xlane.xlu0 %5686
    %v5688 = vadd.f32 %v5683, %v5684
    %5689 = vadd.xlane.f32.xlu0 %v5688
    %v5690 = vpop.xlane.xlu0 %5689
    %v5691 = vmul.f32 %v5687, %v2327
    %v5692 = vmul.f32 %v5690, %v2327
    %v5693 = vmul.f32 %v5679, %v5679
    %v5694 = vmul.f32 %v5680, %v5680
    %v5695 = vsub.f32 %v5691, %v5693
    %v5696 = vsub.f32 %v5692, %v5694
    %v5697 = vsub.f32 %v5665, %v5679
    %v5698 = vsub.f32 %v5666, %v5679
    %v5699 = vsub.f32 %v5667, %v5680
    %v5700 = vsub.f32 %v5668, %v5680
    %v5701 = vadd.f32 %v5695, 1e-05
    %v5702 = vadd.f32 %v5696, 1e-05
    %v5703 = vrsqrt.pop %v5701
    %v5704 = vmul.f32 %v5703, %v5701
    %v5705 = vmul.f32 %v5704, %v5703
    %v5706 = vmul.f32 0.5, %v5705
    %v5707 = vsub.f32 1.5, %v5706
    %v5708 = vmul.f32 %v5703, %v5707
    %vm5709 = vweird.f32 %v5701
    %vm5710 = vweird.f32 %v5703
    %vm5711 = vmor %vm5709, %vm5710
    %v5712 = vsel %vm5711, %v5703, %v5708
    %v5713 = vrsqrt.pop %v5702
    %v5714 = vmul.f32 %v5713, %v5702
    %v5715 = vmul.f32 %v5714, %v5713
    %v5716 = vmul.f32 0.5, %v5715
    %v5717 = vsub.f32 1.5, %v5716
    %v5718 = vmul.f32 %v5713, %v5717
    %vm5719 = vweird.f32 %v5702
    %vm5720 = vweird.f32 %v5713
    %vm5721 = vmor %vm5719, %vm5720
    %v5722 = vsel %vm5721, %v5713, %v5718
    %v5723 = vmul.f32 %v5697, %v5712
    %v5724 = vmul.f32 %v5698, %v5712
    %v5725 = vmul.f32 %v5699, %v5722
    %v5726 = vmul.f32 %v5700, %v5722
    %v5728 = vperm.slane %v5670, 0
    %v5729 = vperm.slane %v5670, 1
    %v5732 = vmul.f32 %v5723, %v5728
    %v5733 = vmul.f32 %v5724, %v5729
    %v5734 = vmul.f32 %v5725, %v5728
    %v5735 = vmul.f32 %v5726, %v5729
    %v5737 = vperm.slane %v5672, 0
    %v5738 = vperm.slane %v5672, 1
    %v5741 = vadd.f32 %v5732, %v5737
    %v5742 = vadd.f32 %v5733, %v5738
    %v5743 = vadd.f32 %v5734, %v5737
    %v5744 = vadd.f32 %v5735, %v5738
    %v5745 = vpack.c.bf16 %v5743, %v5741
    %v5746 = vpack.c.bf16 %v5744, %v5742
    %s5747 = scalar_lea.vmem [#allocation13], 512
    %v5748 = vld [vmem:[%s5747] sm:$0xff]
    %v5749 = vld [vmem:[%s5747 + $0x8] sm:$0xff]
    %v5750 = vld [vmem:[%s5747 + $0x10] sm:$0xff]
    %v5751 = vld [vmem:[%s5747 + $0x18] sm:$0xff]
    %v5752 = vld [vmem:[%s5747 + $0x20] sm:$0xff]
    %v5753 = vld [vmem:[%s5747 + $0x28] sm:$0xff]
    %v5754 = vld [vmem:[%s5747 + $0x30] sm:$0xff]
    %v5755 = vld [vmem:[%s5747 + $0x38] sm:$0xff]
    %v5756 = vld [vmem:[%s5747 + $0x40] sm:$0xff]
    %v5757 = vld [vmem:[%s5747 + $0x48] sm:$0xff]
    %v5758 = vld [vmem:[%s5747 + $0x50] sm:$0xff]
    %v5759 = vld [vmem:[%s5747 + $0x58] sm:$0xff]
    %v5760 = vld [vmem:[%s5747 + $0x60] sm:$0xff]
    %v5761 = vld [vmem:[%s5747 + $0x68] sm:$0xff]
    %v5762 = vld [vmem:[%s5747 + $0x70] sm:$0xff]
    %v5763 = vld [vmem:[%s5747 + $0x78] sm:$0xff]
    %v5764 = vld [vmem:[%s5747 + $0x80] sm:$0xff]
    %v5765 = vld [vmem:[%s5747 + $0x88] sm:$0xff]
    %v5766 = vld [vmem:[%s5747 + $0x90] sm:$0xff]
    %v5767 = vld [vmem:[%s5747 + $0x98] sm:$0xff]
    %v5768 = vld [vmem:[%s5747 + $0xa0] sm:$0xff]
    %v5769 = vld [vmem:[%s5747 + $0xa8] sm:$0xff]
    %v5770 = vld [vmem:[%s5747 + $0xb0] sm:$0xff]
    %v5771 = vld [vmem:[%s5747 + $0xb8] sm:$0xff]
    %v5772 = vld [vmem:[%s5747 + $0xc0] sm:$0xff]
    %v5773 = vld [vmem:[%s5747 + $0xc8] sm:$0xff]
    %v5774 = vld [vmem:[%s5747 + $0xd0] sm:$0xff]
    %v5775 = vld [vmem:[%s5747 + $0xd8] sm:$0xff]
    %v5776 = vld [vmem:[%s5747 + $0xe0] sm:$0xff]
    %v5777 = vld [vmem:[%s5747 + $0xe8] sm:$0xff]
    %v5778 = vld [vmem:[%s5747 + $0xf0] sm:$0xff]
    %v5779 = vld [vmem:[%s5747 + $0xf8] sm:$0xff]
    %v5780 = vld [vmem:[%s5747 + $0x100] sm:$0xff]
    %v5781 = vld [vmem:[%s5747 + $0x108] sm:$0xff]
    %v5782 = vld [vmem:[%s5747 + $0x110] sm:$0xff]
    %v5783 = vld [vmem:[%s5747 + $0x118] sm:$0xff]
    %v5784 = vld [vmem:[%s5747 + $0x120] sm:$0xff]
    %v5785 = vld [vmem:[%s5747 + $0x128] sm:$0xff]
    %v5786 = vld [vmem:[%s5747 + $0x130] sm:$0xff]
    %v5787 = vld [vmem:[%s5747 + $0x138] sm:$0xff]
    %v5788 = vld [vmem:[%s5747 + $0x140] sm:$0xff]
    %v5789 = vld [vmem:[%s5747 + $0x148] sm:$0xff]
    %v5790 = vld [vmem:[%s5747 + $0x150] sm:$0xff]
    %v5791 = vld [vmem:[%s5747 + $0x158] sm:$0xff]
    %v5792 = vld [vmem:[%s5747 + $0x160] sm:$0xff]
    %v5793 = vld [vmem:[%s5747 + $0x168] sm:$0xff]
    %v5794 = vld [vmem:[%s5747 + $0x170] sm:$0xff]
    %v5795 = vld [vmem:[%s5747 + $0x178] sm:$0xff]
    %v5796 = vld [vmem:[%s5747 + $0x180] sm:$0xff]
    %v5797 = vld [vmem:[%s5747 + $0x188] sm:$0xff]
    %v5798 = vld [vmem:[%s5747 + $0x190] sm:$0xff]
    %v5799 = vld [vmem:[%s5747 + $0x198] sm:$0xff]
    %v5800 = vld [vmem:[%s5747 + $0x1a0] sm:$0xff]
    %v5801 = vld [vmem:[%s5747 + $0x1a8] sm:$0xff]
    %v5802 = vld [vmem:[%s5747 + $0x1b0] sm:$0xff]
    %v5803 = vld [vmem:[%s5747 + $0x1b8] sm:$0xff]
    %v5804 = vld [vmem:[%s5747 + $0x1c0] sm:$0xff]
    %v5805 = vld [vmem:[%s5747 + $0x1c8] sm:$0xff]
    %v5806 = vld [vmem:[%s5747 + $0x1d0] sm:$0xff]
    %v5807 = vld [vmem:[%s5747 + $0x1d8] sm:$0xff]
    %v5808 = vld [vmem:[%s5747 + $0x1e0] sm:$0xff]
    %v5809 = vld [vmem:[%s5747 + $0x1e8] sm:$0xff]
    %v5810 = vld [vmem:[%s5747 + $0x1f0] sm:$0xff]
    %v5811 = vld [vmem:[%s5747 + $0x1f8] sm:$0xff]
    %s5812 = scalar_lea.vmem [#allocation14], 4
    %v5813 = vld [vmem:[%s5812] sm:$0xf]
    %v5815 = vperm.slane %v5813, 0
    %v5816 = vperm.slane %v5813, 1
    %v5817 = vperm.slane %v5813, 2
    %v5818 = vperm.slane %v5813, 3
    %v5887 = vunpack.c.l.b16 %v5748
    %v5888 = vunpack.c.h.b16 %v5748
    %v5889 = vunpack.c.l.b16 %v5749
    %v5890 = vunpack.c.h.b16 %v5749
    %v5891 = vunpack.c.l.b16 %v5750
    %v5892 = vunpack.c.h.b16 %v5750
    %v5893 = vunpack.c.l.b16 %v5751
    %v5894 = vunpack.c.h.b16 %v5751
    %v5895 = vunpack.c.l.b16 %v5752
    %v5896 = vunpack.c.h.b16 %v5752
    %v5897 = vunpack.c.l.b16 %v5753
    %v5898 = vunpack.c.h.b16 %v5753
    %v5899 = vunpack.c.l.b16 %v5754
    %v5900 = vunpack.c.h.b16 %v5754
    %v5901 = vunpack.c.l.b16 %v5755
    %v5902 = vunpack.c.h.b16 %v5755
    %v5903 = vunpack.c.l.b16 %v5756
    %v5904 = vunpack.c.h.b16 %v5756
    %v5905 = vunpack.c.l.b16 %v5757
    %v5906 = vunpack.c.h.b16 %v5757
    %v5907 = vunpack.c.l.b16 %v5758
    %v5908 = vunpack.c.h.b16 %v5758
    %v5909 = vunpack.c.l.b16 %v5759
    %v5910 = vunpack.c.h.b16 %v5759
    %v5911 = vunpack.c.l.b16 %v5760
    %v5912 = vunpack.c.h.b16 %v5760
    %v5913 = vunpack.c.l.b16 %v5761
    %v5914 = vunpack.c.h.b16 %v5761
    %v5915 = vunpack.c.l.b16 %v5762
    %v5916 = vunpack.c.h.b16 %v5762
    %v5917 = vunpack.c.l.b16 %v5763
    %v5918 = vunpack.c.h.b16 %v5763
    %v5919 = vunpack.c.l.b16 %v5764
    %v5920 = vunpack.c.h.b16 %v5764
    %v5921 = vunpack.c.l.b16 %v5765
    %v5922 = vunpack.c.h.b16 %v5765
    %v5923 = vunpack.c.l.b16 %v5766
    %v5924 = vunpack.c.h.b16 %v5766
    %v5925 = vunpack.c.l.b16 %v5767
    %v5926 = vunpack.c.h.b16 %v5767
    %v5927 = vunpack.c.l.b16 %v5768
    %v5928 = vunpack.c.h.b16 %v5768
    %v5929 = vunpack.c.l.b16 %v5769
    %v5930 = vunpack.c.h.b16 %v5769
    %v5931 = vunpack.c.l.b16 %v5770
    %v5932 = vunpack.c.h.b16 %v5770
    %v5933 = vunpack.c.l.b16 %v5771
    %v5934 = vunpack.c.h.b16 %v5771
    %v5935 = vunpack.c.l.b16 %v5772
    %v5936 = vunpack.c.h.b16 %v5772
    %v5937 = vunpack.c.l.b16 %v5773
    %v5938 = vunpack.c.h.b16 %v5773
    %v5939 = vunpack.c.l.b16 %v5774
    %v5940 = vunpack.c.h.b16 %v5774
    %v5941 = vunpack.c.l.b16 %v5775
    %v5942 = vunpack.c.h.b16 %v5775
    %v5943 = vunpack.c.l.b16 %v5776
    %v5944 = vunpack.c.h.b16 %v5776
    %v5945 = vunpack.c.l.b16 %v5777
    %v5946 = vunpack.c.h.b16 %v5777
    %v5947 = vunpack.c.l.b16 %v5778
    %v5948 = vunpack.c.h.b16 %v5778
    %v5949 = vunpack.c.l.b16 %v5779
    %v5950 = vunpack.c.h.b16 %v5779
    %v5951 = vunpack.c.l.b16 %v5780
    %v5952 = vunpack.c.h.b16 %v5780
    %v5953 = vunpack.c.l.b16 %v5781
    %v5954 = vunpack.c.h.b16 %v5781
    %v5955 = vunpack.c.l.b16 %v5782
    %v5956 = vunpack.c.h.b16 %v5782
    %v5957 = vunpack.c.l.b16 %v5783
    %v5958 = vunpack.c.h.b16 %v5783
    %v5959 = vunpack.c.l.b16 %v5784
    %v5960 = vunpack.c.h.b16 %v5784
    %v5961 = vunpack.c.l.b16 %v5785
    %v5962 = vunpack.c.h.b16 %v5785
    %v5963 = vunpack.c.l.b16 %v5786
    %v5964 = vunpack.c.h.b16 %v5786
    %v5965 = vunpack.c.l.b16 %v5787
    %v5966 = vunpack.c.h.b16 %v5787
    %v5967 = vunpack.c.l.b16 %v5788
    %v5968 = vunpack.c.h.b16 %v5788
    %v5969 = vunpack.c.l.b16 %v5789
    %v5970 = vunpack.c.h.b16 %v5789
    %v5971 = vunpack.c.l.b16 %v5790
    %v5972 = vunpack.c.h.b16 %v5790
    %v5973 = vunpack.c.l.b16 %v5791
    %v5974 = vunpack.c.h.b16 %v5791
    %v5975 = vunpack.c.l.b16 %v5792
    %v5976 = vunpack.c.h.b16 %v5792
    %v5977 = vunpack.c.l.b16 %v5793
    %v5978 = vunpack.c.h.b16 %v5793
    %v5979 = vunpack.c.l.b16 %v5794
    %v5980 = vunpack.c.h.b16 %v5794
    %v5981 = vunpack.c.l.b16 %v5795
    %v5982 = vunpack.c.h.b16 %v5795
    %v5983 = vunpack.c.l.b16 %v5796
    %v5984 = vunpack.c.h.b16 %v5796
    %v5985 = vunpack.c.l.b16 %v5797
    %v5986 = vunpack.c.h.b16 %v5797
    %v5987 = vunpack.c.l.b16 %v5798
    %v5988 = vunpack.c.h.b16 %v5798
    %v5989 = vunpack.c.l.b16 %v5799
    %v5990 = vunpack.c.h.b16 %v5799
    %v5991 = vunpack.c.l.b16 %v5800
    %v5992 = vunpack.c.h.b16 %v5800
    %v5993 = vunpack.c.l.b16 %v5801
    %v5994 = vunpack.c.h.b16 %v5801
    %v5995 = vunpack.c.l.b16 %v5802
    %v5996 = vunpack.c.h.b16 %v5802
    %v5997 = vunpack.c.l.b16 %v5803
    %v5998 = vunpack.c.h.b16 %v5803
    %v5999 = vunpack.c.l.b16 %v5804
    %v6000 = vunpack.c.h.b16 %v5804
    %v6001 = vunpack.c.l.b16 %v5805
    %v6002 = vunpack.c.h.b16 %v5805
    %v6003 = vunpack.c.l.b16 %v5806
    %v6004 = vunpack.c.h.b16 %v5806
    %v6005 = vunpack.c.l.b16 %v5807
    %v6006 = vunpack.c.h.b16 %v5807
    %v6007 = vunpack.c.l.b16 %v5808
    %v6008 = vunpack.c.h.b16 %v5808
    %v6009 = vunpack.c.l.b16 %v5809
    %v6010 = vunpack.c.h.b16 %v5809
    %v6011 = vunpack.c.l.b16 %v5810
    %v6012 = vunpack.c.h.b16 %v5810
    %v6013 = vunpack.c.l.b16 %v5811
    %v6014 = vunpack.c.h.b16 %v5811
    %v6015 = vpack.c.b16 %v5891, %v5887
    %v6016 = vpack.c.b16 %v5892, %v5888
    %v6017 = vpack.c.b16 %v5893, %v5889
    %v6018 = vpack.c.b16 %v5894, %v5890
    %v6019 = vpack.c.b16 %v5899, %v5895
    %v6020 = vpack.c.b16 %v5900, %v5896
    %v6021 = vpack.c.b16 %v5901, %v5897
    %v6022 = vpack.c.b16 %v5902, %v5898
    %v6023 = vpack.c.b16 %v5907, %v5903
    %v6024 = vpack.c.b16 %v5908, %v5904
    %v6025 = vpack.c.b16 %v5909, %v5905
    %v6026 = vpack.c.b16 %v5910, %v5906
    %v6027 = vpack.c.b16 %v5915, %v5911
    %v6028 = vpack.c.b16 %v5916, %v5912
    %v6029 = vpack.c.b16 %v5917, %v5913
    %v6030 = vpack.c.b16 %v5918, %v5914
    %v6031 = vpack.c.b16 %v5923, %v5919
    %v6032 = vpack.c.b16 %v5924, %v5920
    %v6033 = vpack.c.b16 %v5925, %v5921
    %v6034 = vpack.c.b16 %v5926, %v5922
    %v6035 = vpack.c.b16 %v5931, %v5927
    %v6036 = vpack.c.b16 %v5932, %v5928
    %v6037 = vpack.c.b16 %v5933, %v5929
    %v6038 = vpack.c.b16 %v5934, %v5930
    %v6039 = vpack.c.b16 %v5939, %v5935
    %v6040 = vpack.c.b16 %v5940, %v5936
    %v6041 = vpack.c.b16 %v5941, %v5937
    %v6042 = vpack.c.b16 %v5942, %v5938
    %v6043 = vpack.c.b16 %v5947, %v5943
    %v6044 = vpack.c.b16 %v5948, %v5944
    %v6045 = vpack.c.b16 %v5949, %v5945
    %v6046 = vpack.c.b16 %v5950, %v5946
    %v6047 = vpack.c.b16 %v5955, %v5951
    %v6048 = vpack.c.b16 %v5956, %v5952
    %v6049 = vpack.c.b16 %v5957, %v5953
    %v6050 = vpack.c.b16 %v5958, %v5954
    %v6051 = vpack.c.b16 %v5963, %v5959
    %v6052 = vpack.c.b16 %v5964, %v5960
    %v6053 = vpack.c.b16 %v5965, %v5961
    %v6054 = vpack.c.b16 %v5966, %v5962
    %v6055 = vpack.c.b16 %v5971, %v5967
    %v6056 = vpack.c.b16 %v5972, %v5968
    %v6057 = vpack.c.b16 %v5973, %v5969
    %v6058 = vpack.c.b16 %v5974, %v5970
    %v6059 = vpack.c.b16 %v5979, %v5975
    %v6060 = vpack.c.b16 %v5980, %v5976
    %v6061 = vpack.c.b16 %v5981, %v5977
    %v6062 = vpack.c.b16 %v5982, %v5978
    %v6063 = vpack.c.b16 %v5987, %v5983
    %v6064 = vpack.c.b16 %v5988, %v5984
    %v6065 = vpack.c.b16 %v5989, %v5985
    %v6066 = vpack.c.b16 %v5990, %v5986
    %v6067 = vpack.c.b16 %v5995, %v5991
    %v6068 = vpack.c.b16 %v5996, %v5992
    %v6069 = vpack.c.b16 %v5997, %v5993
    %v6070 = vpack.c.b16 %v5998, %v5994
    %v6071 = vpack.c.b16 %v6003, %v5999
    %v6072 = vpack.c.b16 %v6004, %v6000
    %v6073 = vpack.c.b16 %v6005, %v6001
    %v6074 = vpack.c.b16 %v6006, %v6002
    %v6075 = vpack.c.b16 %v6011, %v6007
    %v6076 = vpack.c.b16 %v6012, %v6008
    %v6077 = vpack.c.b16 %v6013, %v6009
    %v6078 = vpack.c.b16 %v6014, %v6010
    %6143 = vmatpush.bf16.msra.mxu0 %v6043
    %6144 = vmatpush.bf16.msra.mxu0 %v6039
    %6145 = vmatpush.bf16.msra.mxu0 %v6035
    %6146 = vmatpush.bf16.msra.mxu0 %v6031
    %6147 = vmatpush.bf16.msra.mxu0 %v6027
    %6148 = vmatpush.bf16.msra.mxu0 %v6023
    %6149 = vmatpush.bf16.msra.mxu0 %v6019
    %6150 = vmatpush.bf16.msra.mxu0 %v6015
    %6151 = vmatmul.bf16.gmra.mxu0 %v5745
    %v6152 = vpop.f32.mrf.mxu0
    %v6153 = vadd.f32 %v5815, %v6152
    %v6154 = vpop.f32.mrf.mxu0
    %v6155 = vadd.f32 %v5815, %v6154
    %6156 = vdwg.mxu0
    %6157 = vmatpush.bf16.msra.mxu0 %v6075
    %6158 = vmatpush.bf16.msra.mxu0 %v6071
    %6159 = vmatpush.bf16.msra.mxu0 %v6067
    %6160 = vmatpush.bf16.msra.mxu0 %v6063
    %6161 = vmatpush.bf16.msra.mxu0 %v6059
    %6162 = vmatpush.bf16.msra.mxu0 %v6055
    %6163 = vmatpush.bf16.msra.mxu0 %v6051
    %6164 = vmatpush.bf16.msra.mxu0 %v6047
    %6165 = vmatmul.bf16.gmra.mxu0 %v5746
    %v6166 = vpop.f32.mrf.mxu0
    %v6167 = vadd.f32 %v6153, %v6166
    %v6168 = vpop.f32.mrf.mxu0
    %v6169 = vadd.f32 %v6155, %v6168
    %6170 = vdwg.mxu0
    %6171 = vmatpush.bf16.msra.mxu0 %v6044
    %6172 = vmatpush.bf16.msra.mxu0 %v6040
    %6173 = vmatpush.bf16.msra.mxu0 %v6036
    %6174 = vmatpush.bf16.msra.mxu0 %v6032
    %6175 = vmatpush.bf16.msra.mxu0 %v6028
    %6176 = vmatpush.bf16.msra.mxu0 %v6024
    %6177 = vmatpush.bf16.msra.mxu0 %v6020
    %6178 = vmatpush.bf16.msra.mxu0 %v6016
    %6179 = vmatmul.bf16.gmra.mxu0 %v5745
    %v6180 = vpop.f32.mrf.mxu0
    %v6181 = vadd.f32 %v5816, %v6180
    %v6182 = vpop.f32.mrf.mxu0
    %v6183 = vadd.f32 %v5816, %v6182
    %6184 = vdwg.mxu0
    %6185 = vmatpush.bf16.msra.mxu0 %v6076
    %6186 = vmatpush.bf16.msra.mxu0 %v6072
    %6187 = vmatpush.bf16.msra.mxu0 %v6068
    %6188 = vmatpush.bf16.msra.mxu0 %v6064
    %6189 = vmatpush.bf16.msra.mxu0 %v6060
    %6190 = vmatpush.bf16.msra.mxu0 %v6056
    %6191 = vmatpush.bf16.msra.mxu0 %v6052
    %6192 = vmatpush.bf16.msra.mxu0 %v6048
    %6193 = vmatmul.bf16.gmra.mxu0 %v5746
    %v6194 = vpop.f32.mrf.mxu0
    %v6195 = vadd.f32 %v6181, %v6194
    %v6196 = vpop.f32.mrf.mxu0
    %v6197 = vadd.f32 %v6183, %v6196
    %6198 = vdwg.mxu0
    %6199 = vmatpush.bf16.msra.mxu0 %v6045
    %6200 = vmatpush.bf16.msra.mxu0 %v6041
    %6201 = vmatpush.bf16.msra.mxu0 %v6037
    %6202 = vmatpush.bf16.msra.mxu0 %v6033
    %6203 = vmatpush.bf16.msra.mxu0 %v6029
    %6204 = vmatpush.bf16.msra.mxu0 %v6025
    %6205 = vmatpush.bf16.msra.mxu0 %v6021
    %6206 = vmatpush.bf16.msra.mxu0 %v6017
    %6207 = vmatmul.bf16.gmra.mxu0 %v5745
    %v6208 = vpop.f32.mrf.mxu0
    %v6209 = vadd.f32 %v5817, %v6208
    %v6210 = vpop.f32.mrf.mxu0
    %v6211 = vadd.f32 %v5817, %v6210
    %6212 = vdwg.mxu0
    %6213 = vmatpush.bf16.msra.mxu0 %v6077
    %6214 = vmatpush.bf16.msra.mxu0 %v6073
    %6215 = vmatpush.bf16.msra.mxu0 %v6069
    %6216 = vmatpush.bf16.msra.mxu0 %v6065
    %6217 = vmatpush.bf16.msra.mxu0 %v6061
    %6218 = vmatpush.bf16.msra.mxu0 %v6057
    %6219 = vmatpush.bf16.msra.mxu0 %v6053
    %6220 = vmatpush.bf16.msra.mxu0 %v6049
    %6221 = vmatmul.bf16.gmra.mxu0 %v5746
    %v6222 = vpop.f32.mrf.mxu0
    %v6223 = vadd.f32 %v6209, %v6222
    %v6224 = vpop.f32.mrf.mxu0
    %v6225 = vadd.f32 %v6211, %v6224
    %6226 = vdwg.mxu0
    %6227 = vmatpush.bf16.msra.mxu0 %v6046
    %6228 = vmatpush.bf16.msra.mxu0 %v6042
    %6229 = vmatpush.bf16.msra.mxu0 %v6038
    %6230 = vmatpush.bf16.msra.mxu0 %v6034
    %6231 = vmatpush.bf16.msra.mxu0 %v6030
    %6232 = vmatpush.bf16.msra.mxu0 %v6026
    %6233 = vmatpush.bf16.msra.mxu0 %v6022
    %6234 = vmatpush.bf16.msra.mxu0 %v6018
    %6235 = vmatmul.bf16.gmra.mxu0 %v5745
    %v6236 = vpop.f32.mrf.mxu0
    %v6237 = vadd.f32 %v5818, %v6236
    %v6238 = vpop.f32.mrf.mxu0
    %v6239 = vadd.f32 %v5818, %v6238
    %6240 = vdwg.mxu0
    %6241 = vmatpush.bf16.msra.mxu0 %v6078
    %6242 = vmatpush.bf16.msra.mxu0 %v6074
    %6243 = vmatpush.bf16.msra.mxu0 %v6070
    %6244 = vmatpush.bf16.msra.mxu0 %v6066
    %6245 = vmatpush.bf16.msra.mxu0 %v6062
    %6246 = vmatpush.bf16.msra.mxu0 %v6058
    %6247 = vmatpush.bf16.msra.mxu0 %v6054
    %6248 = vmatpush.bf16.msra.mxu0 %v6050
    %6249 = vmatmul.bf16.gmra.mxu0 %v5746
    %v6250 = vpop.f32.mrf.mxu0
    %v6251 = vadd.f32 %v6237, %v6250
    %v6252 = vpop.f32.mrf.mxu0
    %v6253 = vadd.f32 %v6239, %v6252
    %6254 = vdwg.mxu0
    %v6255 = vmax.f32 %v6167, 0.0
    %v6256 = vmax.f32 %v6195, 0.0
    %v6257 = vmax.f32 %v6223, 0.0
    %v6258 = vmax.f32 %v6251, 0.0
    %v6259 = vmax.f32 %v6169, 0.0
    %v6260 = vmax.f32 %v6197, 0.0
    %v6261 = vmax.f32 %v6225, 0.0
    %v6262 = vmax.f32 %v6253, 0.0
    %v6263 = vpack.c.bf16 %v6259, %v6255
    %v6264 = vpack.c.bf16 %v6260, %v6256
    %v6265 = vpack.c.bf16 %v6261, %v6257
    %v6266 = vpack.c.bf16 %v6262, %v6258
    %s6267 = scalar_lea.vmem [#allocation16], 512
    %v6268 = vld [vmem:[%s6267] sm:$0xff]
    %v6269 = vld [vmem:[%s6267 + $0x8] sm:$0xff]
    %v6270 = vld [vmem:[%s6267 + $0x10] sm:$0xff]
    %v6271 = vld [vmem:[%s6267 + $0x18] sm:$0xff]
    %v6272 = vld [vmem:[%s6267 + $0x20] sm:$0xff]
    %v6273 = vld [vmem:[%s6267 + $0x28] sm:$0xff]
    %v6274 = vld [vmem:[%s6267 + $0x30] sm:$0xff]
    %v6275 = vld [vmem:[%s6267 + $0x38] sm:$0xff]
    %v6276 = vld [vmem:[%s6267 + $0x40] sm:$0xff]
    %v6277 = vld [vmem:[%s6267 + $0x48] sm:$0xff]
    %v6278 = vld [vmem:[%s6267 + $0x50] sm:$0xff]
    %v6279 = vld [vmem:[%s6267 + $0x58] sm:$0xff]
    %v6280 = vld [vmem:[%s6267 + $0x60] sm:$0xff]
    %v6281 = vld [vmem:[%s6267 + $0x68] sm:$0xff]
    %v6282 = vld [vmem:[%s6267 + $0x70] sm:$0xff]
    %v6283 = vld [vmem:[%s6267 + $0x78] sm:$0xff]
    %v6284 = vld [vmem:[%s6267 + $0x80] sm:$0xff]
    %v6285 = vld [vmem:[%s6267 + $0x88] sm:$0xff]
    %v6286 = vld [vmem:[%s6267 + $0x90] sm:$0xff]
    %v6287 = vld [vmem:[%s6267 + $0x98] sm:$0xff]
    %v6288 = vld [vmem:[%s6267 + $0xa0] sm:$0xff]
    %v6289 = vld [vmem:[%s6267 + $0xa8] sm:$0xff]
    %v6290 = vld [vmem:[%s6267 + $0xb0] sm:$0xff]
    %v6291 = vld [vmem:[%s6267 + $0xb8] sm:$0xff]
    %v6292 = vld [vmem:[%s6267 + $0xc0] sm:$0xff]
    %v6293 = vld [vmem:[%s6267 + $0xc8] sm:$0xff]
    %v6294 = vld [vmem:[%s6267 + $0xd0] sm:$0xff]
    %v6295 = vld [vmem:[%s6267 + $0xd8] sm:$0xff]
    %v6296 = vld [vmem:[%s6267 + $0xe0] sm:$0xff]
    %v6297 = vld [vmem:[%s6267 + $0xe8] sm:$0xff]
    %v6298 = vld [vmem:[%s6267 + $0xf0] sm:$0xff]
    %v6299 = vld [vmem:[%s6267 + $0xf8] sm:$0xff]
    %v6300 = vld [vmem:[%s6267 + $0x100] sm:$0xff]
    %v6301 = vld [vmem:[%s6267 + $0x108] sm:$0xff]
    %v6302 = vld [vmem:[%s6267 + $0x110] sm:$0xff]
    %v6303 = vld [vmem:[%s6267 + $0x118] sm:$0xff]
    %v6304 = vld [vmem:[%s6267 + $0x120] sm:$0xff]
    %v6305 = vld [vmem:[%s6267 + $0x128] sm:$0xff]
    %v6306 = vld [vmem:[%s6267 + $0x130] sm:$0xff]
    %v6307 = vld [vmem:[%s6267 + $0x138] sm:$0xff]
    %v6308 = vld [vmem:[%s6267 + $0x140] sm:$0xff]
    %v6309 = vld [vmem:[%s6267 + $0x148] sm:$0xff]
    %v6310 = vld [vmem:[%s6267 + $0x150] sm:$0xff]
    %v6311 = vld [vmem:[%s6267 + $0x158] sm:$0xff]
    %v6312 = vld [vmem:[%s6267 + $0x160] sm:$0xff]
    %v6313 = vld [vmem:[%s6267 + $0x168] sm:$0xff]
    %v6314 = vld [vmem:[%s6267 + $0x170] sm:$0xff]
    %v6315 = vld [vmem:[%s6267 + $0x178] sm:$0xff]
    %v6316 = vld [vmem:[%s6267 + $0x180] sm:$0xff]
    %v6317 = vld [vmem:[%s6267 + $0x188] sm:$0xff]
    %v6318 = vld [vmem:[%s6267 + $0x190] sm:$0xff]
    %v6319 = vld [vmem:[%s6267 + $0x198] sm:$0xff]
    %v6320 = vld [vmem:[%s6267 + $0x1a0] sm:$0xff]
    %v6321 = vld [vmem:[%s6267 + $0x1a8] sm:$0xff]
    %v6322 = vld [vmem:[%s6267 + $0x1b0] sm:$0xff]
    %v6323 = vld [vmem:[%s6267 + $0x1b8] sm:$0xff]
    %v6324 = vld [vmem:[%s6267 + $0x1c0] sm:$0xff]
    %v6325 = vld [vmem:[%s6267 + $0x1c8] sm:$0xff]
    %v6326 = vld [vmem:[%s6267 + $0x1d0] sm:$0xff]
    %v6327 = vld [vmem:[%s6267 + $0x1d8] sm:$0xff]
    %v6328 = vld [vmem:[%s6267 + $0x1e0] sm:$0xff]
    %v6329 = vld [vmem:[%s6267 + $0x1e8] sm:$0xff]
    %v6330 = vld [vmem:[%s6267 + $0x1f0] sm:$0xff]
    %v6331 = vld [vmem:[%s6267 + $0x1f8] sm:$0xff]
    %s6332 = scalar_lea.vmem [#allocation17], 2
    %v6333 = vld [vmem:[%s6332] sm:$0x3]
    %v6335 = vperm.slane %v6333, 0
    %v6336 = vperm.slane %v6333, 1
    %v6403 = vunpack.c.l.b16 %v6268
    %v6404 = vunpack.c.h.b16 %v6268
    %v6405 = vunpack.c.l.b16 %v6269
    %v6406 = vunpack.c.h.b16 %v6269
    %v6407 = vunpack.c.l.b16 %v6270
    %v6408 = vunpack.c.h.b16 %v6270
    %v6409 = vunpack.c.l.b16 %v6271
    %v6410 = vunpack.c.h.b16 %v6271
    %v6411 = vunpack.c.l.b16 %v6272
    %v6412 = vunpack.c.h.b16 %v6272
    %v6413 = vunpack.c.l.b16 %v6273
    %v6414 = vunpack.c.h.b16 %v6273
    %v6415 = vunpack.c.l.b16 %v6274
    %v6416 = vunpack.c.h.b16 %v6274
    %v6417 = vunpack.c.l.b16 %v6275
    %v6418 = vunpack.c.h.b16 %v6275
    %v6419 = vunpack.c.l.b16 %v6276
    %v6420 = vunpack.c.h.b16 %v6276
    %v6421 = vunpack.c.l.b16 %v6277
    %v6422 = vunpack.c.h.b16 %v6277
    %v6423 = vunpack.c.l.b16 %v6278
    %v6424 = vunpack.c.h.b16 %v6278
    %v6425 = vunpack.c.l.b16 %v6279
    %v6426 = vunpack.c.h.b16 %v6279
    %v6427 = vunpack.c.l.b16 %v6280
    %v6428 = vunpack.c.h.b16 %v6280
    %v6429 = vunpack.c.l.b16 %v6281
    %v6430 = vunpack.c.h.b16 %v6281
    %v6431 = vunpack.c.l.b16 %v6282
    %v6432 = vunpack.c.h.b16 %v6282
    %v6433 = vunpack.c.l.b16 %v6283
    %v6434 = vunpack.c.h.b16 %v6283
    %v6435 = vunpack.c.l.b16 %v6284
    %v6436 = vunpack.c.h.b16 %v6284
    %v6437 = vunpack.c.l.b16 %v6285
    %v6438 = vunpack.c.h.b16 %v6285
    %v6439 = vunpack.c.l.b16 %v6286
    %v6440 = vunpack.c.h.b16 %v6286
    %v6441 = vunpack.c.l.b16 %v6287
    %v6442 = vunpack.c.h.b16 %v6287
    %v6443 = vunpack.c.l.b16 %v6288
    %v6444 = vunpack.c.h.b16 %v6288
    %v6445 = vunpack.c.l.b16 %v6289
    %v6446 = vunpack.c.h.b16 %v6289
    %v6447 = vunpack.c.l.b16 %v6290
    %v6448 = vunpack.c.h.b16 %v6290
    %v6449 = vunpack.c.l.b16 %v6291
    %v6450 = vunpack.c.h.b16 %v6291
    %v6451 = vunpack.c.l.b16 %v6292
    %v6452 = vunpack.c.h.b16 %v6292
    %v6453 = vunpack.c.l.b16 %v6293
    %v6454 = vunpack.c.h.b16 %v6293
    %v6455 = vunpack.c.l.b16 %v6294
    %v6456 = vunpack.c.h.b16 %v6294
    %v6457 = vunpack.c.l.b16 %v6295
    %v6458 = vunpack.c.h.b16 %v6295
    %v6459 = vunpack.c.l.b16 %v6296
    %v6460 = vunpack.c.h.b16 %v6296
    %v6461 = vunpack.c.l.b16 %v6297
    %v6462 = vunpack.c.h.b16 %v6297
    %v6463 = vunpack.c.l.b16 %v6298
    %v6464 = vunpack.c.h.b16 %v6298
    %v6465 = vunpack.c.l.b16 %v6299
    %v6466 = vunpack.c.h.b16 %v6299
    %v6467 = vunpack.c.l.b16 %v6300
    %v6468 = vunpack.c.h.b16 %v6300
    %v6469 = vunpack.c.l.b16 %v6301
    %v6470 = vunpack.c.h.b16 %v6301
    %v6471 = vunpack.c.l.b16 %v6302
    %v6472 = vunpack.c.h.b16 %v6302
    %v6473 = vunpack.c.l.b16 %v6303
    %v6474 = vunpack.c.h.b16 %v6303
    %v6475 = vunpack.c.l.b16 %v6304
    %v6476 = vunpack.c.h.b16 %v6304
    %v6477 = vunpack.c.l.b16 %v6305
    %v6478 = vunpack.c.h.b16 %v6305
    %v6479 = vunpack.c.l.b16 %v6306
    %v6480 = vunpack.c.h.b16 %v6306
    %v6481 = vunpack.c.l.b16 %v6307
    %v6482 = vunpack.c.h.b16 %v6307
    %v6483 = vunpack.c.l.b16 %v6308
    %v6484 = vunpack.c.h.b16 %v6308
    %v6485 = vunpack.c.l.b16 %v6309
    %v6486 = vunpack.c.h.b16 %v6309
    %v6487 = vunpack.c.l.b16 %v6310
    %v6488 = vunpack.c.h.b16 %v6310
    %v6489 = vunpack.c.l.b16 %v6311
    %v6490 = vunpack.c.h.b16 %v6311
    %v6491 = vunpack.c.l.b16 %v6312
    %v6492 = vunpack.c.h.b16 %v6312
    %v6493 = vunpack.c.l.b16 %v6313
    %v6494 = vunpack.c.h.b16 %v6313
    %v6495 = vunpack.c.l.b16 %v6314
    %v6496 = vunpack.c.h.b16 %v6314
    %v6497 = vunpack.c.l.b16 %v6315
    %v6498 = vunpack.c.h.b16 %v6315
    %v6499 = vunpack.c.l.b16 %v6316
    %v6500 = vunpack.c.h.b16 %v6316
    %v6501 = vunpack.c.l.b16 %v6317
    %v6502 = vunpack.c.h.b16 %v6317
    %v6503 = vunpack.c.l.b16 %v6318
    %v6504 = vunpack.c.h.b16 %v6318
    %v6505 = vunpack.c.l.b16 %v6319
    %v6506 = vunpack.c.h.b16 %v6319
    %v6507 = vunpack.c.l.b16 %v6320
    %v6508 = vunpack.c.h.b16 %v6320
    %v6509 = vunpack.c.l.b16 %v6321
    %v6510 = vunpack.c.h.b16 %v6321
    %v6511 = vunpack.c.l.b16 %v6322
    %v6512 = vunpack.c.h.b16 %v6322
    %v6513 = vunpack.c.l.b16 %v6323
    %v6514 = vunpack.c.h.b16 %v6323
    %v6515 = vunpack.c.l.b16 %v6324
    %v6516 = vunpack.c.h.b16 %v6324
    %v6517 = vunpack.c.l.b16 %v6325
    %v6518 = vunpack.c.h.b16 %v6325
    %v6519 = vunpack.c.l.b16 %v6326
    %v6520 = vunpack.c.h.b16 %v6326
    %v6521 = vunpack.c.l.b16 %v6327
    %v6522 = vunpack.c.h.b16 %v6327
    %v6523 = vunpack.c.l.b16 %v6328
    %v6524 = vunpack.c.h.b16 %v6328
    %v6525 = vunpack.c.l.b16 %v6329
    %v6526 = vunpack.c.h.b16 %v6329
    %v6527 = vunpack.c.l.b16 %v6330
    %v6528 = vunpack.c.h.b16 %v6330
    %v6529 = vunpack.c.l.b16 %v6331
    %v6530 = vunpack.c.h.b16 %v6331
    %v6531 = vpack.c.b16 %v6405, %v6403
    %v6532 = vpack.c.b16 %v6406, %v6404
    %v6533 = vpack.c.b16 %v6409, %v6407
    %v6534 = vpack.c.b16 %v6410, %v6408
    %v6535 = vpack.c.b16 %v6413, %v6411
    %v6536 = vpack.c.b16 %v6414, %v6412
    %v6537 = vpack.c.b16 %v6417, %v6415
    %v6538 = vpack.c.b16 %v6418, %v6416
    %v6539 = vpack.c.b16 %v6421, %v6419
    %v6540 = vpack.c.b16 %v6422, %v6420
    %v6541 = vpack.c.b16 %v6425, %v6423
    %v6542 = vpack.c.b16 %v6426, %v6424
    %v6543 = vpack.c.b16 %v6429, %v6427
    %v6544 = vpack.c.b16 %v6430, %v6428
    %v6545 = vpack.c.b16 %v6433, %v6431
    %v6546 = vpack.c.b16 %v6434, %v6432
    %v6547 = vpack.c.b16 %v6437, %v6435
    %v6548 = vpack.c.b16 %v6438, %v6436
    %v6549 = vpack.c.b16 %v6441, %v6439
    %v6550 = vpack.c.b16 %v6442, %v6440
    %v6551 = vpack.c.b16 %v6445, %v6443
    %v6552 = vpack.c.b16 %v6446, %v6444
    %v6553 = vpack.c.b16 %v6449, %v6447
    %v6554 = vpack.c.b16 %v6450, %v6448
    %v6555 = vpack.c.b16 %v6453, %v6451
    %v6556 = vpack.c.b16 %v6454, %v6452
    %v6557 = vpack.c.b16 %v6457, %v6455
    %v6558 = vpack.c.b16 %v6458, %v6456
    %v6559 = vpack.c.b16 %v6461, %v6459
    %v6560 = vpack.c.b16 %v6462, %v6460
    %v6561 = vpack.c.b16 %v6465, %v6463
    %v6562 = vpack.c.b16 %v6466, %v6464
    %v6563 = vpack.c.b16 %v6469, %v6467
    %v6564 = vpack.c.b16 %v6470, %v6468
    %v6565 = vpack.c.b16 %v6473, %v6471
    %v6566 = vpack.c.b16 %v6474, %v6472
    %v6567 = vpack.c.b16 %v6477, %v6475
    %v6568 = vpack.c.b16 %v6478, %v6476
    %v6569 = vpack.c.b16 %v6481, %v6479
    %v6570 = vpack.c.b16 %v6482, %v6480
    %v6571 = vpack.c.b16 %v6485, %v6483
    %v6572 = vpack.c.b16 %v6486, %v6484
    %v6573 = vpack.c.b16 %v6489, %v6487
    %v6574 = vpack.c.b16 %v6490, %v6488
    %v6575 = vpack.c.b16 %v6493, %v6491
    %v6576 = vpack.c.b16 %v6494, %v6492
    %v6577 = vpack.c.b16 %v6497, %v6495
    %v6578 = vpack.c.b16 %v6498, %v6496
    %v6579 = vpack.c.b16 %v6501, %v6499
    %v6580 = vpack.c.b16 %v6502, %v6500
    %v6581 = vpack.c.b16 %v6505, %v6503
    %v6582 = vpack.c.b16 %v6506, %v6504
    %v6583 = vpack.c.b16 %v6509, %v6507
    %v6584 = vpack.c.b16 %v6510, %v6508
    %v6585 = vpack.c.b16 %v6513, %v6511
    %v6586 = vpack.c.b16 %v6514, %v6512
    %v6587 = vpack.c.b16 %v6517, %v6515
    %v6588 = vpack.c.b16 %v6518, %v6516
    %v6589 = vpack.c.b16 %v6521, %v6519
    %v6590 = vpack.c.b16 %v6522, %v6520
    %v6591 = vpack.c.b16 %v6525, %v6523
    %v6592 = vpack.c.b16 %v6526, %v6524
    %v6593 = vpack.c.b16 %v6529, %v6527
    %v6594 = vpack.c.b16 %v6530, %v6528
    %6659 = vmatpush.bf16.msra.mxu0 %v6545
    %6660 = vmatpush.bf16.msra.mxu0 %v6543
    %6661 = vmatpush.bf16.msra.mxu0 %v6541
    %6662 = vmatpush.bf16.msra.mxu0 %v6539
    %6663 = vmatpush.bf16.msra.mxu0 %v6537
    %6664 = vmatpush.bf16.msra.mxu0 %v6535
    %6665 = vmatpush.bf16.msra.mxu0 %v6533
    %6666 = vmatpush.bf16.msra.mxu0 %v6531
    %6667 = vmatmul.bf16.gmra.mxu0 %v6263
    %v6668 = vpop.f32.mrf.mxu0
    %v6669 = vadd.f32 %v6335, %v6668
    %v6670 = vpop.f32.mrf.mxu0
    %v6671 = vadd.f32 %v6335, %v6670
    %6672 = vdwg.mxu0
    %6673 = vmatpush.bf16.msra.mxu0 %v6561
    %6674 = vmatpush.bf16.msra.mxu0 %v6559
    %6675 = vmatpush.bf16.msra.mxu0 %v6557
    %6676 = vmatpush.bf16.msra.mxu0 %v6555
    %6677 = vmatpush.bf16.msra.mxu0 %v6553
    %6678 = vmatpush.bf16.msra.mxu0 %v6551
    %6679 = vmatpush.bf16.msra.mxu0 %v6549
    %6680 = vmatpush.bf16.msra.mxu0 %v6547
    %6681 = vmatmul.bf16.gmra.mxu0 %v6264
    %v6682 = vpop.f32.mrf.mxu0
    %v6683 = vadd.f32 %v6669, %v6682
    %v6684 = vpop.f32.mrf.mxu0
    %v6685 = vadd.f32 %v6671, %v6684
    %6686 = vdwg.mxu0
    %6687 = vmatpush.bf16.msra.mxu0 %v6577
    %6688 = vmatpush.bf16.msra.mxu0 %v6575
    %6689 = vmatpush.bf16.msra.mxu0 %v6573
    %6690 = vmatpush.bf16.msra.mxu0 %v6571
    %6691 = vmatpush.bf16.msra.mxu0 %v6569
    %6692 = vmatpush.bf16.msra.mxu0 %v6567
    %6693 = vmatpush.bf16.msra.mxu0 %v6565
    %6694 = vmatpush.bf16.msra.mxu0 %v6563
    %6695 = vmatmul.bf16.gmra.mxu0 %v6265
    %v6696 = vpop.f32.mrf.mxu0
    %v6697 = vadd.f32 %v6683, %v6696
    %v6698 = vpop.f32.mrf.mxu0
    %v6699 = vadd.f32 %v6685, %v6698
    %6700 = vdwg.mxu0
    %6701 = vmatpush.bf16.msra.mxu0 %v6593
    %6702 = vmatpush.bf16.msra.mxu0 %v6591
    %6703 = vmatpush.bf16.msra.mxu0 %v6589
    %6704 = vmatpush.bf16.msra.mxu0 %v6587
    %6705 = vmatpush.bf16.msra.mxu0 %v6585
    %6706 = vmatpush.bf16.msra.mxu0 %v6583
    %6707 = vmatpush.bf16.msra.mxu0 %v6581
    %6708 = vmatpush.bf16.msra.mxu0 %v6579
    %6709 = vmatmul.bf16.gmra.mxu0 %v6266
    %v6710 = vpop.f32.mrf.mxu0
    %v6711 = vadd.f32 %v6697, %v6710
    %v6712 = vpop.f32.mrf.mxu0
    %v6713 = vadd.f32 %v6699, %v6712
    %6714 = vdwg.mxu0
    %6715 = vmatpush.bf16.msra.mxu0 %v6546
    %6716 = vmatpush.bf16.msra.mxu0 %v6544
    %6717 = vmatpush.bf16.msra.mxu0 %v6542
    %6718 = vmatpush.bf16.msra.mxu0 %v6540
    %6719 = vmatpush.bf16.msra.mxu0 %v6538
    %6720 = vmatpush.bf16.msra.mxu0 %v6536
    %6721 = vmatpush.bf16.msra.mxu0 %v6534
    %6722 = vmatpush.bf16.msra.mxu0 %v6532
    %6723 = vmatmul.bf16.gmra.mxu0 %v6263
    %v6724 = vpop.f32.mrf.mxu0
    %v6725 = vadd.f32 %v6336, %v6724
    %v6726 = vpop.f32.mrf.mxu0
    %v6727 = vadd.f32 %v6336, %v6726
    %6728 = vdwg.mxu0
    %6729 = vmatpush.bf16.msra.mxu0 %v6562
    %6730 = vmatpush.bf16.msra.mxu0 %v6560
    %6731 = vmatpush.bf16.msra.mxu0 %v6558
    %6732 = vmatpush.bf16.msra.mxu0 %v6556
    %6733 = vmatpush.bf16.msra.mxu0 %v6554
    %6734 = vmatpush.bf16.msra.mxu0 %v6552
    %6735 = vmatpush.bf16.msra.mxu0 %v6550
    %6736 = vmatpush.bf16.msra.mxu0 %v6548
    %6737 = vmatmul.bf16.gmra.mxu0 %v6264
    %v6738 = vpop.f32.mrf.mxu0
    %v6739 = vadd.f32 %v6725, %v6738
    %v6740 = vpop.f32.mrf.mxu0
    %v6741 = vadd.f32 %v6727, %v6740
    %6742 = vdwg.mxu0
    %6743 = vmatpush.bf16.msra.mxu0 %v6578
    %6744 = vmatpush.bf16.msra.mxu0 %v6576
    %6745 = vmatpush.bf16.msra.mxu0 %v6574
    %6746 = vmatpush.bf16.msra.mxu0 %v6572
    %6747 = vmatpush.bf16.msra.mxu0 %v6570
    %6748 = vmatpush.bf16.msra.mxu0 %v6568
    %6749 = vmatpush.bf16.msra.mxu0 %v6566
    %6750 = vmatpush.bf16.msra.mxu0 %v6564
    %6751 = vmatmul.bf16.gmra.mxu0 %v6265
    %v6752 = vpop.f32.mrf.mxu0
    %v6753 = vadd.f32 %v6739, %v6752
    %v6754 = vpop.f32.mrf.mxu0
    %v6755 = vadd.f32 %v6741, %v6754
    %6756 = vdwg.mxu0
    %6757 = vmatpush.bf16.msra.mxu0 %v6594
    %6758 = vmatpush.bf16.msra.mxu0 %v6592
    %6759 = vmatpush.bf16.msra.mxu0 %v6590
    %6760 = vmatpush.bf16.msra.mxu0 %v6588
    %6761 = vmatpush.bf16.msra.mxu0 %v6586
    %6762 = vmatpush.bf16.msra.mxu0 %v6584
    %6763 = vmatpush.bf16.msra.mxu0 %v6582
    %6764 = vmatpush.bf16.msra.mxu0 %v6580
    %6765 = vmatmul.bf16.gmra.mxu0 %v6266
    %v6766 = vpop.f32.mrf.mxu0
    %v6767 = vadd.f32 %v6753, %v6766
    %v6768 = vpop.f32.mrf.mxu0
    %v6769 = vadd.f32 %v6755, %v6768
    %6770 = vdwg.mxu0
    %v6771 = vadd.f32 %v5741, %v6711
    %v6772 = vadd.f32 %v5742, %v6767
    %v6773 = vadd.f32 %v5743, %v6713
    %v6774 = vadd.f32 %v5744, %v6769
    %s6775 = scalar_lea.vmem [#allocation25], 2
    %v6776 = vld [vmem:[%s6775] sm:$0x3]
    %s6777 = scalar_lea.vmem [#allocation26], 2
    %v6778 = vld [vmem:[%s6777] sm:$0x3]
    %v6779 = vadd.f32 %v6771, %v6772
    %6780 = vadd.xlane.f32.xlu0 %v6779
    %v6781 = vpop.xlane.xlu0 %6780
    %v6782 = vadd.f32 %v6773, %v6774
    %6783 = vadd.xlane.f32.xlu0 %v6782
    %v6784 = vpop.xlane.xlu0 %6783
    %v6785 = vmul.f32 %v6781, %v2327
    %v6786 = vmul.f32 %v6784, %v2327
    %v6787 = vmul.f32 %v6771, %v6771
    %v6788 = vmul.f32 %v6772, %v6772
    %v6789 = vmul.f32 %v6773, %v6773
    %v6790 = vmul.f32 %v6774, %v6774
    %v6791 = vadd.f32 %v6787, %v6788
    %6792 = vadd.xlane.f32.xlu0 %v6791
    %v6793 = vpop.xlane.xlu0 %6792
    %v6794 = vadd.f32 %v6789, %v6790
    %6795 = vadd.xlane.f32.xlu0 %v6794
    %v6796 = vpop.xlane.xlu0 %6795
    %v6797 = vmul.f32 %v6793, %v2327
    %v6798 = vmul.f32 %v6796, %v2327
    %v6799 = vmul.f32 %v6785, %v6785
    %v6800 = vmul.f32 %v6786, %v6786
    %v6801 = vsub.f32 %v6797, %v6799
    %v6802 = vsub.f32 %v6798, %v6800
    %v6803 = vsub.f32 %v6771, %v6785
    %v6804 = vsub.f32 %v6772, %v6785
    %v6805 = vsub.f32 %v6773, %v6786
    %v6806 = vsub.f32 %v6774, %v6786
    %v6807 = vadd.f32 %v6801, 1e-05
    %v6808 = vadd.f32 %v6802, 1e-05
    %v6809 = vrsqrt.pop %v6807
    %v6810 = vmul.f32 %v6809, %v6807
    %v6811 = vmul.f32 %v6810, %v6809
    %v6812 = vmul.f32 0.5, %v6811
    %v6813 = vsub.f32 1.5, %v6812
    %v6814 = vmul.f32 %v6809, %v6813
    %vm6815 = vweird.f32 %v6807
    %vm6816 = vweird.f32 %v6809
    %vm6817 = vmor %vm6815, %vm6816
    %v6818 = vsel %vm6817, %v6809, %v6814
    %v6819 = vrsqrt.pop %v6808
    %v6820 = vmul.f32 %v6819, %v6808
    %v6821 = vmul.f32 %v6820, %v6819
    %v6822 = vmul.f32 0.5, %v6821
    %v6823 = vsub.f32 1.5, %v6822
    %v6824 = vmul.f32 %v6819, %v6823
    %vm6825 = vweird.f32 %v6808
    %vm6826 = vweird.f32 %v6819
    %vm6827 = vmor %vm6825, %vm6826
    %v6828 = vsel %vm6827, %v6819, %v6824
    %v6829 = vmul.f32 %v6803, %v6818
    %v6830 = vmul.f32 %v6804, %v6818
    %v6831 = vmul.f32 %v6805, %v6828
    %v6832 = vmul.f32 %v6806, %v6828
    %v6834 = vperm.slane %v6776, 0
    %v6835 = vperm.slane %v6776, 1
    %v6838 = vmul.f32 %v6829, %v6834
    %v6839 = vmul.f32 %v6830, %v6835
    %v6840 = vmul.f32 %v6831, %v6834
    %v6841 = vmul.f32 %v6832, %v6835
    %v6843 = vperm.slane %v6778, 0
    %v6844 = vperm.slane %v6778, 1
    %v6847 = vadd.f32 %v6838, %v6843
    %v6848 = vadd.f32 %v6839, %v6844
    %v6849 = vadd.f32 %v6840, %v6843
    %v6850 = vadd.f32 %v6841, %v6844
    %v6851 = vpack.c.bf16 %v6849, %v6847
    %v6852 = vpack.c.bf16 %v6850, %v6848
    %s6853 = scalar_lea.vmem [#allocation5], 1536
    %v6854 = vld [vmem:[%s6853] sm:$0xff]
    %v6855 = vld [vmem:[%s6853 + $0x8] sm:$0xff]
    %v6856 = vld [vmem:[%s6853 + $0x10] sm:$0xff]
    %v6857 = vld [vmem:[%s6853 + $0x18] sm:$0xff]
    %v6858 = vld [vmem:[%s6853 + $0x20] sm:$0xff]
    %v6859 = vld [vmem:[%s6853 + $0x28] sm:$0xff]
    %v6860 = vld [vmem:[%s6853 + $0x30] sm:$0xff]
    %v6861 = vld [vmem:[%s6853 + $0x38] sm:$0xff]
    %v6862 = vld [vmem:[%s6853 + $0x40] sm:$0xff]
    %v6863 = vld [vmem:[%s6853 + $0x48] sm:$0xff]
    %v6864 = vld [vmem:[%s6853 + $0x50] sm:$0xff]
    %v6865 = vld [vmem:[%s6853 + $0x58] sm:$0xff]
    %v6866 = vld [vmem:[%s6853 + $0x60] sm:$0xff]
    %v6867 = vld [vmem:[%s6853 + $0x68] sm:$0xff]
    %v6868 = vld [vmem:[%s6853 + $0x70] sm:$0xff]
    %v6869 = vld [vmem:[%s6853 + $0x78] sm:$0xff]
    %v6870 = vld [vmem:[%s6853 + $0x80] sm:$0xff]
    %v6871 = vld [vmem:[%s6853 + $0x88] sm:$0xff]
    %v6872 = vld [vmem:[%s6853 + $0x90] sm:$0xff]
    %v6873 = vld [vmem:[%s6853 + $0x98] sm:$0xff]
    %v6874 = vld [vmem:[%s6853 + $0xa0] sm:$0xff]
    %v6875 = vld [vmem:[%s6853 + $0xa8] sm:$0xff]
    %v6876 = vld [vmem:[%s6853 + $0xb0] sm:$0xff]
    %v6877 = vld [vmem:[%s6853 + $0xb8] sm:$0xff]
    %v6878 = vld [vmem:[%s6853 + $0xc0] sm:$0xff]
    %v6879 = vld [vmem:[%s6853 + $0xc8] sm:$0xff]
    %v6880 = vld [vmem:[%s6853 + $0xd0] sm:$0xff]
    %v6881 = vld [vmem:[%s6853 + $0xd8] sm:$0xff]
    %v6882 = vld [vmem:[%s6853 + $0xe0] sm:$0xff]
    %v6883 = vld [vmem:[%s6853 + $0xe8] sm:$0xff]
    %v6884 = vld [vmem:[%s6853 + $0xf0] sm:$0xff]
    %v6885 = vld [vmem:[%s6853 + $0xf8] sm:$0xff]
    %v6886 = vld [vmem:[%s6853 + $0x100] sm:$0xff]
    %v6887 = vld [vmem:[%s6853 + $0x108] sm:$0xff]
    %v6888 = vld [vmem:[%s6853 + $0x110] sm:$0xff]
    %v6889 = vld [vmem:[%s6853 + $0x118] sm:$0xff]
    %v6890 = vld [vmem:[%s6853 + $0x120] sm:$0xff]
    %v6891 = vld [vmem:[%s6853 + $0x128] sm:$0xff]
    %v6892 = vld [vmem:[%s6853 + $0x130] sm:$0xff]
    %v6893 = vld [vmem:[%s6853 + $0x138] sm:$0xff]
    %v6894 = vld [vmem:[%s6853 + $0x140] sm:$0xff]
    %v6895 = vld [vmem:[%s6853 + $0x148] sm:$0xff]
    %v6896 = vld [vmem:[%s6853 + $0x150] sm:$0xff]
    %v6897 = vld [vmem:[%s6853 + $0x158] sm:$0xff]
    %v6898 = vld [vmem:[%s6853 + $0x160] sm:$0xff]
    %v6899 = vld [vmem:[%s6853 + $0x168] sm:$0xff]
    %v6900 = vld [vmem:[%s6853 + $0x170] sm:$0xff]
    %v6901 = vld [vmem:[%s6853 + $0x178] sm:$0xff]
    %v6902 = vld [vmem:[%s6853 + $0x180] sm:$0xff]
    %v6903 = vld [vmem:[%s6853 + $0x188] sm:$0xff]
    %v6904 = vld [vmem:[%s6853 + $0x190] sm:$0xff]
    %v6905 = vld [vmem:[%s6853 + $0x198] sm:$0xff]
    %v6906 = vld [vmem:[%s6853 + $0x1a0] sm:$0xff]
    %v6907 = vld [vmem:[%s6853 + $0x1a8] sm:$0xff]
    %v6908 = vld [vmem:[%s6853 + $0x1b0] sm:$0xff]
    %v6909 = vld [vmem:[%s6853 + $0x1b8] sm:$0xff]
    %v6910 = vld [vmem:[%s6853 + $0x1c0] sm:$0xff]
    %v6911 = vld [vmem:[%s6853 + $0x1c8] sm:$0xff]
    %v6912 = vld [vmem:[%s6853 + $0x1d0] sm:$0xff]
    %v6913 = vld [vmem:[%s6853 + $0x1d8] sm:$0xff]
    %v6914 = vld [vmem:[%s6853 + $0x1e0] sm:$0xff]
    %v6915 = vld [vmem:[%s6853 + $0x1e8] sm:$0xff]
    %v6916 = vld [vmem:[%s6853 + $0x1f0] sm:$0xff]
    %v6917 = vld [vmem:[%s6853 + $0x1f8] sm:$0xff]
    %v6918 = vld [vmem:[%s6853 + $0x200] sm:$0xff]
    %v6919 = vld [vmem:[%s6853 + $0x208] sm:$0xff]
    %v6920 = vld [vmem:[%s6853 + $0x210] sm:$0xff]
    %v6921 = vld [vmem:[%s6853 + $0x218] sm:$0xff]
    %v6922 = vld [vmem:[%s6853 + $0x220] sm:$0xff]
    %v6923 = vld [vmem:[%s6853 + $0x228] sm:$0xff]
    %v6924 = vld [vmem:[%s6853 + $0x230] sm:$0xff]
    %v6925 = vld [vmem:[%s6853 + $0x238] sm:$0xff]
    %v6926 = vld [vmem:[%s6853 + $0x240] sm:$0xff]
    %v6927 = vld [vmem:[%s6853 + $0x248] sm:$0xff]
    %v6928 = vld [vmem:[%s6853 + $0x250] sm:$0xff]
    %v6929 = vld [vmem:[%s6853 + $0x258] sm:$0xff]
    %v6930 = vld [vmem:[%s6853 + $0x260] sm:$0xff]
    %v6931 = vld [vmem:[%s6853 + $0x268] sm:$0xff]
    %v6932 = vld [vmem:[%s6853 + $0x270] sm:$0xff]
    %v6933 = vld [vmem:[%s6853 + $0x278] sm:$0xff]
    %v6934 = vld [vmem:[%s6853 + $0x280] sm:$0xff]
    %v6935 = vld [vmem:[%s6853 + $0x288] sm:$0xff]
    %v6936 = vld [vmem:[%s6853 + $0x290] sm:$0xff]
    %v6937 = vld [vmem:[%s6853 + $0x298] sm:$0xff]
    %v6938 = vld [vmem:[%s6853 + $0x2a0] sm:$0xff]
    %v6939 = vld [vmem:[%s6853 + $0x2a8] sm:$0xff]
    %v6940 = vld [vmem:[%s6853 + $0x2b0] sm:$0xff]
    %v6941 = vld [vmem:[%s6853 + $0x2b8] sm:$0xff]
    %v6942 = vld [vmem:[%s6853 + $0x2c0] sm:$0xff]
    %v6943 = vld [vmem:[%s6853 + $0x2c8] sm:$0xff]
    %v6944 = vld [vmem:[%s6853 + $0x2d0] sm:$0xff]
    %v6945 = vld [vmem:[%s6853 + $0x2d8] sm:$0xff]
    %v6946 = vld [vmem:[%s6853 + $0x2e0] sm:$0xff]
    %v6947 = vld [vmem:[%s6853 + $0x2e8] sm:$0xff]
    %v6948 = vld [vmem:[%s6853 + $0x2f0] sm:$0xff]
    %v6949 = vld [vmem:[%s6853 + $0x2f8] sm:$0xff]
    %s6950 = scalar_lea.vmem [#allocation7], 12
    %v6951 = vld [vmem:[%s6950] sm:$0x3f]
    %v6953 = vperm.slane %v6951, 0
    %v6954 = vperm.slane %v6951, 1
    %v6955 = vperm.slane %v6951, 2
    %v6956 = vperm.slane %v6951, 3
    %v6957 = vperm.slane %v6951, 4
    %v6958 = vperm.slane %v6951, 5
    %v7061 = vunpack.c.l.b16 %v6854
    %v7062 = vunpack.c.h.b16 %v6854
    %v7063 = vunpack.c.l.b16 %v6855
    %v7064 = vunpack.c.h.b16 %v6855
    %v7065 = vunpack.c.l.b16 %v6856
    %v7066 = vunpack.c.h.b16 %v6856
    %v7067 = vunpack.c.l.b16 %v6857
    %v7068 = vunpack.c.h.b16 %v6857
    %v7069 = vunpack.c.l.b16 %v6858
    %v7070 = vunpack.c.h.b16 %v6858
    %v7071 = vunpack.c.l.b16 %v6859
    %v7072 = vunpack.c.h.b16 %v6859
    %v7073 = vunpack.c.l.b16 %v6860
    %v7074 = vunpack.c.h.b16 %v6860
    %v7075 = vunpack.c.l.b16 %v6861
    %v7076 = vunpack.c.h.b16 %v6861
    %v7077 = vunpack.c.l.b16 %v6862
    %v7078 = vunpack.c.h.b16 %v6862
    %v7079 = vunpack.c.l.b16 %v6863
    %v7080 = vunpack.c.h.b16 %v6863
    %v7081 = vunpack.c.l.b16 %v6864
    %v7082 = vunpack.c.h.b16 %v6864
    %v7083 = vunpack.c.l.b16 %v6865
    %v7084 = vunpack.c.h.b16 %v6865
    %v7085 = vunpack.c.l.b16 %v6866
    %v7086 = vunpack.c.h.b16 %v6866
    %v7087 = vunpack.c.l.b16 %v6867
    %v7088 = vunpack.c.h.b16 %v6867
    %v7089 = vunpack.c.l.b16 %v6868
    %v7090 = vunpack.c.h.b16 %v6868
    %v7091 = vunpack.c.l.b16 %v6869
    %v7092 = vunpack.c.h.b16 %v6869
    %v7093 = vunpack.c.l.b16 %v6870
    %v7094 = vunpack.c.h.b16 %v6870
    %v7095 = vunpack.c.l.b16 %v6871
    %v7096 = vunpack.c.h.b16 %v6871
    %v7097 = vunpack.c.l.b16 %v6872
    %v7098 = vunpack.c.h.b16 %v6872
    %v7099 = vunpack.c.l.b16 %v6873
    %v7100 = vunpack.c.h.b16 %v6873
    %v7101 = vunpack.c.l.b16 %v6874
    %v7102 = vunpack.c.h.b16 %v6874
    %v7103 = vunpack.c.l.b16 %v6875
    %v7104 = vunpack.c.h.b16 %v6875
    %v7105 = vunpack.c.l.b16 %v6876
    %v7106 = vunpack.c.h.b16 %v6876
    %v7107 = vunpack.c.l.b16 %v6877
    %v7108 = vunpack.c.h.b16 %v6877
    %v7109 = vunpack.c.l.b16 %v6878
    %v7110 = vunpack.c.h.b16 %v6878
    %v7111 = vunpack.c.l.b16 %v6879
    %v7112 = vunpack.c.h.b16 %v6879
    %v7113 = vunpack.c.l.b16 %v6880
    %v7114 = vunpack.c.h.b16 %v6880
    %v7115 = vunpack.c.l.b16 %v6881
    %v7116 = vunpack.c.h.b16 %v6881
    %v7117 = vunpack.c.l.b16 %v6882
    %v7118 = vunpack.c.h.b16 %v6882
    %v7119 = vunpack.c.l.b16 %v6883
    %v7120 = vunpack.c.h.b16 %v6883
    %v7121 = vunpack.c.l.b16 %v6884
    %v7122 = vunpack.c.h.b16 %v6884
    %v7123 = vunpack.c.l.b16 %v6885
    %v7124 = vunpack.c.h.b16 %v6885
    %v7125 = vunpack.c.l.b16 %v6886
    %v7126 = vunpack.c.h.b16 %v6886
    %v7127 = vunpack.c.l.b16 %v6887
    %v7128 = vunpack.c.h.b16 %v6887
    %v7129 = vunpack.c.l.b16 %v6888
    %v7130 = vunpack.c.h.b16 %v6888
    %v7131 = vunpack.c.l.b16 %v6889
    %v7132 = vunpack.c.h.b16 %v6889
    %v7133 = vunpack.c.l.b16 %v6890
    %v7134 = vunpack.c.h.b16 %v6890
    %v7135 = vunpack.c.l.b16 %v6891
    %v7136 = vunpack.c.h.b16 %v6891
    %v7137 = vunpack.c.l.b16 %v6892
    %v7138 = vunpack.c.h.b16 %v6892
    %v7139 = vunpack.c.l.b16 %v6893
    %v7140 = vunpack.c.h.b16 %v6893
    %v7141 = vunpack.c.l.b16 %v6894
    %v7142 = vunpack.c.h.b16 %v6894
    %v7143 = vunpack.c.l.b16 %v6895
    %v7144 = vunpack.c.h.b16 %v6895
    %v7145 = vunpack.c.l.b16 %v6896
    %v7146 = vunpack.c.h.b16 %v6896
    %v7147 = vunpack.c.l.b16 %v6897
    %v7148 = vunpack.c.h.b16 %v6897
    %v7149 = vunpack.c.l.b16 %v6898
    %v7150 = vunpack.c.h.b16 %v6898
    %v7151 = vunpack.c.l.b16 %v6899
    %v7152 = vunpack.c.h.b16 %v6899
    %v7153 = vunpack.c.l.b16 %v6900
    %v7154 = vunpack.c.h.b16 %v6900
    %v7155 = vunpack.c.l.b16 %v6901
    %v7156 = vunpack.c.h.b16 %v6901
    %v7157 = vunpack.c.l.b16 %v6902
    %v7158 = vunpack.c.h.b16 %v6902
    %v7159 = vunpack.c.l.b16 %v6903
    %v7160 = vunpack.c.h.b16 %v6903
    %v7161 = vunpack.c.l.b16 %v6904
    %v7162 = vunpack.c.h.b16 %v6904
    %v7163 = vunpack.c.l.b16 %v6905
    %v7164 = vunpack.c.h.b16 %v6905
    %v7165 = vunpack.c.l.b16 %v6906
    %v7166 = vunpack.c.h.b16 %v6906
    %v7167 = vunpack.c.l.b16 %v6907
    %v7168 = vunpack.c.h.b16 %v6907
    %v7169 = vunpack.c.l.b16 %v6908
    %v7170 = vunpack.c.h.b16 %v6908
    %v7171 = vunpack.c.l.b16 %v6909
    %v7172 = vunpack.c.h.b16 %v6909
    %v7173 = vunpack.c.l.b16 %v6910
    %v7174 = vunpack.c.h.b16 %v6910
    %v7175 = vunpack.c.l.b16 %v6911
    %v7176 = vunpack.c.h.b16 %v6911
    %v7177 = vunpack.c.l.b16 %v6912
    %v7178 = vunpack.c.h.b16 %v6912
    %v7179 = vunpack.c.l.b16 %v6913
    %v7180 = vunpack.c.h.b16 %v6913
    %v7181 = vunpack.c.l.b16 %v6914
    %v7182 = vunpack.c.h.b16 %v6914
    %v7183 = vunpack.c.l.b16 %v6915
    %v7184 = vunpack.c.h.b16 %v6915
    %v7185 = vunpack.c.l.b16 %v6916
    %v7186 = vunpack.c.h.b16 %v6916
    %v7187 = vunpack.c.l.b16 %v6917
    %v7188 = vunpack.c.h.b16 %v6917
    %v7189 = vunpack.c.l.b16 %v6918
    %v7190 = vunpack.c.h.b16 %v6918
    %v7191 = vunpack.c.l.b16 %v6919
    %v7192 = vunpack.c.h.b16 %v6919
    %v7193 = vunpack.c.l.b16 %v6920
    %v7194 = vunpack.c.h.b16 %v6920
    %v7195 = vunpack.c.l.b16 %v6921
    %v7196 = vunpack.c.h.b16 %v6921
    %v7197 = vunpack.c.l.b16 %v6922
    %v7198 = vunpack.c.h.b16 %v6922
    %v7199 = vunpack.c.l.b16 %v6923
    %v7200 = vunpack.c.h.b16 %v6923
    %v7201 = vunpack.c.l.b16 %v6924
    %v7202 = vunpack.c.h.b16 %v6924
    %v7203 = vunpack.c.l.b16 %v6925
    %v7204 = vunpack.c.h.b16 %v6925
    %v7205 = vunpack.c.l.b16 %v6926
    %v7206 = vunpack.c.h.b16 %v6926
    %v7207 = vunpack.c.l.b16 %v6927
    %v7208 = vunpack.c.h.b16 %v6927
    %v7209 = vunpack.c.l.b16 %v6928
    %v7210 = vunpack.c.h.b16 %v6928
    %v7211 = vunpack.c.l.b16 %v6929
    %v7212 = vunpack.c.h.b16 %v6929
    %v7213 = vunpack.c.l.b16 %v6930
    %v7214 = vunpack.c.h.b16 %v6930
    %v7215 = vunpack.c.l.b16 %v6931
    %v7216 = vunpack.c.h.b16 %v6931
    %v7217 = vunpack.c.l.b16 %v6932
    %v7218 = vunpack.c.h.b16 %v6932
    %v7219 = vunpack.c.l.b16 %v6933
    %v7220 = vunpack.c.h.b16 %v6933
    %v7221 = vunpack.c.l.b16 %v6934
    %v7222 = vunpack.c.h.b16 %v6934
    %v7223 = vunpack.c.l.b16 %v6935
    %v7224 = vunpack.c.h.b16 %v6935
    %v7225 = vunpack.c.l.b16 %v6936
    %v7226 = vunpack.c.h.b16 %v6936
    %v7227 = vunpack.c.l.b16 %v6937
    %v7228 = vunpack.c.h.b16 %v6937
    %v7229 = vunpack.c.l.b16 %v6938
    %v7230 = vunpack.c.h.b16 %v6938
    %v7231 = vunpack.c.l.b16 %v6939
    %v7232 = vunpack.c.h.b16 %v6939
    %v7233 = vunpack.c.l.b16 %v6940
    %v7234 = vunpack.c.h.b16 %v6940
    %v7235 = vunpack.c.l.b16 %v6941
    %v7236 = vunpack.c.h.b16 %v6941
    %v7237 = vunpack.c.l.b16 %v6942
    %v7238 = vunpack.c.h.b16 %v6942
    %v7239 = vunpack.c.l.b16 %v6943
    %v7240 = vunpack.c.h.b16 %v6943
    %v7241 = vunpack.c.l.b16 %v6944
    %v7242 = vunpack.c.h.b16 %v6944
    %v7243 = vunpack.c.l.b16 %v6945
    %v7244 = vunpack.c.h.b16 %v6945
    %v7245 = vunpack.c.l.b16 %v6946
    %v7246 = vunpack.c.h.b16 %v6946
    %v7247 = vunpack.c.l.b16 %v6947
    %v7248 = vunpack.c.h.b16 %v6947
    %v7249 = vunpack.c.l.b16 %v6948
    %v7250 = vunpack.c.h.b16 %v6948
    %v7251 = vunpack.c.l.b16 %v6949
    %v7252 = vunpack.c.h.b16 %v6949
    %v7253 = vpack.c.b16 %v7067, %v7061
    %v7254 = vpack.c.b16 %v7068, %v7062
    %v7255 = vpack.c.b16 %v7069, %v7063
    %v7256 = vpack.c.b16 %v7070, %v7064
    %v7257 = vpack.c.b16 %v7071, %v7065
    %v7258 = vpack.c.b16 %v7072, %v7066
    %v7259 = vpack.c.b16 %v7079, %v7073
    %v7260 = vpack.c.b16 %v7080, %v7074
    %v7261 = vpack.c.b16 %v7081, %v7075
    %v7262 = vpack.c.b16 %v7082, %v7076
    %v7263 = vpack.c.b16 %v7083, %v7077
    %v7264 = vpack.c.b16 %v7084, %v7078
    %v7265 = vpack.c.b16 %v7091, %v7085
    %v7266 = vpack.c.b16 %v7092, %v7086
    %v7267 = vpack.c.b16 %v7093, %v7087
    %v7268 = vpack.c.b16 %v7094, %v7088
    %v7269 = vpack.c.b16 %v7095, %v7089
    %v7270 = vpack.c.b16 %v7096, %v7090
    %v7271 = vpack.c.b16 %v7103, %v7097
    %v7272 = vpack.c.b16 %v7104, %v7098
    %v7273 = vpack.c.b16 %v7105, %v7099
    %v7274 = vpack.c.b16 %v7106, %v7100
    %v7275 = vpack.c.b16 %v7107, %v7101
    %v7276 = vpack.c.b16 %v7108, %v7102
    %v7277 = vpack.c.b16 %v7115, %v7109
    %v7278 = vpack.c.b16 %v7116, %v7110
    %v7279 = vpack.c.b16 %v7117, %v7111
    %v7280 = vpack.c.b16 %v7118, %v7112
    %v7281 = vpack.c.b16 %v7119, %v7113
    %v7282 = vpack.c.b16 %v7120, %v7114
    %v7283 = vpack.c.b16 %v7127, %v7121
    %v7284 = vpack.c.b16 %v7128, %v7122
    %v7285 = vpack.c.b16 %v7129, %v7123
    %v7286 = vpack.c.b16 %v7130, %v7124
    %v7287 = vpack.c.b16 %v7131, %v7125
    %v7288 = vpack.c.b16 %v7132, %v7126
    %v7289 = vpack.c.b16 %v7139, %v7133
    %v7290 = vpack.c.b16 %v7140, %v7134
    %v7291 = vpack.c.b16 %v7141, %v7135
    %v7292 = vpack.c.b16 %v7142, %v7136
    %v7293 = vpack.c.b16 %v7143, %v7137
    %v7294 = vpack.c.b16 %v7144, %v7138
    %v7295 = vpack.c.b16 %v7151, %v7145
    %v7296 = vpack.c.b16 %v7152, %v7146
    %v7297 = vpack.c.b16 %v7153, %v7147
    %v7298 = vpack.c.b16 %v7154, %v7148
    %v7299 = vpack.c.b16 %v7155, %v7149
    %v7300 = vpack.c.b16 %v7156, %v7150
    %v7301 = vpack.c.b16 %v7163, %v7157
    %v7302 = vpack.c.b16 %v7164, %v7158
    %v7303 = vpack.c.b16 %v7165, %v7159
    %v7304 = vpack.c.b16 %v7166, %v7160
    %v7305 = vpack.c.b16 %v7167, %v7161
    %v7306 = vpack.c.b16 %v7168, %v7162
    %v7307 = vpack.c.b16 %v7175, %v7169
    %v7308 = vpack.c.b16 %v7176, %v7170
    %v7309 = vpack.c.b16 %v7177, %v7171
    %v7310 = vpack.c.b16 %v7178, %v7172
    %v7311 = vpack.c.b16 %v7179, %v7173
    %v7312 = vpack.c.b16 %v7180, %v7174
    %v7313 = vpack.c.b16 %v7187, %v7181
    %v7314 = vpack.c.b16 %v7188, %v7182
    %v7315 = vpack.c.b16 %v7189, %v7183
    %v7316 = vpack.c.b16 %v7190, %v7184
    %v7317 = vpack.c.b16 %v7191, %v7185
    %v7318 = vpack.c.b16 %v7192, %v7186
    %v7319 = vpack.c.b16 %v7199, %v7193
    %v7320 = vpack.c.b16 %v7200, %v7194
    %v7321 = vpack.c.b16 %v7201, %v7195
    %v7322 = vpack.c.b16 %v7202, %v7196
    %v7323 = vpack.c.b16 %v7203, %v7197
    %v7324 = vpack.c.b16 %v7204, %v7198
    %v7325 = vpack.c.b16 %v7211, %v7205
    %v7326 = vpack.c.b16 %v7212, %v7206
    %v7327 = vpack.c.b16 %v7213, %v7207
    %v7328 = vpack.c.b16 %v7214, %v7208
    %v7329 = vpack.c.b16 %v7215, %v7209
    %v7330 = vpack.c.b16 %v7216, %v7210
    %v7331 = vpack.c.b16 %v7223, %v7217
    %v7332 = vpack.c.b16 %v7224, %v7218
    %v7333 = vpack.c.b16 %v7225, %v7219
    %v7334 = vpack.c.b16 %v7226, %v7220
    %v7335 = vpack.c.b16 %v7227, %v7221
    %v7336 = vpack.c.b16 %v7228, %v7222
    %v7337 = vpack.c.b16 %v7235, %v7229
    %v7338 = vpack.c.b16 %v7236, %v7230
    %v7339 = vpack.c.b16 %v7237, %v7231
    %v7340 = vpack.c.b16 %v7238, %v7232
    %v7341 = vpack.c.b16 %v7239, %v7233
    %v7342 = vpack.c.b16 %v7240, %v7234
    %v7343 = vpack.c.b16 %v7247, %v7241
    %v7344 = vpack.c.b16 %v7248, %v7242
    %v7345 = vpack.c.b16 %v7249, %v7243
    %v7346 = vpack.c.b16 %v7250, %v7244
    %v7347 = vpack.c.b16 %v7251, %v7245
    %v7348 = vpack.c.b16 %v7252, %v7246
    %7445 = vmatpush.bf16.msra.mxu0 %v7295
    %7446 = vmatpush.bf16.msra.mxu0 %v7289
    %7447 = vmatpush.bf16.msra.mxu0 %v7283
    %7448 = vmatpush.bf16.msra.mxu0 %v7277
    %7449 = vmatpush.bf16.msra.mxu0 %v7271
    %7450 = vmatpush.bf16.msra.mxu0 %v7265
    %7451 = vmatpush.bf16.msra.mxu0 %v7259
    %7452 = vmatpush.bf16.msra.mxu0 %v7253
    %7453 = vmatmul.bf16.gmra.mxu0 %v6851
    %v7454 = vpop.f32.mrf.mxu0
    %v7455 = vadd.f32 %v6953, %v7454
    %v7456 = vpop.f32.mrf.mxu0
    %v7457 = vadd.f32 %v6953, %v7456
    %7458 = vdwg.mxu0
    %7459 = vmatpush.bf16.msra.mxu0 %v7343
    %7460 = vmatpush.bf16.msra.mxu0 %v7337
    %7461 = vmatpush.bf16.msra.mxu0 %v7331
    %7462 = vmatpush.bf16.msra.mxu0 %v7325
    %7463 = vmatpush.bf16.msra.mxu0 %v7319
    %7464 = vmatpush.bf16.msra.mxu0 %v7313
    %7465 = vmatpush.bf16.msra.mxu0 %v7307
    %7466 = vmatpush.bf16.msra.mxu0 %v7301
    %7467 = vmatmul.bf16.gmra.mxu0 %v6852
    %v7468 = vpop.f32.mrf.mxu0
    %v7469 = vadd.f32 %v7455, %v7468
    %v7470 = vpop.f32.mrf.mxu0
    %v7471 = vadd.f32 %v7457, %v7470
    %7472 = vdwg.mxu0
    %7473 = vmatpush.bf16.msra.mxu0 %v7296
    %7474 = vmatpush.bf16.msra.mxu0 %v7290
    %7475 = vmatpush.bf16.msra.mxu0 %v7284
    %7476 = vmatpush.bf16.msra.mxu0 %v7278
    %7477 = vmatpush.bf16.msra.mxu0 %v7272
    %7478 = vmatpush.bf16.msra.mxu0 %v7266
    %7479 = vmatpush.bf16.msra.mxu0 %v7260
    %7480 = vmatpush.bf16.msra.mxu0 %v7254
    %7481 = vmatmul.bf16.gmra.mxu0 %v6851
    %v7482 = vpop.f32.mrf.mxu0
    %v7483 = vadd.f32 %v6954, %v7482
    %v7484 = vpop.f32.mrf.mxu0
    %v7485 = vadd.f32 %v6954, %v7484
    %7486 = vdwg.mxu0
    %7487 = vmatpush.bf16.msra.mxu0 %v7344
    %7488 = vmatpush.bf16.msra.mxu0 %v7338
    %7489 = vmatpush.bf16.msra.mxu0 %v7332
    %7490 = vmatpush.bf16.msra.mxu0 %v7326
    %7491 = vmatpush.bf16.msra.mxu0 %v7320
    %7492 = vmatpush.bf16.msra.mxu0 %v7314
    %7493 = vmatpush.bf16.msra.mxu0 %v7308
    %7494 = vmatpush.bf16.msra.mxu0 %v7302
    %7495 = vmatmul.bf16.gmra.mxu0 %v6852
    %v7496 = vpop.f32.mrf.mxu0
    %v7497 = vadd.f32 %v7483, %v7496
    %v7498 = vpop.f32.mrf.mxu0
    %v7499 = vadd.f32 %v7485, %v7498
    %7500 = vdwg.mxu0
    %7501 = vmatpush.bf16.msra.mxu0 %v7297
    %7502 = vmatpush.bf16.msra.mxu0 %v7291
    %7503 = vmatpush.bf16.msra.mxu0 %v7285
    %7504 = vmatpush.bf16.msra.mxu0 %v7279
    %7505 = vmatpush.bf16.msra.mxu0 %v7273
    %7506 = vmatpush.bf16.msra.mxu0 %v7267
    %7507 = vmatpush.bf16.msra.mxu0 %v7261
    %7508 = vmatpush.bf16.msra.mxu0 %v7255
    %7509 = vmatmul.bf16.gmra.mxu0 %v6851
    %v7510 = vpop.f32.mrf.mxu0
    %v7511 = vadd.f32 %v6955, %v7510
    %v7512 = vpop.f32.mrf.mxu0
    %v7513 = vadd.f32 %v6955, %v7512
    %7514 = vdwg.mxu0
    %7515 = vmatpush.bf16.msra.mxu0 %v7345
    %7516 = vmatpush.bf16.msra.mxu0 %v7339
    %7517 = vmatpush.bf16.msra.mxu0 %v7333
    %7518 = vmatpush.bf16.msra.mxu0 %v7327
    %7519 = vmatpush.bf16.msra.mxu0 %v7321
    %7520 = vmatpush.bf16.msra.mxu0 %v7315
    %7521 = vmatpush.bf16.msra.mxu0 %v7309
    %7522 = vmatpush.bf16.msra.mxu0 %v7303
    %7523 = vmatmul.bf16.gmra.mxu0 %v6852
    %v7524 = vpop.f32.mrf.mxu0
    %v7525 = vadd.f32 %v7511, %v7524
    %v7526 = vpop.f32.mrf.mxu0
    %v7527 = vadd.f32 %v7513, %v7526
    %7528 = vdwg.mxu0
    %7529 = vmatpush.bf16.msra.mxu0 %v7298
    %7530 = vmatpush.bf16.msra.mxu0 %v7292
    %7531 = vmatpush.bf16.msra.mxu0 %v7286
    %7532 = vmatpush.bf16.msra.mxu0 %v7280
    %7533 = vmatpush.bf16.msra.mxu0 %v7274
    %7534 = vmatpush.bf16.msra.mxu0 %v7268
    %7535 = vmatpush.bf16.msra.mxu0 %v7262
    %7536 = vmatpush.bf16.msra.mxu0 %v7256
    %7537 = vmatmul.bf16.gmra.mxu0 %v6851
    %v7538 = vpop.f32.mrf.mxu0
    %v7539 = vadd.f32 %v6956, %v7538
    %v7540 = vpop.f32.mrf.mxu0
    %v7541 = vadd.f32 %v6956, %v7540
    %7542 = vdwg.mxu0
    %7543 = vmatpush.bf16.msra.mxu0 %v7346
    %7544 = vmatpush.bf16.msra.mxu0 %v7340
    %7545 = vmatpush.bf16.msra.mxu0 %v7334
    %7546 = vmatpush.bf16.msra.mxu0 %v7328
    %7547 = vmatpush.bf16.msra.mxu0 %v7322
    %7548 = vmatpush.bf16.msra.mxu0 %v7316
    %7549 = vmatpush.bf16.msra.mxu0 %v7310
    %7550 = vmatpush.bf16.msra.mxu0 %v7304
    %7551 = vmatmul.bf16.gmra.mxu0 %v6852
    %v7552 = vpop.f32.mrf.mxu0
    %v7553 = vadd.f32 %v7539, %v7552
    %v7554 = vpop.f32.mrf.mxu0
    %v7555 = vadd.f32 %v7541, %v7554
    %7556 = vdwg.mxu0
    %7557 = vmatpush.bf16.msra.mxu0 %v7299
    %7558 = vmatpush.bf16.msra.mxu0 %v7293
    %7559 = vmatpush.bf16.msra.mxu0 %v7287
    %7560 = vmatpush.bf16.msra.mxu0 %v7281
    %7561 = vmatpush.bf16.msra.mxu0 %v7275
    %7562 = vmatpush.bf16.msra.mxu0 %v7269
    %7563 = vmatpush.bf16.msra.mxu0 %v7263
    %7564 = vmatpush.bf16.msra.mxu0 %v7257
    %7565 = vmatmul.bf16.gmra.mxu0 %v6851
    %v7566 = vpop.f32.mrf.mxu0
    %v7567 = vadd.f32 %v6957, %v7566
    %v7568 = vpop.f32.mrf.mxu0
    %v7569 = vadd.f32 %v6957, %v7568
    %7570 = vdwg.mxu0
    %7571 = vmatpush.bf16.msra.mxu0 %v7347
    %7572 = vmatpush.bf16.msra.mxu0 %v7341
    %7573 = vmatpush.bf16.msra.mxu0 %v7335
    %7574 = vmatpush.bf16.msra.mxu0 %v7329
    %7575 = vmatpush.bf16.msra.mxu0 %v7323
    %7576 = vmatpush.bf16.msra.mxu0 %v7317
    %7577 = vmatpush.bf16.msra.mxu0 %v7311
    %7578 = vmatpush.bf16.msra.mxu0 %v7305
    %7579 = vmatmul.bf16.gmra.mxu0 %v6852
    %v7580 = vpop.f32.mrf.mxu0
    %v7581 = vadd.f32 %v7567, %v7580
    %v7582 = vpop.f32.mrf.mxu0
    %v7583 = vadd.f32 %v7569, %v7582
    %7584 = vdwg.mxu0
    %7585 = vmatpush.bf16.msra.mxu0 %v7300
    %7586 = vmatpush.bf16.msra.mxu0 %v7294
    %7587 = vmatpush.bf16.msra.mxu0 %v7288
    %7588 = vmatpush.bf16.msra.mxu0 %v7282
    %7589 = vmatpush.bf16.msra.mxu0 %v7276
    %7590 = vmatpush.bf16.msra.mxu0 %v7270
    %7591 = vmatpush.bf16.msra.mxu0 %v7264
    %7592 = vmatpush.bf16.msra.mxu0 %v7258
    %7593 = vmatmul.bf16.gmra.mxu0 %v6851
    %v7594 = vpop.f32.mrf.mxu0
    %v7595 = vadd.f32 %v6958, %v7594
    %v7596 = vpop.f32.mrf.mxu0
    %v7597 = vadd.f32 %v6958, %v7596
    %7598 = vdwg.mxu0
    %7599 = vmatpush.bf16.msra.mxu0 %v7348
    %7600 = vmatpush.bf16.msra.mxu0 %v7342
    %7601 = vmatpush.bf16.msra.mxu0 %v7336
    %7602 = vmatpush.bf16.msra.mxu0 %v7330
    %7603 = vmatpush.bf16.msra.mxu0 %v7324
    %7604 = vmatpush.bf16.msra.mxu0 %v7318
    %7605 = vmatpush.bf16.msra.mxu0 %v7312
    %7606 = vmatpush.bf16.msra.mxu0 %v7306
    %7607 = vmatmul.bf16.gmra.mxu0 %v6852
    %v7608 = vpop.f32.mrf.mxu0
    %v7609 = vadd.f32 %v7595, %v7608
    %v7610 = vpop.f32.mrf.mxu0
    %v7611 = vadd.f32 %v7597, %v7610
    %7612 = vdwg.mxu0
    %v7613 = vpack.c.bf16 %v7469, %v7469
    %v7614 = vpack.c.bf16 %v7471, %v7471
    %v7615 = vpack.c.bf16 %v7525, %v7525
    %v7616 = vpack.c.bf16 %v7527, %v7527
    %v7617 = vpack.c.bf16 %v7581, %v7581
    %v7618 = vpack.c.bf16 %v7583, %v7583
    %v7620 = vsel %vm1074, %v7613, 0
    %v7623 = vsel %vm1074, %v7615, 0
    %7625 = vmatpush.bf16.xpose.msra.mxu0 0
    %7626 = vmatpush.bf16.xpose.msra.mxu0 0
    %7627 = vmatpush.bf16.xpose.msra.mxu0 0
    %7628 = vmatpush.bf16.xpose.msra.mxu0 0
    %7629 = vmatpush.bf16.xpose.msra.mxu0 0
    %7630 = vmatpush.bf16.xpose.msra.mxu0 0
    %7631 = vmatpush.bf16.xpose.msra.mxu0 0
    %7632 = vmatpush.bf16.xpose.msra.mxu0 %v7623
    %7633 = vmatmul.bf16.gmra.mxu0 %v7620
    %v7634 = vpop.f32.mrf.mxu0
    %v7635 = vadd.f32 0.0, %v7634
    %v7636 = vpop.f32.mrf.mxu0
    %7637 = vdwg.mxu0
    %v7639 = vsel %vm1074, %v7614, 0
    %v7642 = vsel %vm1074, %v7616, 0
    %7644 = vmatpush.bf16.xpose.msra.mxu0 0
    %7645 = vmatpush.bf16.xpose.msra.mxu0 0
    %7646 = vmatpush.bf16.xpose.msra.mxu0 0
    %7647 = vmatpush.bf16.xpose.msra.mxu0 0
    %7648 = vmatpush.bf16.xpose.msra.mxu0 0
    %7649 = vmatpush.bf16.xpose.msra.mxu0 0
    %7650 = vmatpush.bf16.xpose.msra.mxu0 0
    %7651 = vmatpush.bf16.xpose.msra.mxu0 %v7642
    %7652 = vmatmul.bf16.gmra.mxu0 %v7639
    %v7653 = vpop.f32.mrf.mxu0
    %v7654 = vadd.f32 0.0, %v7653
    %v7655 = vpop.f32.mrf.mxu0
    %7656 = vdwg.mxu0
    %v7657 = vsel %vm1113, %v7635, -inf
    %7658 = vmax.xlane.f32.xlu0 %v7657
    %v7659 = vpop.xlane.xlu0 %7658
    %v7660 = vsel %vm1113, %v7654, -inf
    %7661 = vmax.xlane.f32.xlu0 %v7660
    %v7662 = vpop.xlane.xlu0 %7661
    %v7663 = vsub.f32 %v7635, %v7659
    %v7664 = vsub.f32 %v7654, %v7662
    %v7665 = vmul.f32 %v7663, 1.442695
    %v7666 = vpow.pop %v7665
    %v7667 = vmul.f32 %v7664, 1.442695
    %v7668 = vpow.pop %v7667
    %v7669 = vsel %vm1113, %v7666, 0.0
    %7670 = vadd.xlane.f32.xlu0 %v7669
    %v7671 = vpop.xlane.xlu0 %7670
    %v7672 = vsel %vm1113, %v7668, 0.0
    %7673 = vadd.xlane.f32.xlu0 %v7672
    %v7674 = vpop.xlane.xlu0 %7673
    %v7675 = vrcp.pop %v7671
    %v7676 = vrcp.pop %v7674
    %v7677 = vmul.f32 %v7666, %v7675
    %v7678 = vmul.f32 %v7668, %v7676
    %v7679 = vpack.c.bf16 %v7677, %v7677
    %v7680 = vpack.c.bf16 %v7678, %v7678
    %v7682 = vsel %vm1113, %v7679, 0
    %v7685 = vsel %vm1141, %v7617, 0
    %7687 = vmatpush.bf16.msra.mxu0 0
    %7688 = vmatpush.bf16.msra.mxu0 0
    %7689 = vmatpush.bf16.msra.mxu0 0
    %7690 = vmatpush.bf16.msra.mxu0 0
    %7691 = vmatpush.bf16.msra.mxu0 0
    %7692 = vmatpush.bf16.msra.mxu0 0
    %7693 = vmatpush.bf16.msra.mxu0 0
    %7694 = vmatpush.bf16.msra.mxu0 %v7685
    %7695 = vmatmul.bf16.gmra.mxu0 %v7682
    %v7696 = vpop.f32.mrf.mxu0
    %v7697 = vadd.f32 0.0, %v7696
    %v7698 = vpop.f32.mrf.mxu0
    %7699 = vdwg.mxu0
    %v7701 = vsel %vm1113, %v7680, 0
    %v7704 = vsel %vm1141, %v7618, 0
    %7706 = vmatpush.bf16.msra.mxu0 0
    %7707 = vmatpush.bf16.msra.mxu0 0
    %7708 = vmatpush.bf16.msra.mxu0 0
    %7709 = vmatpush.bf16.msra.mxu0 0
    %7710 = vmatpush.bf16.msra.mxu0 0
    %7711 = vmatpush.bf16.msra.mxu0 0
    %7712 = vmatpush.bf16.msra.mxu0 0
    %7713 = vmatpush.bf16.msra.mxu0 %v7704
    %7714 = vmatmul.bf16.gmra.mxu0 %v7701
    %v7715 = vpop.f32.mrf.mxu0
    %v7716 = vadd.f32 0.0, %v7715
    %v7717 = vpop.f32.mrf.mxu0
    %7718 = vdwg.mxu0
    %v7720 = vunpack.c.l.b16 %v7613
    %v7721 = vpack.c.b16 %v7720, %v7720
    %7722 = vrot.lane.b32.xlu0 %v7721, 96
    %v7723 = vpop.permute.xlu0 %7722
    %v7725 = vunpack.c.l.b16 %v7615
    %v7726 = vpack.c.b16 %v7725, %v7725
    %7727 = vrot.lane.b32.xlu0 %v7726, 96
    %v7728 = vpop.permute.xlu0 %7727
    %v7730 = vsel %vm1074, %v7723, 0
    %v7733 = vsel %vm1074, %v7728, 0
    %7735 = vmatpush.bf16.xpose.msra.mxu0 0
    %7736 = vmatpush.bf16.xpose.msra.mxu0 0
    %7737 = vmatpush.bf16.xpose.msra.mxu0 0
    %7738 = vmatpush.bf16.xpose.msra.mxu0 0
    %7739 = vmatpush.bf16.xpose.msra.mxu0 0
    %7740 = vmatpush.bf16.xpose.msra.mxu0 0
    %7741 = vmatpush.bf16.xpose.msra.mxu0 0
    %7742 = vmatpush.bf16.xpose.msra.mxu0 %v7733
    %7743 = vmatmul.bf16.gmra.mxu0 %v7730
    %v7744 = vpop.f32.mrf.mxu0
    %v7745 = vadd.f32 0.0, %v7744
    %v7746 = vpop.f32.mrf.mxu0
    %7747 = vdwg.mxu0
    %v7749 = vunpack.c.l.b16 %v7614
    %v7750 = vpack.c.b16 %v7749, %v7749
    %7751 = vrot.lane.b32.xlu0 %v7750, 96
    %v7752 = vpop.permute.xlu0 %7751
    %v7754 = vunpack.c.l.b16 %v7616
    %v7755 = vpack.c.b16 %v7754, %v7754
    %7756 = vrot.lane.b32.xlu0 %v7755, 96
    %v7757 = vpop.permute.xlu0 %7756
    %v7759 = vsel %vm1074, %v7752, 0
    %v7762 = vsel %vm1074, %v7757, 0
    %7764 = vmatpush.bf16.xpose.msra.mxu0 0
    %7765 = vmatpush.bf16.xpose.msra.mxu0 0
    %7766 = vmatpush.bf16.xpose.msra.mxu0 0
    %7767 = vmatpush.bf16.xpose.msra.mxu0 0
    %7768 = vmatpush.bf16.xpose.msra.mxu0 0
    %7769 = vmatpush.bf16.xpose.msra.mxu0 0
    %7770 = vmatpush.bf16.xpose.msra.mxu0 0
    %7771 = vmatpush.bf16.xpose.msra.mxu0 %v7762
    %7772 = vmatmul.bf16.gmra.mxu0 %v7759
    %v7773 = vpop.f32.mrf.mxu0
    %v7774 = vadd.f32 0.0, %v7773
    %v7775 = vpop.f32.mrf.mxu0
    %7776 = vdwg.mxu0
    %v7777 = vsel %vm1113, %v7745, -inf
    %7778 = vmax.xlane.f32.xlu0 %v7777
    %v7779 = vpop.xlane.xlu0 %7778
    %v7780 = vsel %vm1113, %v7774, -inf
    %7781 = vmax.xlane.f32.xlu0 %v7780
    %v7782 = vpop.xlane.xlu0 %7781
    %v7783 = vsub.f32 %v7745, %v7779
    %v7784 = vsub.f32 %v7774, %v7782
    %v7785 = vmul.f32 %v7783, 1.442695
    %v7786 = vpow.pop %v7785
    %v7787 = vmul.f32 %v7784, 1.442695
    %v7788 = vpow.pop %v7787
    %v7789 = vsel %vm1113, %v7786, 0.0
    %7790 = vadd.xlane.f32.xlu0 %v7789
    %v7791 = vpop.xlane.xlu0 %7790
    %v7792 = vsel %vm1113, %v7788, 0.0
    %7793 = vadd.xlane.f32.xlu0 %v7792
    %v7794 = vpop.xlane.xlu0 %7793
    %v7795 = vrcp.pop %v7791
    %v7796 = vrcp.pop %v7794
    %v7797 = vmul.f32 %v7786, %v7795
    %v7798 = vmul.f32 %v7788, %v7796
    %v7799 = vpack.c.bf16 %v7797, %v7797
    %v7800 = vpack.c.bf16 %v7798, %v7798
    %v7802 = vunpack.c.l.b16 %v7617
    %v7803 = vpack.c.b16 %v7802, %v7802
    %7804 = vrot.lane.b32.xlu0 %v7803, 96
    %v7805 = vpop.permute.xlu0 %7804
    %v7807 = vsel %vm1113, %v7799, 0
    %v7810 = vsel %vm1141, %v7805, 0
    %7812 = vmatpush.bf16.msra.mxu0 0
    %7813 = vmatpush.bf16.msra.mxu0 0
    %7814 = vmatpush.bf16.msra.mxu0 0
    %7815 = vmatpush.bf16.msra.mxu0 0
    %7816 = vmatpush.bf16.msra.mxu0 0
    %7817 = vmatpush.bf16.msra.mxu0 0
    %7818 = vmatpush.bf16.msra.mxu0 0
    %7819 = vmatpush.bf16.msra.mxu0 %v7810
    %7820 = vmatmul.bf16.gmra.mxu0 %v7807
    %v7821 = vpop.f32.mrf.mxu0
    %v7822 = vadd.f32 0.0, %v7821
    %v7823 = vpop.f32.mrf.mxu0
    %7824 = vdwg.mxu0
    %v7826 = vunpack.c.l.b16 %v7618
    %v7827 = vpack.c.b16 %v7826, %v7826
    %7828 = vrot.lane.b32.xlu0 %v7827, 96
    %v7829 = vpop.permute.xlu0 %7828
    %v7831 = vsel %vm1113, %v7800, 0
    %v7834 = vsel %vm1141, %v7829, 0
    %7836 = vmatpush.bf16.msra.mxu0 0
    %7837 = vmatpush.bf16.msra.mxu0 0
    %7838 = vmatpush.bf16.msra.mxu0 0
    %7839 = vmatpush.bf16.msra.mxu0 0
    %7840 = vmatpush.bf16.msra.mxu0 0
    %7841 = vmatpush.bf16.msra.mxu0 0
    %7842 = vmatpush.bf16.msra.mxu0 0
    %7843 = vmatpush.bf16.msra.mxu0 %v7834
    %7844 = vmatmul.bf16.gmra.mxu0 %v7831
    %v7845 = vpop.f32.mrf.mxu0
    %v7846 = vadd.f32 0.0, %v7845
    %v7847 = vpop.f32.mrf.mxu0
    %7848 = vdwg.mxu0
    %7849 = vrot.lane.b32.xlu0 %v7721, 64
    %v7850 = vpop.permute.xlu0 %7849
    %7851 = vrot.lane.b32.xlu0 %v7726, 64
    %v7852 = vpop.permute.xlu0 %7851
    %v7854 = vsel %vm1074, %v7850, 0
    %v7857 = vsel %vm1074, %v7852, 0
    %7859 = vmatpush.bf16.xpose.msra.mxu0 0
    %7860 = vmatpush.bf16.xpose.msra.mxu0 0
    %7861 = vmatpush.bf16.xpose.msra.mxu0 0
    %7862 = vmatpush.bf16.xpose.msra.mxu0 0
    %7863 = vmatpush.bf16.xpose.msra.mxu0 0
    %7864 = vmatpush.bf16.xpose.msra.mxu0 0
    %7865 = vmatpush.bf16.xpose.msra.mxu0 0
    %7866 = vmatpush.bf16.xpose.msra.mxu0 %v7857
    %7867 = vmatmul.bf16.gmra.mxu0 %v7854
    %v7868 = vpop.f32.mrf.mxu0
    %v7869 = vadd.f32 0.0, %v7868
    %v7870 = vpop.f32.mrf.mxu0
    %7871 = vdwg.mxu0
    %7872 = vrot.lane.b32.xlu0 %v7750, 64
    %v7873 = vpop.permute.xlu0 %7872
    %7874 = vrot.lane.b32.xlu0 %v7755, 64
    %v7875 = vpop.permute.xlu0 %7874
    %v7877 = vsel %vm1074, %v7873, 0
    %v7880 = vsel %vm1074, %v7875, 0
    %7882 = vmatpush.bf16.xpose.msra.mxu0 0
    %7883 = vmatpush.bf16.xpose.msra.mxu0 0
    %7884 = vmatpush.bf16.xpose.msra.mxu0 0
    %7885 = vmatpush.bf16.xpose.msra.mxu0 0
    %7886 = vmatpush.bf16.xpose.msra.mxu0 0
    %7887 = vmatpush.bf16.xpose.msra.mxu0 0
    %7888 = vmatpush.bf16.xpose.msra.mxu0 0
    %7889 = vmatpush.bf16.xpose.msra.mxu0 %v7880
    %7890 = vmatmul.bf16.gmra.mxu0 %v7877
    %v7891 = vpop.f32.mrf.mxu0
    %v7892 = vadd.f32 0.0, %v7891
    %v7893 = vpop.f32.mrf.mxu0
    %7894 = vdwg.mxu0
    %v7895 = vsel %vm1113, %v7869, -inf
    %7896 = vmax.xlane.f32.xlu0 %v7895
    %v7897 = vpop.xlane.xlu0 %7896
    %v7898 = vsel %vm1113, %v7892, -inf
    %7899 = vmax.xlane.f32.xlu0 %v7898
    %v7900 = vpop.xlane.xlu0 %7899
    %v7901 = vsub.f32 %v7869, %v7897
    %v7902 = vsub.f32 %v7892, %v7900
    %v7903 = vmul.f32 %v7901, 1.442695
    %v7904 = vpow.pop %v7903
    %v7905 = vmul.f32 %v7902, 1.442695
    %v7906 = vpow.pop %v7905
    %v7907 = vsel %vm1113, %v7904, 0.0
    %7908 = vadd.xlane.f32.xlu0 %v7907
    %v7909 = vpop.xlane.xlu0 %7908
    %v7910 = vsel %vm1113, %v7906, 0.0
    %7911 = vadd.xlane.f32.xlu0 %v7910
    %v7912 = vpop.xlane.xlu0 %7911
    %v7913 = vrcp.pop %v7909
    %v7914 = vrcp.pop %v7912
    %v7915 = vmul.f32 %v7904, %v7913
    %v7916 = vmul.f32 %v7906, %v7914
    %v7917 = vpack.c.bf16 %v7915, %v7915
    %v7918 = vpack.c.bf16 %v7916, %v7916
    %7919 = vrot.lane.b32.xlu0 %v7803, 64
    %v7920 = vpop.permute.xlu0 %7919
    %v7922 = vsel %vm1113, %v7917, 0
    %v7925 = vsel %vm1141, %v7920, 0
    %7927 = vmatpush.bf16.msra.mxu0 0
    %7928 = vmatpush.bf16.msra.mxu0 0
    %7929 = vmatpush.bf16.msra.mxu0 0
    %7930 = vmatpush.bf16.msra.mxu0 0
    %7931 = vmatpush.bf16.msra.mxu0 0
    %7932 = vmatpush.bf16.msra.mxu0 0
    %7933 = vmatpush.bf16.msra.mxu0 0
    %7934 = vmatpush.bf16.msra.mxu0 %v7925
    %7935 = vmatmul.bf16.gmra.mxu0 %v7922
    %v7936 = vpop.f32.mrf.mxu0
    %v7937 = vadd.f32 0.0, %v7936
    %v7938 = vpop.f32.mrf.mxu0
    %7939 = vdwg.mxu0
    %7940 = vrot.lane.b32.xlu0 %v7827, 64
    %v7941 = vpop.permute.xlu0 %7940
    %v7943 = vsel %vm1113, %v7918, 0
    %v7946 = vsel %vm1141, %v7941, 0
    %7948 = vmatpush.bf16.msra.mxu0 0
    %7949 = vmatpush.bf16.msra.mxu0 0
    %7950 = vmatpush.bf16.msra.mxu0 0
    %7951 = vmatpush.bf16.msra.mxu0 0
    %7952 = vmatpush.bf16.msra.mxu0 0
    %7953 = vmatpush.bf16.msra.mxu0 0
    %7954 = vmatpush.bf16.msra.mxu0 0
    %7955 = vmatpush.bf16.msra.mxu0 %v7946
    %7956 = vmatmul.bf16.gmra.mxu0 %v7943
    %v7957 = vpop.f32.mrf.mxu0
    %v7958 = vadd.f32 0.0, %v7957
    %v7959 = vpop.f32.mrf.mxu0
    %7960 = vdwg.mxu0
    %7961 = vrot.lane.b32.xlu0 %v7721, 32
    %v7962 = vpop.permute.xlu0 %7961
    %7963 = vrot.lane.b32.xlu0 %v7726, 32
    %v7964 = vpop.permute.xlu0 %7963
    %v7966 = vsel %vm1074, %v7962, 0
    %v7969 = vsel %vm1074, %v7964, 0
    %7971 = vmatpush.bf16.xpose.msra.mxu0 0
    %7972 = vmatpush.bf16.xpose.msra.mxu0 0
    %7973 = vmatpush.bf16.xpose.msra.mxu0 0
    %7974 = vmatpush.bf16.xpose.msra.mxu0 0
    %7975 = vmatpush.bf16.xpose.msra.mxu0 0
    %7976 = vmatpush.bf16.xpose.msra.mxu0 0
    %7977 = vmatpush.bf16.xpose.msra.mxu0 0
    %7978 = vmatpush.bf16.xpose.msra.mxu0 %v7969
    %7979 = vmatmul.bf16.gmra.mxu0 %v7966
    %v7980 = vpop.f32.mrf.mxu0
    %v7981 = vadd.f32 0.0, %v7980
    %v7982 = vpop.f32.mrf.mxu0
    %7983 = vdwg.mxu0
    %7984 = vrot.lane.b32.xlu0 %v7750, 32
    %v7985 = vpop.permute.xlu0 %7984
    %7986 = vrot.lane.b32.xlu0 %v7755, 32
    %v7987 = vpop.permute.xlu0 %7986
    %v7989 = vsel %vm1074, %v7985, 0
    %v7992 = vsel %vm1074, %v7987, 0
    %7994 = vmatpush.bf16.xpose.msra.mxu0 0
    %7995 = vmatpush.bf16.xpose.msra.mxu0 0
    %7996 = vmatpush.bf16.xpose.msra.mxu0 0
    %7997 = vmatpush.bf16.xpose.msra.mxu0 0
    %7998 = vmatpush.bf16.xpose.msra.mxu0 0
    %7999 = vmatpush.bf16.xpose.msra.mxu0 0
    %8000 = vmatpush.bf16.xpose.msra.mxu0 0
    %8001 = vmatpush.bf16.xpose.msra.mxu0 %v7992
    %8002 = vmatmul.bf16.gmra.mxu0 %v7989
    %v8003 = vpop.f32.mrf.mxu0
    %v8004 = vadd.f32 0.0, %v8003
    %v8005 = vpop.f32.mrf.mxu0
    %8006 = vdwg.mxu0
    %v8007 = vsel %vm1113, %v7981, -inf
    %8008 = vmax.xlane.f32.xlu0 %v8007
    %v8009 = vpop.xlane.xlu0 %8008
    %v8010 = vsel %vm1113, %v8004, -inf
    %8011 = vmax.xlane.f32.xlu0 %v8010
    %v8012 = vpop.xlane.xlu0 %8011
    %v8013 = vsub.f32 %v7981, %v8009
    %v8014 = vsub.f32 %v8004, %v8012
    %v8015 = vmul.f32 %v8013, 1.442695
    %v8016 = vpow.pop %v8015
    %v8017 = vmul.f32 %v8014, 1.442695
    %v8018 = vpow.pop %v8017
    %v8019 = vsel %vm1113, %v8016, 0.0
    %8020 = vadd.xlane.f32.xlu0 %v8019
    %v8021 = vpop.xlane.xlu0 %8020
    %v8022 = vsel %vm1113, %v8018, 0.0
    %8023 = vadd.xlane.f32.xlu0 %v8022
    %v8024 = vpop.xlane.xlu0 %8023
    %v8025 = vrcp.pop %v8021
    %v8026 = vrcp.pop %v8024
    %v8027 = vmul.f32 %v8016, %v8025
    %v8028 = vmul.f32 %v8018, %v8026
    %v8029 = vpack.c.bf16 %v8027, %v8027
    %v8030 = vpack.c.bf16 %v8028, %v8028
    %8031 = vrot.lane.b32.xlu0 %v7803, 32
    %v8032 = vpop.permute.xlu0 %8031
    %v8034 = vsel %vm1113, %v8029, 0
    %v8037 = vsel %vm1141, %v8032, 0
    %8039 = vmatpush.bf16.msra.mxu0 0
    %8040 = vmatpush.bf16.msra.mxu0 0
    %8041 = vmatpush.bf16.msra.mxu0 0
    %8042 = vmatpush.bf16.msra.mxu0 0
    %8043 = vmatpush.bf16.msra.mxu0 0
    %8044 = vmatpush.bf16.msra.mxu0 0
    %8045 = vmatpush.bf16.msra.mxu0 0
    %8046 = vmatpush.bf16.msra.mxu0 %v8037
    %8047 = vmatmul.bf16.gmra.mxu0 %v8034
    %v8048 = vpop.f32.mrf.mxu0
    %v8049 = vadd.f32 0.0, %v8048
    %v8050 = vpop.f32.mrf.mxu0
    %8051 = vdwg.mxu0
    %8052 = vrot.lane.b32.xlu0 %v7827, 32
    %v8053 = vpop.permute.xlu0 %8052
    %v8055 = vsel %vm1113, %v8030, 0
    %v8058 = vsel %vm1141, %v8053, 0
    %8060 = vmatpush.bf16.msra.mxu0 0
    %8061 = vmatpush.bf16.msra.mxu0 0
    %8062 = vmatpush.bf16.msra.mxu0 0
    %8063 = vmatpush.bf16.msra.mxu0 0
    %8064 = vmatpush.bf16.msra.mxu0 0
    %8065 = vmatpush.bf16.msra.mxu0 0
    %8066 = vmatpush.bf16.msra.mxu0 0
    %8067 = vmatpush.bf16.msra.mxu0 %v8058
    %8068 = vmatmul.bf16.gmra.mxu0 %v8055
    %v8069 = vpop.f32.mrf.mxu0
    %v8070 = vadd.f32 0.0, %v8069
    %v8071 = vpop.f32.mrf.mxu0
    %8072 = vdwg.mxu0
    %v8073 = vpack.c.bf16 %v7497, %v7497
    %v8074 = vpack.c.bf16 %v7499, %v7499
    %v8075 = vpack.c.bf16 %v7553, %v7553
    %v8076 = vpack.c.bf16 %v7555, %v7555
    %v8077 = vpack.c.bf16 %v7609, %v7609
    %v8078 = vpack.c.bf16 %v7611, %v7611
    %v8080 = vsel %vm1074, %v8073, 0
    %v8083 = vsel %vm1074, %v8075, 0
    %8085 = vmatpush.bf16.xpose.msra.mxu0 0
    %8086 = vmatpush.bf16.xpose.msra.mxu0 0
    %8087 = vmatpush.bf16.xpose.msra.mxu0 0
    %8088 = vmatpush.bf16.xpose.msra.mxu0 0
    %8089 = vmatpush.bf16.xpose.msra.mxu0 0
    %8090 = vmatpush.bf16.xpose.msra.mxu0 0
    %8091 = vmatpush.bf16.xpose.msra.mxu0 0
    %8092 = vmatpush.bf16.xpose.msra.mxu0 %v8083
    %8093 = vmatmul.bf16.gmra.mxu0 %v8080
    %v8094 = vpop.f32.mrf.mxu0
    %v8095 = vadd.f32 0.0, %v8094
    %v8096 = vpop.f32.mrf.mxu0
    %8097 = vdwg.mxu0
    %v8099 = vsel %vm1074, %v8074, 0
    %v8102 = vsel %vm1074, %v8076, 0
    %8104 = vmatpush.bf16.xpose.msra.mxu0 0
    %8105 = vmatpush.bf16.xpose.msra.mxu0 0
    %8106 = vmatpush.bf16.xpose.msra.mxu0 0
    %8107 = vmatpush.bf16.xpose.msra.mxu0 0
    %8108 = vmatpush.bf16.xpose.msra.mxu0 0
    %8109 = vmatpush.bf16.xpose.msra.mxu0 0
    %8110 = vmatpush.bf16.xpose.msra.mxu0 0
    %8111 = vmatpush.bf16.xpose.msra.mxu0 %v8102
    %8112 = vmatmul.bf16.gmra.mxu0 %v8099
    %v8113 = vpop.f32.mrf.mxu0
    %v8114 = vadd.f32 0.0, %v8113
    %v8115 = vpop.f32.mrf.mxu0
    %8116 = vdwg.mxu0
    %v8117 = vsel %vm1113, %v8095, -inf
    %8118 = vmax.xlane.f32.xlu0 %v8117
    %v8119 = vpop.xlane.xlu0 %8118
    %v8120 = vsel %vm1113, %v8114, -inf
    %8121 = vmax.xlane.f32.xlu0 %v8120
    %v8122 = vpop.xlane.xlu0 %8121
    %v8123 = vsub.f32 %v8095, %v8119
    %v8124 = vsub.f32 %v8114, %v8122
    %v8125 = vmul.f32 %v8123, 1.442695
    %v8126 = vpow.pop %v8125
    %v8127 = vmul.f32 %v8124, 1.442695
    %v8128 = vpow.pop %v8127
    %v8129 = vsel %vm1113, %v8126, 0.0
    %8130 = vadd.xlane.f32.xlu0 %v8129
    %v8131 = vpop.xlane.xlu0 %8130
    %v8132 = vsel %vm1113, %v8128, 0.0
    %8133 = vadd.xlane.f32.xlu0 %v8132
    %v8134 = vpop.xlane.xlu0 %8133
    %v8135 = vrcp.pop %v8131
    %v8136 = vrcp.pop %v8134
    %v8137 = vmul.f32 %v8126, %v8135
    %v8138 = vmul.f32 %v8128, %v8136
    %v8139 = vpack.c.bf16 %v8137, %v8137
    %v8140 = vpack.c.bf16 %v8138, %v8138
    %v8142 = vsel %vm1113, %v8139, 0
    %v8145 = vsel %vm1141, %v8077, 0
    %8147 = vmatpush.bf16.msra.mxu0 0
    %8148 = vmatpush.bf16.msra.mxu0 0
    %8149 = vmatpush.bf16.msra.mxu0 0
    %8150 = vmatpush.bf16.msra.mxu0 0
    %8151 = vmatpush.bf16.msra.mxu0 0
    %8152 = vmatpush.bf16.msra.mxu0 0
    %8153 = vmatpush.bf16.msra.mxu0 0
    %8154 = vmatpush.bf16.msra.mxu0 %v8145
    %8155 = vmatmul.bf16.gmra.mxu0 %v8142
    %v8156 = vpop.f32.mrf.mxu0
    %v8157 = vadd.f32 0.0, %v8156
    %v8158 = vpop.f32.mrf.mxu0
    %8159 = vdwg.mxu0
    %v8161 = vsel %vm1113, %v8140, 0
    %v8164 = vsel %vm1141, %v8078, 0
    %8166 = vmatpush.bf16.msra.mxu0 0
    %8167 = vmatpush.bf16.msra.mxu0 0
    %8168 = vmatpush.bf16.msra.mxu0 0
    %8169 = vmatpush.bf16.msra.mxu0 0
    %8170 = vmatpush.bf16.msra.mxu0 0
    %8171 = vmatpush.bf16.msra.mxu0 0
    %8172 = vmatpush.bf16.msra.mxu0 0
    %8173 = vmatpush.bf16.msra.mxu0 %v8164
    %8174 = vmatmul.bf16.gmra.mxu0 %v8161
    %v8175 = vpop.f32.mrf.mxu0
    %v8176 = vadd.f32 0.0, %v8175
    %v8177 = vpop.f32.mrf.mxu0
    %8178 = vdwg.mxu0
    %v8180 = vunpack.c.l.b16 %v8073
    %v8181 = vpack.c.b16 %v8180, %v8180
    %8182 = vrot.lane.b32.xlu0 %v8181, 96
    %v8183 = vpop.permute.xlu0 %8182
    %v8185 = vunpack.c.l.b16 %v8075
    %v8186 = vpack.c.b16 %v8185, %v8185
    %8187 = vrot.lane.b32.xlu0 %v8186, 96
    %v8188 = vpop.permute.xlu0 %8187
    %v8190 = vsel %vm1074, %v8183, 0
    %v8193 = vsel %vm1074, %v8188, 0
    %8195 = vmatpush.bf16.xpose.msra.mxu0 0
    %8196 = vmatpush.bf16.xpose.msra.mxu0 0
    %8197 = vmatpush.bf16.xpose.msra.mxu0 0
    %8198 = vmatpush.bf16.xpose.msra.mxu0 0
    %8199 = vmatpush.bf16.xpose.msra.mxu0 0
    %8200 = vmatpush.bf16.xpose.msra.mxu0 0
    %8201 = vmatpush.bf16.xpose.msra.mxu0 0
    %8202 = vmatpush.bf16.xpose.msra.mxu0 %v8193
    %8203 = vmatmul.bf16.gmra.mxu0 %v8190
    %v8204 = vpop.f32.mrf.mxu0
    %v8205 = vadd.f32 0.0, %v8204
    %v8206 = vpop.f32.mrf.mxu0
    %8207 = vdwg.mxu0
    %v8209 = vunpack.c.l.b16 %v8074
    %v8210 = vpack.c.b16 %v8209, %v8209
    %8211 = vrot.lane.b32.xlu0 %v8210, 96
    %v8212 = vpop.permute.xlu0 %8211
    %v8214 = vunpack.c.l.b16 %v8076
    %v8215 = vpack.c.b16 %v8214, %v8214
    %8216 = vrot.lane.b32.xlu0 %v8215, 96
    %v8217 = vpop.permute.xlu0 %8216
    %v8219 = vsel %vm1074, %v8212, 0
    %v8222 = vsel %vm1074, %v8217, 0
    %8224 = vmatpush.bf16.xpose.msra.mxu0 0
    %8225 = vmatpush.bf16.xpose.msra.mxu0 0
    %8226 = vmatpush.bf16.xpose.msra.mxu0 0
    %8227 = vmatpush.bf16.xpose.msra.mxu0 0
    %8228 = vmatpush.bf16.xpose.msra.mxu0 0
    %8229 = vmatpush.bf16.xpose.msra.mxu0 0
    %8230 = vmatpush.bf16.xpose.msra.mxu0 0
    %8231 = vmatpush.bf16.xpose.msra.mxu0 %v8222
    %8232 = vmatmul.bf16.gmra.mxu0 %v8219
    %v8233 = vpop.f32.mrf.mxu0
    %v8234 = vadd.f32 0.0, %v8233
    %v8235 = vpop.f32.mrf.mxu0
    %8236 = vdwg.mxu0
    %v8237 = vsel %vm1113, %v8205, -inf
    %8238 = vmax.xlane.f32.xlu0 %v8237
    %v8239 = vpop.xlane.xlu0 %8238
    %v8240 = vsel %vm1113, %v8234, -inf
    %8241 = vmax.xlane.f32.xlu0 %v8240
    %v8242 = vpop.xlane.xlu0 %8241
    %v8243 = vsub.f32 %v8205, %v8239
    %v8244 = vsub.f32 %v8234, %v8242
    %v8245 = vmul.f32 %v8243, 1.442695
    %v8246 = vpow.pop %v8245
    %v8247 = vmul.f32 %v8244, 1.442695
    %v8248 = vpow.pop %v8247
    %v8249 = vsel %vm1113, %v8246, 0.0
    %8250 = vadd.xlane.f32.xlu0 %v8249
    %v8251 = vpop.xlane.xlu0 %8250
    %v8252 = vsel %vm1113, %v8248, 0.0
    %8253 = vadd.xlane.f32.xlu0 %v8252
    %v8254 = vpop.xlane.xlu0 %8253
    %v8255 = vrcp.pop %v8251
    %v8256 = vrcp.pop %v8254
    %v8257 = vmul.f32 %v8246, %v8255
    %v8258 = vmul.f32 %v8248, %v8256
    %v8259 = vpack.c.bf16 %v8257, %v8257
    %v8260 = vpack.c.bf16 %v8258, %v8258
    %v8262 = vunpack.c.l.b16 %v8077
    %v8263 = vpack.c.b16 %v8262, %v8262
    %8264 = vrot.lane.b32.xlu0 %v8263, 96
    %v8265 = vpop.permute.xlu0 %8264
    %v8267 = vsel %vm1113, %v8259, 0
    %v8270 = vsel %vm1141, %v8265, 0
    %8272 = vmatpush.bf16.msra.mxu0 0
    %8273 = vmatpush.bf16.msra.mxu0 0
    %8274 = vmatpush.bf16.msra.mxu0 0
    %8275 = vmatpush.bf16.msra.mxu0 0
    %8276 = vmatpush.bf16.msra.mxu0 0
    %8277 = vmatpush.bf16.msra.mxu0 0
    %8278 = vmatpush.bf16.msra.mxu0 0
    %8279 = vmatpush.bf16.msra.mxu0 %v8270
    %8280 = vmatmul.bf16.gmra.mxu0 %v8267
    %v8281 = vpop.f32.mrf.mxu0
    %v8282 = vadd.f32 0.0, %v8281
    %v8283 = vpop.f32.mrf.mxu0
    %8284 = vdwg.mxu0
    %v8286 = vunpack.c.l.b16 %v8078
    %v8287 = vpack.c.b16 %v8286, %v8286
    %8288 = vrot.lane.b32.xlu0 %v8287, 96
    %v8289 = vpop.permute.xlu0 %8288
    %v8291 = vsel %vm1113, %v8260, 0
    %v8294 = vsel %vm1141, %v8289, 0
    %8296 = vmatpush.bf16.msra.mxu0 0
    %8297 = vmatpush.bf16.msra.mxu0 0
    %8298 = vmatpush.bf16.msra.mxu0 0
    %8299 = vmatpush.bf16.msra.mxu0 0
    %8300 = vmatpush.bf16.msra.mxu0 0
    %8301 = vmatpush.bf16.msra.mxu0 0
    %8302 = vmatpush.bf16.msra.mxu0 0
    %8303 = vmatpush.bf16.msra.mxu0 %v8294
    %8304 = vmatmul.bf16.gmra.mxu0 %v8291
    %v8305 = vpop.f32.mrf.mxu0
    %v8306 = vadd.f32 0.0, %v8305
    %v8307 = vpop.f32.mrf.mxu0
    %8308 = vdwg.mxu0
    %8309 = vrot.lane.b32.xlu0 %v8181, 64
    %v8310 = vpop.permute.xlu0 %8309
    %8311 = vrot.lane.b32.xlu0 %v8186, 64
    %v8312 = vpop.permute.xlu0 %8311
    %v8314 = vsel %vm1074, %v8310, 0
    %v8317 = vsel %vm1074, %v8312, 0
    %8319 = vmatpush.bf16.xpose.msra.mxu0 0
    %8320 = vmatpush.bf16.xpose.msra.mxu0 0
    %8321 = vmatpush.bf16.xpose.msra.mxu0 0
    %8322 = vmatpush.bf16.xpose.msra.mxu0 0
    %8323 = vmatpush.bf16.xpose.msra.mxu0 0
    %8324 = vmatpush.bf16.xpose.msra.mxu0 0
    %8325 = vmatpush.bf16.xpose.msra.mxu0 0
    %8326 = vmatpush.bf16.xpose.msra.mxu0 %v8317
    %8327 = vmatmul.bf16.gmra.mxu0 %v8314
    %v8328 = vpop.f32.mrf.mxu0
    %v8329 = vadd.f32 0.0, %v8328
    %v8330 = vpop.f32.mrf.mxu0
    %8331 = vdwg.mxu0
    %8332 = vrot.lane.b32.xlu0 %v8210, 64
    %v8333 = vpop.permute.xlu0 %8332
    %8334 = vrot.lane.b32.xlu0 %v8215, 64
    %v8335 = vpop.permute.xlu0 %8334
    %v8337 = vsel %vm1074, %v8333, 0
    %v8340 = vsel %vm1074, %v8335, 0
    %8342 = vmatpush.bf16.xpose.msra.mxu0 0
    %8343 = vmatpush.bf16.xpose.msra.mxu0 0
    %8344 = vmatpush.bf16.xpose.msra.mxu0 0
    %8345 = vmatpush.bf16.xpose.msra.mxu0 0
    %8346 = vmatpush.bf16.xpose.msra.mxu0 0
    %8347 = vmatpush.bf16.xpose.msra.mxu0 0
    %8348 = vmatpush.bf16.xpose.msra.mxu0 0
    %8349 = vmatpush.bf16.xpose.msra.mxu0 %v8340
    %8350 = vmatmul.bf16.gmra.mxu0 %v8337
    %v8351 = vpop.f32.mrf.mxu0
    %v8352 = vadd.f32 0.0, %v8351
    %v8353 = vpop.f32.mrf.mxu0
    %8354 = vdwg.mxu0
    %v8355 = vsel %vm1113, %v8329, -inf
    %8356 = vmax.xlane.f32.xlu0 %v8355
    %v8357 = vpop.xlane.xlu0 %8356
    %v8358 = vsel %vm1113, %v8352, -inf
    %8359 = vmax.xlane.f32.xlu0 %v8358
    %v8360 = vpop.xlane.xlu0 %8359
    %v8361 = vsub.f32 %v8329, %v8357
    %v8362 = vsub.f32 %v8352, %v8360
    %v8363 = vmul.f32 %v8361, 1.442695
    %v8364 = vpow.pop %v8363
    %v8365 = vmul.f32 %v8362, 1.442695
    %v8366 = vpow.pop %v8365
    %v8367 = vsel %vm1113, %v8364, 0.0
    %8368 = vadd.xlane.f32.xlu0 %v8367
    %v8369 = vpop.xlane.xlu0 %8368
    %v8370 = vsel %vm1113, %v8366, 0.0
    %8371 = vadd.xlane.f32.xlu0 %v8370
    %v8372 = vpop.xlane.xlu0 %8371
    %v8373 = vrcp.pop %v8369
    %v8374 = vrcp.pop %v8372
    %v8375 = vmul.f32 %v8364, %v8373
    %v8376 = vmul.f32 %v8366, %v8374
    %v8377 = vpack.c.bf16 %v8375, %v8375
    %v8378 = vpack.c.bf16 %v8376, %v8376
    %8379 = vrot.lane.b32.xlu0 %v8263, 64
    %v8380 = vpop.permute.xlu0 %8379
    %v8382 = vsel %vm1113, %v8377, 0
    %v8385 = vsel %vm1141, %v8380, 0
    %8387 = vmatpush.bf16.msra.mxu0 0
    %8388 = vmatpush.bf16.msra.mxu0 0
    %8389 = vmatpush.bf16.msra.mxu0 0
    %8390 = vmatpush.bf16.msra.mxu0 0
    %8391 = vmatpush.bf16.msra.mxu0 0
    %8392 = vmatpush.bf16.msra.mxu0 0
    %8393 = vmatpush.bf16.msra.mxu0 0
    %8394 = vmatpush.bf16.msra.mxu0 %v8385
    %8395 = vmatmul.bf16.gmra.mxu0 %v8382
    %v8396 = vpop.f32.mrf.mxu0
    %v8397 = vadd.f32 0.0, %v8396
    %v8398 = vpop.f32.mrf.mxu0
    %8399 = vdwg.mxu0
    %8400 = vrot.lane.b32.xlu0 %v8287, 64
    %v8401 = vpop.permute.xlu0 %8400
    %v8403 = vsel %vm1113, %v8378, 0
    %v8406 = vsel %vm1141, %v8401, 0
    %8408 = vmatpush.bf16.msra.mxu0 0
    %8409 = vmatpush.bf16.msra.mxu0 0
    %8410 = vmatpush.bf16.msra.mxu0 0
    %8411 = vmatpush.bf16.msra.mxu0 0
    %8412 = vmatpush.bf16.msra.mxu0 0
    %8413 = vmatpush.bf16.msra.mxu0 0
    %8414 = vmatpush.bf16.msra.mxu0 0
    %8415 = vmatpush.bf16.msra.mxu0 %v8406
    %8416 = vmatmul.bf16.gmra.mxu0 %v8403
    %v8417 = vpop.f32.mrf.mxu0
    %v8418 = vadd.f32 0.0, %v8417
    %v8419 = vpop.f32.mrf.mxu0
    %8420 = vdwg.mxu0
    %8421 = vrot.lane.b32.xlu0 %v8181, 32
    %v8422 = vpop.permute.xlu0 %8421
    %8423 = vrot.lane.b32.xlu0 %v8186, 32
    %v8424 = vpop.permute.xlu0 %8423
    %v8426 = vsel %vm1074, %v8422, 0
    %v8429 = vsel %vm1074, %v8424, 0
    %8431 = vmatpush.bf16.xpose.msra.mxu0 0
    %8432 = vmatpush.bf16.xpose.msra.mxu0 0
    %8433 = vmatpush.bf16.xpose.msra.mxu0 0
    %8434 = vmatpush.bf16.xpose.msra.mxu0 0
    %8435 = vmatpush.bf16.xpose.msra.mxu0 0
    %8436 = vmatpush.bf16.xpose.msra.mxu0 0
    %8437 = vmatpush.bf16.xpose.msra.mxu0 0
    %8438 = vmatpush.bf16.xpose.msra.mxu0 %v8429
    %8439 = vmatmul.bf16.gmra.mxu0 %v8426
    %v8440 = vpop.f32.mrf.mxu0
    %v8441 = vadd.f32 0.0, %v8440
    %v8442 = vpop.f32.mrf.mxu0
    %8443 = vdwg.mxu0
    %8444 = vrot.lane.b32.xlu0 %v8210, 32
    %v8445 = vpop.permute.xlu0 %8444
    %8446 = vrot.lane.b32.xlu0 %v8215, 32
    %v8447 = vpop.permute.xlu0 %8446
    %v8449 = vsel %vm1074, %v8445, 0
    %v8452 = vsel %vm1074, %v8447, 0
    %8454 = vmatpush.bf16.xpose.msra.mxu0 0
    %8455 = vmatpush.bf16.xpose.msra.mxu0 0
    %8456 = vmatpush.bf16.xpose.msra.mxu0 0
    %8457 = vmatpush.bf16.xpose.msra.mxu0 0
    %8458 = vmatpush.bf16.xpose.msra.mxu0 0
    %8459 = vmatpush.bf16.xpose.msra.mxu0 0
    %8460 = vmatpush.bf16.xpose.msra.mxu0 0
    %8461 = vmatpush.bf16.xpose.msra.mxu0 %v8452
    %8462 = vmatmul.bf16.gmra.mxu0 %v8449
    %v8463 = vpop.f32.mrf.mxu0
    %v8464 = vadd.f32 0.0, %v8463
    %v8465 = vpop.f32.mrf.mxu0
    %8466 = vdwg.mxu0
    %v8467 = vsel %vm1113, %v8441, -inf
    %8468 = vmax.xlane.f32.xlu0 %v8467
    %v8469 = vpop.xlane.xlu0 %8468
    %v8470 = vsel %vm1113, %v8464, -inf
    %8471 = vmax.xlane.f32.xlu0 %v8470
    %v8472 = vpop.xlane.xlu0 %8471
    %v8473 = vsub.f32 %v8441, %v8469
    %v8474 = vsub.f32 %v8464, %v8472
    %v8475 = vmul.f32 %v8473, 1.442695
    %v8476 = vpow.pop %v8475
    %v8477 = vmul.f32 %v8474, 1.442695
    %v8478 = vpow.pop %v8477
    %v8479 = vsel %vm1113, %v8476, 0.0
    %8480 = vadd.xlane.f32.xlu0 %v8479
    %v8481 = vpop.xlane.xlu0 %8480
    %v8482 = vsel %vm1113, %v8478, 0.0
    %8483 = vadd.xlane.f32.xlu0 %v8482
    %v8484 = vpop.xlane.xlu0 %8483
    %v8485 = vrcp.pop %v8481
    %v8486 = vrcp.pop %v8484
    %v8487 = vmul.f32 %v8476, %v8485
    %v8488 = vmul.f32 %v8478, %v8486
    %v8489 = vpack.c.bf16 %v8487, %v8487
    %v8490 = vpack.c.bf16 %v8488, %v8488
    %8491 = vrot.lane.b32.xlu0 %v8263, 32
    %v8492 = vpop.permute.xlu0 %8491
    %v8494 = vsel %vm1113, %v8489, 0
    %v8497 = vsel %vm1141, %v8492, 0
    %8499 = vmatpush.bf16.msra.mxu0 0
    %8500 = vmatpush.bf16.msra.mxu0 0
    %8501 = vmatpush.bf16.msra.mxu0 0
    %8502 = vmatpush.bf16.msra.mxu0 0
    %8503 = vmatpush.bf16.msra.mxu0 0
    %8504 = vmatpush.bf16.msra.mxu0 0
    %8505 = vmatpush.bf16.msra.mxu0 0
    %8506 = vmatpush.bf16.msra.mxu0 %v8497
    %8507 = vmatmul.bf16.gmra.mxu0 %v8494
    %v8508 = vpop.f32.mrf.mxu0
    %v8509 = vadd.f32 0.0, %v8508
    %v8510 = vpop.f32.mrf.mxu0
    %8511 = vdwg.mxu0
    %8512 = vrot.lane.b32.xlu0 %v8287, 32
    %v8513 = vpop.permute.xlu0 %8512
    %v8515 = vsel %vm1113, %v8490, 0
    %v8518 = vsel %vm1141, %v8513, 0
    %8520 = vmatpush.bf16.msra.mxu0 0
    %8521 = vmatpush.bf16.msra.mxu0 0
    %8522 = vmatpush.bf16.msra.mxu0 0
    %8523 = vmatpush.bf16.msra.mxu0 0
    %8524 = vmatpush.bf16.msra.mxu0 0
    %8525 = vmatpush.bf16.msra.mxu0 0
    %8526 = vmatpush.bf16.msra.mxu0 0
    %8527 = vmatpush.bf16.msra.mxu0 %v8518
    %8528 = vmatmul.bf16.gmra.mxu0 %v8515
    %v8529 = vpop.f32.mrf.mxu0
    %v8530 = vadd.f32 0.0, %v8529
    %v8531 = vpop.f32.mrf.mxu0
    %8532 = vdwg.mxu0
    %8535 = vrot.lane.b32.xlu0 %v7822, 32
    %v8536 = vpop.permute.xlu0 %8535
    %8537 = vrot.lane.b32.xlu0 %v7846, 32
    %v8538 = vpop.permute.xlu0 %8537
    %8543 = vrot.lane.b32.xlu0 %v7937, 64
    %v8544 = vpop.permute.xlu0 %8543
    %8545 = vrot.lane.b32.xlu0 %v7958, 64
    %v8546 = vpop.permute.xlu0 %8545
    %8551 = vrot.lane.b32.xlu0 %v8049, 96
    %v8552 = vpop.permute.xlu0 %8551
    %8553 = vrot.lane.b32.xlu0 %v8070, 96
    %v8554 = vpop.permute.xlu0 %8553
    %8559 = vrot.lane.b32.xlu0 %v8282, 32
    %v8560 = vpop.permute.xlu0 %8559
    %8561 = vrot.lane.b32.xlu0 %v8306, 32
    %v8562 = vpop.permute.xlu0 %8561
    %8567 = vrot.lane.b32.xlu0 %v8397, 64
    %v8568 = vpop.permute.xlu0 %8567
    %8569 = vrot.lane.b32.xlu0 %v8418, 64
    %v8570 = vpop.permute.xlu0 %8569
    %8575 = vrot.lane.b32.xlu0 %v8509, 96
    %v8576 = vpop.permute.xlu0 %8575
    %8577 = vrot.lane.b32.xlu0 %v8530, 96
    %v8578 = vpop.permute.xlu0 %8577
    %v8581 = vsel %vm1074, %v7697, %v8536
    %v8582 = vsel %vm1074, %v7716, %v8538
    %v8583 = vsel %vm2041, %v8581, %v8544
    %v8584 = vsel %vm2041, %v8582, %v8546
    %v8585 = vsel %vm2044, %v8583, %v8552
    %v8586 = vsel %vm2044, %v8584, %v8554
    %v8587 = vsel %vm1074, %v8157, %v8560
    %v8588 = vsel %vm1074, %v8176, %v8562
    %v8589 = vsel %vm2041, %v8587, %v8568
    %v8590 = vsel %vm2041, %v8588, %v8570
    %v8591 = vsel %vm2044, %v8589, %v8576
    %v8592 = vsel %vm2044, %v8590, %v8578
    %v8593 = vpack.c.bf16 %v8586, %v8585
    %v8594 = vpack.c.bf16 %v8592, %v8591
    %s8595 = scalar_lea.vmem [#allocation8], 512
    %v8596 = vld [vmem:[%s8595] sm:$0xff]
    %v8597 = vld [vmem:[%s8595 + $0x8] sm:$0xff]
    %v8598 = vld [vmem:[%s8595 + $0x10] sm:$0xff]
    %v8599 = vld [vmem:[%s8595 + $0x18] sm:$0xff]
    %v8600 = vld [vmem:[%s8595 + $0x20] sm:$0xff]
    %v8601 = vld [vmem:[%s8595 + $0x28] sm:$0xff]
    %v8602 = vld [vmem:[%s8595 + $0x30] sm:$0xff]
    %v8603 = vld [vmem:[%s8595 + $0x38] sm:$0xff]
    %v8604 = vld [vmem:[%s8595 + $0x40] sm:$0xff]
    %v8605 = vld [vmem:[%s8595 + $0x48] sm:$0xff]
    %v8606 = vld [vmem:[%s8595 + $0x50] sm:$0xff]
    %v8607 = vld [vmem:[%s8595 + $0x58] sm:$0xff]
    %v8608 = vld [vmem:[%s8595 + $0x60] sm:$0xff]
    %v8609 = vld [vmem:[%s8595 + $0x68] sm:$0xff]
    %v8610 = vld [vmem:[%s8595 + $0x70] sm:$0xff]
    %v8611 = vld [vmem:[%s8595 + $0x78] sm:$0xff]
    %v8612 = vld [vmem:[%s8595 + $0x80] sm:$0xff]
    %v8613 = vld [vmem:[%s8595 + $0x88] sm:$0xff]
    %v8614 = vld [vmem:[%s8595 + $0x90] sm:$0xff]
    %v8615 = vld [vmem:[%s8595 + $0x98] sm:$0xff]
    %v8616 = vld [vmem:[%s8595 + $0xa0] sm:$0xff]
    %v8617 = vld [vmem:[%s8595 + $0xa8] sm:$0xff]
    %v8618 = vld [vmem:[%s8595 + $0xb0] sm:$0xff]
    %v8619 = vld [vmem:[%s8595 + $0xb8] sm:$0xff]
    %v8620 = vld [vmem:[%s8595 + $0xc0] sm:$0xff]
    %v8621 = vld [vmem:[%s8595 + $0xc8] sm:$0xff]
    %v8622 = vld [vmem:[%s8595 + $0xd0] sm:$0xff]
    %v8623 = vld [vmem:[%s8595 + $0xd8] sm:$0xff]
    %v8624 = vld [vmem:[%s8595 + $0xe0] sm:$0xff]
    %v8625 = vld [vmem:[%s8595 + $0xe8] sm:$0xff]
    %v8626 = vld [vmem:[%s8595 + $0xf0] sm:$0xff]
    %v8627 = vld [vmem:[%s8595 + $0xf8] sm:$0xff]
    %s8628 = scalar_lea.vmem [#allocation10], 4
    %v8629 = vld [vmem:[%s8628] sm:$0x3]
    %v8631 = vperm.slane %v8629, 0
    %v8632 = vperm.slane %v8629, 1
    %v8667 = vunpack.c.l.b16 %v8596
    %v8668 = vunpack.c.h.b16 %v8596
    %v8669 = vunpack.c.l.b16 %v8597
    %v8670 = vunpack.c.h.b16 %v8597
    %v8671 = vunpack.c.l.b16 %v8598
    %v8672 = vunpack.c.h.b16 %v8598
    %v8673 = vunpack.c.l.b16 %v8599
    %v8674 = vunpack.c.h.b16 %v8599
    %v8675 = vunpack.c.l.b16 %v8600
    %v8676 = vunpack.c.h.b16 %v8600
    %v8677 = vunpack.c.l.b16 %v8601
    %v8678 = vunpack.c.h.b16 %v8601
    %v8679 = vunpack.c.l.b16 %v8602
    %v8680 = vunpack.c.h.b16 %v8602
    %v8681 = vunpack.c.l.b16 %v8603
    %v8682 = vunpack.c.h.b16 %v8603
    %v8683 = vunpack.c.l.b16 %v8604
    %v8684 = vunpack.c.h.b16 %v8604
    %v8685 = vunpack.c.l.b16 %v8605
    %v8686 = vunpack.c.h.b16 %v8605
    %v8687 = vunpack.c.l.b16 %v8606
    %v8688 = vunpack.c.h.b16 %v8606
    %v8689 = vunpack.c.l.b16 %v8607
    %v8690 = vunpack.c.h.b16 %v8607
    %v8691 = vunpack.c.l.b16 %v8608
    %v8692 = vunpack.c.h.b16 %v8608
    %v8693 = vunpack.c.l.b16 %v8609
    %v8694 = vunpack.c.h.b16 %v8609
    %v8695 = vunpack.c.l.b16 %v8610
    %v8696 = vunpack.c.h.b16 %v8610
    %v8697 = vunpack.c.l.b16 %v8611
    %v8698 = vunpack.c.h.b16 %v8611
    %v8699 = vunpack.c.l.b16 %v8612
    %v8700 = vunpack.c.h.b16 %v8612
    %v8701 = vunpack.c.l.b16 %v8613
    %v8702 = vunpack.c.h.b16 %v8613
    %v8703 = vunpack.c.l.b16 %v8614
    %v8704 = vunpack.c.h.b16 %v8614
    %v8705 = vunpack.c.l.b16 %v8615
    %v8706 = vunpack.c.h.b16 %v8615
    %v8707 = vunpack.c.l.b16 %v8616
    %v8708 = vunpack.c.h.b16 %v8616
    %v8709 = vunpack.c.l.b16 %v8617
    %v8710 = vunpack.c.h.b16 %v8617
    %v8711 = vunpack.c.l.b16 %v8618
    %v8712 = vunpack.c.h.b16 %v8618
    %v8713 = vunpack.c.l.b16 %v8619
    %v8714 = vunpack.c.h.b16 %v8619
    %v8715 = vunpack.c.l.b16 %v8620
    %v8716 = vunpack.c.h.b16 %v8620
    %v8717 = vunpack.c.l.b16 %v8621
    %v8718 = vunpack.c.h.b16 %v8621
    %v8719 = vunpack.c.l.b16 %v8622
    %v8720 = vunpack.c.h.b16 %v8622
    %v8721 = vunpack.c.l.b16 %v8623
    %v8722 = vunpack.c.h.b16 %v8623
    %v8723 = vunpack.c.l.b16 %v8624
    %v8724 = vunpack.c.h.b16 %v8624
    %v8725 = vunpack.c.l.b16 %v8625
    %v8726 = vunpack.c.h.b16 %v8625
    %v8727 = vunpack.c.l.b16 %v8626
    %v8728 = vunpack.c.h.b16 %v8626
    %v8729 = vunpack.c.l.b16 %v8627
    %v8730 = vunpack.c.h.b16 %v8627
    %v8731 = vpack.c.b16 %v8669, %v8667
    %v8732 = vpack.c.b16 %v8670, %v8668
    %v8733 = vpack.c.b16 %v8673, %v8671
    %v8734 = vpack.c.b16 %v8674, %v8672
    %v8735 = vpack.c.b16 %v8677, %v8675
    %v8736 = vpack.c.b16 %v8678, %v8676
    %v8737 = vpack.c.b16 %v8681, %v8679
    %v8738 = vpack.c.b16 %v8682, %v8680
    %v8739 = vpack.c.b16 %v8685, %v8683
    %v8740 = vpack.c.b16 %v8686, %v8684
    %v8741 = vpack.c.b16 %v8689, %v8687
    %v8742 = vpack.c.b16 %v8690, %v8688
    %v8743 = vpack.c.b16 %v8693, %v8691
    %v8744 = vpack.c.b16 %v8694, %v8692
    %v8745 = vpack.c.b16 %v8697, %v8695
    %v8746 = vpack.c.b16 %v8698, %v8696
    %v8747 = vpack.c.b16 %v8701, %v8699
    %v8748 = vpack.c.b16 %v8702, %v8700
    %v8749 = vpack.c.b16 %v8705, %v8703
    %v8750 = vpack.c.b16 %v8706, %v8704
    %v8751 = vpack.c.b16 %v8709, %v8707
    %v8752 = vpack.c.b16 %v8710, %v8708
    %v8753 = vpack.c.b16 %v8713, %v8711
    %v8754 = vpack.c.b16 %v8714, %v8712
    %v8755 = vpack.c.b16 %v8717, %v8715
    %v8756 = vpack.c.b16 %v8718, %v8716
    %v8757 = vpack.c.b16 %v8721, %v8719
    %v8758 = vpack.c.b16 %v8722, %v8720
    %v8759 = vpack.c.b16 %v8725, %v8723
    %v8760 = vpack.c.b16 %v8726, %v8724
    %v8761 = vpack.c.b16 %v8729, %v8727
    %v8762 = vpack.c.b16 %v8730, %v8728
    %8795 = vmatpush.bf16.msra.mxu0 %v8745
    %8796 = vmatpush.bf16.msra.mxu0 %v8743
    %8797 = vmatpush.bf16.msra.mxu0 %v8741
    %8798 = vmatpush.bf16.msra.mxu0 %v8739
    %8799 = vmatpush.bf16.msra.mxu0 %v8737
    %8800 = vmatpush.bf16.msra.mxu0 %v8735
    %8801 = vmatpush.bf16.msra.mxu0 %v8733
    %8802 = vmatpush.bf16.msra.mxu0 %v8731
    %8803 = vmatmul.bf16.gmra.mxu0 %v8593
    %v8804 = vpop.f32.mrf.mxu0
    %v8805 = vadd.f32 %v8631, %v8804
    %v8806 = vpop.f32.mrf.mxu0
    %v8807 = vadd.f32 %v8631, %v8806
    %8808 = vdwg.mxu0
    %8809 = vmatpush.bf16.msra.mxu0 %v8761
    %8810 = vmatpush.bf16.msra.mxu0 %v8759
    %8811 = vmatpush.bf16.msra.mxu0 %v8757
    %8812 = vmatpush.bf16.msra.mxu0 %v8755
    %8813 = vmatpush.bf16.msra.mxu0 %v8753
    %8814 = vmatpush.bf16.msra.mxu0 %v8751
    %8815 = vmatpush.bf16.msra.mxu0 %v8749
    %8816 = vmatpush.bf16.msra.mxu0 %v8747
    %8817 = vmatmul.bf16.gmra.mxu0 %v8594
    %v8818 = vpop.f32.mrf.mxu0
    %v8819 = vadd.f32 %v8805, %v8818
    %v8820 = vpop.f32.mrf.mxu0
    %v8821 = vadd.f32 %v8807, %v8820
    %8822 = vdwg.mxu0
    %8823 = vmatpush.bf16.msra.mxu0 %v8746
    %8824 = vmatpush.bf16.msra.mxu0 %v8744
    %8825 = vmatpush.bf16.msra.mxu0 %v8742
    %8826 = vmatpush.bf16.msra.mxu0 %v8740
    %8827 = vmatpush.bf16.msra.mxu0 %v8738
    %8828 = vmatpush.bf16.msra.mxu0 %v8736
    %8829 = vmatpush.bf16.msra.mxu0 %v8734
    %8830 = vmatpush.bf16.msra.mxu0 %v8732
    %8831 = vmatmul.bf16.gmra.mxu0 %v8593
    %v8832 = vpop.f32.mrf.mxu0
    %v8833 = vadd.f32 %v8632, %v8832
    %v8834 = vpop.f32.mrf.mxu0
    %v8835 = vadd.f32 %v8632, %v8834
    %8836 = vdwg.mxu0
    %8837 = vmatpush.bf16.msra.mxu0 %v8762
    %8838 = vmatpush.bf16.msra.mxu0 %v8760
    %8839 = vmatpush.bf16.msra.mxu0 %v8758
    %8840 = vmatpush.bf16.msra.mxu0 %v8756
    %8841 = vmatpush.bf16.msra.mxu0 %v8754
    %8842 = vmatpush.bf16.msra.mxu0 %v8752
    %8843 = vmatpush.bf16.msra.mxu0 %v8750
    %8844 = vmatpush.bf16.msra.mxu0 %v8748
    %8845 = vmatmul.bf16.gmra.mxu0 %v8594
    %v8846 = vpop.f32.mrf.mxu0
    %v8847 = vadd.f32 %v8833, %v8846
    %v8848 = vpop.f32.mrf.mxu0
    %v8849 = vadd.f32 %v8835, %v8848
    %8850 = vdwg.mxu0
    %v8851 = vadd.f32 %v6847, %v8819
    %v8852 = vadd.f32 %v6848, %v8847
    %v8853 = vadd.f32 %v6849, %v8821
    %v8854 = vadd.f32 %v6850, %v8849
    %s8855 = scalar_lea.vmem [#allocation19], 4
    %v8856 = vld [vmem:[%s8855] sm:$0x3]
    %s8857 = scalar_lea.vmem [#allocation20], 4
    %v8858 = vld [vmem:[%s8857] sm:$0x3]
    %v8859 = vadd.f32 %v8851, %v8852
    %8860 = vadd.xlane.f32.xlu0 %v8859
    %v8861 = vpop.xlane.xlu0 %8860
    %v8862 = vadd.f32 %v8853, %v8854
    %8863 = vadd.xlane.f32.xlu0 %v8862
    %v8864 = vpop.xlane.xlu0 %8863
    %v8865 = vmul.f32 %v8861, %v2327
    %v8866 = vmul.f32 %v8864, %v2327
    %v8867 = vmul.f32 %v8851, %v8851
    %v8868 = vmul.f32 %v8852, %v8852
    %v8869 = vmul.f32 %v8853, %v8853
    %v8870 = vmul.f32 %v8854, %v8854
    %v8871 = vadd.f32 %v8867, %v8868
    %8872 = vadd.xlane.f32.xlu0 %v8871
    %v8873 = vpop.xlane.xlu0 %8872
    %v8874 = vadd.f32 %v8869, %v8870
    %8875 = vadd.xlane.f32.xlu0 %v8874
    %v8876 = vpop.xlane.xlu0 %8875
    %v8877 = vmul.f32 %v8873, %v2327
    %v8878 = vmul.f32 %v8876, %v2327
    %v8879 = vmul.f32 %v8865, %v8865
    %v8880 = vmul.f32 %v8866, %v8866
    %v8881 = vsub.f32 %v8877, %v8879
    %v8882 = vsub.f32 %v8878, %v8880
    %v8883 = vsub.f32 %v8851, %v8865
    %v8884 = vsub.f32 %v8852, %v8865
    %v8885 = vsub.f32 %v8853, %v8866
    %v8886 = vsub.f32 %v8854, %v8866
    %v8887 = vadd.f32 %v8881, 1e-05
    %v8888 = vadd.f32 %v8882, 1e-05
    %v8889 = vrsqrt.pop %v8887
    %v8890 = vmul.f32 %v8889, %v8887
    %v8891 = vmul.f32 %v8890, %v8889
    %v8892 = vmul.f32 0.5, %v8891
    %v8893 = vsub.f32 1.5, %v8892
    %v8894 = vmul.f32 %v8889, %v8893
    %vm8895 = vweird.f32 %v8887
    %vm8896 = vweird.f32 %v8889
    %vm8897 = vmor %vm8895, %vm8896
    %v8898 = vsel %vm8897, %v8889, %v8894
    %v8899 = vrsqrt.pop %v8888
    %v8900 = vmul.f32 %v8899, %v8888
    %v8901 = vmul.f32 %v8900, %v8899
    %v8902 = vmul.f32 0.5, %v8901
    %v8903 = vsub.f32 1.5, %v8902
    %v8904 = vmul.f32 %v8899, %v8903
    %vm8905 = vweird.f32 %v8888
    %vm8906 = vweird.f32 %v8899
    %vm8907 = vmor %vm8905, %vm8906
    %v8908 = vsel %vm8907, %v8899, %v8904
    %v8909 = vmul.f32 %v8883, %v8898
    %v8910 = vmul.f32 %v8884, %v8898
    %v8911 = vmul.f32 %v8885, %v8908
    %v8912 = vmul.f32 %v8886, %v8908
    %v8914 = vperm.slane %v8856, 0
    %v8915 = vperm.slane %v8856, 1
    %v8918 = vmul.f32 %v8909, %v8914
    %v8919 = vmul.f32 %v8910, %v8915
    %v8920 = vmul.f32 %v8911, %v8914
    %v8921 = vmul.f32 %v8912, %v8915
    %v8923 = vperm.slane %v8858, 0
    %v8924 = vperm.slane %v8858, 1
    %v8927 = vadd.f32 %v8918, %v8923
    %v8928 = vadd.f32 %v8919, %v8924
    %v8929 = vadd.f32 %v8920, %v8923
    %v8930 = vadd.f32 %v8921, %v8924
    %s8931 = scalar_lea.vmem [#allocation11], 4
    %v8932 = vld [vmem:[%s8931] sm:$0x3]
    %v8934 = vperm.slane %v8932, 0
    %v8935 = vperm.slane %v8932, 1
    %v8938 = vadd.f32 %v8927, %v8934
    %v8939 = vadd.f32 %v8928, %v8935
    %v8940 = vadd.f32 %v8929, %v8934
    %v8941 = vadd.f32 %v8930, %v8935
    %s8942 = scalar_lea.vmem [#allocation22], 4
    %v8943 = vld [vmem:[%s8942] sm:$0x3]
    %s8944 = scalar_lea.vmem [#allocation23], 4
    %v8945 = vld [vmem:[%s8944] sm:$0x3]
    %v8946 = vadd.f32 %v8938, %v8939
    %8947 = vadd.xlane.f32.xlu0 %v8946
    %v8948 = vpop.xlane.xlu0 %8947
    %v8949 = vadd.f32 %v8940, %v8941
    %8950 = vadd.xlane.f32.xlu0 %v8949
    %v8951 = vpop.xlane.xlu0 %8950
    %v8952 = vmul.f32 %v8948, %v2327
    %v8953 = vmul.f32 %v8951, %v2327
    %v8954 = vmul.f32 %v8938, %v8938
    %v8955 = vmul.f32 %v8939, %v8939
    %v8956 = vmul.f32 %v8940, %v8940
    %v8957 = vmul.f32 %v8941, %v8941
    %v8958 = vadd.f32 %v8954, %v8955
    %8959 = vadd.xlane.f32.xlu0 %v8958
    %v8960 = vpop.xlane.xlu0 %8959
    %v8961 = vadd.f32 %v8956, %v8957
    %8962 = vadd.xlane.f32.xlu0 %v8961
    %v8963 = vpop.xlane.xlu0 %8962
    %v8964 = vmul.f32 %v8960, %v2327
    %v8965 = vmul.f32 %v8963, %v2327
    %v8966 = vmul.f32 %v8952, %v8952
    %v8967 = vmul.f32 %v8953, %v8953
    %v8968 = vsub.f32 %v8964, %v8966
    %v8969 = vsub.f32 %v8965, %v8967
    %v8970 = vsub.f32 %v8938, %v8952
    %v8971 = vsub.f32 %v8939, %v8952
    %v8972 = vsub.f32 %v8940, %v8953
    %v8973 = vsub.f32 %v8941, %v8953
    %v8974 = vadd.f32 %v8968, 1e-05
    %v8975 = vadd.f32 %v8969, 1e-05
    %v8976 = vrsqrt.pop %v8974
    %v8977 = vmul.f32 %v8976, %v8974
    %v8978 = vmul.f32 %v8977, %v8976
    %v8979 = vmul.f32 0.5, %v8978
    %v8980 = vsub.f32 1.5, %v8979
    %v8981 = vmul.f32 %v8976, %v8980
    %vm8982 = vweird.f32 %v8974
    %vm8983 = vweird.f32 %v8976
    %vm8984 = vmor %vm8982, %vm8983
    %v8985 = vsel %vm8984, %v8976, %v8981
    %v8986 = vrsqrt.pop %v8975
    %v8987 = vmul.f32 %v8986, %v8975
    %v8988 = vmul.f32 %v8987, %v8986
    %v8989 = vmul.f32 0.5, %v8988
    %v8990 = vsub.f32 1.5, %v8989
    %v8991 = vmul.f32 %v8986, %v8990
    %vm8992 = vweird.f32 %v8975
    %vm8993 = vweird.f32 %v8986
    %vm8994 = vmor %vm8992, %vm8993
    %v8995 = vsel %vm8994, %v8986, %v8991
    %v8996 = vmul.f32 %v8970, %v8985
    %v8997 = vmul.f32 %v8971, %v8985
    %v8998 = vmul.f32 %v8972, %v8995
    %v8999 = vmul.f32 %v8973, %v8995
    %v9001 = vperm.slane %v8943, 0
    %v9002 = vperm.slane %v8943, 1
    %v9005 = vmul.f32 %v8996, %v9001
    %v9006 = vmul.f32 %v8997, %v9002
    %v9007 = vmul.f32 %v8998, %v9001
    %v9008 = vmul.f32 %v8999, %v9002
    %v9010 = vperm.slane %v8945, 0
    %v9011 = vperm.slane %v8945, 1
    %v9014 = vadd.f32 %v9005, %v9010
    %v9015 = vadd.f32 %v9006, %v9011
    %v9016 = vadd.f32 %v9007, %v9010
    %v9017 = vadd.f32 %v9008, %v9011
    %v9018 = vpack.c.bf16 %v9016, %v9014
    %v9019 = vpack.c.bf16 %v9017, %v9015
    %s9020 = scalar_lea.vmem [#allocation13], 1024
    %v9021 = vld [vmem:[%s9020] sm:$0xff]
    %v9022 = vld [vmem:[%s9020 + $0x8] sm:$0xff]
    %v9023 = vld [vmem:[%s9020 + $0x10] sm:$0xff]
    %v9024 = vld [vmem:[%s9020 + $0x18] sm:$0xff]
    %v9025 = vld [vmem:[%s9020 + $0x20] sm:$0xff]
    %v9026 = vld [vmem:[%s9020 + $0x28] sm:$0xff]
    %v9027 = vld [vmem:[%s9020 + $0x30] sm:$0xff]
    %v9028 = vld [vmem:[%s9020 + $0x38] sm:$0xff]
    %v9029 = vld [vmem:[%s9020 + $0x40] sm:$0xff]
    %v9030 = vld [vmem:[%s9020 + $0x48] sm:$0xff]
    %v9031 = vld [vmem:[%s9020 + $0x50] sm:$0xff]
    %v9032 = vld [vmem:[%s9020 + $0x58] sm:$0xff]
    %v9033 = vld [vmem:[%s9020 + $0x60] sm:$0xff]
    %v9034 = vld [vmem:[%s9020 + $0x68] sm:$0xff]
    %v9035 = vld [vmem:[%s9020 + $0x70] sm:$0xff]
    %v9036 = vld [vmem:[%s9020 + $0x78] sm:$0xff]
    %v9037 = vld [vmem:[%s9020 + $0x80] sm:$0xff]
    %v9038 = vld [vmem:[%s9020 + $0x88] sm:$0xff]
    %v9039 = vld [vmem:[%s9020 + $0x90] sm:$0xff]
    %v9040 = vld [vmem:[%s9020 + $0x98] sm:$0xff]
    %v9041 = vld [vmem:[%s9020 + $0xa0] sm:$0xff]
    %v9042 = vld [vmem:[%s9020 + $0xa8] sm:$0xff]
    %v9043 = vld [vmem:[%s9020 + $0xb0] sm:$0xff]
    %v9044 = vld [vmem:[%s9020 + $0xb8] sm:$0xff]
    %v9045 = vld [vmem:[%s9020 + $0xc0] sm:$0xff]
    %v9046 = vld [vmem:[%s9020 + $0xc8] sm:$0xff]
    %v9047 = vld [vmem:[%s9020 + $0xd0] sm:$0xff]
    %v9048 = vld [vmem:[%s9020 + $0xd8] sm:$0xff]
    %v9049 = vld [vmem:[%s9020 + $0xe0] sm:$0xff]
    %v9050 = vld [vmem:[%s9020 + $0xe8] sm:$0xff]
    %v9051 = vld [vmem:[%s9020 + $0xf0] sm:$0xff]
    %v9052 = vld [vmem:[%s9020 + $0xf8] sm:$0xff]
    %v9053 = vld [vmem:[%s9020 + $0x100] sm:$0xff]
    %v9054 = vld [vmem:[%s9020 + $0x108] sm:$0xff]
    %v9055 = vld [vmem:[%s9020 + $0x110] sm:$0xff]
    %v9056 = vld [vmem:[%s9020 + $0x118] sm:$0xff]
    %v9057 = vld [vmem:[%s9020 + $0x120] sm:$0xff]
    %v9058 = vld [vmem:[%s9020 + $0x128] sm:$0xff]
    %v9059 = vld [vmem:[%s9020 + $0x130] sm:$0xff]
    %v9060 = vld [vmem:[%s9020 + $0x138] sm:$0xff]
    %v9061 = vld [vmem:[%s9020 + $0x140] sm:$0xff]
    %v9062 = vld [vmem:[%s9020 + $0x148] sm:$0xff]
    %v9063 = vld [vmem:[%s9020 + $0x150] sm:$0xff]
    %v9064 = vld [vmem:[%s9020 + $0x158] sm:$0xff]
    %v9065 = vld [vmem:[%s9020 + $0x160] sm:$0xff]
    %v9066 = vld [vmem:[%s9020 + $0x168] sm:$0xff]
    %v9067 = vld [vmem:[%s9020 + $0x170] sm:$0xff]
    %v9068 = vld [vmem:[%s9020 + $0x178] sm:$0xff]
    %v9069 = vld [vmem:[%s9020 + $0x180] sm:$0xff]
    %v9070 = vld [vmem:[%s9020 + $0x188] sm:$0xff]
    %v9071 = vld [vmem:[%s9020 + $0x190] sm:$0xff]
    %v9072 = vld [vmem:[%s9020 + $0x198] sm:$0xff]
    %v9073 = vld [vmem:[%s9020 + $0x1a0] sm:$0xff]
    %v9074 = vld [vmem:[%s9020 + $0x1a8] sm:$0xff]
    %v9075 = vld [vmem:[%s9020 + $0x1b0] sm:$0xff]
    %v9076 = vld [vmem:[%s9020 + $0x1b8] sm:$0xff]
    %v9077 = vld [vmem:[%s9020 + $0x1c0] sm:$0xff]
    %v9078 = vld [vmem:[%s9020 + $0x1c8] sm:$0xff]
    %v9079 = vld [vmem:[%s9020 + $0x1d0] sm:$0xff]
    %v9080 = vld [vmem:[%s9020 + $0x1d8] sm:$0xff]
    %v9081 = vld [vmem:[%s9020 + $0x1e0] sm:$0xff]
    %v9082 = vld [vmem:[%s9020 + $0x1e8] sm:$0xff]
    %v9083 = vld [vmem:[%s9020 + $0x1f0] sm:$0xff]
    %v9084 = vld [vmem:[%s9020 + $0x1f8] sm:$0xff]
    %s9085 = scalar_lea.vmem [#allocation14], 8
    %v9086 = vld [vmem:[%s9085] sm:$0xf]
    %v9088 = vperm.slane %v9086, 0
    %v9089 = vperm.slane %v9086, 1
    %v9090 = vperm.slane %v9086, 2
    %v9091 = vperm.slane %v9086, 3
    %v9160 = vunpack.c.l.b16 %v9021
    %v9161 = vunpack.c.h.b16 %v9021
    %v9162 = vunpack.c.l.b16 %v9022
    %v9163 = vunpack.c.h.b16 %v9022
    %v9164 = vunpack.c.l.b16 %v9023
    %v9165 = vunpack.c.h.b16 %v9023
    %v9166 = vunpack.c.l.b16 %v9024
    %v9167 = vunpack.c.h.b16 %v9024
    %v9168 = vunpack.c.l.b16 %v9025
    %v9169 = vunpack.c.h.b16 %v9025
    %v9170 = vunpack.c.l.b16 %v9026
    %v9171 = vunpack.c.h.b16 %v9026
    %v9172 = vunpack.c.l.b16 %v9027
    %v9173 = vunpack.c.h.b16 %v9027
    %v9174 = vunpack.c.l.b16 %v9028
    %v9175 = vunpack.c.h.b16 %v9028
    %v9176 = vunpack.c.l.b16 %v9029
    %v9177 = vunpack.c.h.b16 %v9029
    %v9178 = vunpack.c.l.b16 %v9030
    %v9179 = vunpack.c.h.b16 %v9030
    %v9180 = vunpack.c.l.b16 %v9031
    %v9181 = vunpack.c.h.b16 %v9031
    %v9182 = vunpack.c.l.b16 %v9032
    %v9183 = vunpack.c.h.b16 %v9032
    %v9184 = vunpack.c.l.b16 %v9033
    %v9185 = vunpack.c.h.b16 %v9033
    %v9186 = vunpack.c.l.b16 %v9034
    %v9187 = vunpack.c.h.b16 %v9034
    %v9188 = vunpack.c.l.b16 %v9035
    %v9189 = vunpack.c.h.b16 %v9035
    %v9190 = vunpack.c.l.b16 %v9036
    %v9191 = vunpack.c.h.b16 %v9036
    %v9192 = vunpack.c.l.b16 %v9037
    %v9193 = vunpack.c.h.b16 %v9037
    %v9194 = vunpack.c.l.b16 %v9038
    %v9195 = vunpack.c.h.b16 %v9038
    %v9196 = vunpack.c.l.b16 %v9039
    %v9197 = vunpack.c.h.b16 %v9039
    %v9198 = vunpack.c.l.b16 %v9040
    %v9199 = vunpack.c.h.b16 %v9040
    %v9200 = vunpack.c.l.b16 %v9041
    %v9201 = vunpack.c.h.b16 %v9041
    %v9202 = vunpack.c.l.b16 %v9042
    %v9203 = vunpack.c.h.b16 %v9042
    %v9204 = vunpack.c.l.b16 %v9043
    %v9205 = vunpack.c.h.b16 %v9043
    %v9206 = vunpack.c.l.b16 %v9044
    %v9207 = vunpack.c.h.b16 %v9044
    %v9208 = vunpack.c.l.b16 %v9045
    %v9209 = vunpack.c.h.b16 %v9045
    %v9210 = vunpack.c.l.b16 %v9046
    %v9211 = vunpack.c.h.b16 %v9046
    %v9212 = vunpack.c.l.b16 %v9047
    %v9213 = vunpack.c.h.b16 %v9047
    %v9214 = vunpack.c.l.b16 %v9048
    %v9215 = vunpack.c.h.b16 %v9048
    %v9216 = vunpack.c.l.b16 %v9049
    %v9217 = vunpack.c.h.b16 %v9049
    %v9218 = vunpack.c.l.b16 %v9050
    %v9219 = vunpack.c.h.b16 %v9050
    %v9220 = vunpack.c.l.b16 %v9051
    %v9221 = vunpack.c.h.b16 %v9051
    %v9222 = vunpack.c.l.b16 %v9052
    %v9223 = vunpack.c.h.b16 %v9052
    %v9224 = vunpack.c.l.b16 %v9053
    %v9225 = vunpack.c.h.b16 %v9053
    %v9226 = vunpack.c.l.b16 %v9054
    %v9227 = vunpack.c.h.b16 %v9054
    %v9228 = vunpack.c.l.b16 %v9055
    %v9229 = vunpack.c.h.b16 %v9055
    %v9230 = vunpack.c.l.b16 %v9056
    %v9231 = vunpack.c.h.b16 %v9056
    %v9232 = vunpack.c.l.b16 %v9057
    %v9233 = vunpack.c.h.b16 %v9057
    %v9234 = vunpack.c.l.b16 %v9058
    %v9235 = vunpack.c.h.b16 %v9058
    %v9236 = vunpack.c.l.b16 %v9059
    %v9237 = vunpack.c.h.b16 %v9059
    %v9238 = vunpack.c.l.b16 %v9060
    %v9239 = vunpack.c.h.b16 %v9060
    %v9240 = vunpack.c.l.b16 %v9061
    %v9241 = vunpack.c.h.b16 %v9061
    %v9242 = vunpack.c.l.b16 %v9062
    %v9243 = vunpack.c.h.b16 %v9062
    %v9244 = vunpack.c.l.b16 %v9063
    %v9245 = vunpack.c.h.b16 %v9063
    %v9246 = vunpack.c.l.b16 %v9064
    %v9247 = vunpack.c.h.b16 %v9064
    %v9248 = vunpack.c.l.b16 %v9065
    %v9249 = vunpack.c.h.b16 %v9065
    %v9250 = vunpack.c.l.b16 %v9066
    %v9251 = vunpack.c.h.b16 %v9066
    %v9252 = vunpack.c.l.b16 %v9067
    %v9253 = vunpack.c.h.b16 %v9067
    %v9254 = vunpack.c.l.b16 %v9068
    %v9255 = vunpack.c.h.b16 %v9068
    %v9256 = vunpack.c.l.b16 %v9069
    %v9257 = vunpack.c.h.b16 %v9069
    %v9258 = vunpack.c.l.b16 %v9070
    %v9259 = vunpack.c.h.b16 %v9070
    %v9260 = vunpack.c.l.b16 %v9071
    %v9261 = vunpack.c.h.b16 %v9071
    %v9262 = vunpack.c.l.b16 %v9072
    %v9263 = vunpack.c.h.b16 %v9072
    %v9264 = vunpack.c.l.b16 %v9073
    %v9265 = vunpack.c.h.b16 %v9073
    %v9266 = vunpack.c.l.b16 %v9074
    %v9267 = vunpack.c.h.b16 %v9074
    %v9268 = vunpack.c.l.b16 %v9075
    %v9269 = vunpack.c.h.b16 %v9075
    %v9270 = vunpack.c.l.b16 %v9076
    %v9271 = vunpack.c.h.b16 %v9076
    %v9272 = vunpack.c.l.b16 %v9077
    %v9273 = vunpack.c.h.b16 %v9077
    %v9274 = vunpack.c.l.b16 %v9078
    %v9275 = vunpack.c.h.b16 %v9078
    %v9276 = vunpack.c.l.b16 %v9079
    %v9277 = vunpack.c.h.b16 %v9079
    %v9278 = vunpack.c.l.b16 %v9080
    %v9279 = vunpack.c.h.b16 %v9080
    %v9280 = vunpack.c.l.b16 %v9081
    %v9281 = vunpack.c.h.b16 %v9081
    %v9282 = vunpack.c.l.b16 %v9082
    %v9283 = vunpack.c.h.b16 %v9082
    %v9284 = vunpack.c.l.b16 %v9083
    %v9285 = vunpack.c.h.b16 %v9083
    %v9286 = vunpack.c.l.b16 %v9084
    %v9287 = vunpack.c.h.b16 %v9084
    %v9288 = vpack.c.b16 %v9164, %v9160
    %v9289 = vpack.c.b16 %v9165, %v9161
    %v9290 = vpack.c.b16 %v9166, %v9162
    %v9291 = vpack.c.b16 %v9167, %v9163
    %v9292 = vpack.c.b16 %v9172, %v9168
    %v9293 = vpack.c.b16 %v9173, %v9169
    %v9294 = vpack.c.b16 %v9174, %v9170
    %v9295 = vpack.c.b16 %v9175, %v9171
    %v9296 = vpack.c.b16 %v9180, %v9176
    %v9297 = vpack.c.b16 %v9181, %v9177
    %v9298 = vpack.c.b16 %v9182, %v9178
    %v9299 = vpack.c.b16 %v9183, %v9179
    %v9300 = vpack.c.b16 %v9188, %v9184
    %v9301 = vpack.c.b16 %v9189, %v9185
    %v9302 = vpack.c.b16 %v9190, %v9186
    %v9303 = vpack.c.b16 %v9191, %v9187
    %v9304 = vpack.c.b16 %v9196, %v9192
    %v9305 = vpack.c.b16 %v9197, %v9193
    %v9306 = vpack.c.b16 %v9198, %v9194
    %v9307 = vpack.c.b16 %v9199, %v9195
    %v9308 = vpack.c.b16 %v9204, %v9200
    %v9309 = vpack.c.b16 %v9205, %v9201
    %v9310 = vpack.c.b16 %v9206, %v9202
    %v9311 = vpack.c.b16 %v9207, %v9203
    %v9312 = vpack.c.b16 %v9212, %v9208
    %v9313 = vpack.c.b16 %v9213, %v9209
    %v9314 = vpack.c.b16 %v9214, %v9210
    %v9315 = vpack.c.b16 %v9215, %v9211
    %v9316 = vpack.c.b16 %v9220, %v9216
    %v9317 = vpack.c.b16 %v9221, %v9217
    %v9318 = vpack.c.b16 %v9222, %v9218
    %v9319 = vpack.c.b16 %v9223, %v9219
    %v9320 = vpack.c.b16 %v9228, %v9224
    %v9321 = vpack.c.b16 %v9229, %v9225
    %v9322 = vpack.c.b16 %v9230, %v9226
    %v9323 = vpack.c.b16 %v9231, %v9227
    %v9324 = vpack.c.b16 %v9236, %v9232
    %v9325 = vpack.c.b16 %v9237, %v9233
    %v9326 = vpack.c.b16 %v9238, %v9234
    %v9327 = vpack.c.b16 %v9239, %v9235
    %v9328 = vpack.c.b16 %v9244, %v9240
    %v9329 = vpack.c.b16 %v9245, %v9241
    %v9330 = vpack.c.b16 %v9246, %v9242
    %v9331 = vpack.c.b16 %v9247, %v9243
    %v9332 = vpack.c.b16 %v9252, %v9248
    %v9333 = vpack.c.b16 %v9253, %v9249
    %v9334 = vpack.c.b16 %v9254, %v9250
    %v9335 = vpack.c.b16 %v9255, %v9251
    %v9336 = vpack.c.b16 %v9260, %v9256
    %v9337 = vpack.c.b16 %v9261, %v9257
    %v9338 = vpack.c.b16 %v9262, %v9258
    %v9339 = vpack.c.b16 %v9263, %v9259
    %v9340 = vpack.c.b16 %v9268, %v9264
    %v9341 = vpack.c.b16 %v9269, %v9265
    %v9342 = vpack.c.b16 %v9270, %v9266
    %v9343 = vpack.c.b16 %v9271, %v9267
    %v9344 = vpack.c.b16 %v9276, %v9272
    %v9345 = vpack.c.b16 %v9277, %v9273
    %v9346 = vpack.c.b16 %v9278, %v9274
    %v9347 = vpack.c.b16 %v9279, %v9275
    %v9348 = vpack.c.b16 %v9284, %v9280
    %v9349 = vpack.c.b16 %v9285, %v9281
    %v9350 = vpack.c.b16 %v9286, %v9282
    %v9351 = vpack.c.b16 %v9287, %v9283
    %9416 = vmatpush.bf16.msra.mxu0 %v9316
    %9417 = vmatpush.bf16.msra.mxu0 %v9312
    %9418 = vmatpush.bf16.msra.mxu0 %v9308
    %9419 = vmatpush.bf16.msra.mxu0 %v9304
    %9420 = vmatpush.bf16.msra.mxu0 %v9300
    %9421 = vmatpush.bf16.msra.mxu0 %v9296
    %9422 = vmatpush.bf16.msra.mxu0 %v9292
    %9423 = vmatpush.bf16.msra.mxu0 %v9288
    %9424 = vmatmul.bf16.gmra.mxu0 %v9018
    %v9425 = vpop.f32.mrf.mxu0
    %v9426 = vadd.f32 %v9088, %v9425
    %v9427 = vpop.f32.mrf.mxu0
    %v9428 = vadd.f32 %v9088, %v9427
    %9429 = vdwg.mxu0
    %9430 = vmatpush.bf16.msra.mxu0 %v9348
    %9431 = vmatpush.bf16.msra.mxu0 %v9344
    %9432 = vmatpush.bf16.msra.mxu0 %v9340
    %9433 = vmatpush.bf16.msra.mxu0 %v9336
    %9434 = vmatpush.bf16.msra.mxu0 %v9332
    %9435 = vmatpush.bf16.msra.mxu0 %v9328
    %9436 = vmatpush.bf16.msra.mxu0 %v9324
    %9437 = vmatpush.bf16.msra.mxu0 %v9320
    %9438 = vmatmul.bf16.gmra.mxu0 %v9019
    %v9439 = vpop.f32.mrf.mxu0
    %v9440 = vadd.f32 %v9426, %v9439
    %v9441 = vpop.f32.mrf.mxu0
    %v9442 = vadd.f32 %v9428, %v9441
    %9443 = vdwg.mxu0
    %9444 = vmatpush.bf16.msra.mxu0 %v9317
    %9445 = vmatpush.bf16.msra.mxu0 %v9313
    %9446 = vmatpush.bf16.msra.mxu0 %v9309
    %9447 = vmatpush.bf16.msra.mxu0 %v9305
    %9448 = vmatpush.bf16.msra.mxu0 %v9301
    %9449 = vmatpush.bf16.msra.mxu0 %v9297
    %9450 = vmatpush.bf16.msra.mxu0 %v9293
    %9451 = vmatpush.bf16.msra.mxu0 %v9289
    %9452 = vmatmul.bf16.gmra.mxu0 %v9018
    %v9453 = vpop.f32.mrf.mxu0
    %v9454 = vadd.f32 %v9089, %v9453
    %v9455 = vpop.f32.mrf.mxu0
    %v9456 = vadd.f32 %v9089, %v9455
    %9457 = vdwg.mxu0
    %9458 = vmatpush.bf16.msra.mxu0 %v9349
    %9459 = vmatpush.bf16.msra.mxu0 %v9345
    %9460 = vmatpush.bf16.msra.mxu0 %v9341
    %9461 = vmatpush.bf16.msra.mxu0 %v9337
    %9462 = vmatpush.bf16.msra.mxu0 %v9333
    %9463 = vmatpush.bf16.msra.mxu0 %v9329
    %9464 = vmatpush.bf16.msra.mxu0 %v9325
    %9465 = vmatpush.bf16.msra.mxu0 %v9321
    %9466 = vmatmul.bf16.gmra.mxu0 %v9019
    %v9467 = vpop.f32.mrf.mxu0
    %v9468 = vadd.f32 %v9454, %v9467
    %v9469 = vpop.f32.mrf.mxu0
    %v9470 = vadd.f32 %v9456, %v9469
    %9471 = vdwg.mxu0
    %9472 = vmatpush.bf16.msra.mxu0 %v9318
    %9473 = vmatpush.bf16.msra.mxu0 %v9314
    %9474 = vmatpush.bf16.msra.mxu0 %v9310
    %9475 = vmatpush.bf16.msra.mxu0 %v9306
    %9476 = vmatpush.bf16.msra.mxu0 %v9302
    %9477 = vmatpush.bf16.msra.mxu0 %v9298
    %9478 = vmatpush.bf16.msra.mxu0 %v9294
    %9479 = vmatpush.bf16.msra.mxu0 %v9290
    %9480 = vmatmul.bf16.gmra.mxu0 %v9018
    %v9481 = vpop.f32.mrf.mxu0
    %v9482 = vadd.f32 %v9090, %v9481
    %v9483 = vpop.f32.mrf.mxu0
    %v9484 = vadd.f32 %v9090, %v9483
    %9485 = vdwg.mxu0
    %9486 = vmatpush.bf16.msra.mxu0 %v9350
    %9487 = vmatpush.bf16.msra.mxu0 %v9346
    %9488 = vmatpush.bf16.msra.mxu0 %v9342
    %9489 = vmatpush.bf16.msra.mxu0 %v9338
    %9490 = vmatpush.bf16.msra.mxu0 %v9334
    %9491 = vmatpush.bf16.msra.mxu0 %v9330
    %9492 = vmatpush.bf16.msra.mxu0 %v9326
    %9493 = vmatpush.bf16.msra.mxu0 %v9322
    %9494 = vmatmul.bf16.gmra.mxu0 %v9019
    %v9495 = vpop.f32.mrf.mxu0
    %v9496 = vadd.f32 %v9482, %v9495
    %v9497 = vpop.f32.mrf.mxu0
    %v9498 = vadd.f32 %v9484, %v9497
    %9499 = vdwg.mxu0
    %9500 = vmatpush.bf16.msra.mxu0 %v9319
    %9501 = vmatpush.bf16.msra.mxu0 %v9315
    %9502 = vmatpush.bf16.msra.mxu0 %v9311
    %9503 = vmatpush.bf16.msra.mxu0 %v9307
    %9504 = vmatpush.bf16.msra.mxu0 %v9303
    %9505 = vmatpush.bf16.msra.mxu0 %v9299
    %9506 = vmatpush.bf16.msra.mxu0 %v9295
    %9507 = vmatpush.bf16.msra.mxu0 %v9291
    %9508 = vmatmul.bf16.gmra.mxu0 %v9018
    %v9509 = vpop.f32.mrf.mxu0
    %v9510 = vadd.f32 %v9091, %v9509
    %v9511 = vpop.f32.mrf.mxu0
    %v9512 = vadd.f32 %v9091, %v9511
    %9513 = vdwg.mxu0
    %9514 = vmatpush.bf16.msra.mxu0 %v9351
    %9515 = vmatpush.bf16.msra.mxu0 %v9347
    %9516 = vmatpush.bf16.msra.mxu0 %v9343
    %9517 = vmatpush.bf16.msra.mxu0 %v9339
    %9518 = vmatpush.bf16.msra.mxu0 %v9335
    %9519 = vmatpush.bf16.msra.mxu0 %v9331
    %9520 = vmatpush.bf16.msra.mxu0 %v9327
    %9521 = vmatpush.bf16.msra.mxu0 %v9323
    %9522 = vmatmul.bf16.gmra.mxu0 %v9019
    %v9523 = vpop.f32.mrf.mxu0
    %v9524 = vadd.f32 %v9510, %v9523
    %v9525 = vpop.f32.mrf.mxu0
    %v9526 = vadd.f32 %v9512, %v9525
    %9527 = vdwg.mxu0
    %v9528 = vmax.f32 %v9440, 0.0
    %v9529 = vmax.f32 %v9468, 0.0
    %v9530 = vmax.f32 %v9496, 0.0
    %v9531 = vmax.f32 %v9524, 0.0
    %v9532 = vmax.f32 %v9442, 0.0
    %v9533 = vmax.f32 %v9470, 0.0
    %v9534 = vmax.f32 %v9498, 0.0
    %v9535 = vmax.f32 %v9526, 0.0
    %v9536 = vpack.c.bf16 %v9532, %v9528
    %v9537 = vpack.c.bf16 %v9533, %v9529
    %v9538 = vpack.c.bf16 %v9534, %v9530
    %v9539 = vpack.c.bf16 %v9535, %v9531
    %s9540 = scalar_lea.vmem [#allocation16], 1024
    %v9541 = vld [vmem:[%s9540] sm:$0xff]
    %v9542 = vld [vmem:[%s9540 + $0x8] sm:$0xff]
    %v9543 = vld [vmem:[%s9540 + $0x10] sm:$0xff]
    %v9544 = vld [vmem:[%s9540 + $0x18] sm:$0xff]
    %v9545 = vld [vmem:[%s9540 + $0x20] sm:$0xff]
    %v9546 = vld [vmem:[%s9540 + $0x28] sm:$0xff]
    %v9547 = vld [vmem:[%s9540 + $0x30] sm:$0xff]
    %v9548 = vld [vmem:[%s9540 + $0x38] sm:$0xff]
    %v9549 = vld [vmem:[%s9540 + $0x40] sm:$0xff]
    %v9550 = vld [vmem:[%s9540 + $0x48] sm:$0xff]
    %v9551 = vld [vmem:[%s9540 + $0x50] sm:$0xff]
    %v9552 = vld [vmem:[%s9540 + $0x58] sm:$0xff]
    %v9553 = vld [vmem:[%s9540 + $0x60] sm:$0xff]
    %v9554 = vld [vmem:[%s9540 + $0x68] sm:$0xff]
    %v9555 = vld [vmem:[%s9540 + $0x70] sm:$0xff]
    %v9556 = vld [vmem:[%s9540 + $0x78] sm:$0xff]
    %v9557 = vld [vmem:[%s9540 + $0x80] sm:$0xff]
    %v9558 = vld [vmem:[%s9540 + $0x88] sm:$0xff]
    %v9559 = vld [vmem:[%s9540 + $0x90] sm:$0xff]
    %v9560 = vld [vmem:[%s9540 + $0x98] sm:$0xff]
    %v9561 = vld [vmem:[%s9540 + $0xa0] sm:$0xff]
    %v9562 = vld [vmem:[%s9540 + $0xa8] sm:$0xff]
    %v9563 = vld [vmem:[%s9540 + $0xb0] sm:$0xff]
    %v9564 = vld [vmem:[%s9540 + $0xb8] sm:$0xff]
    %v9565 = vld [vmem:[%s9540 + $0xc0] sm:$0xff]
    %v9566 = vld [vmem:[%s9540 + $0xc8] sm:$0xff]
    %v9567 = vld [vmem:[%s9540 + $0xd0] sm:$0xff]
    %v9568 = vld [vmem:[%s9540 + $0xd8] sm:$0xff]
    %v9569 = vld [vmem:[%s9540 + $0xe0] sm:$0xff]
    %v9570 = vld [vmem:[%s9540 + $0xe8] sm:$0xff]
    %v9571 = vld [vmem:[%s9540 + $0xf0] sm:$0xff]
    %v9572 = vld [vmem:[%s9540 + $0xf8] sm:$0xff]
    %v9573 = vld [vmem:[%s9540 + $0x100] sm:$0xff]
    %v9574 = vld [vmem:[%s9540 + $0x108] sm:$0xff]
    %v9575 = vld [vmem:[%s9540 + $0x110] sm:$0xff]
    %v9576 = vld [vmem:[%s9540 + $0x118] sm:$0xff]
    %v9577 = vld [vmem:[%s9540 + $0x120] sm:$0xff]
    %v9578 = vld [vmem:[%s9540 + $0x128] sm:$0xff]
    %v9579 = vld [vmem:[%s9540 + $0x130] sm:$0xff]
    %v9580 = vld [vmem:[%s9540 + $0x138] sm:$0xff]
    %v9581 = vld [vmem:[%s9540 + $0x140] sm:$0xff]
    %v9582 = vld [vmem:[%s9540 + $0x148] sm:$0xff]
    %v9583 = vld [vmem:[%s9540 + $0x150] sm:$0xff]
    %v9584 = vld [vmem:[%s9540 + $0x158] sm:$0xff]
    %v9585 = vld [vmem:[%s9540 + $0x160] sm:$0xff]
    %v9586 = vld [vmem:[%s9540 + $0x168] sm:$0xff]
    %v9587 = vld [vmem:[%s9540 + $0x170] sm:$0xff]
    %v9588 = vld [vmem:[%s9540 + $0x178] sm:$0xff]
    %v9589 = vld [vmem:[%s9540 + $0x180] sm:$0xff]
    %v9590 = vld [vmem:[%s9540 + $0x188] sm:$0xff]
    %v9591 = vld [vmem:[%s9540 + $0x190] sm:$0xff]
    %v9592 = vld [vmem:[%s9540 + $0x198] sm:$0xff]
    %v9593 = vld [vmem:[%s9540 + $0x1a0] sm:$0xff]
    %v9594 = vld [vmem:[%s9540 + $0x1a8] sm:$0xff]
    %v9595 = vld [vmem:[%s9540 + $0x1b0] sm:$0xff]
    %v9596 = vld [vmem:[%s9540 + $0x1b8] sm:$0xff]
    %v9597 = vld [vmem:[%s9540 + $0x1c0] sm:$0xff]
    %v9598 = vld [vmem:[%s9540 + $0x1c8] sm:$0xff]
    %v9599 = vld [vmem:[%s9540 + $0x1d0] sm:$0xff]
    %v9600 = vld [vmem:[%s9540 + $0x1d8] sm:$0xff]
    %v9601 = vld [vmem:[%s9540 + $0x1e0] sm:$0xff]
    %v9602 = vld [vmem:[%s9540 + $0x1e8] sm:$0xff]
    %v9603 = vld [vmem:[%s9540 + $0x1f0] sm:$0xff]
    %v9604 = vld [vmem:[%s9540 + $0x1f8] sm:$0xff]
    %s9605 = scalar_lea.vmem [#allocation17], 4
    %v9606 = vld [vmem:[%s9605] sm:$0x3]
    %v9608 = vperm.slane %v9606, 0
    %v9609 = vperm.slane %v9606, 1
    %v9676 = vunpack.c.l.b16 %v9541
    %v9677 = vunpack.c.h.b16 %v9541
    %v9678 = vunpack.c.l.b16 %v9542
    %v9679 = vunpack.c.h.b16 %v9542
    %v9680 = vunpack.c.l.b16 %v9543
    %v9681 = vunpack.c.h.b16 %v9543
    %v9682 = vunpack.c.l.b16 %v9544
    %v9683 = vunpack.c.h.b16 %v9544
    %v9684 = vunpack.c.l.b16 %v9545
    %v9685 = vunpack.c.h.b16 %v9545
    %v9686 = vunpack.c.l.b16 %v9546
    %v9687 = vunpack.c.h.b16 %v9546
    %v9688 = vunpack.c.l.b16 %v9547
    %v9689 = vunpack.c.h.b16 %v9547
    %v9690 = vunpack.c.l.b16 %v9548
    %v9691 = vunpack.c.h.b16 %v9548
    %v9692 = vunpack.c.l.b16 %v9549
    %v9693 = vunpack.c.h.b16 %v9549
    %v9694 = vunpack.c.l.b16 %v9550
    %v9695 = vunpack.c.h.b16 %v9550
    %v9696 = vunpack.c.l.b16 %v9551
    %v9697 = vunpack.c.h.b16 %v9551
    %v9698 = vunpack.c.l.b16 %v9552
    %v9699 = vunpack.c.h.b16 %v9552
    %v9700 = vunpack.c.l.b16 %v9553
    %v9701 = vunpack.c.h.b16 %v9553
    %v9702 = vunpack.c.l.b16 %v9554
    %v9703 = vunpack.c.h.b16 %v9554
    %v9704 = vunpack.c.l.b16 %v9555
    %v9705 = vunpack.c.h.b16 %v9555
    %v9706 = vunpack.c.l.b16 %v9556
    %v9707 = vunpack.c.h.b16 %v9556
    %v9708 = vunpack.c.l.b16 %v9557
    %v9709 = vunpack.c.h.b16 %v9557
    %v9710 = vunpack.c.l.b16 %v9558
    %v9711 = vunpack.c.h.b16 %v9558
    %v9712 = vunpack.c.l.b16 %v9559
    %v9713 = vunpack.c.h.b16 %v9559
    %v9714 = vunpack.c.l.b16 %v9560
    %v9715 = vunpack.c.h.b16 %v9560
    %v9716 = vunpack.c.l.b16 %v9561
    %v9717 = vunpack.c.h.b16 %v9561
    %v9718 = vunpack.c.l.b16 %v9562
    %v9719 = vunpack.c.h.b16 %v9562
    %v9720 = vunpack.c.l.b16 %v9563
    %v9721 = vunpack.c.h.b16 %v9563
    %v9722 = vunpack.c.l.b16 %v9564
    %v9723 = vunpack.c.h.b16 %v9564
    %v9724 = vunpack.c.l.b16 %v9565
    %v9725 = vunpack.c.h.b16 %v9565
    %v9726 = vunpack.c.l.b16 %v9566
    %v9727 = vunpack.c.h.b16 %v9566
    %v9728 = vunpack.c.l.b16 %v9567
    %v9729 = vunpack.c.h.b16 %v9567
    %v9730 = vunpack.c.l.b16 %v9568
    %v9731 = vunpack.c.h.b16 %v9568
    %v9732 = vunpack.c.l.b16 %v9569
    %v9733 = vunpack.c.h.b16 %v9569
    %v9734 = vunpack.c.l.b16 %v9570
    %v9735 = vunpack.c.h.b16 %v9570
    %v9736 = vunpack.c.l.b16 %v9571
    %v9737 = vunpack.c.h.b16 %v9571
    %v9738 = vunpack.c.l.b16 %v9572
    %v9739 = vunpack.c.h.b16 %v9572
    %v9740 = vunpack.c.l.b16 %v9573
    %v9741 = vunpack.c.h.b16 %v9573
    %v9742 = vunpack.c.l.b16 %v9574
    %v9743 = vunpack.c.h.b16 %v9574
    %v9744 = vunpack.c.l.b16 %v9575
    %v9745 = vunpack.c.h.b16 %v9575
    %v9746 = vunpack.c.l.b16 %v9576
    %v9747 = vunpack.c.h.b16 %v9576
    %v9748 = vunpack.c.l.b16 %v9577
    %v9749 = vunpack.c.h.b16 %v9577
    %v9750 = vunpack.c.l.b16 %v9578
    %v9751 = vunpack.c.h.b16 %v9578
    %v9752 = vunpack.c.l.b16 %v9579
    %v9753 = vunpack.c.h.b16 %v9579
    %v9754 = vunpack.c.l.b16 %v9580
    %v9755 = vunpack.c.h.b16 %v9580
    %v9756 = vunpack.c.l.b16 %v9581
    %v9757 = vunpack.c.h.b16 %v9581
    %v9758 = vunpack.c.l.b16 %v9582
    %v9759 = vunpack.c.h.b16 %v9582
    %v9760 = vunpack.c.l.b16 %v9583
    %v9761 = vunpack.c.h.b16 %v9583
    %v9762 = vunpack.c.l.b16 %v9584
    %v9763 = vunpack.c.h.b16 %v9584
    %v9764 = vunpack.c.l.b16 %v9585
    %v9765 = vunpack.c.h.b16 %v9585
    %v9766 = vunpack.c.l.b16 %v9586
    %v9767 = vunpack.c.h.b16 %v9586
    %v9768 = vunpack.c.l.b16 %v9587
    %v9769 = vunpack.c.h.b16 %v9587
    %v9770 = vunpack.c.l.b16 %v9588
    %v9771 = vunpack.c.h.b16 %v9588
    %v9772 = vunpack.c.l.b16 %v9589
    %v9773 = vunpack.c.h.b16 %v9589
    %v9774 = vunpack.c.l.b16 %v9590
    %v9775 = vunpack.c.h.b16 %v9590
    %v9776 = vunpack.c.l.b16 %v9591
    %v9777 = vunpack.c.h.b16 %v9591
    %v9778 = vunpack.c.l.b16 %v9592
    %v9779 = vunpack.c.h.b16 %v9592
    %v9780 = vunpack.c.l.b16 %v9593
    %v9781 = vunpack.c.h.b16 %v9593
    %v9782 = vunpack.c.l.b16 %v9594
    %v9783 = vunpack.c.h.b16 %v9594
    %v9784 = vunpack.c.l.b16 %v9595
    %v9785 = vunpack.c.h.b16 %v9595
    %v9786 = vunpack.c.l.b16 %v9596
    %v9787 = vunpack.c.h.b16 %v9596
    %v9788 = vunpack.c.l.b16 %v9597
    %v9789 = vunpack.c.h.b16 %v9597
    %v9790 = vunpack.c.l.b16 %v9598
    %v9791 = vunpack.c.h.b16 %v9598
    %v9792 = vunpack.c.l.b16 %v9599
    %v9793 = vunpack.c.h.b16 %v9599
    %v9794 = vunpack.c.l.b16 %v9600
    %v9795 = vunpack.c.h.b16 %v9600
    %v9796 = vunpack.c.l.b16 %v9601
    %v9797 = vunpack.c.h.b16 %v9601
    %v9798 = vunpack.c.l.b16 %v9602
    %v9799 = vunpack.c.h.b16 %v9602
    %v9800 = vunpack.c.l.b16 %v9603
    %v9801 = vunpack.c.h.b16 %v9603
    %v9802 = vunpack.c.l.b16 %v9604
    %v9803 = vunpack.c.h.b16 %v9604
    %v9804 = vpack.c.b16 %v9678, %v9676
    %v9805 = vpack.c.b16 %v9679, %v9677
    %v9806 = vpack.c.b16 %v9682, %v9680
    %v9807 = vpack.c.b16 %v9683, %v9681
    %v9808 = vpack.c.b16 %v9686, %v9684
    %v9809 = vpack.c.b16 %v9687, %v9685
    %v9810 = vpack.c.b16 %v9690, %v9688
    %v9811 = vpack.c.b16 %v9691, %v9689
    %v9812 = vpack.c.b16 %v9694, %v9692
    %v9813 = vpack.c.b16 %v9695, %v9693
    %v9814 = vpack.c.b16 %v9698, %v9696
    %v9815 = vpack.c.b16 %v9699, %v9697
    %v9816 = vpack.c.b16 %v9702, %v9700
    %v9817 = vpack.c.b16 %v9703, %v9701
    %v9818 = vpack.c.b16 %v9706, %v9704
    %v9819 = vpack.c.b16 %v9707, %v9705
    %v9820 = vpack.c.b16 %v9710, %v9708
    %v9821 = vpack.c.b16 %v9711, %v9709
    %v9822 = vpack.c.b16 %v9714, %v9712
    %v9823 = vpack.c.b16 %v9715, %v9713
    %v9824 = vpack.c.b16 %v9718, %v9716
    %v9825 = vpack.c.b16 %v9719, %v9717
    %v9826 = vpack.c.b16 %v9722, %v9720
    %v9827 = vpack.c.b16 %v9723, %v9721
    %v9828 = vpack.c.b16 %v9726, %v9724
    %v9829 = vpack.c.b16 %v9727, %v9725
    %v9830 = vpack.c.b16 %v9730, %v9728
    %v9831 = vpack.c.b16 %v9731, %v9729
    %v9832 = vpack.c.b16 %v9734, %v9732
    %v9833 = vpack.c.b16 %v9735, %v9733
    %v9834 = vpack.c.b16 %v9738, %v9736
    %v9835 = vpack.c.b16 %v9739, %v9737
    %v9836 = vpack.c.b16 %v9742, %v9740
    %v9837 = vpack.c.b16 %v9743, %v9741
    %v9838 = vpack.c.b16 %v9746, %v9744
    %v9839 = vpack.c.b16 %v9747, %v9745
    %v9840 = vpack.c.b16 %v9750, %v9748
    %v9841 = vpack.c.b16 %v9751, %v9749
    %v9842 = vpack.c.b16 %v9754, %v9752
    %v9843 = vpack.c.b16 %v9755, %v9753
    %v9844 = vpack.c.b16 %v9758, %v9756
    %v9845 = vpack.c.b16 %v9759, %v9757
    %v9846 = vpack.c.b16 %v9762, %v9760
    %v9847 = vpack.c.b16 %v9763, %v9761
    %v9848 = vpack.c.b16 %v9766, %v9764
    %v9849 = vpack.c.b16 %v9767, %v9765
    %v9850 = vpack.c.b16 %v9770, %v9768
    %v9851 = vpack.c.b16 %v9771, %v9769
    %v9852 = vpack.c.b16 %v9774, %v9772
    %v9853 = vpack.c.b16 %v9775, %v9773
    %v9854 = vpack.c.b16 %v9778, %v9776
    %v9855 = vpack.c.b16 %v9779, %v9777
    %v9856 = vpack.c.b16 %v9782, %v9780
    %v9857 = vpack.c.b16 %v9783, %v9781
    %v9858 = vpack.c.b16 %v9786, %v9784
    %v9859 = vpack.c.b16 %v9787, %v9785
    %v9860 = vpack.c.b16 %v9790, %v9788
    %v9861 = vpack.c.b16 %v9791, %v9789
    %v9862 = vpack.c.b16 %v9794, %v9792
    %v9863 = vpack.c.b16 %v9795, %v9793
    %v9864 = vpack.c.b16 %v9798, %v9796
    %v9865 = vpack.c.b16 %v9799, %v9797
    %v9866 = vpack.c.b16 %v9802, %v9800
    %v9867 = vpack.c.b16 %v9803, %v9801
    %9932 = vmatpush.bf16.msra.mxu0 %v9818
    %9933 = vmatpush.bf16.msra.mxu0 %v9816
    %9934 = vmatpush.bf16.msra.mxu0 %v9814
    %9935 = vmatpush.bf16.msra.mxu0 %v9812
    %9936 = vmatpush.bf16.msra.mxu0 %v9810
    %9937 = vmatpush.bf16.msra.mxu0 %v9808
    %9938 = vmatpush.bf16.msra.mxu0 %v9806
    %9939 = vmatpush.bf16.msra.mxu0 %v9804
    %9940 = vmatmul.bf16.gmra.mxu0 %v9536
    %v9941 = vpop.f32.mrf.mxu0
    %v9942 = vadd.f32 %v9608, %v9941
    %v9943 = vpop.f32.mrf.mxu0
    %v9944 = vadd.f32 %v9608, %v9943
    %9945 = vdwg.mxu0
    %9946 = vmatpush.bf16.msra.mxu0 %v9834
    %9947 = vmatpush.bf16.msra.mxu0 %v9832
    %9948 = vmatpush.bf16.msra.mxu0 %v9830
    %9949 = vmatpush.bf16.msra.mxu0 %v9828
    %9950 = vmatpush.bf16.msra.mxu0 %v9826
    %9951 = vmatpush.bf16.msra.mxu0 %v9824
    %9952 = vmatpush.bf16.msra.mxu0 %v9822
    %9953 = vmatpush.bf16.msra.mxu0 %v9820
    %9954 = vmatmul.bf16.gmra.mxu0 %v9537
    %v9955 = vpop.f32.mrf.mxu0
    %v9956 = vadd.f32 %v9942, %v9955
    %v9957 = vpop.f32.mrf.mxu0
    %v9958 = vadd.f32 %v9944, %v9957
    %9959 = vdwg.mxu0
    %9960 = vmatpush.bf16.msra.mxu0 %v9850
    %9961 = vmatpush.bf16.msra.mxu0 %v9848
    %9962 = vmatpush.bf16.msra.mxu0 %v9846
    %9963 = vmatpush.bf16.msra.mxu0 %v9844
    %9964 = vmatpush.bf16.msra.mxu0 %v9842
    %9965 = vmatpush.bf16.msra.mxu0 %v9840
    %9966 = vmatpush.bf16.msra.mxu0 %v9838
    %9967 = vmatpush.bf16.msra.mxu0 %v9836
    %9968 = vmatmul.bf16.gmra.mxu0 %v9538
    %v9969 = vpop.f32.mrf.mxu0
    %v9970 = vadd.f32 %v9956, %v9969
    %v9971 = vpop.f32.mrf.mxu0
    %v9972 = vadd.f32 %v9958, %v9971
    %9973 = vdwg.mxu0
    %9974 = vmatpush.bf16.msra.mxu0 %v9866
    %9975 = vmatpush.bf16.msra.mxu0 %v9864
    %9976 = vmatpush.bf16.msra.mxu0 %v9862
    %9977 = vmatpush.bf16.msra.mxu0 %v9860
    %9978 = vmatpush.bf16.msra.mxu0 %v9858
    %9979 = vmatpush.bf16.msra.mxu0 %v9856
    %9980 = vmatpush.bf16.msra.mxu0 %v9854
    %9981 = vmatpush.bf16.msra.mxu0 %v9852
    %9982 = vmatmul.bf16.gmra.mxu0 %v9539
    %v9983 = vpop.f32.mrf.mxu0
    %v9984 = vadd.f32 %v9970, %v9983
    %v9985 = vpop.f32.mrf.mxu0
    %v9986 = vadd.f32 %v9972, %v9985
    %9987 = vdwg.mxu0
    %9988 = vmatpush.bf16.msra.mxu0 %v9819
    %9989 = vmatpush.bf16.msra.mxu0 %v9817
    %9990 = vmatpush.bf16.msra.mxu0 %v9815
    %9991 = vmatpush.bf16.msra.mxu0 %v9813
    %9992 = vmatpush.bf16.msra.mxu0 %v9811
    %9993 = vmatpush.bf16.msra.mxu0 %v9809
    %9994 = vmatpush.bf16.msra.mxu0 %v9807
    %9995 = vmatpush.bf16.msra.mxu0 %v9805
    %9996 = vmatmul.bf16.gmra.mxu0 %v9536
    %v9997 = vpop.f32.mrf.mxu0
    %v9998 = vadd.f32 %v9609, %v9997
    %v9999 = vpop.f32.mrf.mxu0
    %v10000 = vadd.f32 %v9609, %v9999
    %10001 = vdwg.mxu0
    %10002 = vmatpush.bf16.msra.mxu0 %v9835
    %10003 = vmatpush.bf16.msra.mxu0 %v9833
    %10004 = vmatpush.bf16.msra.mxu0 %v9831
    %10005 = vmatpush.bf16.msra.mxu0 %v9829
    %10006 = vmatpush.bf16.msra.mxu0 %v9827
    %10007 = vmatpush.bf16.msra.mxu0 %v9825
    %10008 = vmatpush.bf16.msra.mxu0 %v9823
    %10009 = vmatpush.bf16.msra.mxu0 %v9821
    %10010 = vmatmul.bf16.gmra.mxu0 %v9537
    %v10011 = vpop.f32.mrf.mxu0
    %v10012 = vadd.f32 %v9998, %v10011
    %v10013 = vpop.f32.mrf.mxu0
    %v10014 = vadd.f32 %v10000, %v10013
    %10015 = vdwg.mxu0
    %10016 = vmatpush.bf16.msra.mxu0 %v9851
    %10017 = vmatpush.bf16.msra.mxu0 %v9849
    %10018 = vmatpush.bf16.msra.mxu0 %v9847
    %10019 = vmatpush.bf16.msra.mxu0 %v9845
    %10020 = vmatpush.bf16.msra.mxu0 %v9843
    %10021 = vmatpush.bf16.msra.mxu0 %v9841
    %10022 = vmatpush.bf16.msra.mxu0 %v9839
    %10023 = vmatpush.bf16.msra.mxu0 %v9837
    %10024 = vmatmul.bf16.gmra.mxu0 %v9538
    %v10025 = vpop.f32.mrf.mxu0
    %v10026 = vadd.f32 %v10012, %v10025
    %v10027 = vpop.f32.mrf.mxu0
    %v10028 = vadd.f32 %v10014, %v10027
    %10029 = vdwg.mxu0
    %10030 = vmatpush.bf16.msra.mxu0 %v9867
    %10031 = vmatpush.bf16.msra.mxu0 %v9865
    %10032 = vmatpush.bf16.msra.mxu0 %v9863
    %10033 = vmatpush.bf16.msra.mxu0 %v9861
    %10034 = vmatpush.bf16.msra.mxu0 %v9859
    %10035 = vmatpush.bf16.msra.mxu0 %v9857
    %10036 = vmatpush.bf16.msra.mxu0 %v9855
    %10037 = vmatpush.bf16.msra.mxu0 %v9853
    %10038 = vmatmul.bf16.gmra.mxu0 %v9539
    %v10039 = vpop.f32.mrf.mxu0
    %v10040 = vadd.f32 %v10026, %v10039
    %v10041 = vpop.f32.mrf.mxu0
    %v10042 = vadd.f32 %v10028, %v10041
    %10043 = vdwg.mxu0
    %v10044 = vadd.f32 %v9014, %v9984
    %v10045 = vadd.f32 %v9015, %v10040
    %v10046 = vadd.f32 %v9016, %v9986
    %v10047 = vadd.f32 %v9017, %v10042
    %s10048 = scalar_lea.vmem [#allocation25], 4
    %v10049 = vld [vmem:[%s10048] sm:$0x3]
    %s10050 = scalar_lea.vmem [#allocation26], 4
    %v10051 = vld [vmem:[%s10050] sm:$0x3]
    %v10052 = vadd.f32 %v10044, %v10045
    %10053 = vadd.xlane.f32.xlu0 %v10052
    %v10054 = vpop.xlane.xlu0 %10053
    %v10055 = vadd.f32 %v10046, %v10047
    %10056 = vadd.xlane.f32.xlu0 %v10055
    %v10057 = vpop.xlane.xlu0 %10056
    %v10058 = vmul.f32 %v10054, %v2327
    %v10059 = vmul.f32 %v10057, %v2327
    %v10060 = vmul.f32 %v10044, %v10044
    %v10061 = vmul.f32 %v10045, %v10045
    %v10062 = vmul.f32 %v10046, %v10046
    %v10063 = vmul.f32 %v10047, %v10047
    %v10064 = vadd.f32 %v10060, %v10061
    %10065 = vadd.xlane.f32.xlu0 %v10064
    %v10066 = vpop.xlane.xlu0 %10065
    %v10067 = vadd.f32 %v10062, %v10063
    %10068 = vadd.xlane.f32.xlu0 %v10067
    %v10069 = vpop.xlane.xlu0 %10068
    %v10070 = vmul.f32 %v10066, %v2327
    %v10071 = vmul.f32 %v10069, %v2327
    %v10072 = vmul.f32 %v10058, %v10058
    %v10073 = vmul.f32 %v10059, %v10059
    %v10074 = vsub.f32 %v10070, %v10072
    %v10075 = vsub.f32 %v10071, %v10073
    %v10076 = vsub.f32 %v10044, %v10058
    %v10077 = vsub.f32 %v10045, %v10058
    %v10078 = vsub.f32 %v10046, %v10059
    %v10079 = vsub.f32 %v10047, %v10059
    %v10080 = vadd.f32 %v10074, 1e-05
    %v10081 = vadd.f32 %v10075, 1e-05
    %v10082 = vrsqrt.pop %v10080
    %v10083 = vmul.f32 %v10082, %v10080
    %v10084 = vmul.f32 %v10083, %v10082
    %v10085 = vmul.f32 0.5, %v10084
    %v10086 = vsub.f32 1.5, %v10085
    %v10087 = vmul.f32 %v10082, %v10086
    %vm10088 = vweird.f32 %v10080
    %vm10089 = vweird.f32 %v10082
    %vm10090 = vmor %vm10088, %vm10089
    %v10091 = vsel %vm10090, %v10082, %v10087
    %v10092 = vrsqrt.pop %v10081
    %v10093 = vmul.f32 %v10092, %v10081
    %v10094 = vmul.f32 %v10093, %v10092
    %v10095 = vmul.f32 0.5, %v10094
    %v10096 = vsub.f32 1.5, %v10095
    %v10097 = vmul.f32 %v10092, %v10096
    %vm10098 = vweird.f32 %v10081
    %vm10099 = vweird.f32 %v10092
    %vm10100 = vmor %vm10098, %vm10099
    %v10101 = vsel %vm10100, %v10092, %v10097
    %v10102 = vmul.f32 %v10076, %v10091
    %v10103 = vmul.f32 %v10077, %v10091
    %v10104 = vmul.f32 %v10078, %v10101
    %v10105 = vmul.f32 %v10079, %v10101
    %v10107 = vperm.slane %v10049, 0
    %v10108 = vperm.slane %v10049, 1
    %v10111 = vmul.f32 %v10102, %v10107
    %v10112 = vmul.f32 %v10103, %v10108
    %v10113 = vmul.f32 %v10104, %v10107
    %v10114 = vmul.f32 %v10105, %v10108
    %v10116 = vperm.slane %v10051, 0
    %v10117 = vperm.slane %v10051, 1
    %v10120 = vadd.f32 %v10111, %v10116
    %v10121 = vadd.f32 %v10112, %v10117
    %v10122 = vadd.f32 %v10113, %v10116
    %v10123 = vadd.f32 %v10114, %v10117
    %v10124 = vpack.c.bf16 %v10121, %v10120
    %v10125 = vpack.c.bf16 %v10123, %v10122
    %10126 = vst [vmem:[#allocation28] sm:$0xff] %v10124
    %10127 = vst [vmem:[#allocation28 + $0x8] sm:$0xff] %v10125
    // Predicated region
    $region130: #{tpu_custom_call.1} parent=1 // pred_check
      _
    $region131: #{tpu_custom_call.1} parent=1 // pred_check_branch
      %10129 = sbr.rel (0) target = $region133
    $region132: #{tpu_custom_call.1} parent=1 // pred_region
      %10131 = vsyncadd [#allocation4], 0
      %s10132 = sshll.u32 [#allocation28], 4
      %s10133 = int_to_ptr.vmem [resolvable:$true] %s10132
      %s10134 = sshll.u32 %s16, 4
      %s10135 = int_to_ptr.hbm [resolvable:$true] %s10134
      %10140 = dma.vmem_to_hbm [thread:$0]  %s10133, 256, %s10135, [#allocation4], 128, 128, 8
    $region133: #{tpu_custom_call.1} parent=1 // pred_fallthru
      _
    // Predicated region
    $region134: #{tpu_custom_call.1} parent=1 // pred_check
      _
    $region135: #{tpu_custom_call.1} parent=1 // pred_check_branch
      %10142 = sbr.rel (0) target = $region137
    $region136: #{tpu_custom_call.1} parent=1 // pred_region
      %10144 = dma.done [#allocation4], 256
    $region137: #{tpu_custom_call.1} parent=1 // pred_fallthru
      _
    %10145 = vsyncpa [#allocation3], 1
    %10146 = vsyncpa [#allocation6], 1
    %10147 = vsyncpa [#allocation9], 1
    %10148 = vsyncpa [#allocation12], 1
    %10149 = vsyncpa [#allocation15], 1
    %10150 = vsyncpa [#allocation18], 1
    %10151 = vsyncpa [#allocation21], 1
    %10152 = vsyncpa [#allocation24], 1
    %10153 = vsyncpa [#allocation27], 1
    %10154 = vsyncpa [#allocation4], 1

</llo_original>
